<compile_context>
chip_gen: v7x
topology: tpu7x:2x2x1
jax: 0.10.0
libtpu: 0.0.40
codegen_flags: <defaults>
</compile_context>

<pallas_src>
import functools

import jax
import jax.numpy as jnp
from jax import lax
from jax.experimental import pallas as pl
from jax.experimental.pallas import tpu as pltpu

EPS = 1e-5
_MiB = 1024 * 1024
_GROUP_CIN_MAX = 96     # below this, group the 3 dx taps per dy (K = 3*Cin)
_MXU_N = 256            # fuse downsample columns when 2*tile_cout <= this


# ------------------------------ VMEM budgeting ------------------------------
def _vmem_cap_bytes():
    """~75% of detected per-core VMEM (leave headroom for Mosaic scratch)."""
    try:
        cap = int(pltpu.get_tpu_info().vmem_capacity_bytes)
    except Exception:
        cap = 64 * _MiB                       # conservative (v7x per-TC) fallback
    return max(32 * _MiB, (3 * cap) // 4)


def _vmem_limit_bytes(estimate_bytes):
    cap = _vmem_cap_bytes()
    want = max(24 * _MiB, 2 * int(estimate_bytes))
    return int(min(cap, want))


def _pick_co_tile(cout):
    """Output-channel tile: lane-aligned (mult of 128) and >=3 pipeline steps,
    otherwise keep the full width (small/indivisible channel counts)."""
    if cout % 256 == 0 and cout >= 768:
        return 256
    if cout % 128 == 0 and cout >= 384:
        return 128
    return cout


# --------------------------- conv3x3 stage kernel ---------------------------
def _make_conv_stage_kernel(H, W, Cin, tco, group_mode, apply_affine,
                            with_ds, fuse_ds, cdt):
    f32 = jnp.float32

    def kernel(*args):
        it = iter(args)
        x_ref = next(it)
        scale_ref = next(it) if apply_affine else None
        shift_ref = next(it) if apply_affine else None
        w_ref = next(it)
        wd_ref = next(it) if with_ds else None
        y_ref = next(it)
        st_ref = next(it)
        yd_ref = next(it) if with_ds else None
        std_ref = next(it) if with_ds else None
        padbuf = next(it)

        # ---- stage input -> padded scratch (once per image; co tiles reuse) ----
        @pl.when(pl.program_id(1) == 0)
        def _fill_padbuf():
            zrow = jnp.zeros((1, W + 2, Cin), cdt)
            zcol = jnp.zeros((H, 1, Cin), cdt)
            padbuf[0:1, :, :] = zrow
            padbuf[H + 1:H + 2, :, :] = zrow
            padbuf[1:H + 1, 0:1, :] = zcol
            padbuf[1:H + 1, W + 1:W + 2, :] = zcol
            if apply_affine:
                # previous stage's BN affine + ReLU, applied in row chunks so no
                # full-image f32 temporary is kept live.
                scale = scale_ref[...].reshape(1, 1, Cin).astype(f32)
                shift = shift_ref[...].reshape(1, 1, Cin).astype(f32)
                rg = next((g for g in (16, 8, 4) if H % g == 0), None)
                if rg is None:
                    xf = x_ref[...].astype(f32)
                    xf = jnp.maximum(xf * scale + shift, 0.0)
                    padbuf[1:H + 1, 1:W + 1, :] = xf.astype(cdt)
                else:
                    def body(i, carry):
                        r = pl.multiple_of(i * rg, rg)
                        ch = x_ref[pl.ds(r, rg), :, :].astype(f32)
                        ch = jnp.maximum(ch * scale + shift, 0.0)
                        padbuf[pl.ds(r + 1, rg), 1:W + 1, :] = ch.astype(cdt)
                        return carry
                    lax.fori_loop(0, H // rg, body, 0)
            else:
                padbuf[1:H + 1, 1:W + 1, :] = x_ref[...].astype(cdt)

        # ---- conv: accumulate tap matmuls from shifted padbuf views ----
        accd = None
        if group_mode:
            # 3 matmuls with K = 3*Cin (good MXU K-utilization at small Cin)
            def slab(dy):
                parts = [padbuf[dy:dy + H, dx:dx + W, :] for dx in range(3)]
                return jnp.concatenate(parts, axis=-1).reshape(H * W, 3 * Cin)

            acc = jnp.dot(slab(0), w_ref[0], preferred_element_type=f32)
            s1 = slab(1)
            if fuse_ds:
                # downsample weight rides in extra MXU output columns of the
                # dy=1 (center-containing) group; split the accumulator.
                wmid = jnp.concatenate([w_ref[1], wd_ref[...]], axis=-1)
                res = jnp.dot(s1, wmid, preferred_element_type=f32)
                acc = acc + res[:, :tco]
                accd = res[:, tco:]
            else:
                acc = acc + jnp.dot(s1, w_ref[1], preferred_element_type=f32)
                if with_ds:
                    accd = jnp.dot(s1, wd_ref[...], preferred_element_type=f32)
            acc = acc + jnp.dot(slab(2), w_ref[2], preferred_element_type=f32)
        else:
            # 9 single-tap matmuls (K = Cin); no concat/copy traffic at large Cin
            acc = None
            for t in range(9):
                dy, dx = divmod(t, 3)
                view = padbuf[dy:dy + H, dx:dx + W, :].reshape(H * W, Cin)
                if t == 4 and fuse_ds:
                    wc = jnp.concatenate([w_ref[4], wd_ref[...]], axis=-1)
                    res = jnp.dot(view, wc, preferred_element_type=f32)
                    contrib = res[:, :tco]
                    accd = res[:, tco:]
                else:
                    contrib = jnp.dot(view, w_ref[t], preferred_element_type=f32)
                acc = contrib if acc is None else acc + contrib
            if with_ds and not fuse_ds:
                center = padbuf[1:1 + H, 1:1 + W, :].reshape(H * W, Cin)
                accd = jnp.dot(center, wd_ref[...], preferred_element_type=f32)

        # ---- store raw conv output + one-pass BN statistics ----
        y_ref[...] = acc.reshape(H, W, tco).astype(cdt)
        st_ref[0:1, :] = jnp.sum(acc, axis=0, keepdims=True)
        st_ref[1:2, :] = jnp.sum(acc * acc, axis=0, keepdims=True)
        if with_ds:
            yd_ref[...] = accd.reshape(H, W, tco).astype(cdt)
            std_ref[0:1, :] = jnp.sum(accd, axis=0, keepdims=True)
            std_ref[1:2, :] = jnp.sum(accd * accd, axis=0, keepdims=True)

    return kernel


def _conv3x3_stage(x, w, scale=None, shift=None, wd=None, *, compute_dtype):
    """3x3 conv of (optionally BN-affine+ReLU'd) x.

    Returns the raw (pre-BN) conv output plus per-image per-channel
    (sum, sumsq); with `wd`, also the raw 1x1 downsample output and its stats.
    """
    N, H, W, Cin = x.shape
    group_mode = (w.shape[0] == 3)
    Cout = w.shape[2]
    tco = _pick_co_tile(Cout)
    n_co = Cout // tco
    with_ds = wd is not None
    fuse_ds = with_ds and (2 * tco <= _MXU_N)
    apply_affine = scale is not None
    cdt = compute_dtype
    isz = jnp.dtype(cdt).itemsize

    inputs = [x]
    in_specs = [pl.BlockSpec((None, H, W, Cin), lambda b, c: (b, 0, 0, 0))]
    if apply_affine:
        inputs += [scale, shift]
        vs = pl.BlockSpec((1, Cin), lambda b, c: (0, 0))
        in_specs += [vs, vs]
    inputs.append(w)
    if group_mode:
        in_specs.append(pl.BlockSpec((3, 3 * Cin, tco), lambda b, c: (0, 0, c)))
    else:
        in_specs.append(pl.BlockSpec((9, Cin, tco), lambda b, c: (0, 0, c)))
    if with_ds:
        inputs.append(wd)
        in_specs.append(pl.BlockSpec((wd.shape[0], tco), lambda b, c: (0, c)))

    y_shape = jax.ShapeDtypeStruct((N, H, W, Cout), cdt)
    st_shape = jax.ShapeDtypeStruct((N, 2, Cout), jnp.float32)
    y_spec = pl.BlockSpec((None, H, W, tco), lambda b, c: (b, 0, 0, c))
    st_spec = pl.BlockSpec((None, 2, tco), lambda b, c: (b, 0, c))
    out_shapes = [y_shape, st_shape]
    out_specs = [y_spec, st_spec]
    if with_ds:
        out_shapes += [y_shape, st_shape]
        out_specs += [y_spec, st_spec]

    kernel = _make_conv_stage_kernel(H, W, Cin, tco, group_mode, apply_affine,
                                     with_ds, fuse_ds, cdt)

    flops = 2 * N * H * W * (9 * Cin) * Cout
    bytes_accessed = (N * H * W * Cin * isz + 9 * Cin * Cout * isz
                      + N * H * W * Cout * isz + N * 2 * Cout * 4)
    if with_ds:
        flops += 2 * N * H * W * Cin * Cout
        bytes_accessed += (wd.shape[0] * Cout * isz + N * H * W * Cout * isz
                           + N * 2 * Cout * 4)

    # per-grid-step VMEM: double-buffered blocks + scratch + live values
    blk = (H * W * Cin * isz
           + 9 * Cin * tco * isz
           + (wd.shape[0] * tco * isz if with_ds else 0)
           + (2 if with_ds else 1) * (H * W * tco * isz + 2 * tco * 4))
    live = ((H + 2) * (W + 2) * Cin * isz                  # padded scratch
            + (3 if group_mode else 1) * H * W * Cin * isz  # largest tap slab
            + (2 if with_ds else 1) * H * W * tco * 4       # f32 accumulators
            + (2 * H * W * tco * 4 if fuse_ds else 0)       # fused wide result
            + H * W * Cin * 4)                              # affine chunk bound
    vmem = _vmem_limit_bytes(2 * blk + live)

    return pl.pallas_call(
        kernel,
        grid=(N, n_co),
        in_specs=in_specs,
        out_specs=tuple(out_specs),
        out_shape=tuple(out_shapes),
        scratch_shapes=[pltpu.VMEM((H + 2, W + 2, Cin), cdt)],
        compiler_params=pltpu.CompilerParams(
            dimension_semantics=("parallel", "arbitrary"),
            vmem_limit_bytes=vmem),
        cost_estimate=pl.CostEstimate(flops=flops, transcendentals=0,
                                      bytes_accessed=bytes_accessed),
    )(*inputs)


# ------------------- epilogue: bn3 + bn_d + add + relu + pool ----------------
def _make_epilogue_kernel(H, W, P):
    Ho, Wo = H // 2, W // 2

    def kernel(y3_ref, yd_ref, s3_ref, t3_ref, sd_ref, td_ref, o_ref):
        s3 = s3_ref[...]
        t3 = t3_ref[...]
        sd = sd_ref[...]
        td = td_ref[...]

        def fused_cols(start):
            # strided read picks every other W column -> one half of each 2x2 window
            a = y3_ref[:, pl.ds(start, Wo, 2), :].astype(jnp.float32)
            b = yd_ref[:, pl.ds(start, Wo, 2), :].astype(jnp.float32)
            return jnp.maximum(a * s3 + t3 + b * sd + td, 0.0)   # (H, Wo, P)

        wmax = jnp.maximum(fused_cols(0), fused_cols(1))
        wmax = wmax[:2 * Ho]                         # floor pooling for odd H
        r = wmax.reshape(Ho, 2, Wo, P)               # split of the major axis only
        o_ref[...] = jnp.maximum(r[:, 0, :, :], r[:, 1, :, :]).astype(o_ref.dtype)

    return kernel


def _epilogue(y3, yd, s3, t3, sd, td, *, out_dtype):
    N, H, W, P = y3.shape
    Ho, Wo = H // 2, W // 2
    isz = jnp.dtype(y3.dtype).itemsize
    osz = jnp.dtype(out_dtype).itemsize

    act_spec = pl.BlockSpec((None, H, W, P), lambda b: (b, 0, 0, 0))
    vec_spec = pl.BlockSpec((1, P), lambda b: (0, 0))

    flops = 7 * N * H * W * P
    bytes_accessed = 2 * N * H * W * P * isz + N * Ho * Wo * P * osz + 4 * P * 4
    vmem = _vmem_limit_bytes(2 * (2 * H * W * P * isz + Ho * Wo * P * osz)
                             + 3 * H * Wo * P * 4)

    return pl.pallas_call(
        _make_epilogue_kernel(H, W, P),
        grid=(N,),
        in_specs=[act_spec, act_spec, vec_spec, vec_spec, vec_spec, vec_spec],
        out_specs=pl.BlockSpec((None, Ho, Wo, P), lambda b: (b, 0, 0, 0)),
        out_shape=jax.ShapeDtypeStruct((N, Ho, Wo, P), out_dtype),
        compiler_params=pltpu.CompilerParams(
            dimension_semantics=("parallel",),
            vmem_limit_bytes=vmem),
        cost_estimate=pl.CostEstimate(flops=flops, transcendentals=0,
                                      bytes_accessed=bytes_accessed),
    )(y3, yd, s3, t3, sd, td)


# ------------------------------- orchestration ------------------------------
def _bn_affine(stats, gamma, beta, count):
    """Fold batch-statistics BatchNorm (biased var, eps=1e-5) with gamma/beta
    into a per-channel (scale, shift) applied by the following kernel."""
    total = jnp.sum(stats, axis=0)                    # (2, C): [sum, sumsq]
    mean = total[0] / count
    var = total[1] / count - mean * mean              # biased variance
    scale = gamma.astype(jnp.float32) * jax.lax.rsqrt(var + EPS)
    shift = beta.astype(jnp.float32) - mean * scale
    return scale.reshape(1, -1), shift.reshape(1, -1)


def prepare_block_params(params, compute_dtype=jnp.bfloat16):
    """One-time re-layout of the PyTorch-format weights (hoisted out of the
    per-step forward path)."""
    cdt = compute_dtype
    inplanes = params["w1"].shape[1]

    def prep3x3(wt):
        cout, cin = wt.shape[0], wt.shape[1]
        w = jnp.transpose(wt, (2, 3, 1, 0))            # (ky, kx, ci, co)
        if cin < _GROUP_CIN_MAX:
            return w.reshape(3, 3 * cin, cout).astype(cdt)   # per-dy groups
        return w.reshape(9, cin, cout).astype(cdt)           # per-tap

    wd = jnp.transpose(params["wd"][:, :, 0, 0], (1, 0)).astype(cdt)  # (Cin, Cout)
    if inplanes < _GROUP_CIN_MAX:
        z = jnp.zeros_like(wd)
        wdp = jnp.concatenate([z, wd, z], axis=0)      # center rows hold wd
    else:
        wdp = wd

    prep = {"w1": prep3x3(params["w1"]), "w2": prep3x3(params["w2"]),
            "w3": prep3x3(params["w3"]), "wdp": wdp}
    for n in ("1", "2", "3", "d"):
        prep["g" + n] = params["g" + n].astype(jnp.float32)
        prep["b" + n] = params["b" + n].astype(jnp.float32)
    return prep


def block_forward(x_nchw, prep, compute_dtype=jnp.bfloat16):
    """Forward pass of Block. Input is NCHW (like PyTorch); output is NCHW in
    compute_dtype (bf16 recommended; pass jnp.float32 for exact comparison).
    BN statistics and all BN/ReLU math stay in f32."""
    # TODO(synk): BatchNorm running-mean/var buffer updates (train-time side
    # effect) are not modeled; only the forward output is reproduced.
    N, Cin, H, W = x_nchw.shape
    cdt = compute_dtype

    x = jnp.transpose(x_nchw, (0, 2, 3, 1)).astype(cdt)          # NHWC
    m = float(N * H * W)

    # stage 1: conv1 (+ the fused 1x1 downsample conv, sharing the input tiles)
    y1, st1, ydown, std_ds = _conv3x3_stage(x, prep["w1"], wd=prep["wdp"],
                                            compute_dtype=cdt)
    s1, t1 = _bn_affine(st1, prep["g1"], prep["b1"], m)
    # stage 2: bn1 + relu applied on load, then conv2
    y2, st2 = _conv3x3_stage(y1, prep["w2"], s1, t1, compute_dtype=cdt)
    s2, t2 = _bn_affine(st2, prep["g2"], prep["b2"], m)
    # stage 3: bn2 + relu applied on load, then conv3
    y3, st3 = _conv3x3_stage(y2, prep["w3"], s2, t2, compute_dtype=cdt)
    s3, t3 = _bn_affine(st3, prep["g3"], prep["b3"], m)
    sd, td = _bn_affine(std_ds, prep["gd"], prep["bd"], m)

    # epilogue: bn3 + bn_d + residual add + relu + 2x2 maxpool (floor)
    out_nhwc = _epilogue(y3, ydown, s3, t3, sd, td, out_dtype=cdt)
    return jnp.transpose(out_nhwc, (0, 3, 1, 2))                 # back to NCHW


# ---------------------------- pure-JAX reference ----------------------------
def block_reference(x_nchw, params):
    prec = jax.lax.Precision.HIGHEST

    def conv(x, w, pad):
        return jax.lax.conv_general_dilated(
            x, w, (1, 1), [(pad, pad), (pad, pad)],
            dimension_numbers=("NCHW", "OIHW", "NCHW"), precision=prec)

    def bn(x, g, b):
        mean = jnp.mean(x, axis=(0, 2, 3), keepdims=True)
        var = jnp.mean(jnp.square(x - mean), axis=(0, 2, 3), keepdims=True)
        return ((x - mean) / jnp.sqrt(var + EPS)) * g.reshape(1, -1, 1, 1) \
               + b.reshape(1, -1, 1, 1)

    relu = lambda v: jnp.maximum(v, 0.0)
    out = relu(bn(conv(x_nchw, params["w1"], 1), params["g1"], params["b1"]))
    out = relu(bn(conv(out, params["w2"], 1), params["g2"], params["b2"]))
    out = bn(conv(out, params["w3"], 1), params["g3"], params["b3"])
    idn = bn(conv(x_nchw, params["wd"], 0), params["gd"], params["bd"])
    out = relu(out + idn)
    N, C, H, W = out.shape
    out = out[:, :, :2 * (H // 2), :2 * (W // 2)]     # floor pooling (odd H/W)
    out = out.reshape(N, C, H // 2, 2, W // 2, 2).max(axis=(3, 5))
    return out


def init_params(key, inplanes, planes):
    ks = jax.random.split(key, 8)
    p = {
        "w1": 0.1 * jax.random.normal(ks[0], (planes, inplanes, 3, 3), jnp.float32),
        "w2": 0.1 * jax.random.normal(ks[1], (planes, planes, 3, 3), jnp.float32),
        "w3": 0.1 * jax.random.normal(ks[2], (planes, planes, 3, 3), jnp.float32),
        "wd": 0.1 * jax.random.normal(ks[3], (planes, inplanes, 1, 1), jnp.float32),
    }
    for i, name in enumerate(["1", "2", "3", "d"]):
        p["g" + name] = 1.0 + 0.1 * jax.random.normal(ks[4 + i], (planes,), jnp.float32)
        p["b" + name] = 0.1 * jax.random.normal(jax.random.fold_in(ks[4 + i], 7),
                                                (planes,), jnp.float32)
    return p


if __name__ == "__main__":
    key = jax.random.PRNGKey(0)
    k_x, k_p = jax.random.split(key)

    N, Cin, H, W = 2, 4, 16, 16     # inplanes=4
    planes = 8
    x = jax.random.normal(k_x, (N, Cin, H, W), jnp.float32)
    params = init_params(k_p, Cin, planes)
    ref = jax.block_until_ready(block_reference(x, params))

    # exact-dtype path (f32 everywhere) -> tight tolerance
    prep_f32 = prepare_block_params(params, jnp.float32)
    fwd_f32 = jax.jit(functools.partial(block_forward, compute_dtype=jnp.float32))
    out_f32 = jax.block_until_ready(fwd_f32(x, prep_f32))
    assert out_f32.shape == (N, planes, H // 2, W // 2), out_f32.shape
    assert jnp.allclose(out_f32, ref, rtol=2e-3, atol=2e-3), \
        f"f32 max abs err {jnp.max(jnp.abs(out_f32 - ref))}"

    # performance path (bf16 activations/weights/output, f32 accumulation/BN math)
    prep_bf16 = prepare_block_params(params, jnp.bfloat16)
    fwd_bf16 = jax.jit(functools.partial(block_forward, compute_dtype=jnp.bfloat16))
    out_bf16 = jax.block_until_ready(fwd_bf16(x, prep_bf16))
    assert out_bf16.shape == (N, planes, H // 2, W // 2), out_bf16.shape
    assert jnp.allclose(out_bf16.astype(jnp.float32), ref, rtol=6e-2, atol=6e-2), \
        f"bf16 max abs err {jnp.max(jnp.abs(out_bf16.astype(jnp.float32) - ref))}"

    # odd spatial size (exercises floor maxpool like nn.MaxPool2d(2))
    N2, Cin2, H2, W2, planes2 = 2, 3, 11, 11, 8
    x2 = jax.random.normal(jax.random.fold_in(k_x, 1), (N2, Cin2, H2, W2), jnp.float32)
    params2 = init_params(jax.random.fold_in(k_p, 1), Cin2, planes2)
    ref2 = jax.block_until_ready(block_reference(x2, params2))
    out2 = jax.block_until_ready(fwd_f32(x2, prepare_block_params(params2, jnp.float32)))
    assert out2.shape == (N2, planes2, H2 // 2, W2 // 2), out2.shape
    assert jnp.allclose(out2, ref2, rtol=2e-3, atol=2e-3), \
        f"odd-size max abs err {jnp.max(jnp.abs(out2 - ref2))}"

    print("KERNEL_OK")
</pallas_src>

<mosaic_0001>
module attributes {stable_mosaic.version = 11 : i64} {
  func.func @kernel(%arg0: i32, %arg1: i32, %arg2: memref<1x16x16x4xf32, #tpu.memory_space<vmem>>, %arg3: memref<3x12x8xf32, #tpu.memory_space<vmem>>, %arg4: memref<12x8xf32, #tpu.memory_space<vmem>>, %arg5: memref<1x16x16x8xf32, #tpu.memory_space<vmem>>, %arg6: memref<1x2x8xf32, #tpu.memory_space<vmem>>, %arg7: memref<1x16x16x8xf32, #tpu.memory_space<vmem>>, %arg8: memref<1x2x8xf32, #tpu.memory_space<vmem>>, %arg9: memref<18x18x4xf32, #tpu.memory_space<vmem>>) attributes {dimension_semantics = [#tpu.dimension_semantics<parallel>, #tpu.dimension_semantics<arbitrary>], iteration_bounds = array<i64: 2, 1>, scalar_prefetch = 0 : i64, scratch_operands = 1 : i64, tpu.core_type = #tpu.core_type<tc>, window_params = [{transform_indices = @transform_0, window_bounds = array<i64: 1, 16, 16, 4>}, {transform_indices = @transform_1, window_bounds = array<i64: 3, 12, 8>}, {transform_indices = @transform_2, window_bounds = array<i64: 12, 8>}, {transform_indices = @transform_3, window_bounds = array<i64: 1, 16, 16, 8>}, {transform_indices = @transform_4, window_bounds = array<i64: 1, 2, 8>}, {transform_indices = @transform_5, window_bounds = array<i64: 1, 16, 16, 8>}, {transform_indices = @transform_6, window_bounds = array<i64: 1, 2, 8>}]} {
    %c0_i32 = arith.constant 0 : i32
    %0 = arith.cmpi eq, %arg1, %c0_i32 : i32
    %1 = arith.extui %0 : i1 to i32
    %c0_i32_0 = arith.constant 0 : i32
    %2 = arith.cmpi ne, %1, %c0_i32_0 : i32
    scf.if %2 {
      %cst_62 = arith.constant 0.000000e+00 : f32
      %63 = vector.broadcast %cst_62 : f32 to vector<1x18x4xf32>
      %cst_63 = arith.constant 0.000000e+00 : f32
      %64 = vector.broadcast %cst_63 : f32 to vector<16x1x4xf32>
      %c0_64 = arith.constant 0 : index
      %c0_65 = arith.constant 0 : index
      %c0_66 = arith.constant 0 : index
      %65 = vector.load %arg9[%c0_64, %c0_65, %c0_66] : memref<18x18x4xf32, #tpu.memory_space<vmem>>, vector<1x18x4xf32>
      tpu.vector_store %arg9[%c0_64, %c0_65, %c0_66], %63 {strides = array<i32>} : memref<18x18x4xf32, #tpu.memory_space<vmem>>, vector<1x18x4xf32>,
      %c17 = arith.constant 17 : index
      %c0_67 = arith.constant 0 : index
      %c0_68 = arith.constant 0 : index
      %66 = vector.load %arg9[%c17, %c0_67, %c0_68] : memref<18x18x4xf32, #tpu.memory_space<vmem>>, vector<1x18x4xf32>
      tpu.vector_store %arg9[%c17, %c0_67, %c0_68], %63 {strides = array<i32>} : memref<18x18x4xf32, #tpu.memory_space<vmem>>, vector<1x18x4xf32>,
      %c1_69 = arith.constant 1 : index
      %c0_70 = arith.constant 0 : index
      %c0_71 = arith.constant 0 : index
      %67 = vector.load %arg9[%c1_69, %c0_70, %c0_71] : memref<18x18x4xf32, #tpu.memory_space<vmem>>, vector<16x1x4xf32>
      tpu.vector_store %arg9[%c1_69, %c0_70, %c0_71], %64 {strides = array<i32>} : memref<18x18x4xf32, #tpu.memory_space<vmem>>, vector<16x1x4xf32>,
      %c1_72 = arith.constant 1 : index
      %c17_73 = arith.constant 17 : index
      %c0_74 = arith.constant 0 : index
      %68 = vector.load %arg9[%c1_72, %c17_73, %c0_74] : memref<18x18x4xf32, #tpu.memory_space<vmem>>, vector<16x1x4xf32>
      tpu.vector_store %arg9[%c1_72, %c17_73, %c0_74], %64 {strides = array<i32>} : memref<18x18x4xf32, #tpu.memory_space<vmem>>, vector<16x1x4xf32>,
      %c0_75 = arith.constant 0 : index
      %c0_76 = arith.constant 0 : index
      %c0_77 = arith.constant 0 : index
      %c0_78 = arith.constant 0 : index
      %69 = vector.load %arg2[%c0_75, %c0_76, %c0_77, %c0_78] : memref<1x16x16x4xf32, #tpu.memory_space<vmem>>, vector<1x16x16x4xf32>
      %70 = vector.shape_cast %69 : vector<1x16x16x4xf32> to vector<16x16x4xf32>
      %c1_79 = arith.constant 1 : index
      %c1_80 = arith.constant 1 : index
      %c0_81 = arith.constant 0 : index
      %71 = vector.load %arg9[%c1_79, %c1_80, %c0_81] : memref<18x18x4xf32, #tpu.memory_space<vmem>>, vector<16x16x4xf32>
      tpu.vector_store %arg9[%c1_79, %c1_80, %c0_81], %70 {strides = array<i32>} : memref<18x18x4xf32, #tpu.memory_space<vmem>>, vector<16x16x4xf32>,
    } else {
    }
    %c0 = arith.constant 0 : index
    %c0_1 = arith.constant 0 : index
    %c0_2 = arith.constant 0 : index
    %3 = vector.load %arg9[%c0, %c0_1, %c0_2] : memref<18x18x4xf32, #tpu.memory_space<vmem>>, vector<16x16x4xf32>
    %c0_3 = arith.constant 0 : index
    %c1 = arith.constant 1 : index
    %c0_4 = arith.constant 0 : index
    %4 = vector.load %arg9[%c0_3, %c1, %c0_4] : memref<18x18x4xf32, #tpu.memory_space<vmem>>, vector<16x16x4xf32>
    %c0_5 = arith.constant 0 : index
    %c2 = arith.constant 2 : index
    %c0_6 = arith.constant 0 : index
    %5 = vector.load %arg9[%c0_5, %c2, %c0_6] : memref<18x18x4xf32, #tpu.memory_space<vmem>>, vector<16x16x4xf32>
    %6 = tpu.concatenate %3, %4, %5 in 2 : vector<16x16x4xf32>, vector<16x16x4xf32>, vector<16x16x4xf32> -> vector<16x16x12xf32>
    %7 = vector.shape_cast %6 : vector<16x16x12xf32> to vector<256x12xf32>
    %c0_7 = arith.constant 0 : index
    %c0_8 = arith.constant 0 : index
    %c0_9 = arith.constant 0 : index
    %8 = vector.load %arg3[%c0_7, %c0_8, %c0_9] : memref<3x12x8xf32, #tpu.memory_space<vmem>>, vector<1x12x8xf32>
    %9 = vector.shape_cast %8 : vector<1x12x8xf32> to vector<12x8xf32>
    %cst = arith.constant dense<0.000000e+00> : vector<256x8xf32>
    %10 = tpu.matmul %7, %9, %cst {dimension_numbers = #tpu.dot_dimension_numbers<[1], [0], [0], [1], [0, 0, 1, 1], [], []>} : vector<256x12xf32>, vector<12x8xf32>, vector<256x8xf32> -> vector<256x8xf32>
    %c1_10 = arith.constant 1 : index
    %c0_11 = arith.constant 0 : index
    %c0_12 = arith.constant 0 : index
    %11 = vector.load %arg9[%c1_10, %c0_11, %c0_12] : memref<18x18x4xf32, #tpu.memory_space<vmem>>, vector<16x16x4xf32>
    %c1_13 = arith.constant 1 : index
    %c1_14 = arith.constant 1 : index
    %c0_15 = arith.constant 0 : index
    %12 = vector.load %arg9[%c1_13, %c1_14, %c0_15] : memref<18x18x4xf32, #tpu.memory_space<vmem>>, vector<16x16x4xf32>
    %c1_16 = arith.constant 1 : index
    %c2_17 = arith.constant 2 : index
    %c0_18 = arith.constant 0 : index
    %13 = vector.load %arg9[%c1_16, %c2_17, %c0_18] : memref<18x18x4xf32, #tpu.memory_space<vmem>>, vector<16x16x4xf32>
    %14 = tpu.concatenate %11, %12, %13 in 2 : vector<16x16x4xf32>, vector<16x16x4xf32>, vector<16x16x4xf32> -> vector<16x16x12xf32>
    %15 = vector.shape_cast %14 : vector<16x16x12xf32> to vector<256x12xf32>
    %c1_19 = arith.constant 1 : index
    %c0_20 = arith.constant 0 : index
    %c0_21 = arith.constant 0 : index
    %16 = vector.load %arg3[%c1_19, %c0_20, %c0_21] : memref<3x12x8xf32, #tpu.memory_space<vmem>>, vector<1x12x8xf32>
    %17 = vector.shape_cast %16 : vector<1x12x8xf32> to vector<12x8xf32>
    %c0_22 = arith.constant 0 : index
    %c0_23 = arith.constant 0 : index
    %18 = vector.load %arg4[%c0_22, %c0_23] : memref<12x8xf32, #tpu.memory_space<vmem>>, vector<12x8xf32>
    %19 = tpu.concatenate %17, %18 in 1 : vector<12x8xf32>, vector<12x8xf32> -> vector<12x16xf32>
    %cst_24 = arith.constant dense<0.000000e+00> : vector<256x16xf32>
    %20 = tpu.matmul %15, %19, %cst_24 {dimension_numbers = #tpu.dot_dimension_numbers<[1], [0], [0], [1], [0, 0, 1, 1], [], []>} : vector<256x12xf32>, vector<12x16xf32>, vector<256x16xf32> -> vector<256x16xf32>
    %21 = vector.extract_strided_slice %20 {offsets = [0, 0], sizes = [256, 8], strides = [1, 1]} : vector<256x16xf32> to vector<256x8xf32>
    %22 = arith.addf %10, %21 : vector<256x8xf32>
    %23 = vector.extract_strided_slice %20 {offsets = [0, 8], sizes = [256, 8], strides = [1, 1]} : vector<256x16xf32> to vector<256x8xf32>
    %c2_25 = arith.constant 2 : index
    %c0_26 = arith.constant 0 : index
    %c0_27 = arith.constant 0 : index
    %24 = vector.load %arg9[%c2_25, %c0_26, %c0_27] : memref<18x18x4xf32, #tpu.memory_space<vmem>>, vector<16x16x4xf32>
    %c2_28 = arith.constant 2 : index
    %c1_29 = arith.constant 1 : index
    %c0_30 = arith.constant 0 : index
    %25 = vector.load %arg9[%c2_28, %c1_29, %c0_30] : memref<18x18x4xf32, #tpu.memory_space<vmem>>, vector<16x16x4xf32>
    %c2_31 = arith.constant 2 : index
    %c2_32 = arith.constant 2 : index
    %c0_33 = arith.constant 0 : index
    %26 = vector.load %arg9[%c2_31, %c2_32, %c0_33] : memref<18x18x4xf32, #tpu.memory_space<vmem>>, vector<16x16x4xf32>
    %27 = tpu.concatenate %24, %25, %26 in 2 : vector<16x16x4xf32>, vector<16x16x4xf32>, vector<16x16x4xf32> -> vector<16x16x12xf32>
    %28 = vector.shape_cast %27 : vector<16x16x12xf32> to vector<256x12xf32>
    %c2_34 = arith.constant 2 : index
    %c0_35 = arith.constant 0 : index
    %c0_36 = arith.constant 0 : index
    %29 = vector.load %arg3[%c2_34, %c0_35, %c0_36] : memref<3x12x8xf32, #tpu.memory_space<vmem>>, vector<1x12x8xf32>
    %30 = vector.shape_cast %29 : vector<1x12x8xf32> to vector<12x8xf32>
    %cst_37 = arith.constant dense<0.000000e+00> : vector<256x8xf32>
    %31 = tpu.matmul %28, %30, %cst_37 {dimension_numbers = #tpu.dot_dimension_numbers<[1], [0], [0], [1], [0, 0, 1, 1], [], []>} : vector<256x12xf32>, vector<12x8xf32>, vector<256x8xf32> -> vector<256x8xf32>
    %32 = arith.addf %22, %31 : vector<256x8xf32>
    %33 = vector.shape_cast %32 : vector<256x8xf32> to vector<16x16x8xf32>
    %c0_38 = arith.constant 0 : index
    %c0_39 = arith.constant 0 : index
    %c0_40 = arith.constant 0 : index
    %c0_41 = arith.constant 0 : index
    %34 = vector.load %arg5[%c0_38, %c0_39, %c0_40, %c0_41] : memref<1x16x16x8xf32, #tpu.memory_space<vmem>>, vector<1x16x16x8xf32>
    %35 = vector.shape_cast %34 : vector<1x16x16x8xf32> to vector<16x16x8xf32>
    %36 = vector.shape_cast %33 : vector<16x16x8xf32> to vector<1x16x16x8xf32>
    tpu.vector_store %arg5[%c0_38, %c0_39, %c0_40, %c0_41], %36 {strides = array<i32>} : memref<1x16x16x8xf32, #tpu.memory_space<vmem>>, vector<1x16x16x8xf32>,
    %cst_42 = arith.constant dense<0.000000e+00> : vector<8xf32>
    %37 = vector.multi_reduction <add>, %32, %cst_42 [0] : vector<256x8xf32> to vector<8xf32>
    %38 = vector.shape_cast %37 : vector<8xf32> to vector<1x8xf32>
    %c0_43 = arith.constant 0 : index
    %c0_44 = arith.constant 0 : index
    %c0_45 = arith.constant 0 : index
    %39 = vector.load %arg6[%c0_43, %c0_44, %c0_45] : memref<1x2x8xf32, #tpu.memory_space<vmem>>, vector<1x1x8xf32>
    %40 = vector.shape_cast %39 : vector<1x1x8xf32> to vector<1x8xf32>
    %41 = vector.shape_cast %38 : vector<1x8xf32> to vector<1x1x8xf32>
    tpu.vector_store %arg6[%c0_43, %c0_44, %c0_45], %41 {strides = array<i32>} : memref<1x2x8xf32, #tpu.memory_space<vmem>>, vector<1x1x8xf32>,
    %42 = arith.mulf %32, %32 : vector<256x8xf32>
    %cst_46 = arith.constant dense<0.000000e+00> : vector<8xf32>
    %43 = vector.multi_reduction <add>, %42, %cst_46 [0] : vector<256x8xf32> to vector<8xf32>
    %44 = vector.shape_cast %43 : vector<8xf32> to vector<1x8xf32>
    %c0_47 = arith.constant 0 : index
    %c1_48 = arith.constant 1 : index
    %c0_49 = arith.constant 0 : index
    %45 = vector.load %arg6[%c0_47, %c1_48, %c0_49] : memref<1x2x8xf32, #tpu.memory_space<vmem>>, vector<1x1x8xf32>
    %46 = vector.shape_cast %45 : vector<1x1x8xf32> to vector<1x8xf32>
    %47 = vector.shape_cast %44 : vector<1x8xf32> to vector<1x1x8xf32>
    tpu.vector_store %arg6[%c0_47, %c1_48, %c0_49], %47 {strides = array<i32>} : memref<1x2x8xf32, #tpu.memory_space<vmem>>, vector<1x1x8xf32>,
    %48 = vector.shape_cast %23 : vector<256x8xf32> to vector<16x16x8xf32>
    %c0_50 = arith.constant 0 : index
    %c0_51 = arith.constant 0 : index
    %c0_52 = arith.constant 0 : index
    %c0_53 = arith.constant 0 : index
    %49 = vector.load %arg7[%c0_50, %c0_51, %c0_52, %c0_53] : memref<1x16x16x8xf32, #tpu.memory_space<vmem>>, vector<1x16x16x8xf32>
    %50 = vector.shape_cast %49 : vector<1x16x16x8xf32> to vector<16x16x8xf32>
    %51 = vector.shape_cast %48 : vector<16x16x8xf32> to vector<1x16x16x8xf32>
    tpu.vector_store %arg7[%c0_50, %c0_51, %c0_52, %c0_53], %51 {strides = array<i32>} : memref<1x16x16x8xf32, #tpu.memory_space<vmem>>, vector<1x16x16x8xf32>,
    %cst_54 = arith.constant dense<0.000000e+00> : vector<8xf32>
    %52 = vector.multi_reduction <add>, %23, %cst_54 [0] : vector<256x8xf32> to vector<8xf32>
    %53 = vector.shape_cast %52 : vector<8xf32> to vector<1x8xf32>
    %c0_55 = arith.constant 0 : index
    %c0_56 = arith.constant 0 : index
    %c0_57 = arith.constant 0 : index
    %54 = vector.load %arg8[%c0_55, %c0_56, %c0_57] : memref<1x2x8xf32, #tpu.memory_space<vmem>>, vector<1x1x8xf32>
    %55 = vector.shape_cast %54 : vector<1x1x8xf32> to vector<1x8xf32>
    %56 = vector.shape_cast %53 : vector<1x8xf32> to vector<1x1x8xf32>
    tpu.vector_store %arg8[%c0_55, %c0_56, %c0_57], %56 {strides = array<i32>} : memref<1x2x8xf32, #tpu.memory_space<vmem>>, vector<1x1x8xf32>,
    %57 = arith.mulf %23, %23 : vector<256x8xf32>
    %cst_58 = arith.constant dense<0.000000e+00> : vector<8xf32>
    %58 = vector.multi_reduction <add>, %57, %cst_58 [0] : vector<256x8xf32> to vector<8xf32>
    %59 = vector.shape_cast %58 : vector<8xf32> to vector<1x8xf32>
    %c0_59 = arith.constant 0 : index
    %c1_60 = arith.constant 1 : index
    %c0_61 = arith.constant 0 : index
    %60 = vector.load %arg8[%c0_59, %c1_60, %c0_61] : memref<1x2x8xf32, #tpu.memory_space<vmem>>, vector<1x1x8xf32>
    %61 = vector.shape_cast %60 : vector<1x1x8xf32> to vector<1x8xf32>
    %62 = vector.shape_cast %59 : vector<1x8xf32> to vector<1x1x8xf32>
    tpu.vector_store %arg8[%c0_59, %c1_60, %c0_61], %62 {strides = array<i32>} : memref<1x2x8xf32, #tpu.memory_space<vmem>>, vector<1x1x8xf32>,
    return
  }
  func.func @transform_0(%arg0: i32, %arg1: i32) -> (i32, i32, i32, i32) {
    %c0_i32 = arith.constant 0 : i32
    %c0_i32_0 = arith.constant 0 : i32
    %c0_i32_1 = arith.constant 0 : i32
    %c0_i32_2 = arith.constant 0 : i32
    return %arg0, %c0_i32, %c0_i32_0, %c0_i32_1 : i32, i32, i32, i32
  }
  func.func @transform_1(%arg0: i32, %arg1: i32) -> (i32, i32, i32) {
    %c0_i32 = arith.constant 0 : i32
    %c0_i32_0 = arith.constant 0 : i32
    %c0_i32_1 = arith.constant 0 : i32
    return %c0_i32, %c0_i32_0, %arg1 : i32, i32, i32
  }
  func.func @transform_2(%arg0: i32, %arg1: i32) -> (i32, i32) {
    %c0_i32 = arith.constant 0 : i32
    %c0_i32_0 = arith.constant 0 : i32
    return %c0_i32, %arg1 : i32, i32
  }
  func.func @transform_3(%arg0: i32, %arg1: i32) -> (i32, i32, i32, i32) {
    %c0_i32 = arith.constant 0 : i32
    %c0_i32_0 = arith.constant 0 : i32
    %c0_i32_1 = arith.constant 0 : i32
    return %arg0, %c0_i32, %c0_i32_0, %arg1 : i32, i32, i32, i32
  }
  func.func @transform_4(%arg0: i32, %arg1: i32) -> (i32, i32, i32) {
    %c0_i32 = arith.constant 0 : i32
    %c0_i32_0 = arith.constant 0 : i32
    return %arg0, %c0_i32, %arg1 : i32, i32, i32
  }
  func.func @transform_5(%arg0: i32, %arg1: i32) -> (i32, i32, i32, i32) {
    %c0_i32 = arith.constant 0 : i32
    %c0_i32_0 = arith.constant 0 : i32
    %c0_i32_1 = arith.constant 0 : i32
    return %arg0, %c0_i32, %c0_i32_0, %arg1 : i32, i32, i32, i32
  }
  func.func @transform_6(%arg0: i32, %arg1: i32) -> (i32, i32, i32) {
    %c0_i32 = arith.constant 0 : i32
    %c0_i32_0 = arith.constant 0 : i32
    return %arg0, %c0_i32, %arg1 : i32, i32, i32
  }
}

module attributes {stable_mosaic.version = 11 : i64} {
  func.func @kernel(%arg0: i32, %arg1: i32, %arg2: memref<1x16x16x8xf32, #tpu.memory_space<vmem>>, %arg3: memref<1x8xf32, #tpu.memory_space<vmem>>, %arg4: memref<1x8xf32, #tpu.memory_space<vmem>>, %arg5: memref<3x24x8xf32, #tpu.memory_space<vmem>>, %arg6: memref<1x16x16x8xf32, #tpu.memory_space<vmem>>, %arg7: memref<1x2x8xf32, #tpu.memory_space<vmem>>, %arg8: memref<18x18x8xf32, #tpu.memory_space<vmem>>) attributes {dimension_semantics = [#tpu.dimension_semantics<parallel>, #tpu.dimension_semantics<arbitrary>], iteration_bounds = array<i64: 2, 1>, scalar_prefetch = 0 : i64, scratch_operands = 1 : i64, tpu.core_type = #tpu.core_type<tc>, window_params = [{transform_indices = @transform_0, window_bounds = array<i64: 1, 16, 16, 8>}, {pipeline_mode = #tpu.pipeline_mode<synchronous>, transform_indices = @transform_1, window_bounds = array<i64: 1, 8>}, {pipeline_mode = #tpu.pipeline_mode<synchronous>, transform_indices = @transform_2, window_bounds = array<i64: 1, 8>}, {transform_indices = @transform_3, window_bounds = array<i64: 3, 24, 8>}, {transform_indices = @transform_4, window_bounds = array<i64: 1, 16, 16, 8>}, {transform_indices = @transform_5, window_bounds = array<i64: 1, 2, 8>}]} {
    %c0_i32 = arith.constant 0 : i32
    %0 = arith.cmpi eq, %arg1, %c0_i32 : i32
    %1 = arith.extui %0 : i1 to i32
    %c0_i32_0 = arith.constant 0 : i32
    %2 = arith.cmpi ne, %1, %c0_i32_0 : i32
    scf.if %2 {
      %cst_48 = arith.constant 0.000000e+00 : f32
      %44 = vector.broadcast %cst_48 : f32 to vector<1x18x8xf32>
      %cst_49 = arith.constant 0.000000e+00 : f32
      %45 = vector.broadcast %cst_49 : f32 to vector<16x1x8xf32>
      %c0_50 = arith.constant 0 : index
      %c0_51 = arith.constant 0 : index
      %c0_52 = arith.constant 0 : index
      %46 = vector.load %arg8[%c0_50, %c0_51, %c0_52] : memref<18x18x8xf32, #tpu.memory_space<vmem>>, vector<1x18x8xf32>
      tpu.vector_store %arg8[%c0_50, %c0_51, %c0_52], %44 {strides = array<i32>} : memref<18x18x8xf32, #tpu.memory_space<vmem>>, vector<1x18x8xf32>,
      %c17 = arith.constant 17 : index
      %c0_53 = arith.constant 0 : index
      %c0_54 = arith.constant 0 : index
      %47 = vector.load %arg8[%c17, %c0_53, %c0_54] : memref<18x18x8xf32, #tpu.memory_space<vmem>>, vector<1x18x8xf32>
      tpu.vector_store %arg8[%c17, %c0_53, %c0_54], %44 {strides = array<i32>} : memref<18x18x8xf32, #tpu.memory_space<vmem>>, vector<1x18x8xf32>,
      %c1_55 = arith.constant 1 : index
      %c0_56 = arith.constant 0 : index
      %c0_57 = arith.constant 0 : index
      %48 = vector.load %arg8[%c1_55, %c0_56, %c0_57] : memref<18x18x8xf32, #tpu.memory_space<vmem>>, vector<16x1x8xf32>
      tpu.vector_store %arg8[%c1_55, %c0_56, %c0_57], %45 {strides = array<i32>} : memref<18x18x8xf32, #tpu.memory_space<vmem>>, vector<16x1x8xf32>,
      %c1_58 = arith.constant 1 : index
      %c17_59 = arith.constant 17 : index
      %c0_60 = arith.constant 0 : index
      %49 = vector.load %arg8[%c1_58, %c17_59, %c0_60] : memref<18x18x8xf32, #tpu.memory_space<vmem>>, vector<16x1x8xf32>
      tpu.vector_store %arg8[%c1_58, %c17_59, %c0_60], %45 {strides = array<i32>} : memref<18x18x8xf32, #tpu.memory_space<vmem>>, vector<16x1x8xf32>,
      %c0_61 = arith.constant 0 : index
      %c0_62 = arith.constant 0 : index
      %50 = vector.load %arg3[%c0_61, %c0_62] : memref<1x8xf32, #tpu.memory_space<vmem>>, vector<1x8xf32>
      %51 = vector.shape_cast %50 : vector<1x8xf32> to vector<1x1x8xf32>
      %c0_63 = arith.constant 0 : index
      %c0_64 = arith.constant 0 : index
      %52 = vector.load %arg4[%c0_63, %c0_64] : memref<1x8xf32, #tpu.memory_space<vmem>>, vector<1x8xf32>
      %53 = vector.shape_cast %52 : vector<1x8xf32> to vector<1x1x8xf32>
      %c0_i32_65 = arith.constant 0 : i32
      %c16_i32 = arith.constant 16 : i32
      %54 = arith.muli %c0_i32_65, %c16_i32 : i32
      %55 = tpu.assume_multiple %54, 16 : i32
      %c0_66 = arith.constant 0 : index
      %56 = arith.index_cast %55 : i32 to index
      %c0_67 = arith.constant 0 : index
      %c0_68 = arith.constant 0 : index
      %57 = vector.load %arg2[%c0_66, %56, %c0_67, %c0_68] : memref<1x16x16x8xf32, #tpu.memory_space<vmem>>, vector<1x16x16x8xf32>
      %58 = vector.shape_cast %57 : vector<1x16x16x8xf32> to vector<16x16x8xf32>
      %59 = vector.broadcast %51 : vector<1x1x8xf32> to vector<16x16x8xf32>
      %60 = arith.mulf %58, %59 : vector<16x16x8xf32>
      %61 = vector.broadcast %53 : vector<1x1x8xf32> to vector<16x16x8xf32>
      %62 = arith.addf %60, %61 : vector<16x16x8xf32>
      %cst_69 = arith.constant 0.000000e+00 : f32
      %63 = vector.broadcast %cst_69 : f32 to vector<16x16x8xf32>
      %64 = arith.maximumf %62, %63 : vector<16x16x8xf32>
      %c1_i32 = arith.constant 1 : i32
      %65 = arith.addi %55, %c1_i32 : i32
      %66 = arith.index_cast %65 : i32 to index
      %c1_70 = arith.constant 1 : index
      %c0_71 = arith.constant 0 : index
      %67 = vector.load %arg8[%66, %c1_70, %c0_71] : memref<18x18x8xf32, #tpu.memory_space<vmem>>, vector<16x16x8xf32>
      tpu.vector_store %arg8[%66, %c1_70, %c0_71], %64 {strides = array<i32>} : memref<18x18x8xf32, #tpu.memory_space<vmem>>, vector<16x16x8xf32>,
      %c1_i32_72 = arith.constant 1 : i32
    } else {
    }
    %c0 = arith.constant 0 : index
    %c0_1 = arith.constant 0 : index
    %c0_2 = arith.constant 0 : index
    %3 = vector.load %arg8[%c0, %c0_1, %c0_2] : memref<18x18x8xf32, #tpu.memory_space<vmem>>, vector<16x16x8xf32>
    %c0_3 = arith.constant 0 : index
    %c1 = arith.constant 1 : index
    %c0_4 = arith.constant 0 : index
    %4 = vector.load %arg8[%c0_3, %c1, %c0_4] : memref<18x18x8xf32, #tpu.memory_space<vmem>>, vector<16x16x8xf32>
    %c0_5 = arith.constant 0 : index
    %c2 = arith.constant 2 : index
    %c0_6 = arith.constant 0 : index
    %5 = vector.load %arg8[%c0_5, %c2, %c0_6] : memref<18x18x8xf32, #tpu.memory_space<vmem>>, vector<16x16x8xf32>
    %6 = tpu.concatenate %3, %4, %5 in 2 : vector<16x16x8xf32>, vector<16x16x8xf32>, vector<16x16x8xf32> -> vector<16x16x24xf32>
    %7 = vector.shape_cast %6 : vector<16x16x24xf32> to vector<256x24xf32>
    %c0_7 = arith.constant 0 : index
    %c0_8 = arith.constant 0 : index
    %c0_9 = arith.constant 0 : index
    %8 = vector.load %arg5[%c0_7, %c0_8, %c0_9] : memref<3x24x8xf32, #tpu.memory_space<vmem>>, vector<1x24x8xf32>
    %9 = vector.shape_cast %8 : vector<1x24x8xf32> to vector<24x8xf32>
    %cst = arith.constant dense<0.000000e+00> : vector<256x8xf32>
    %10 = tpu.matmul %7, %9, %cst {dimension_numbers = #tpu.dot_dimension_numbers<[1], [0], [0], [1], [0, 0, 1, 1], [], []>} : vector<256x24xf32>, vector<24x8xf32>, vector<256x8xf32> -> vector<256x8xf32>
    %c1_10 = arith.constant 1 : index
    %c0_11 = arith.constant 0 : index
    %c0_12 = arith.constant 0 : index
    %11 = vector.load %arg8[%c1_10, %c0_11, %c0_12] : memref<18x18x8xf32, #tpu.memory_space<vmem>>, vector<16x16x8xf32>
    %c1_13 = arith.constant 1 : index
    %c1_14 = arith.constant 1 : index
    %c0_15 = arith.constant 0 : index
    %12 = vector.load %arg8[%c1_13, %c1_14, %c0_15] : memref<18x18x8xf32, #tpu.memory_space<vmem>>, vector<16x16x8xf32>
    %c1_16 = arith.constant 1 : index
    %c2_17 = arith.constant 2 : index
    %c0_18 = arith.constant 0 : index
    %13 = vector.load %arg8[%c1_16, %c2_17, %c0_18] : memref<18x18x8xf32, #tpu.memory_space<vmem>>, vector<16x16x8xf32>
    %14 = tpu.concatenate %11, %12, %13 in 2 : vector<16x16x8xf32>, vector<16x16x8xf32>, vector<16x16x8xf32> -> vector<16x16x24xf32>
    %15 = vector.shape_cast %14 : vector<16x16x24xf32> to vector<256x24xf32>
    %c1_19 = arith.constant 1 : index
    %c0_20 = arith.constant 0 : index
    %c0_21 = arith.constant 0 : index
    %16 = vector.load %arg5[%c1_19, %c0_20, %c0_21] : memref<3x24x8xf32, #tpu.memory_space<vmem>>, vector<1x24x8xf32>
    %17 = vector.shape_cast %16 : vector<1x24x8xf32> to vector<24x8xf32>
    %cst_22 = arith.constant dense<0.000000e+00> : vector<256x8xf32>
    %18 = tpu.matmul %15, %17, %cst_22 {dimension_numbers = #tpu.dot_dimension_numbers<[1], [0], [0], [1], [0, 0, 1, 1], [], []>} : vector<256x24xf32>, vector<24x8xf32>, vector<256x8xf32> -> vector<256x8xf32>
    %19 = arith.addf %10, %18 : vector<256x8xf32>
    %c2_23 = arith.constant 2 : index
    %c0_24 = arith.constant 0 : index
    %c0_25 = arith.constant 0 : index
    %20 = vector.load %arg8[%c2_23, %c0_24, %c0_25] : memref<18x18x8xf32, #tpu.memory_space<vmem>>, vector<16x16x8xf32>
    %c2_26 = arith.constant 2 : index
    %c1_27 = arith.constant 1 : index
    %c0_28 = arith.constant 0 : index
    %21 = vector.load %arg8[%c2_26, %c1_27, %c0_28] : memref<18x18x8xf32, #tpu.memory_space<vmem>>, vector<16x16x8xf32>
    %c2_29 = arith.constant 2 : index
    %c2_30 = arith.constant 2 : index
    %c0_31 = arith.constant 0 : index
    %22 = vector.load %arg8[%c2_29, %c2_30, %c0_31] : memref<18x18x8xf32, #tpu.memory_space<vmem>>, vector<16x16x8xf32>
    %23 = tpu.concatenate %20, %21, %22 in 2 : vector<16x16x8xf32>, vector<16x16x8xf32>, vector<16x16x8xf32> -> vector<16x16x24xf32>
    %24 = vector.shape_cast %23 : vector<16x16x24xf32> to vector<256x24xf32>
    %c2_32 = arith.constant 2 : index
    %c0_33 = arith.constant 0 : index
    %c0_34 = arith.constant 0 : index
    %25 = vector.load %arg5[%c2_32, %c0_33, %c0_34] : memref<3x24x8xf32, #tpu.memory_space<vmem>>, vector<1x24x8xf32>
    %26 = vector.shape_cast %25 : vector<1x24x8xf32> to vector<24x8xf32>
    %cst_35 = arith.constant dense<0.000000e+00> : vector<256x8xf32>
    %27 = tpu.matmul %24, %26, %cst_35 {dimension_numbers = #tpu.dot_dimension_numbers<[1], [0], [0], [1], [0, 0, 1, 1], [], []>} : vector<256x24xf32>, vector<24x8xf32>, vector<256x8xf32> -> vector<256x8xf32>
    %28 = arith.addf %19, %27 : vector<256x8xf32>
    %29 = vector.shape_cast %28 : vector<256x8xf32> to vector<16x16x8xf32>
    %c0_36 = arith.constant 0 : index
    %c0_37 = arith.constant 0 : index
    %c0_38 = arith.constant 0 : index
    %c0_39 = arith.constant 0 : index
    %30 = vector.load %arg6[%c0_36, %c0_37, %c0_38, %c0_39] : memref<1x16x16x8xf32, #tpu.memory_space<vmem>>, vector<1x16x16x8xf32>
    %31 = vector.shape_cast %30 : vector<1x16x16x8xf32> to vector<16x16x8xf32>
    %32 = vector.shape_cast %29 : vector<16x16x8xf32> to vector<1x16x16x8xf32>
    tpu.vector_store %arg6[%c0_36, %c0_37, %c0_38, %c0_39], %32 {strides = array<i32>} : memref<1x16x16x8xf32, #tpu.memory_space<vmem>>, vector<1x16x16x8xf32>,
    %cst_40 = arith.constant dense<0.000000e+00> : vector<8xf32>
    %33 = vector.multi_reduction <add>, %28, %cst_40 [0] : vector<256x8xf32> to vector<8xf32>
    %34 = vector.shape_cast %33 : vector<8xf32> to vector<1x8xf32>
    %c0_41 = arith.constant 0 : index
    %c0_42 = arith.constant 0 : index
    %c0_43 = arith.constant 0 : index
    %35 = vector.load %arg7[%c0_41, %c0_42, %c0_43] : memref<1x2x8xf32, #tpu.memory_space<vmem>>, vector<1x1x8xf32>
    %36 = vector.shape_cast %35 : vector<1x1x8xf32> to vector<1x8xf32>
    %37 = vector.shape_cast %34 : vector<1x8xf32> to vector<1x1x8xf32>
    tpu.vector_store %arg7[%c0_41, %c0_42, %c0_43], %37 {strides = array<i32>} : memref<1x2x8xf32, #tpu.memory_space<vmem>>, vector<1x1x8xf32>,
    %38 = arith.mulf %28, %28 : vector<256x8xf32>
    %cst_44 = arith.constant dense<0.000000e+00> : vector<8xf32>
    %39 = vector.multi_reduction <add>, %38, %cst_44 [0] : vector<256x8xf32> to vector<8xf32>
    %40 = vector.shape_cast %39 : vector<8xf32> to vector<1x8xf32>
    %c0_45 = arith.constant 0 : index
    %c1_46 = arith.constant 1 : index
    %c0_47 = arith.constant 0 : index
    %41 = vector.load %arg7[%c0_45, %c1_46, %c0_47] : memref<1x2x8xf32, #tpu.memory_space<vmem>>, vector<1x1x8xf32>
    %42 = vector.shape_cast %41 : vector<1x1x8xf32> to vector<1x8xf32>
    %43 = vector.shape_cast %40 : vector<1x8xf32> to vector<1x1x8xf32>
    tpu.vector_store %arg7[%c0_45, %c1_46, %c0_47], %43 {strides = array<i32>} : memref<1x2x8xf32, #tpu.memory_space<vmem>>, vector<1x1x8xf32>,
    return
  }
  func.func @transform_0(%arg0: i32, %arg1: i32) -> (i32, i32, i32, i32) {
    %c0_i32 = arith.constant 0 : i32
    %c0_i32_0 = arith.constant 0 : i32
    %c0_i32_1 = arith.constant 0 : i32
    %c0_i32_2 = arith.constant 0 : i32
    return %arg0, %c0_i32, %c0_i32_0, %c0_i32_1 : i32, i32, i32, i32
  }
  func.func @transform_1(%arg0: i32, %arg1: i32) -> (i32, i32) {
    %c0_i32 = arith.constant 0 : i32
    %c0_i32_0 = arith.constant 0 : i32
    %c0_i32_1 = arith.constant 0 : i32
    return %c0_i32, %c0_i32_0 : i32, i32
  }
  func.func @transform_2(%arg0: i32, %arg1: i32) -> (i32, i32) {
    %c0_i32 = arith.constant 0 : i32
    %c0_i32_0 = arith.constant 0 : i32
    %c0_i32_1 = arith.constant 0 : i32
    return %c0_i32, %c0_i32_0 : i32, i32
  }
  func.func @transform_3(%arg0: i32, %arg1: i32) -> (i32, i32, i32) {
    %c0_i32 = arith.constant 0 : i32
    %c0_i32_0 = arith.constant 0 : i32
    %c0_i32_1 = arith.constant 0 : i32
    return %c0_i32, %c0_i32_0, %arg1 : i32, i32, i32
  }
  func.func @transform_4(%arg0: i32, %arg1: i32) -> (i32, i32, i32, i32) {
    %c0_i32 = arith.constant 0 : i32
    %c0_i32_0 = arith.constant 0 : i32
    %c0_i32_1 = arith.constant 0 : i32
    return %arg0, %c0_i32, %c0_i32_0, %arg1 : i32, i32, i32, i32
  }
  func.func @transform_5(%arg0: i32, %arg1: i32) -> (i32, i32, i32) {
    %c0_i32 = arith.constant 0 : i32
    %c0_i32_0 = arith.constant 0 : i32
    return %arg0, %c0_i32, %arg1 : i32, i32, i32
  }
}

module attributes {stable_mosaic.version = 11 : i64} {
  func.func @kernel(%arg0: i32, %arg1: memref<1x16x16x8xf32, #tpu.memory_space<vmem>>, %arg2: memref<1x16x16x8xf32, #tpu.memory_space<vmem>>, %arg3: memref<1x8xf32, #tpu.memory_space<vmem>>, %arg4: memref<1x8xf32, #tpu.memory_space<vmem>>, %arg5: memref<1x8xf32, #tpu.memory_space<vmem>>, %arg6: memref<1x8xf32, #tpu.memory_space<vmem>>, %arg7: memref<1x8x8x8xf32, #tpu.memory_space<vmem>>) attributes {dimension_semantics = [#tpu.dimension_semantics<parallel>], iteration_bounds = array<i64: 2>, scalar_prefetch = 0 : i64, scratch_operands = 0 : i64, tpu.core_type = #tpu.core_type<tc>, window_params = [{transform_indices = @transform_0, window_bounds = array<i64: 1, 16, 16, 8>}, {transform_indices = @transform_1, window_bounds = array<i64: 1, 16, 16, 8>}, {pipeline_mode = #tpu.pipeline_mode<synchronous>, transform_indices = @transform_2, window_bounds = array<i64: 1, 8>}, {pipeline_mode = #tpu.pipeline_mode<synchronous>, transform_indices = @transform_3, window_bounds = array<i64: 1, 8>}, {pipeline_mode = #tpu.pipeline_mode<synchronous>, transform_indices = @transform_4, window_bounds = array<i64: 1, 8>}, {pipeline_mode = #tpu.pipeline_mode<synchronous>, transform_indices = @transform_5, window_bounds = array<i64: 1, 8>}, {transform_indices = @transform_6, window_bounds = array<i64: 1, 8, 8, 8>}]} {
    %c0 = arith.constant 0 : index
    %c0_0 = arith.constant 0 : index
    %0 = vector.load %arg3[%c0, %c0_0] : memref<1x8xf32, #tpu.memory_space<vmem>>, vector<1x8xf32>
    %c0_1 = arith.constant 0 : index
    %c0_2 = arith.constant 0 : index
    %1 = vector.load %arg4[%c0_1, %c0_2] : memref<1x8xf32, #tpu.memory_space<vmem>>, vector<1x8xf32>
    %c0_3 = arith.constant 0 : index
    %c0_4 = arith.constant 0 : index
    %2 = vector.load %arg5[%c0_3, %c0_4] : memref<1x8xf32, #tpu.memory_space<vmem>>, vector<1x8xf32>
    %c0_5 = arith.constant 0 : index
    %c0_6 = arith.constant 0 : index
    %3 = vector.load %arg6[%c0_5, %c0_6] : memref<1x8xf32, #tpu.memory_space<vmem>>, vector<1x8xf32>
    %c0_7 = arith.constant 0 : index
    %c0_8 = arith.constant 0 : index
    %c0_9 = arith.constant 0 : index
    %c0_10 = arith.constant 0 : index
    %4 = tpu.strided_load %arg1[%c0_7, %c0_8, %c0_9, %c0_10] {strides = array<i32: 1, 1, 2, 1>} : memref<1x16x16x8xf32, #tpu.memory_space<vmem>>, vector<1x16x8x8xf32>
    %5 = vector.shape_cast %4 : vector<1x16x8x8xf32> to vector<16x8x8xf32>
    %c0_11 = arith.constant 0 : index
    %c0_12 = arith.constant 0 : index
    %c0_13 = arith.constant 0 : index
    %c0_14 = arith.constant 0 : index
    %6 = tpu.strided_load %arg2[%c0_11, %c0_12, %c0_13, %c0_14] {strides = array<i32: 1, 1, 2, 1>} : memref<1x16x16x8xf32, #tpu.memory_space<vmem>>, vector<1x16x8x8xf32>
    %7 = vector.shape_cast %6 : vector<1x16x8x8xf32> to vector<16x8x8xf32>
    %8 = vector.shape_cast %0 : vector<1x8xf32> to vector<1x1x8xf32>
    %9 = vector.broadcast %8 : vector<1x1x8xf32> to vector<16x8x8xf32>
    %10 = arith.mulf %5, %9 : vector<16x8x8xf32>
    %11 = vector.shape_cast %1 : vector<1x8xf32> to vector<1x1x8xf32>
    %12 = vector.broadcast %11 : vector<1x1x8xf32> to vector<16x8x8xf32>
    %13 = arith.addf %10, %12 : vector<16x8x8xf32>
    %14 = vector.shape_cast %2 : vector<1x8xf32> to vector<1x1x8xf32>
    %15 = vector.broadcast %14 : vector<1x1x8xf32> to vector<16x8x8xf32>
    %16 = arith.mulf %7, %15 : vector<16x8x8xf32>
    %17 = arith.addf %13, %16 : vector<16x8x8xf32>
    %18 = vector.shape_cast %3 : vector<1x8xf32> to vector<1x1x8xf32>
    %19 = vector.broadcast %18 : vector<1x1x8xf32> to vector<16x8x8xf32>
    %20 = arith.addf %17, %19 : vector<16x8x8xf32>
    %cst = arith.constant 0.000000e+00 : f32
    %21 = vector.broadcast %cst : f32 to vector<16x8x8xf32>
    %22 = arith.maximumf %20, %21 : vector<16x8x8xf32>
    %c0_15 = arith.constant 0 : index
    %c0_16 = arith.constant 0 : index
    %c1 = arith.constant 1 : index
    %c0_17 = arith.constant 0 : index
    %23 = tpu.strided_load %arg1[%c0_15, %c0_16, %c1, %c0_17] {strides = array<i32: 1, 1, 2, 1>} : memref<1x16x16x8xf32, #tpu.memory_space<vmem>>, vector<1x16x8x8xf32>
    %24 = vector.shape_cast %23 : vector<1x16x8x8xf32> to vector<16x8x8xf32>
    %c0_18 = arith.constant 0 : index
    %c0_19 = arith.constant 0 : index
    %c1_20 = arith.constant 1 : index
    %c0_21 = arith.constant 0 : index
    %25 = tpu.strided_load %arg2[%c0_18, %c0_19, %c1_20, %c0_21] {strides = array<i32: 1, 1, 2, 1>} : memref<1x16x16x8xf32, #tpu.memory_space<vmem>>, vector<1x16x8x8xf32>
    %26 = vector.shape_cast %25 : vector<1x16x8x8xf32> to vector<16x8x8xf32>
    %27 = vector.shape_cast %0 : vector<1x8xf32> to vector<1x1x8xf32>
    %28 = vector.broadcast %27 : vector<1x1x8xf32> to vector<16x8x8xf32>
    %29 = arith.mulf %24, %28 : vector<16x8x8xf32>
    %30 = vector.shape_cast %1 : vector<1x8xf32> to vector<1x1x8xf32>
    %31 = vector.broadcast %30 : vector<1x1x8xf32> to vector<16x8x8xf32>
    %32 = arith.addf %29, %31 : vector<16x8x8xf32>
    %33 = vector.shape_cast %2 : vector<1x8xf32> to vector<1x1x8xf32>
    %34 = vector.broadcast %33 : vector<1x1x8xf32> to vector<16x8x8xf32>
    %35 = arith.mulf %26, %34 : vector<16x8x8xf32>
    %36 = arith.addf %32, %35 : vector<16x8x8xf32>
    %37 = vector.shape_cast %3 : vector<1x8xf32> to vector<1x1x8xf32>
    %38 = vector.broadcast %37 : vector<1x1x8xf32> to vector<16x8x8xf32>
    %39 = arith.addf %36, %38 : vector<16x8x8xf32>
    %cst_22 = arith.constant 0.000000e+00 : f32
    %40 = vector.broadcast %cst_22 : f32 to vector<16x8x8xf32>
    %41 = arith.maximumf %39, %40 : vector<16x8x8xf32>
    %42 = arith.maximumf %22, %41 : vector<16x8x8xf32>
    %43 = vector.shape_cast %42 : vector<16x8x8xf32> to vector<8x2x8x8xf32>
    %44 = vector.extract_strided_slice %43 {offsets = [0, 0, 0, 0], sizes = [8, 1, 8, 8], strides = [1, 1, 1, 1]} : vector<8x2x8x8xf32> to vector<8x1x8x8xf32>
    %45 = vector.shape_cast %44 : vector<8x1x8x8xf32> to vector<8x8x8xf32>
    %46 = vector.extract_strided_slice %43 {offsets = [0, 1, 0, 0], sizes = [8, 1, 8, 8], strides = [1, 1, 1, 1]} : vector<8x2x8x8xf32> to vector<8x1x8x8xf32>
    %47 = vector.shape_cast %46 : vector<8x1x8x8xf32> to vector<8x8x8xf32>
    %48 = arith.maximumf %45, %47 : vector<8x8x8xf32>
    %c0_23 = arith.constant 0 : index
    %c0_24 = arith.constant 0 : index
    %c0_25 = arith.constant 0 : index
    %c0_26 = arith.constant 0 : index
    %49 = vector.load %arg7[%c0_23, %c0_24, %c0_25, %c0_26] : memref<1x8x8x8xf32, #tpu.memory_space<vmem>>, vector<1x8x8x8xf32>
    %50 = vector.shape_cast %49 : vector<1x8x8x8xf32> to vector<8x8x8xf32>
    %51 = vector.shape_cast %48 : vector<8x8x8xf32> to vector<1x8x8x8xf32>
    tpu.vector_store %arg7[%c0_23, %c0_24, %c0_25, %c0_26], %51 {strides = array<i32>} : memref<1x8x8x8xf32, #tpu.memory_space<vmem>>, vector<1x8x8x8xf32>,
    return
  }
  func.func @transform_0(%arg0: i32) -> (i32, i32, i32, i32) {
    %c0_i32 = arith.constant 0 : i32
    %c0_i32_0 = arith.constant 0 : i32
    %c0_i32_1 = arith.constant 0 : i32
    %c0_i32_2 = arith.constant 0 : i32
    return %arg0, %c0_i32, %c0_i32_0, %c0_i32_1 : i32, i32, i32, i32
  }
  func.func @transform_1(%arg0: i32) -> (i32, i32, i32, i32) {
    %c0_i32 = arith.constant 0 : i32
    %c0_i32_0 = arith.constant 0 : i32
    %c0_i32_1 = arith.constant 0 : i32
    %c0_i32_2 = arith.constant 0 : i32
    return %arg0, %c0_i32, %c0_i32_0, %c0_i32_1 : i32, i32, i32, i32
  }
  func.func @transform_2(%arg0: i32) -> (i32, i32) {
    %c0_i32 = arith.constant 0 : i32
    %c0_i32_0 = arith.constant 0 : i32
    %c0_i32_1 = arith.constant 0 : i32
    return %c0_i32, %c0_i32_0 : i32, i32
  }
  func.func @transform_3(%arg0: i32) -> (i32, i32) {
    %c0_i32 = arith.constant 0 : i32
    %c0_i32_0 = arith.constant 0 : i32
    %c0_i32_1 = arith.constant 0 : i32
    return %c0_i32, %c0_i32_0 : i32, i32
  }
  func.func @transform_4(%arg0: i32) -> (i32, i32) {
    %c0_i32 = arith.constant 0 : i32
    %c0_i32_0 = arith.constant 0 : i32
    %c0_i32_1 = arith.constant 0 : i32
    return %c0_i32, %c0_i32_0 : i32, i32
  }
  func.func @transform_5(%arg0: i32) -> (i32, i32) {
    %c0_i32 = arith.constant 0 : i32
    %c0_i32_0 = arith.constant 0 : i32
    %c0_i32_1 = arith.constant 0 : i32
    return %c0_i32, %c0_i32_0 : i32, i32
  }
  func.func @transform_6(%arg0: i32) -> (i32, i32, i32, i32) {
    %c0_i32 = arith.constant 0 : i32
    %c0_i32_0 = arith.constant 0 : i32
    %c0_i32_1 = arith.constant 0 : i32
    %c0_i32_2 = arith.constant 0 : i32
    return %arg0, %c0_i32, %c0_i32_0, %c0_i32_1 : i32, i32, i32, i32
  }
}

</mosaic_0001>

<llo_original>
// kernel: block_forward.7
$region0: #{block_forward.7}
  #allocation0 [shape = 'u32[]', space=smem, size = 0x4, offset = 0x4, fixed_abs, tag = 'smem constant byte address 0x4 - core index']
  #allocation1 [shape = 'u32[144,128]{1,0:T(1,128)}', space=vmem, size = 0x12000, scoped, tag = 'internal scratch']
  %s0 = inlined_call_operand.vmem [shape: f32[2,16,16,8], index: 0, kind: input, shape index: {}]
  %s1 = inlined_call_operand.vmem [shape: f32[2,16,16,8], index: 1, kind: input, shape index: {}]
  %s2 = inlined_call_operand.vmem [shape: f32[1,8], index: 2, kind: input, shape index: {}]
  %s3 = inlined_call_operand.vmem [shape: f32[1,8], index: 3, kind: input, shape index: {}]
  %s4 = inlined_call_operand.vmem [shape: f32[1,8], index: 4, kind: input, shape index: {}]
  %s5 = inlined_call_operand.vmem [shape: f32[1,8], index: 5, kind: input, shape index: {}]
  %s6 = inlined_call_operand.vmem [shape: f32[2,8,8,8], index: 6, kind: output, shape index: {}]
  %s7 = sld [smem:[#allocation0]]
  $region57: #{block_forward.7} parent=0
    _
  %s9 = ssub.s32 1, %s7
  %s10 = scalar_select 0, %s9, %s7
  loop: start=0, step=1, limit=4
  $region2: #{block_forward.7} parent=0 // loop_pre_header
    _
  $region3: #{block_forward.7} parent=0 // loop_header
    %s12 = sphi 0, %s16
    %p13 = scmp.ge.s32.totalorder %s12, 4
    %s22 = sphi 0, %s24
    %s25 = sphi 0, %s22
    %s26 = sphi 0, %s25
    %s42 = sphi 0, %s26
    %s48 = sphi 0, %s50
    %s51 = sphi 0, %s48
    %s52 = sphi 0, %s51
    %s68 = sphi 0, %s52
    %s72 = sphi 0, %s72
    %s74 = sphi 0, %s72
    %s75 = sphi 0, %s74
    %s89 = sphi 0, %s75
    %s93 = sphi 0, %s93
    %s95 = sphi 0, %s93
    %s96 = sphi 0, %s95
    %s110 = sphi 0, %s96
    %s114 = sphi 0, %s114
    %s116 = sphi 0, %s114
    %s117 = sphi 0, %s116
    %s131 = sphi 0, %s117
    %s135 = sphi 0, %s135
    %s137 = sphi 0, %s135
    %s138 = sphi 0, %s137
    %s152 = sphi 0, %s138
    %s158 = sphi 0, %s160
    %s161 = sphi 0, %s158
    %s162 = sphi 0, %s161
    %s178 = sphi 0, %s162
  $region4: #{block_forward.7} parent=0 // loop_header_branch
    %15 = sbr.rel (%p13) target = $region8
  $region5: #{block_forward.7} parent=0 // loop_body
    %s17 = ssub.s32 %s12, 1
    %s18 = ssub.s32 %s12, 2
    %s19 = sadd.s32 %s12, 1
    %s20 = ssub.s32 %s12, %s19
    %p21 = scmp.eq.s32.totalorder %s20, 0
    %s23 = sadd.s32 %s22, 1
    %s24 = scalar_select %p21, %s22, %s23
    %p27 = pneg %p21
    %p28 = scmp.eq.s32.totalorder %s12, 1
    %p29 = por %p27, %p28
    %p30 = scmp.ne.s32.totalorder %s22, %s25
    %p31 = scmp.eq.s32.totalorder %s12, 0
    %p32 = por %p30, %p31
    %p33 = scmp.ne.s32.totalorder %s22, %s25
    %p34 = scmp.eq.s32.totalorder %s17, 1
    %p35 = por %p33, %p34
    %p36 = scmp.ne.s32.totalorder %s25, %s26
    %p37 = scmp.eq.s32.totalorder %s17, 0
    %p38 = por %p36, %p37
    %p39 = scmp.ne.s32.totalorder %s25, %s26
    %p40 = scmp.eq.s32.totalorder %s18, 1
    %p41 = por %p39, %p40
    %p43 = scmp.ne.s32.totalorder %s26, %s42
    %p44 = scmp.eq.s32.totalorder %s18, 0
    %p45 = por %p43, %p44
    %s46 = ssub.s32 %s12, %s19
    %p47 = scmp.eq.s32.totalorder %s46, 0
    %s49 = sadd.s32 %s48, 1
    %s50 = scalar_select %p47, %s48, %s49
    %p53 = pneg %p47
    %p54 = scmp.eq.s32.totalorder %s12, 1
    %p55 = por %p53, %p54
    %p56 = scmp.ne.s32.totalorder %s48, %s51
    %p57 = scmp.eq.s32.totalorder %s12, 0
    %p58 = por %p56, %p57
    %p59 = scmp.ne.s32.totalorder %s48, %s51
    %p60 = scmp.eq.s32.totalorder %s17, 1
    %p61 = por %p59, %p60
    %p62 = scmp.ne.s32.totalorder %s51, %s52
    %p63 = scmp.eq.s32.totalorder %s17, 0
    %p64 = por %p62, %p63
    %p65 = scmp.ne.s32.totalorder %s51, %s52
    %p66 = scmp.eq.s32.totalorder %s18, 1
    %p67 = por %p65, %p66
    %p69 = scmp.ne.s32.totalorder %s52, %s68
    %p70 = scmp.eq.s32.totalorder %s18, 0
    %p71 = por %p69, %p70
    %s73 = sadd.s32 %s72, 1
    %p76 = scmp.eq.s32.totalorder %s12, 1
    %p77 = scmp.ne.s32.totalorder %s72, %s74
    %p78 = scmp.eq.s32.totalorder %s12, 0
    %p79 = por %p77, %p78
    %p80 = scmp.ne.s32.totalorder %s72, %s74
    %p81 = scmp.eq.s32.totalorder %s17, 1
    %p82 = por %p80, %p81
    %p83 = scmp.ne.s32.totalorder %s74, %s75
    %p84 = scmp.eq.s32.totalorder %s17, 0
    %p85 = por %p83, %p84
    %p86 = scmp.ne.s32.totalorder %s74, %s75
    %p87 = scmp.eq.s32.totalorder %s18, 1
    %p88 = por %p86, %p87
    %p90 = scmp.ne.s32.totalorder %s75, %s89
    %p91 = scmp.eq.s32.totalorder %s18, 0
    %p92 = por %p90, %p91
    %s94 = sadd.s32 %s93, 1
    %p97 = scmp.eq.s32.totalorder %s12, 1
    %p98 = scmp.ne.s32.totalorder %s93, %s95
    %p99 = scmp.eq.s32.totalorder %s12, 0
    %p100 = por %p98, %p99
    %p101 = scmp.ne.s32.totalorder %s93, %s95
    %p102 = scmp.eq.s32.totalorder %s17, 1
    %p103 = por %p101, %p102
    %p104 = scmp.ne.s32.totalorder %s95, %s96
    %p105 = scmp.eq.s32.totalorder %s17, 0
    %p106 = por %p104, %p105
    %p107 = scmp.ne.s32.totalorder %s95, %s96
    %p108 = scmp.eq.s32.totalorder %s18, 1
    %p109 = por %p107, %p108
    %p111 = scmp.ne.s32.totalorder %s96, %s110
    %p112 = scmp.eq.s32.totalorder %s18, 0
    %p113 = por %p111, %p112
    %s115 = sadd.s32 %s114, 1
    %p118 = scmp.eq.s32.totalorder %s12, 1
    %p119 = scmp.ne.s32.totalorder %s114, %s116
    %p120 = scmp.eq.s32.totalorder %s12, 0
    %p121 = por %p119, %p120
    %p122 = scmp.ne.s32.totalorder %s114, %s116
    %p123 = scmp.eq.s32.totalorder %s17, 1
    %p124 = por %p122, %p123
    %p125 = scmp.ne.s32.totalorder %s116, %s117
    %p126 = scmp.eq.s32.totalorder %s17, 0
    %p127 = por %p125, %p126
    %p128 = scmp.ne.s32.totalorder %s116, %s117
    %p129 = scmp.eq.s32.totalorder %s18, 1
    %p130 = por %p128, %p129
    %p132 = scmp.ne.s32.totalorder %s117, %s131
    %p133 = scmp.eq.s32.totalorder %s18, 0
    %p134 = por %p132, %p133
    %s136 = sadd.s32 %s135, 1
    %p139 = scmp.eq.s32.totalorder %s12, 1
    %p140 = scmp.ne.s32.totalorder %s135, %s137
    %p141 = scmp.eq.s32.totalorder %s12, 0
    %p142 = por %p140, %p141
    %p143 = scmp.ne.s32.totalorder %s135, %s137
    %p144 = scmp.eq.s32.totalorder %s17, 1
    %p145 = por %p143, %p144
    %p146 = scmp.ne.s32.totalorder %s137, %s138
    %p147 = scmp.eq.s32.totalorder %s17, 0
    %p148 = por %p146, %p147
    %p149 = scmp.ne.s32.totalorder %s137, %s138
    %p150 = scmp.eq.s32.totalorder %s18, 1
    %p151 = por %p149, %p150
    %p153 = scmp.ne.s32.totalorder %s138, %s152
    %p154 = scmp.eq.s32.totalorder %s18, 0
    %p155 = por %p153, %p154
    %s156 = ssub.s32 %s12, %s19
    %p157 = scmp.eq.s32.totalorder %s156, 0
    %s159 = sadd.s32 %s158, 1
    %s160 = scalar_select %p157, %s158, %s159
    %p163 = pneg %p157
    %p164 = scmp.eq.s32.totalorder %s12, 1
    %p165 = por %p163, %p164
    %p166 = scmp.ne.s32.totalorder %s158, %s161
    %p167 = scmp.eq.s32.totalorder %s12, 0
    %p168 = por %p166, %p167
    %p169 = scmp.ne.s32.totalorder %s158, %s161
    %p170 = scmp.eq.s32.totalorder %s17, 1
    %p171 = por %p169, %p170
    %p172 = scmp.ne.s32.totalorder %s161, %s162
    %p173 = scmp.eq.s32.totalorder %s17, 0
    %p174 = por %p172, %p173
    %p175 = scmp.ne.s32.totalorder %s161, %s162
    %p176 = scmp.eq.s32.totalorder %s18, 1
    %p177 = por %p175, %p176
    %p179 = scmp.ne.s32.totalorder %s162, %s178
    %p180 = scmp.eq.s32.totalorder %s18, 0
    %p181 = por %p179, %p180
    %p182 = scmp.le.s32.totalorder 1, %s12
    %p183 = scmp.lt.s32.totalorder %s12, 3
    %p184 = pnand %p182, %p183
    %p185 = pneg %p184
    // Predicated region
    $region9: #{block_forward.7} parent=5 // pred_check
      _
    $region10: #{block_forward.7} parent=5 // pred_check_branch
      %187 = sbr.rel (%p184) target = $region12
    $region11: #{block_forward.7} parent=5 // pred_region
      %s188 = ssub.s32 %s12, 1
      // Predicated region
      $region13: #{block_forward.7} parent=11 // pred_check
        %p189 = pneg %p85
      $region14: #{block_forward.7} parent=11 // pred_check_branch
        %191 = sbr.rel (%p189) target = $region16
      $region15: #{block_forward.7} parent=11 // pred_region
        _
      $region16: #{block_forward.7} parent=11 // pred_fallthru
        _
      // Predicated region
      $region17: #{block_forward.7} parent=11 // pred_check
        %p192 = pneg %p106
      $region18: #{block_forward.7} parent=11 // pred_check_branch
        %194 = sbr.rel (%p192) target = $region20
      $region19: #{block_forward.7} parent=11 // pred_region
        _
      $region20: #{block_forward.7} parent=11 // pred_fallthru
        _
      // Predicated region
      $region21: #{block_forward.7} parent=11 // pred_check
        %p195 = pneg %p127
      $region22: #{block_forward.7} parent=11 // pred_check_branch
        %197 = sbr.rel (%p195) target = $region24
      $region23: #{block_forward.7} parent=11 // pred_region
        _
      $region24: #{block_forward.7} parent=11 // pred_fallthru
        _
      // Predicated region
      $region25: #{block_forward.7} parent=11 // pred_check
        %p198 = pneg %p148
      $region26: #{block_forward.7} parent=11 // pred_check_branch
        %200 = sbr.rel (%p198) target = $region28
      $region27: #{block_forward.7} parent=11 // pred_region
        _
      $region28: #{block_forward.7} parent=11 // pred_fallthru
        _
    $region12: #{block_forward.7} parent=5 // pred_fallthru
      _
    %p201 = scmp.lt.s32.totalorder %s12, 2
    // Predicated region
    $region29: #{block_forward.7} parent=5 // pred_check
      %p202 = pneg %p201
    $region30: #{block_forward.7} parent=5 // pred_check_branch
      %204 = sbr.rel (%p202) target = $region32
    $region31: #{block_forward.7} parent=5 // pred_region
      // Predicated region
      $region33: #{block_forward.7} parent=31 // pred_check
        %p205 = pneg %p32
      $region34: #{block_forward.7} parent=31 // pred_check_branch
        %207 = sbr.rel (%p205) target = $region36
      $region35: #{block_forward.7} parent=31 // pred_region
        %p208 = scmp.lt.s32.totalorder %s12, 1
        %s209 = scalar_select %p208, %s12, 1
        %s210 = smul.addr %s209, 32
        %s211 = smul.addr %s210, 8
        %s212 = scalar_lea.vmem %s0, %s211
      $region36: #{block_forward.7} parent=31 // pred_fallthru
        _
      // Predicated region
      $region37: #{block_forward.7} parent=31 // pred_check
        %p213 = pneg %p58
      $region38: #{block_forward.7} parent=31 // pred_check_branch
        %215 = sbr.rel (%p213) target = $region40
      $region39: #{block_forward.7} parent=31 // pred_region
        %p216 = scmp.lt.s32.totalorder %s12, 1
        %s217 = scalar_select %p216, %s12, 1
        %s218 = smul.addr %s217, 32
        %s219 = smul.addr %s218, 8
        %s220 = scalar_lea.vmem %s1, %s219
      $region40: #{block_forward.7} parent=31 // pred_fallthru
        _
    $region32: #{block_forward.7} parent=5 // pred_fallthru
      _
    %p221 = scmp.le.s32.totalorder 1, %s12
    %p222 = scmp.lt.s32.totalorder %s12, 3
    %p223 = pnand %p221, %p222
    %p224 = pneg %p223
    // Predicated region
    $region41: #{block_forward.7} parent=5 // pred_check
      _
    $region42: #{block_forward.7} parent=5 // pred_check_branch
      %226 = sbr.rel (%p223) target = $region44
    $region43: #{block_forward.7} parent=5 // pred_region
      %s227 = ssub.s32 %s12, 1
      %p228 = scmp.lt.s32.totalorder %s17, 1
      %s229 = scalar_select %p228, %s17, 1
      %s230 = smul.addr %s229, 32
      %s231 = smul.addr %s230, 8
      %s232 = scalar_lea.vmem %s0, %s231
      %p233 = pneg %p38
      %p234 = pneg %p35
      %p235 = scmp.lt.s32.totalorder %s17, 1
      %s236 = scalar_select %p235, %s17, 1
      %s237 = smul.addr %s236, 32
      %s238 = smul.addr %s237, 8
      %s239 = scalar_lea.vmem %s1, %s238
      %p240 = pneg %p64
      %p241 = pneg %p61
      %p242 = pneg %p85
      %p243 = pneg %p82
      %p244 = pneg %p106
      %p245 = pneg %p103
      %p246 = pneg %p127
      %p247 = pneg %p124
      %p248 = pneg %p148
      %p249 = pneg %p145
      %p250 = pneg %p174
      %p251 = pneg %p171
      %p252 = scmp.lt.s32.totalorder %s17, 1
      %s253 = scalar_select %p252, %s17, 1
      %s254 = smul.addr %s253, 8
      %s255 = smul.addr %s254, 8
      %s256 = scalar_lea.vmem %s6, %s255
      %p257 = scmp.lt.s32.totalorder %s17, 1
      %s258 = scalar_select %p257, %s17, 1
      %s259 = smul.addr %s258, 32
      %s260 = smul.addr %s259, 8
      %s261 = scalar_lea.vmem %s0, %s260
      %p262 = scmp.lt.s32.totalorder %s17, 1
      %s263 = scalar_select %p262, %s17, 1
      %s264 = smul.addr %s263, 32
      %s265 = smul.addr %s264, 8
      %s266 = scalar_lea.vmem %s1, %s265
      %p267 = scmp.lt.s32.totalorder %s17, 1
      %s268 = scalar_select %p267, %s17, 1
      %s269 = smul.addr %s268, 8
      %s270 = smul.addr %s269, 8
      %s271 = scalar_lea.vmem %s6, %s270
      %v272 = vld [vmem:[%s2] sm:$0x1]
      %v273 = vld [vmem:[%s3] sm:$0x1]
      %v274 = vld [vmem:[%s4] sm:$0x1]
      %v275 = vld [vmem:[%s5] sm:$0x1]
      %v276 = vld [vmem:[%s261] ss:$2 sm:$0xff]
      %s277 = scalar_lea.vmem %s261, 16
      %v278 = vld [vmem:[%s277] ss:$2 sm:$0xff]
      %s279 = scalar_lea.vmem %s261, 32
      %v280 = vld [vmem:[%s279] ss:$2 sm:$0xff]
      %s281 = scalar_lea.vmem %s261, 48
      %v282 = vld [vmem:[%s281] ss:$2 sm:$0xff]
      %s283 = scalar_lea.vmem %s261, 64
      %v284 = vld [vmem:[%s283] ss:$2 sm:$0xff]
      %s285 = scalar_lea.vmem %s261, 80
      %v286 = vld [vmem:[%s285] ss:$2 sm:$0xff]
      %s287 = scalar_lea.vmem %s261, 96
      %v288 = vld [vmem:[%s287] ss:$2 sm:$0xff]
      %s289 = scalar_lea.vmem %s261, 112
      %v290 = vld [vmem:[%s289] ss:$2 sm:$0xff]
      %s291 = scalar_lea.vmem %s261, 128
      %v292 = vld [vmem:[%s291] ss:$2 sm:$0xff]
      %s293 = scalar_lea.vmem %s261, 144
      %v294 = vld [vmem:[%s293] ss:$2 sm:$0xff]
      %s295 = scalar_lea.vmem %s261, 160
      %v296 = vld [vmem:[%s295] ss:$2 sm:$0xff]
      %s297 = scalar_lea.vmem %s261, 176
      %v298 = vld [vmem:[%s297] ss:$2 sm:$0xff]
      %s299 = scalar_lea.vmem %s261, 192
      %v300 = vld [vmem:[%s299] ss:$2 sm:$0xff]
      %s301 = scalar_lea.vmem %s261, 208
      %v302 = vld [vmem:[%s301] ss:$2 sm:$0xff]
      %s303 = scalar_lea.vmem %s261, 224
      %v304 = vld [vmem:[%s303] ss:$2 sm:$0xff]
      %s305 = scalar_lea.vmem %s261, 240
      %v306 = vld [vmem:[%s305] ss:$2 sm:$0xff]
      %v307 = vld [vmem:[%s266] ss:$2 sm:$0xff]
      %s308 = scalar_lea.vmem %s266, 16
      %v309 = vld [vmem:[%s308] ss:$2 sm:$0xff]
      %s310 = scalar_lea.vmem %s266, 32
      %v311 = vld [vmem:[%s310] ss:$2 sm:$0xff]
      %s312 = scalar_lea.vmem %s266, 48
      %v313 = vld [vmem:[%s312] ss:$2 sm:$0xff]
      %s314 = scalar_lea.vmem %s266, 64
      %v315 = vld [vmem:[%s314] ss:$2 sm:$0xff]
      %s316 = scalar_lea.vmem %s266, 80
      %v317 = vld [vmem:[%s316] ss:$2 sm:$0xff]
      %s318 = scalar_lea.vmem %s266, 96
      %v319 = vld [vmem:[%s318] ss:$2 sm:$0xff]
      %s320 = scalar_lea.vmem %s266, 112
      %v321 = vld [vmem:[%s320] ss:$2 sm:$0xff]
      %s322 = scalar_lea.vmem %s266, 128
      %v323 = vld [vmem:[%s322] ss:$2 sm:$0xff]
      %s324 = scalar_lea.vmem %s266, 144
      %v325 = vld [vmem:[%s324] ss:$2 sm:$0xff]
      %s326 = scalar_lea.vmem %s266, 160
      %v327 = vld [vmem:[%s326] ss:$2 sm:$0xff]
      %s328 = scalar_lea.vmem %s266, 176
      %v329 = vld [vmem:[%s328] ss:$2 sm:$0xff]
      %s330 = scalar_lea.vmem %s266, 192
      %v331 = vld [vmem:[%s330] ss:$2 sm:$0xff]
      %s332 = scalar_lea.vmem %s266, 208
      %v333 = vld [vmem:[%s332] ss:$2 sm:$0xff]
      %s334 = scalar_lea.vmem %s266, 224
      %v335 = vld [vmem:[%s334] ss:$2 sm:$0xff]
      %s336 = scalar_lea.vmem %s266, 240
      %v337 = vld [vmem:[%s336] ss:$2 sm:$0xff]
      %v339 = vlaneseq
      %v340 = vshrl.u32 %v339, 7
      %v341 = vsub.s32 0, %v340
      %v342 = vrot.slane %v272, %v341
      %v344 = vmul.f32 %v276, %v342
      %v345 = vmul.f32 %v278, %v342
      %v346 = vmul.f32 %v280, %v342
      %v347 = vmul.f32 %v282, %v342
      %v348 = vmul.f32 %v284, %v342
      %v349 = vmul.f32 %v286, %v342
      %v350 = vmul.f32 %v288, %v342
      %v351 = vmul.f32 %v290, %v342
      %v352 = vmul.f32 %v292, %v342
      %v353 = vmul.f32 %v294, %v342
      %v354 = vmul.f32 %v296, %v342
      %v355 = vmul.f32 %v298, %v342
      %v356 = vmul.f32 %v300, %v342
      %v357 = vmul.f32 %v302, %v342
      %v358 = vmul.f32 %v304, %v342
      %v359 = vmul.f32 %v306, %v342
      %v361 = vlaneseq
      %v362 = vshrl.u32 %v361, 7
      %v363 = vsub.s32 0, %v362
      %v364 = vrot.slane %v273, %v363
      %v366 = vadd.f32 %v344, %v364
      %v367 = vadd.f32 %v345, %v364
      %v368 = vadd.f32 %v346, %v364
      %v369 = vadd.f32 %v347, %v364
      %v370 = vadd.f32 %v348, %v364
      %v371 = vadd.f32 %v349, %v364
      %v372 = vadd.f32 %v350, %v364
      %v373 = vadd.f32 %v351, %v364
      %v374 = vadd.f32 %v352, %v364
      %v375 = vadd.f32 %v353, %v364
      %v376 = vadd.f32 %v354, %v364
      %v377 = vadd.f32 %v355, %v364
      %v378 = vadd.f32 %v356, %v364
      %v379 = vadd.f32 %v357, %v364
      %v380 = vadd.f32 %v358, %v364
      %v381 = vadd.f32 %v359, %v364
      %v383 = vlaneseq
      %v384 = vshrl.u32 %v383, 7
      %v385 = vsub.s32 0, %v384
      %v386 = vrot.slane %v274, %v385
      %v388 = vmul.f32 %v307, %v386
      %v389 = vmul.f32 %v309, %v386
      %v390 = vmul.f32 %v311, %v386
      %v391 = vmul.f32 %v313, %v386
      %v392 = vmul.f32 %v315, %v386
      %v393 = vmul.f32 %v317, %v386
      %v394 = vmul.f32 %v319, %v386
      %v395 = vmul.f32 %v321, %v386
      %v396 = vmul.f32 %v323, %v386
      %v397 = vmul.f32 %v325, %v386
      %v398 = vmul.f32 %v327, %v386
      %v399 = vmul.f32 %v329, %v386
      %v400 = vmul.f32 %v331, %v386
      %v401 = vmul.f32 %v333, %v386
      %v402 = vmul.f32 %v335, %v386
      %v403 = vmul.f32 %v337, %v386
      %v404 = vadd.f32 %v366, %v388
      %v405 = vadd.f32 %v367, %v389
      %v406 = vadd.f32 %v368, %v390
      %v407 = vadd.f32 %v369, %v391
      %v408 = vadd.f32 %v370, %v392
      %v409 = vadd.f32 %v371, %v393
      %v410 = vadd.f32 %v372, %v394
      %v411 = vadd.f32 %v373, %v395
      %v412 = vadd.f32 %v374, %v396
      %v413 = vadd.f32 %v375, %v397
      %v414 = vadd.f32 %v376, %v398
      %v415 = vadd.f32 %v377, %v399
      %v416 = vadd.f32 %v378, %v400
      %v417 = vadd.f32 %v379, %v401
      %v418 = vadd.f32 %v380, %v402
      %v419 = vadd.f32 %v381, %v403
      %v421 = vlaneseq
      %v422 = vshrl.u32 %v421, 7
      %v423 = vsub.s32 0, %v422
      %v424 = vrot.slane %v275, %v423
      %v426 = vadd.f32 %v404, %v424
      %v427 = vadd.f32 %v405, %v424
      %v428 = vadd.f32 %v406, %v424
      %v429 = vadd.f32 %v407, %v424
      %v430 = vadd.f32 %v408, %v424
      %v431 = vadd.f32 %v409, %v424
      %v432 = vadd.f32 %v410, %v424
      %v433 = vadd.f32 %v411, %v424
      %v434 = vadd.f32 %v412, %v424
      %v435 = vadd.f32 %v413, %v424
      %v436 = vadd.f32 %v414, %v424
      %v437 = vadd.f32 %v415, %v424
      %v438 = vadd.f32 %v416, %v424
      %v439 = vadd.f32 %v417, %v424
      %v440 = vadd.f32 %v418, %v424
      %v441 = vadd.f32 %v419, %v424
      %v442 = vmax.f32 %v426, 0.0
      %v443 = vmax.f32 %v427, 0.0
      %v444 = vmax.f32 %v428, 0.0
      %v445 = vmax.f32 %v429, 0.0
      %v446 = vmax.f32 %v430, 0.0
      %v447 = vmax.f32 %v431, 0.0
      %v448 = vmax.f32 %v432, 0.0
      %v449 = vmax.f32 %v433, 0.0
      %v450 = vmax.f32 %v434, 0.0
      %v451 = vmax.f32 %v435, 0.0
      %v452 = vmax.f32 %v436, 0.0
      %v453 = vmax.f32 %v437, 0.0
      %v454 = vmax.f32 %v438, 0.0
      %v455 = vmax.f32 %v439, 0.0
      %v456 = vmax.f32 %v440, 0.0
      %v457 = vmax.f32 %v441, 0.0
      %s458 = scalar_lea.vmem %s261, 1
      %v459 = vld [vmem:[%s458] ss:$2 sm:$0xff]
      %s460 = scalar_lea.vmem %s261, 17
      %v461 = vld [vmem:[%s460] ss:$2 sm:$0xff]
      %s462 = scalar_lea.vmem %s261, 33
      %v463 = vld [vmem:[%s462] ss:$2 sm:$0xff]
      %s464 = scalar_lea.vmem %s261, 49
      %v465 = vld [vmem:[%s464] ss:$2 sm:$0xff]
      %s466 = scalar_lea.vmem %s261, 65
      %v467 = vld [vmem:[%s466] ss:$2 sm:$0xff]
      %s468 = scalar_lea.vmem %s261, 81
      %v469 = vld [vmem:[%s468] ss:$2 sm:$0xff]
      %s470 = scalar_lea.vmem %s261, 97
      %v471 = vld [vmem:[%s470] ss:$2 sm:$0xff]
      %s472 = scalar_lea.vmem %s261, 113
      %v473 = vld [vmem:[%s472] ss:$2 sm:$0xff]
      %s474 = scalar_lea.vmem %s261, 129
      %v475 = vld [vmem:[%s474] ss:$2 sm:$0xff]
      %s476 = scalar_lea.vmem %s261, 145
      %v477 = vld [vmem:[%s476] ss:$2 sm:$0xff]
      %s478 = scalar_lea.vmem %s261, 161
      %v479 = vld [vmem:[%s478] ss:$2 sm:$0xff]
      %s480 = scalar_lea.vmem %s261, 177
      %v481 = vld [vmem:[%s480] ss:$2 sm:$0xff]
      %s482 = scalar_lea.vmem %s261, 193
      %v483 = vld [vmem:[%s482] ss:$2 sm:$0xff]
      %s484 = scalar_lea.vmem %s261, 209
      %v485 = vld [vmem:[%s484] ss:$2 sm:$0xff]
      %s486 = scalar_lea.vmem %s261, 225
      %v487 = vld [vmem:[%s486] ss:$2 sm:$0xff]
      %s488 = scalar_lea.vmem %s261, 241
      %v489 = vld [vmem:[%s488] ss:$2 sm:$0xff]
      %s490 = scalar_lea.vmem %s266, 1
      %v491 = vld [vmem:[%s490] ss:$2 sm:$0xff]
      %s492 = scalar_lea.vmem %s266, 17
      %v493 = vld [vmem:[%s492] ss:$2 sm:$0xff]
      %s494 = scalar_lea.vmem %s266, 33
      %v495 = vld [vmem:[%s494] ss:$2 sm:$0xff]
      %s496 = scalar_lea.vmem %s266, 49
      %v497 = vld [vmem:[%s496] ss:$2 sm:$0xff]
      %s498 = scalar_lea.vmem %s266, 65
      %v499 = vld [vmem:[%s498] ss:$2 sm:$0xff]
      %s500 = scalar_lea.vmem %s266, 81
      %v501 = vld [vmem:[%s500] ss:$2 sm:$0xff]
      %s502 = scalar_lea.vmem %s266, 97
      %v503 = vld [vmem:[%s502] ss:$2 sm:$0xff]
      %s504 = scalar_lea.vmem %s266, 113
      %v505 = vld [vmem:[%s504] ss:$2 sm:$0xff]
      %s506 = scalar_lea.vmem %s266, 129
      %v507 = vld [vmem:[%s506] ss:$2 sm:$0xff]
      %s508 = scalar_lea.vmem %s266, 145
      %v509 = vld [vmem:[%s508] ss:$2 sm:$0xff]
      %s510 = scalar_lea.vmem %s266, 161
      %v511 = vld [vmem:[%s510] ss:$2 sm:$0xff]
      %s512 = scalar_lea.vmem %s266, 177
      %v513 = vld [vmem:[%s512] ss:$2 sm:$0xff]
      %s514 = scalar_lea.vmem %s266, 193
      %v515 = vld [vmem:[%s514] ss:$2 sm:$0xff]
      %s516 = scalar_lea.vmem %s266, 209
      %v517 = vld [vmem:[%s516] ss:$2 sm:$0xff]
      %s518 = scalar_lea.vmem %s266, 225
      %v519 = vld [vmem:[%s518] ss:$2 sm:$0xff]
      %s520 = scalar_lea.vmem %s266, 241
      %v521 = vld [vmem:[%s520] ss:$2 sm:$0xff]
      %v522 = vmul.f32 %v459, %v342
      %v523 = vmul.f32 %v461, %v342
      %v524 = vmul.f32 %v463, %v342
      %v525 = vmul.f32 %v465, %v342
      %v526 = vmul.f32 %v467, %v342
      %v527 = vmul.f32 %v469, %v342
      %v528 = vmul.f32 %v471, %v342
      %v529 = vmul.f32 %v473, %v342
      %v530 = vmul.f32 %v475, %v342
      %v531 = vmul.f32 %v477, %v342
      %v532 = vmul.f32 %v479, %v342
      %v533 = vmul.f32 %v481, %v342
      %v534 = vmul.f32 %v483, %v342
      %v535 = vmul.f32 %v485, %v342
      %v536 = vmul.f32 %v487, %v342
      %v537 = vmul.f32 %v489, %v342
      %v538 = vadd.f32 %v522, %v364
      %v539 = vadd.f32 %v523, %v364
      %v540 = vadd.f32 %v524, %v364
      %v541 = vadd.f32 %v525, %v364
      %v542 = vadd.f32 %v526, %v364
      %v543 = vadd.f32 %v527, %v364
      %v544 = vadd.f32 %v528, %v364
      %v545 = vadd.f32 %v529, %v364
      %v546 = vadd.f32 %v530, %v364
      %v547 = vadd.f32 %v531, %v364
      %v548 = vadd.f32 %v532, %v364
      %v549 = vadd.f32 %v533, %v364
      %v550 = vadd.f32 %v534, %v364
      %v551 = vadd.f32 %v535, %v364
      %v552 = vadd.f32 %v536, %v364
      %v553 = vadd.f32 %v537, %v364
      %v554 = vmul.f32 %v491, %v386
      %v555 = vmul.f32 %v493, %v386
      %v556 = vmul.f32 %v495, %v386
      %v557 = vmul.f32 %v497, %v386
      %v558 = vmul.f32 %v499, %v386
      %v559 = vmul.f32 %v501, %v386
      %v560 = vmul.f32 %v503, %v386
      %v561 = vmul.f32 %v505, %v386
      %v562 = vmul.f32 %v507, %v386
      %v563 = vmul.f32 %v509, %v386
      %v564 = vmul.f32 %v511, %v386
      %v565 = vmul.f32 %v513, %v386
      %v566 = vmul.f32 %v515, %v386
      %v567 = vmul.f32 %v517, %v386
      %v568 = vmul.f32 %v519, %v386
      %v569 = vmul.f32 %v521, %v386
      %v570 = vadd.f32 %v538, %v554
      %v571 = vadd.f32 %v539, %v555
      %v572 = vadd.f32 %v540, %v556
      %v573 = vadd.f32 %v541, %v557
      %v574 = vadd.f32 %v542, %v558
      %v575 = vadd.f32 %v543, %v559
      %v576 = vadd.f32 %v544, %v560
      %v577 = vadd.f32 %v545, %v561
      %v578 = vadd.f32 %v546, %v562
      %v579 = vadd.f32 %v547, %v563
      %v580 = vadd.f32 %v548, %v564
      %v581 = vadd.f32 %v549, %v565
      %v582 = vadd.f32 %v550, %v566
      %v583 = vadd.f32 %v551, %v567
      %v584 = vadd.f32 %v552, %v568
      %v585 = vadd.f32 %v553, %v569
      %v586 = vadd.f32 %v570, %v424
      %v587 = vadd.f32 %v571, %v424
      %v588 = vadd.f32 %v572, %v424
      %v589 = vadd.f32 %v573, %v424
      %v590 = vadd.f32 %v574, %v424
      %v591 = vadd.f32 %v575, %v424
      %v592 = vadd.f32 %v576, %v424
      %v593 = vadd.f32 %v577, %v424
      %v594 = vadd.f32 %v578, %v424
      %v595 = vadd.f32 %v579, %v424
      %v596 = vadd.f32 %v580, %v424
      %v597 = vadd.f32 %v581, %v424
      %v598 = vadd.f32 %v582, %v424
      %v599 = vadd.f32 %v583, %v424
      %v600 = vadd.f32 %v584, %v424
      %v601 = vadd.f32 %v585, %v424
      %v602 = vmax.f32 %v586, 0.0
      %v603 = vmax.f32 %v587, 0.0
      %v604 = vmax.f32 %v588, 0.0
      %v605 = vmax.f32 %v589, 0.0
      %v606 = vmax.f32 %v590, 0.0
      %v607 = vmax.f32 %v591, 0.0
      %v608 = vmax.f32 %v592, 0.0
      %v609 = vmax.f32 %v593, 0.0
      %v610 = vmax.f32 %v594, 0.0
      %v611 = vmax.f32 %v595, 0.0
      %v612 = vmax.f32 %v596, 0.0
      %v613 = vmax.f32 %v597, 0.0
      %v614 = vmax.f32 %v598, 0.0
      %v615 = vmax.f32 %v599, 0.0
      %v616 = vmax.f32 %v600, 0.0
      %v617 = vmax.f32 %v601, 0.0
      %v618 = vmax.f32 %v442, %v602
      %v619 = vmax.f32 %v443, %v603
      %v620 = vmax.f32 %v444, %v604
      %v621 = vmax.f32 %v445, %v605
      %v622 = vmax.f32 %v446, %v606
      %v623 = vmax.f32 %v447, %v607
      %v624 = vmax.f32 %v448, %v608
      %v625 = vmax.f32 %v449, %v609
      %v626 = vmax.f32 %v450, %v610
      %v627 = vmax.f32 %v451, %v611
      %v628 = vmax.f32 %v452, %v612
      %v629 = vmax.f32 %v453, %v613
      %v630 = vmax.f32 %v454, %v614
      %v631 = vmax.f32 %v455, %v615
      %v632 = vmax.f32 %v456, %v616
      %v633 = vmax.f32 %v457, %v617
      %v634 = vmax.f32 %v618, %v619
      %v635 = vmax.f32 %v620, %v621
      %v636 = vmax.f32 %v622, %v623
      %v637 = vmax.f32 %v624, %v625
      %v638 = vmax.f32 %v626, %v627
      %v639 = vmax.f32 %v628, %v629
      %v640 = vmax.f32 %v630, %v631
      %v641 = vmax.f32 %v632, %v633
      %vm642 = vcmask 64512
      %643 = vst.msk [vmem:[%s271] sm:$0xff] %vm642, %v634
      %644 = vst.msk [vmem:[%s271 + $0x8] sm:$0xff] %vm642, %v635
      %645 = vst.msk [vmem:[%s271 + $0x10] sm:$0xff] %vm642, %v636
      %646 = vst.msk [vmem:[%s271 + $0x18] sm:$0xff] %vm642, %v637
      %647 = vst.msk [vmem:[%s271 + $0x20] sm:$0xff] %vm642, %v638
      %648 = vst.msk [vmem:[%s271 + $0x28] sm:$0xff] %vm642, %v639
      %649 = vst.msk [vmem:[%s271 + $0x30] sm:$0xff] %vm642, %v640
      %650 = vst.msk [vmem:[%s271 + $0x38] sm:$0xff] %vm642, %v641
      %p651 = scmp.lt.s32.totalorder %s17, 1
      %s652 = scalar_select %p651, %s17, 1
      %s653 = smul.addr %s652, 8
      %s654 = smul.addr %s653, 8
      %s655 = scalar_lea.vmem %s6, %s654
      // Predicated region
      $region45: #{block_forward.7} parent=43 // pred_check
        %p656 = pneg %p171
      $region46: #{block_forward.7} parent=43 // pred_check_branch
        %658 = sbr.rel (%p656) target = $region48
      $region47: #{block_forward.7} parent=43 // pred_region
        _
      $region48: #{block_forward.7} parent=43 // pred_fallthru
        _
    $region44: #{block_forward.7} parent=5 // pred_fallthru
      _
    %p659 = scmp.le.s32.totalorder 2, %s12
    // Predicated region
    $region49: #{block_forward.7} parent=5 // pred_check
      %p660 = pneg %p659
    $region50: #{block_forward.7} parent=5 // pred_check_branch
      %662 = sbr.rel (%p660) target = $region52
    $region51: #{block_forward.7} parent=5 // pred_region
      %s663 = ssub.s32 %s12, 2
      // Predicated region
      $region53: #{block_forward.7} parent=51 // pred_check
        %p664 = pneg %p177
      $region54: #{block_forward.7} parent=51 // pred_check_branch
        %666 = sbr.rel (%p664) target = $region56
      $region55: #{block_forward.7} parent=51 // pred_region
        %p667 = scmp.lt.s32.totalorder %s18, 1
        %s668 = scalar_select %p667, %s18, 1
        %s669 = smul.addr %s668, 8
        %s670 = smul.addr %s669, 8
        %s671 = scalar_lea.vmem %s6, %s670
      $region56: #{block_forward.7} parent=51 // pred_fallthru
        _
    $region52: #{block_forward.7} parent=5 // pred_fallthru
      _
  $region6: #{block_forward.7} parent=0 // loop_footer
    %s16 = sadd.s32 1, %s12
  $region7: #{block_forward.7} parent=0 // loop_footer_branch
    %11 = sbr.rel target = $region3
  $region8: #{block_forward.7} parent=0 // loop_exit
    _

// kernel: block_forward.4
$region0: #{block_forward.4}
  #allocation0 [shape = 'u32[]', space=smem, size = 0x4, offset = 0x4, fixed_abs, tag = 'smem constant byte address 0x4 - core index']
  #allocation1 [shape = 'u32[144,128]{1,0:T(1,128)}', space=vmem, size = 0x12000, scoped, tag = 'internal scratch']
  #allocation2 [shape = 'f32[18,18,4]{2,1,0:T(8,128)}', space=vmem, size = 0x36000, scoped, tag = 'scratch operand']
  %s0 = inlined_call_operand.vmem [shape: f32[2,16,16,4], index: 0, kind: input, shape index: {}]
  %s1 = inlined_call_operand.vmem [shape: f32[3,12,8], index: 1, kind: input, shape index: {}]
  %s2 = inlined_call_operand.vmem [shape: f32[12,8], index: 2, kind: input, shape index: {}]
  %s3 = inlined_call_operand.vmem [shape: f32[2,16,16,8], index: 3, kind: output, shape index: {0}]
  %s4 = inlined_call_operand.vmem [shape: f32[2,2,8], index: 4, kind: output, shape index: {1}]
  %s5 = inlined_call_operand.vmem [shape: f32[2,16,16,8], index: 5, kind: output, shape index: {2}]
  %s6 = inlined_call_operand.vmem [shape: f32[2,2,8], index: 6, kind: output, shape index: {3}]
  %7 = xla_tuple %s3, %s4, %s5, %s6
  %s8 = sld [smem:[#allocation0]]
  $region73: #{block_forward.4} parent=0
    _
  %s10 = ssub.s32 1, %s8
  %s11 = scalar_select 0, %s10, %s8
  loop: start=0, step=1, limit=4
  $region2: #{block_forward.4} parent=0 // loop_pre_header
    _
  $region3: #{block_forward.4} parent=0 // loop_header
    %s13 = sphi 0, %s17
    %p14 = scmp.ge.s32.totalorder %s13, 4
    %s20 = sphi 0, %s32
    %s21 = sphi 0, %s28
    %s22 = sphi 0, %s20
    %s23 = sphi 0, %s21
    %s24 = sphi 0, %s22
    %s25 = sphi 0, %s23
    %s35 = sphi 0, %s37
    %s38 = sphi 0, %s35
    %s39 = sphi 0, %s38
    %s55 = sphi 0, %s39
    %s61 = sphi 0, %s63
    %s64 = sphi 0, %s61
    %s65 = sphi 0, %s64
    %s81 = sphi 0, %s65
    %s87 = sphi 0, %s89
    %s90 = sphi 0, %s87
    %s91 = sphi 0, %s90
    %s107 = sphi 0, %s91
    %s115 = sphi 0, %s117
    %s118 = sphi 0, %s115
    %s119 = sphi 0, %s118
    %s135 = sphi 0, %s119
    %s143 = sphi 0, %s145
    %s146 = sphi 0, %s143
    %s147 = sphi 0, %s146
    %s163 = sphi 0, %s147
    %s171 = sphi 0, %s173
    %s174 = sphi 0, %s171
    %s175 = sphi 0, %s174
    %s191 = sphi 0, %s175
    %s199 = sphi 0, %s201
    %s202 = sphi 0, %s199
    %s203 = sphi 0, %s202
    %s219 = sphi 0, %s203
  $region4: #{block_forward.4} parent=0 // loop_header_branch
    %16 = sbr.rel (%p14) target = $region8
  $region5: #{block_forward.4} parent=0 // loop_body
    %s18 = ssub.s32 %s13, 1
    %s19 = ssub.s32 %s13, 2
    %s26 = sadd.s32 1, %s21
    %p27 = scmp.ge.s32.totalorder %s26, 1
    %s28 = scalar_select %p27, 0, %s26
    %s29 = sadd.s32 1, %s20
    %s30 = scalar_select %p27, %s29, %s20
    %p31 = scmp.ge.s32.totalorder %s30, 2
    %s32 = scalar_select %p31, 0, %s30
    %s33 = ssub.s32 %s20, %s32
    %p34 = scmp.eq.s32.totalorder %s33, 0
    %s36 = sadd.s32 %s35, 1
    %s37 = scalar_select %p34, %s35, %s36
    %p40 = pneg %p34
    %p41 = scmp.eq.s32.totalorder %s13, 1
    %p42 = por %p40, %p41
    %p43 = scmp.ne.s32.totalorder %s35, %s38
    %p44 = scmp.eq.s32.totalorder %s13, 0
    %p45 = por %p43, %p44
    %p46 = scmp.ne.s32.totalorder %s35, %s38
    %p47 = scmp.eq.s32.totalorder %s18, 1
    %p48 = por %p46, %p47
    %p49 = scmp.ne.s32.totalorder %s38, %s39
    %p50 = scmp.eq.s32.totalorder %s18, 0
    %p51 = por %p49, %p50
    %p52 = scmp.ne.s32.totalorder %s38, %s39
    %p53 = scmp.eq.s32.totalorder %s19, 1
    %p54 = por %p52, %p53
    %p56 = scmp.ne.s32.totalorder %s39, %s55
    %p57 = scmp.eq.s32.totalorder %s19, 0
    %p58 = por %p56, %p57
    %s59 = ssub.s32 %s21, %s28
    %p60 = scmp.eq.s32.totalorder %s59, 0
    %s62 = sadd.s32 %s61, 1
    %s63 = scalar_select %p60, %s61, %s62
    %p66 = pneg %p60
    %p67 = scmp.eq.s32.totalorder %s13, 1
    %p68 = por %p66, %p67
    %p69 = scmp.ne.s32.totalorder %s61, %s64
    %p70 = scmp.eq.s32.totalorder %s13, 0
    %p71 = por %p69, %p70
    %p72 = scmp.ne.s32.totalorder %s61, %s64
    %p73 = scmp.eq.s32.totalorder %s18, 1
    %p74 = por %p72, %p73
    %p75 = scmp.ne.s32.totalorder %s64, %s65
    %p76 = scmp.eq.s32.totalorder %s18, 0
    %p77 = por %p75, %p76
    %p78 = scmp.ne.s32.totalorder %s64, %s65
    %p79 = scmp.eq.s32.totalorder %s19, 1
    %p80 = por %p78, %p79
    %p82 = scmp.ne.s32.totalorder %s65, %s81
    %p83 = scmp.eq.s32.totalorder %s19, 0
    %p84 = por %p82, %p83
    %s85 = ssub.s32 %s21, %s28
    %p86 = scmp.eq.s32.totalorder %s85, 0
    %s88 = sadd.s32 %s87, 1
    %s89 = scalar_select %p86, %s87, %s88
    %p92 = pneg %p86
    %p93 = scmp.eq.s32.totalorder %s13, 1
    %p94 = por %p92, %p93
    %p95 = scmp.ne.s32.totalorder %s87, %s90
    %p96 = scmp.eq.s32.totalorder %s13, 0
    %p97 = por %p95, %p96
    %p98 = scmp.ne.s32.totalorder %s87, %s90
    %p99 = scmp.eq.s32.totalorder %s18, 1
    %p100 = por %p98, %p99
    %p101 = scmp.ne.s32.totalorder %s90, %s91
    %p102 = scmp.eq.s32.totalorder %s18, 0
    %p103 = por %p101, %p102
    %p104 = scmp.ne.s32.totalorder %s90, %s91
    %p105 = scmp.eq.s32.totalorder %s19, 1
    %p106 = por %p104, %p105
    %p108 = scmp.ne.s32.totalorder %s91, %s107
    %p109 = scmp.eq.s32.totalorder %s19, 0
    %p110 = por %p108, %p109
    %s111 = ssub.s32 %s20, %s32
    %s112 = ssub.s32 %s21, %s28
    %s113 = sor.u32 %s111, %s112
    %p114 = scmp.eq.s32.totalorder %s113, 0
    %s116 = sadd.s32 %s115, 1
    %s117 = scalar_select %p114, %s115, %s116
    %p120 = pneg %p114
    %p121 = scmp.eq.s32.totalorder %s13, 1
    %p122 = por %p120, %p121
    %p123 = scmp.ne.s32.totalorder %s115, %s118
    %p124 = scmp.eq.s32.totalorder %s13, 0
    %p125 = por %p123, %p124
    %p126 = scmp.ne.s32.totalorder %s115, %s118
    %p127 = scmp.eq.s32.totalorder %s18, 1
    %p128 = por %p126, %p127
    %p129 = scmp.ne.s32.totalorder %s118, %s119
    %p130 = scmp.eq.s32.totalorder %s18, 0
    %p131 = por %p129, %p130
    %p132 = scmp.ne.s32.totalorder %s118, %s119
    %p133 = scmp.eq.s32.totalorder %s19, 1
    %p134 = por %p132, %p133
    %p136 = scmp.ne.s32.totalorder %s119, %s135
    %p137 = scmp.eq.s32.totalorder %s19, 0
    %p138 = por %p136, %p137
    %s139 = ssub.s32 %s20, %s32
    %s140 = ssub.s32 %s21, %s28
    %s141 = sor.u32 %s139, %s140
    %p142 = scmp.eq.s32.totalorder %s141, 0
    %s144 = sadd.s32 %s143, 1
    %s145 = scalar_select %p142, %s143, %s144
    %p148 = pneg %p142
    %p149 = scmp.eq.s32.totalorder %s13, 1
    %p150 = por %p148, %p149
    %p151 = scmp.ne.s32.totalorder %s143, %s146
    %p152 = scmp.eq.s32.totalorder %s13, 0
    %p153 = por %p151, %p152
    %p154 = scmp.ne.s32.totalorder %s143, %s146
    %p155 = scmp.eq.s32.totalorder %s18, 1
    %p156 = por %p154, %p155
    %p157 = scmp.ne.s32.totalorder %s146, %s147
    %p158 = scmp.eq.s32.totalorder %s18, 0
    %p159 = por %p157, %p158
    %p160 = scmp.ne.s32.totalorder %s146, %s147
    %p161 = scmp.eq.s32.totalorder %s19, 1
    %p162 = por %p160, %p161
    %p164 = scmp.ne.s32.totalorder %s147, %s163
    %p165 = scmp.eq.s32.totalorder %s19, 0
    %p166 = por %p164, %p165
    %s167 = ssub.s32 %s20, %s32
    %s168 = ssub.s32 %s21, %s28
    %s169 = sor.u32 %s167, %s168
    %p170 = scmp.eq.s32.totalorder %s169, 0
    %s172 = sadd.s32 %s171, 1
    %s173 = scalar_select %p170, %s171, %s172
    %p176 = pneg %p170
    %p177 = scmp.eq.s32.totalorder %s13, 1
    %p178 = por %p176, %p177
    %p179 = scmp.ne.s32.totalorder %s171, %s174
    %p180 = scmp.eq.s32.totalorder %s13, 0
    %p181 = por %p179, %p180
    %p182 = scmp.ne.s32.totalorder %s171, %s174
    %p183 = scmp.eq.s32.totalorder %s18, 1
    %p184 = por %p182, %p183
    %p185 = scmp.ne.s32.totalorder %s174, %s175
    %p186 = scmp.eq.s32.totalorder %s18, 0
    %p187 = por %p185, %p186
    %p188 = scmp.ne.s32.totalorder %s174, %s175
    %p189 = scmp.eq.s32.totalorder %s19, 1
    %p190 = por %p188, %p189
    %p192 = scmp.ne.s32.totalorder %s175, %s191
    %p193 = scmp.eq.s32.totalorder %s19, 0
    %p194 = por %p192, %p193
    %s195 = ssub.s32 %s20, %s32
    %s196 = ssub.s32 %s21, %s28
    %s197 = sor.u32 %s195, %s196
    %p198 = scmp.eq.s32.totalorder %s197, 0
    %s200 = sadd.s32 %s199, 1
    %s201 = scalar_select %p198, %s199, %s200
    %p204 = pneg %p198
    %p205 = scmp.eq.s32.totalorder %s13, 1
    %p206 = por %p204, %p205
    %p207 = scmp.ne.s32.totalorder %s199, %s202
    %p208 = scmp.eq.s32.totalorder %s13, 0
    %p209 = por %p207, %p208
    %p210 = scmp.ne.s32.totalorder %s199, %s202
    %p211 = scmp.eq.s32.totalorder %s18, 1
    %p212 = por %p210, %p211
    %p213 = scmp.ne.s32.totalorder %s202, %s203
    %p214 = scmp.eq.s32.totalorder %s18, 0
    %p215 = por %p213, %p214
    %p216 = scmp.ne.s32.totalorder %s202, %s203
    %p217 = scmp.eq.s32.totalorder %s19, 1
    %p218 = por %p216, %p217
    %p220 = scmp.ne.s32.totalorder %s203, %s219
    %p221 = scmp.eq.s32.totalorder %s19, 0
    %p222 = por %p220, %p221
    %p223 = scmp.le.s32.totalorder 1, %s13
    %p224 = scmp.lt.s32.totalorder %s13, 3
    %p225 = pnand %p223, %p224
    %p226 = pneg %p225
    // Predicated region
    $region9: #{block_forward.4} parent=5 // pred_check
      _
    $region10: #{block_forward.4} parent=5 // pred_check_branch
      %228 = sbr.rel (%p225) target = $region12
    $region11: #{block_forward.4} parent=5 // pred_region
      %s229 = ssub.s32 %s13, 1
      // Predicated region
      $region13: #{block_forward.4} parent=11 // pred_check
        %p230 = pneg %p77
      $region14: #{block_forward.4} parent=11 // pred_check_branch
        %232 = sbr.rel (%p230) target = $region16
      $region15: #{block_forward.4} parent=11 // pred_region
        %p233 = scmp.lt.s32.totalorder %s23, 0
        %s234 = scalar_select %p233, %s23, 0
        %s235 = smul.addr %s234, 8
        %s236 = scalar_lea.vmem %s1, %s235
      $region16: #{block_forward.4} parent=11 // pred_fallthru
        _
      // Predicated region
      $region17: #{block_forward.4} parent=11 // pred_check
        %p237 = pneg %p103
      $region18: #{block_forward.4} parent=11 // pred_check_branch
        %239 = sbr.rel (%p237) target = $region20
      $region19: #{block_forward.4} parent=11 // pred_region
        %p240 = scmp.lt.s32.totalorder %s23, 0
        %s241 = scalar_select %p240, %s23, 0
        %s242 = smul.addr %s241, 8
        %s243 = scalar_lea.vmem %s2, %s242
      $region20: #{block_forward.4} parent=11 // pred_fallthru
        _
    $region12: #{block_forward.4} parent=5 // pred_fallthru
      _
    %p244 = scmp.lt.s32.totalorder %s13, 2
    // Predicated region
    $region21: #{block_forward.4} parent=5 // pred_check
      %p245 = pneg %p244
    $region22: #{block_forward.4} parent=5 // pred_check_branch
      %247 = sbr.rel (%p245) target = $region24
    $region23: #{block_forward.4} parent=5 // pred_region
      // Predicated region
      $region25: #{block_forward.4} parent=23 // pred_check
        %p248 = pneg %p45
      $region26: #{block_forward.4} parent=23 // pred_check_branch
        %250 = sbr.rel (%p248) target = $region28
      $region27: #{block_forward.4} parent=23 // pred_region
        %p251 = scmp.lt.s32.totalorder %s20, 1
        %s252 = scalar_select %p251, %s20, 1
        %s253 = smul.addr %s252, 32
        %s254 = smul.addr %s253, 8
        %s255 = scalar_lea.vmem %s0, %s254
      $region28: #{block_forward.4} parent=23 // pred_fallthru
        _
    $region24: #{block_forward.4} parent=5 // pred_fallthru
      _
    %p256 = scmp.le.s32.totalorder 1, %s13
    %p257 = scmp.lt.s32.totalorder %s13, 3
    %p258 = pnand %p256, %p257
    %p259 = pneg %p258
    // Predicated region
    $region29: #{block_forward.4} parent=5 // pred_check
      _
    $region30: #{block_forward.4} parent=5 // pred_check_branch
      %261 = sbr.rel (%p258) target = $region32
    $region31: #{block_forward.4} parent=5 // pred_region
      %s262 = ssub.s32 %s13, 1
      %p263 = scmp.lt.s32.totalorder %s22, 1
      %s264 = scalar_select %p263, %s22, 1
      %s265 = smul.addr %s264, 32
      %s266 = smul.addr %s265, 8
      %s267 = scalar_lea.vmem %s0, %s266
      %p268 = pneg %p51
      %p269 = pneg %p48
      %p270 = scmp.lt.s32.totalorder %s23, 0
      %s271 = scalar_select %p270, %s23, 0
      %s272 = smul.addr %s271, 8
      %s273 = scalar_lea.vmem %s1, %s272
      %p274 = pneg %p77
      %p275 = pneg %p74
      %p276 = scmp.lt.s32.totalorder %s23, 0
      %s277 = scalar_select %p276, %s23, 0
      %s278 = smul.addr %s277, 8
      %s279 = scalar_lea.vmem %s2, %s278
      %p280 = pneg %p103
      %p281 = pneg %p100
      %p282 = pneg %p131
      %p283 = pneg %p128
      %p284 = scmp.lt.s32.totalorder %s22, 1
      %s285 = scalar_select %p284, %s22, 1
      %p286 = scmp.lt.s32.totalorder %s23, 0
      %s287 = scalar_select %p286, %s23, 0
      %s288 = smul.addr %s285, 32
      %s289 = sadd.s32 %s287, %s288
      %s290 = smul.addr %s289, 8
      %s291 = scalar_lea.vmem %s3, %s290
      %p292 = pneg %p159
      %p293 = pneg %p156
      %p294 = scmp.lt.s32.totalorder %s22, 1
      %s295 = scalar_select %p294, %s22, 1
      %p296 = scmp.lt.s32.totalorder %s23, 0
      %s297 = scalar_select %p296, %s23, 0
      %s298 = sadd.s32 %s297, %s295
      %s299 = smul.addr %s298, 2
      %s300 = scalar_lea.vmem %s4, %s299
      %p301 = pneg %p187
      %p302 = pneg %p184
      %p303 = scmp.lt.s32.totalorder %s22, 1
      %s304 = scalar_select %p303, %s22, 1
      %p305 = scmp.lt.s32.totalorder %s23, 0
      %s306 = scalar_select %p305, %s23, 0
      %s307 = smul.addr %s304, 32
      %s308 = sadd.s32 %s306, %s307
      %s309 = smul.addr %s308, 8
      %s310 = scalar_lea.vmem %s5, %s309
      %p311 = pneg %p215
      %p312 = pneg %p212
      %p313 = scmp.lt.s32.totalorder %s22, 1
      %s314 = scalar_select %p313, %s22, 1
      %p315 = scmp.lt.s32.totalorder %s23, 0
      %s316 = scalar_select %p315, %s23, 0
      %s317 = sadd.s32 %s316, %s314
      %s318 = smul.addr %s317, 2
      %s319 = scalar_lea.vmem %s6, %s318
      %p320 = scmp.lt.s32.totalorder %s22, 1
      %s321 = scalar_select %p320, %s22, 1
      %s322 = smul.addr %s321, 32
      %s323 = smul.addr %s322, 8
      %s324 = scalar_lea.vmem %s0, %s323
      %p325 = scmp.lt.s32.totalorder %s23, 0
      %s326 = scalar_select %p325, %s23, 0
      %s327 = smul.addr %s326, 8
      %s328 = scalar_lea.vmem %s1, %s327
      %p329 = scmp.lt.s32.totalorder %s23, 0
      %s330 = scalar_select %p329, %s23, 0
      %s331 = smul.addr %s330, 8
      %s332 = scalar_lea.vmem %s2, %s331
      %p333 = scmp.lt.s32.totalorder %s22, 1
      %s334 = scalar_select %p333, %s22, 1
      %p335 = scmp.lt.s32.totalorder %s23, 0
      %s336 = scalar_select %p335, %s23, 0
      %s337 = smul.addr %s334, 32
      %s338 = sadd.s32 %s336, %s337
      %s339 = smul.addr %s338, 8
      %s340 = scalar_lea.vmem %s3, %s339
      %p341 = scmp.lt.s32.totalorder %s22, 1
      %s342 = scalar_select %p341, %s22, 1
      %p343 = scmp.lt.s32.totalorder %s23, 0
      %s344 = scalar_select %p343, %s23, 0
      %s345 = sadd.s32 %s344, %s342
      %s346 = smul.addr %s345, 2
      %s347 = scalar_lea.vmem %s4, %s346
      %p348 = scmp.lt.s32.totalorder %s22, 1
      %s349 = scalar_select %p348, %s22, 1
      %p350 = scmp.lt.s32.totalorder %s23, 0
      %s351 = scalar_select %p350, %s23, 0
      %s352 = smul.addr %s349, 32
      %s353 = sadd.s32 %s351, %s352
      %s354 = smul.addr %s353, 8
      %s355 = scalar_lea.vmem %s5, %s354
      %p356 = scmp.lt.s32.totalorder %s22, 1
      %s357 = scalar_select %p356, %s22, 1
      %p358 = scmp.lt.s32.totalorder %s23, 0
      %s359 = scalar_select %p358, %s23, 0
      %s360 = sadd.s32 %s359, %s357
      %s361 = smul.addr %s360, 2
      %s362 = scalar_lea.vmem %s6, %s361
      %p363 = scmp.eq.s32.totalorder %s23, 0
      // Predicated region
      $region33: #{block_forward.4} parent=31 // pred_check
        %p364 = pneg %p363
      $region34: #{block_forward.4} parent=31 // pred_check_branch
        %366 = sbr.rel (%p364) target = $region36
      $region35: #{block_forward.4} parent=31 // pred_region
        %vm367 = vcmask 31744
        %368 = vst.msk [vmem:[#allocation2] sm:$0xff] %vm367, 0.0
        %369 = vst.msk [vmem:[#allocation2 + $0x8] sm:$0xff] %vm367, 0.0
        %vm370 = vcmask 25600
        %371 = vst.msk [vmem:[#allocation2 + $0x10] sm:$0x3] %vm370, 0.0
        %s372 = scalar_lea.vmem [#allocation2], 408
        %373 = vst.msk [vmem:[%s372] sm:$0xff] %vm367, 0.0
        %374 = vst.msk [vmem:[%s372 + $0x8] sm:$0xff] %vm367, 0.0
        %375 = vst.msk [vmem:[%s372 + $0x10] sm:$0x3] %vm370, 0.0
        %s376 = scalar_lea.vmem [#allocation2], 24
        %vm377 = vcmask 24576
        %378 = vst.msk [vmem:[%s376] sm:$0x1] %vm377, 0.0
        %379 = vst.msk [vmem:[%s376 + $0x18] sm:$0x1] %vm377, 0.0
        %380 = vst.msk [vmem:[%s376 + $0x30] sm:$0x1] %vm377, 0.0
        %381 = vst.msk [vmem:[%s376 + $0x48] sm:$0x1] %vm377, 0.0
        %382 = vst.msk [vmem:[%s376 + $0x60] sm:$0x1] %vm377, 0.0
        %383 = vst.msk [vmem:[%s376 + $0x78] sm:$0x1] %vm377, 0.0
        %384 = vst.msk [vmem:[%s376 + $0x90] sm:$0x1] %vm377, 0.0
        %385 = vst.msk [vmem:[%s376 + $0xa8] sm:$0x1] %vm377, 0.0
        %386 = vst.msk [vmem:[%s376 + $0xc0] sm:$0x1] %vm377, 0.0
        %387 = vst.msk [vmem:[%s376 + $0xd8] sm:$0x1] %vm377, 0.0
        %388 = vst.msk [vmem:[%s376 + $0xf0] sm:$0x1] %vm377, 0.0
        %389 = vst.msk [vmem:[%s376 + $0x108] sm:$0x1] %vm377, 0.0
        %390 = vst.msk [vmem:[%s376 + $0x120] sm:$0x1] %vm377, 0.0
        %391 = vst.msk [vmem:[%s376 + $0x138] sm:$0x1] %vm377, 0.0
        %392 = vst.msk [vmem:[%s376 + $0x150] sm:$0x1] %vm377, 0.0
        %393 = vst.msk [vmem:[%s376 + $0x168] sm:$0x1] %vm377, 0.0
        %394 = vst.msk [vmem:[%s376 + $0x11] sm:$0x1] %vm377, 0.0
        %395 = vst.msk [vmem:[%s376 + $0x29] sm:$0x1] %vm377, 0.0
        %396 = vst.msk [vmem:[%s376 + $0x41] sm:$0x1] %vm377, 0.0
        %397 = vst.msk [vmem:[%s376 + $0x59] sm:$0x1] %vm377, 0.0
        %398 = vst.msk [vmem:[%s376 + $0x71] sm:$0x1] %vm377, 0.0
        %399 = vst.msk [vmem:[%s376 + $0x89] sm:$0x1] %vm377, 0.0
        %400 = vst.msk [vmem:[%s376 + $0xa1] sm:$0x1] %vm377, 0.0
        %401 = vst.msk [vmem:[%s376 + $0xb9] sm:$0x1] %vm377, 0.0
        %402 = vst.msk [vmem:[%s376 + $0xd1] sm:$0x1] %vm377, 0.0
        %403 = vst.msk [vmem:[%s376 + $0xe9] sm:$0x1] %vm377, 0.0
        %404 = vst.msk [vmem:[%s376 + $0x101] sm:$0x1] %vm377, 0.0
        %405 = vst.msk [vmem:[%s376 + $0x119] sm:$0x1] %vm377, 0.0
        %406 = vst.msk [vmem:[%s376 + $0x131] sm:$0x1] %vm377, 0.0
        %407 = vst.msk [vmem:[%s376 + $0x149] sm:$0x1] %vm377, 0.0
        %408 = vst.msk [vmem:[%s376 + $0x161] sm:$0x1] %vm377, 0.0
        %409 = vst.msk [vmem:[%s376 + $0x179] sm:$0x1] %vm377, 0.0
        %v410 = vld [vmem:[%s324] sm:$0xff]
        %v411 = vld [vmem:[%s324 + $0x8] sm:$0xff]
        %v412 = vld [vmem:[%s324 + $0x10] sm:$0xff]
        %v413 = vld [vmem:[%s324 + $0x18] sm:$0xff]
        %v414 = vld [vmem:[%s324 + $0x20] sm:$0xff]
        %v415 = vld [vmem:[%s324 + $0x28] sm:$0xff]
        %v416 = vld [vmem:[%s324 + $0x30] sm:$0xff]
        %v417 = vld [vmem:[%s324 + $0x38] sm:$0xff]
        %v418 = vld [vmem:[%s324 + $0x40] sm:$0xff]
        %v419 = vld [vmem:[%s324 + $0x48] sm:$0xff]
        %v420 = vld [vmem:[%s324 + $0x50] sm:$0xff]
        %v421 = vld [vmem:[%s324 + $0x58] sm:$0xff]
        %v422 = vld [vmem:[%s324 + $0x60] sm:$0xff]
        %v423 = vld [vmem:[%s324 + $0x68] sm:$0xff]
        %v424 = vld [vmem:[%s324 + $0x70] sm:$0xff]
        %v425 = vld [vmem:[%s324 + $0x78] sm:$0xff]
        %v426 = vld [vmem:[%s324 + $0x80] sm:$0xff]
        %v427 = vld [vmem:[%s324 + $0x88] sm:$0xff]
        %v428 = vld [vmem:[%s324 + $0x90] sm:$0xff]
        %v429 = vld [vmem:[%s324 + $0x98] sm:$0xff]
        %v430 = vld [vmem:[%s324 + $0xa0] sm:$0xff]
        %v431 = vld [vmem:[%s324 + $0xa8] sm:$0xff]
        %v432 = vld [vmem:[%s324 + $0xb0] sm:$0xff]
        %v433 = vld [vmem:[%s324 + $0xb8] sm:$0xff]
        %v434 = vld [vmem:[%s324 + $0xc0] sm:$0xff]
        %v435 = vld [vmem:[%s324 + $0xc8] sm:$0xff]
        %v436 = vld [vmem:[%s324 + $0xd0] sm:$0xff]
        %v437 = vld [vmem:[%s324 + $0xd8] sm:$0xff]
        %v438 = vld [vmem:[%s324 + $0xe0] sm:$0xff]
        %v439 = vld [vmem:[%s324 + $0xe8] sm:$0xff]
        %v440 = vld [vmem:[%s324 + $0xf0] sm:$0xff]
        %v441 = vld [vmem:[%s324 + $0xf8] sm:$0xff]
        %442 = vst.msk [vmem:[%s376 + $0x1] sm:$0xff] %vm367, %v410
        %443 = vst.msk [vmem:[%s376 + $0x9] sm:$0xff] %vm367, %v411
        %444 = vst.msk [vmem:[%s376 + $0x19] sm:$0xff] %vm367, %v412
        %445 = vst.msk [vmem:[%s376 + $0x21] sm:$0xff] %vm367, %v413
        %446 = vst.msk [vmem:[%s376 + $0x31] sm:$0xff] %vm367, %v414
        %447 = vst.msk [vmem:[%s376 + $0x39] sm:$0xff] %vm367, %v415
        %448 = vst.msk [vmem:[%s376 + $0x49] sm:$0xff] %vm367, %v416
        %449 = vst.msk [vmem:[%s376 + $0x51] sm:$0xff] %vm367, %v417
        %450 = vst.msk [vmem:[%s376 + $0x61] sm:$0xff] %vm367, %v418
        %451 = vst.msk [vmem:[%s376 + $0x69] sm:$0xff] %vm367, %v419
        %452 = vst.msk [vmem:[%s376 + $0x79] sm:$0xff] %vm367, %v420
        %453 = vst.msk [vmem:[%s376 + $0x81] sm:$0xff] %vm367, %v421
        %454 = vst.msk [vmem:[%s376 + $0x91] sm:$0xff] %vm367, %v422
        %455 = vst.msk [vmem:[%s376 + $0x99] sm:$0xff] %vm367, %v423
        %456 = vst.msk [vmem:[%s376 + $0xa9] sm:$0xff] %vm367, %v424
        %457 = vst.msk [vmem:[%s376 + $0xb1] sm:$0xff] %vm367, %v425
        %458 = vst.msk [vmem:[%s376 + $0xc1] sm:$0xff] %vm367, %v426
        %459 = vst.msk [vmem:[%s376 + $0xc9] sm:$0xff] %vm367, %v427
        %460 = vst.msk [vmem:[%s376 + $0xd9] sm:$0xff] %vm367, %v428
        %461 = vst.msk [vmem:[%s376 + $0xe1] sm:$0xff] %vm367, %v429
        %462 = vst.msk [vmem:[%s376 + $0xf1] sm:$0xff] %vm367, %v430
        %463 = vst.msk [vmem:[%s376 + $0xf9] sm:$0xff] %vm367, %v431
        %464 = vst.msk [vmem:[%s376 + $0x109] sm:$0xff] %vm367, %v432
        %465 = vst.msk [vmem:[%s376 + $0x111] sm:$0xff] %vm367, %v433
        %466 = vst.msk [vmem:[%s376 + $0x121] sm:$0xff] %vm367, %v434
        %467 = vst.msk [vmem:[%s376 + $0x129] sm:$0xff] %vm367, %v435
        %468 = vst.msk [vmem:[%s376 + $0x139] sm:$0xff] %vm367, %v436
        %469 = vst.msk [vmem:[%s376 + $0x141] sm:$0xff] %vm367, %v437
        %470 = vst.msk [vmem:[%s376 + $0x151] sm:$0xff] %vm367, %v438
        %471 = vst.msk [vmem:[%s376 + $0x159] sm:$0xff] %vm367, %v439
        %472 = vst.msk [vmem:[%s376 + $0x169] sm:$0xff] %vm367, %v440
        %473 = vst.msk [vmem:[%s376 + $0x171] sm:$0xff] %vm367, %v441
      $region36: #{block_forward.4} parent=31 // pred_fallthru
        _
      %v474 = vld [vmem:[#allocation2] sm:$0xff]
      %v475 = vld [vmem:[#allocation2 + $0x8] sm:$0xff]
      %v476 = vld [vmem:[#allocation2 + $0x18] sm:$0xff]
      %v477 = vld [vmem:[#allocation2 + $0x20] sm:$0xff]
      %v478 = vld [vmem:[#allocation2 + $0x30] sm:$0xff]
      %v479 = vld [vmem:[#allocation2 + $0x38] sm:$0xff]
      %v480 = vld [vmem:[#allocation2 + $0x48] sm:$0xff]
      %v481 = vld [vmem:[#allocation2 + $0x50] sm:$0xff]
      %v482 = vld [vmem:[#allocation2 + $0x60] sm:$0xff]
      %v483 = vld [vmem:[#allocation2 + $0x68] sm:$0xff]
      %v484 = vld [vmem:[#allocation2 + $0x78] sm:$0xff]
      %v485 = vld [vmem:[#allocation2 + $0x80] sm:$0xff]
      %v486 = vld [vmem:[#allocation2 + $0x90] sm:$0xff]
      %v487 = vld [vmem:[#allocation2 + $0x98] sm:$0xff]
      %v488 = vld [vmem:[#allocation2 + $0xa8] sm:$0xff]
      %v489 = vld [vmem:[#allocation2 + $0xb0] sm:$0xff]
      %v490 = vld [vmem:[#allocation2 + $0xc0] sm:$0xff]
      %v491 = vld [vmem:[#allocation2 + $0xc8] sm:$0xff]
      %v492 = vld [vmem:[#allocation2 + $0xd8] sm:$0xff]
      %v493 = vld [vmem:[#allocation2 + $0xe0] sm:$0xff]
      %v494 = vld [vmem:[#allocation2 + $0xf0] sm:$0xff]
      %v495 = vld [vmem:[#allocation2 + $0xf8] sm:$0xff]
      %v496 = vld [vmem:[#allocation2 + $0x108] sm:$0xff]
      %v497 = vld [vmem:[#allocation2 + $0x110] sm:$0xff]
      %v498 = vld [vmem:[#allocation2 + $0x120] sm:$0xff]
      %v499 = vld [vmem:[#allocation2 + $0x128] sm:$0xff]
      %v500 = vld [vmem:[#allocation2 + $0x138] sm:$0xff]
      %v501 = vld [vmem:[#allocation2 + $0x140] sm:$0xff]
      %v502 = vld [vmem:[#allocation2 + $0x150] sm:$0xff]
      %v503 = vld [vmem:[#allocation2 + $0x158] sm:$0xff]
      %v504 = vld [vmem:[#allocation2 + $0x168] sm:$0xff]
      %v505 = vld [vmem:[#allocation2 + $0x170] sm:$0xff]
      %v506 = vld [vmem:[#allocation2 + $0x1] sm:$0xff]
      %v507 = vld [vmem:[#allocation2 + $0x9] sm:$0xff]
      %v508 = vld [vmem:[#allocation2 + $0x19] sm:$0xff]
      %v509 = vld [vmem:[#allocation2 + $0x21] sm:$0xff]
      %v510 = vld [vmem:[#allocation2 + $0x31] sm:$0xff]
      %v511 = vld [vmem:[#allocation2 + $0x39] sm:$0xff]
      %v512 = vld [vmem:[#allocation2 + $0x49] sm:$0xff]
      %v513 = vld [vmem:[#allocation2 + $0x51] sm:$0xff]
      %v514 = vld [vmem:[#allocation2 + $0x61] sm:$0xff]
      %v515 = vld [vmem:[#allocation2 + $0x69] sm:$0xff]
      %v516 = vld [vmem:[#allocation2 + $0x79] sm:$0xff]
      %v517 = vld [vmem:[#allocation2 + $0x81] sm:$0xff]
      %v518 = vld [vmem:[#allocation2 + $0x91] sm:$0xff]
      %v519 = vld [vmem:[#allocation2 + $0x99] sm:$0xff]
      %v520 = vld [vmem:[#allocation2 + $0xa9] sm:$0xff]
      %v521 = vld [vmem:[#allocation2 + $0xb1] sm:$0xff]
      %v522 = vld [vmem:[#allocation2 + $0xc1] sm:$0xff]
      %v523 = vld [vmem:[#allocation2 + $0xc9] sm:$0xff]
      %v524 = vld [vmem:[#allocation2 + $0xd9] sm:$0xff]
      %v525 = vld [vmem:[#allocation2 + $0xe1] sm:$0xff]
      %v526 = vld [vmem:[#allocation2 + $0xf1] sm:$0xff]
      %v527 = vld [vmem:[#allocation2 + $0xf9] sm:$0xff]
      %v528 = vld [vmem:[#allocation2 + $0x109] sm:$0xff]
      %v529 = vld [vmem:[#allocation2 + $0x111] sm:$0xff]
      %v530 = vld [vmem:[#allocation2 + $0x121] sm:$0xff]
      %v531 = vld [vmem:[#allocation2 + $0x129] sm:$0xff]
      %v532 = vld [vmem:[#allocation2 + $0x139] sm:$0xff]
      %v533 = vld [vmem:[#allocation2 + $0x141] sm:$0xff]
      %v534 = vld [vmem:[#allocation2 + $0x151] sm:$0xff]
      %v535 = vld [vmem:[#allocation2 + $0x159] sm:$0xff]
      %v536 = vld [vmem:[#allocation2 + $0x169] sm:$0xff]
      %v537 = vld [vmem:[#allocation2 + $0x171] sm:$0xff]
      %v538 = vld [vmem:[#allocation2 + $0x2] sm:$0xff]
      %v539 = vld [vmem:[#allocation2 + $0xa] sm:$0xff]
      %v540 = vld [vmem:[#allocation2 + $0x1a] sm:$0xff]
      %v541 = vld [vmem:[#allocation2 + $0x22] sm:$0xff]
      %v542 = vld [vmem:[#allocation2 + $0x32] sm:$0xff]
      %v543 = vld [vmem:[#allocation2 + $0x3a] sm:$0xff]
      %v544 = vld [vmem:[#allocation2 + $0x4a] sm:$0xff]
      %v545 = vld [vmem:[#allocation2 + $0x52] sm:$0xff]
      %v546 = vld [vmem:[#allocation2 + $0x62] sm:$0xff]
      %v547 = vld [vmem:[#allocation2 + $0x6a] sm:$0xff]
      %v548 = vld [vmem:[#allocation2 + $0x7a] sm:$0xff]
      %v549 = vld [vmem:[#allocation2 + $0x82] sm:$0xff]
      %v550 = vld [vmem:[#allocation2 + $0x92] sm:$0xff]
      %v551 = vld [vmem:[#allocation2 + $0x9a] sm:$0xff]
      %v552 = vld [vmem:[#allocation2 + $0xaa] sm:$0xff]
      %v553 = vld [vmem:[#allocation2 + $0xb2] sm:$0xff]
      %v554 = vld [vmem:[#allocation2 + $0xc2] sm:$0xff]
      %v555 = vld [vmem:[#allocation2 + $0xca] sm:$0xff]
      %v556 = vld [vmem:[#allocation2 + $0xda] sm:$0xff]
      %v557 = vld [vmem:[#allocation2 + $0xe2] sm:$0xff]
      %v558 = vld [vmem:[#allocation2 + $0xf2] sm:$0xff]
      %v559 = vld [vmem:[#allocation2 + $0xfa] sm:$0xff]
      %v560 = vld [vmem:[#allocation2 + $0x10a] sm:$0xff]
      %v561 = vld [vmem:[#allocation2 + $0x112] sm:$0xff]
      %v562 = vld [vmem:[#allocation2 + $0x122] sm:$0xff]
      %v563 = vld [vmem:[#allocation2 + $0x12a] sm:$0xff]
      %v564 = vld [vmem:[#allocation2 + $0x13a] sm:$0xff]
      %v565 = vld [vmem:[#allocation2 + $0x142] sm:$0xff]
      %v566 = vld [vmem:[#allocation2 + $0x152] sm:$0xff]
      %v567 = vld [vmem:[#allocation2 + $0x15a] sm:$0xff]
      %v568 = vld [vmem:[#allocation2 + $0x16a] sm:$0xff]
      %v569 = vld [vmem:[#allocation2 + $0x172] sm:$0xff]
      %602 = vrot.lane.b32.xlu0 %v506, 4
      %v603 = vpop.permute.xlu0 %602
      %604 = vrot.lane.b32.xlu0 %v507, 4
      %v605 = vpop.permute.xlu0 %604
      %606 = vrot.lane.b32.xlu0 %v508, 4
      %v607 = vpop.permute.xlu0 %606
      %608 = vrot.lane.b32.xlu0 %v509, 4
      %v609 = vpop.permute.xlu0 %608
      %610 = vrot.lane.b32.xlu0 %v510, 4
      %v611 = vpop.permute.xlu0 %610
      %612 = vrot.lane.b32.xlu0 %v511, 4
      %v613 = vpop.permute.xlu0 %612
      %614 = vrot.lane.b32.xlu0 %v512, 4
      %v615 = vpop.permute.xlu0 %614
      %616 = vrot.lane.b32.xlu0 %v513, 4
      %v617 = vpop.permute.xlu0 %616
      %618 = vrot.lane.b32.xlu0 %v514, 4
      %v619 = vpop.permute.xlu0 %618
      %620 = vrot.lane.b32.xlu0 %v515, 4
      %v621 = vpop.permute.xlu0 %620
      %622 = vrot.lane.b32.xlu0 %v516, 4
      %v623 = vpop.permute.xlu0 %622
      %624 = vrot.lane.b32.xlu0 %v517, 4
      %v625 = vpop.permute.xlu0 %624
      %626 = vrot.lane.b32.xlu0 %v518, 4
      %v627 = vpop.permute.xlu0 %626
      %628 = vrot.lane.b32.xlu0 %v519, 4
      %v629 = vpop.permute.xlu0 %628
      %630 = vrot.lane.b32.xlu0 %v520, 4
      %v631 = vpop.permute.xlu0 %630
      %632 = vrot.lane.b32.xlu0 %v521, 4
      %v633 = vpop.permute.xlu0 %632
      %634 = vrot.lane.b32.xlu0 %v522, 4
      %v635 = vpop.permute.xlu0 %634
      %636 = vrot.lane.b32.xlu0 %v523, 4
      %v637 = vpop.permute.xlu0 %636
      %638 = vrot.lane.b32.xlu0 %v524, 4
      %v639 = vpop.permute.xlu0 %638
      %640 = vrot.lane.b32.xlu0 %v525, 4
      %v641 = vpop.permute.xlu0 %640
      %642 = vrot.lane.b32.xlu0 %v526, 4
      %v643 = vpop.permute.xlu0 %642
      %644 = vrot.lane.b32.xlu0 %v527, 4
      %v645 = vpop.permute.xlu0 %644
      %646 = vrot.lane.b32.xlu0 %v528, 4
      %v647 = vpop.permute.xlu0 %646
      %648 = vrot.lane.b32.xlu0 %v529, 4
      %v649 = vpop.permute.xlu0 %648
      %650 = vrot.lane.b32.xlu0 %v530, 4
      %v651 = vpop.permute.xlu0 %650
      %652 = vrot.lane.b32.xlu0 %v531, 4
      %v653 = vpop.permute.xlu0 %652
      %654 = vrot.lane.b32.xlu0 %v532, 4
      %v655 = vpop.permute.xlu0 %654
      %656 = vrot.lane.b32.xlu0 %v533, 4
      %v657 = vpop.permute.xlu0 %656
      %658 = vrot.lane.b32.xlu0 %v534, 4
      %v659 = vpop.permute.xlu0 %658
      %660 = vrot.lane.b32.xlu0 %v535, 4
      %v661 = vpop.permute.xlu0 %660
      %662 = vrot.lane.b32.xlu0 %v536, 4
      %v663 = vpop.permute.xlu0 %662
      %664 = vrot.lane.b32.xlu0 %v537, 4
      %v665 = vpop.permute.xlu0 %664
      %730 = vrot.lane.b32.xlu0 %v538, 8
      %v731 = vpop.permute.xlu0 %730
      %732 = vrot.lane.b32.xlu0 %v539, 8
      %v733 = vpop.permute.xlu0 %732
      %734 = vrot.lane.b32.xlu0 %v540, 8
      %v735 = vpop.permute.xlu0 %734
      %736 = vrot.lane.b32.xlu0 %v541, 8
      %v737 = vpop.permute.xlu0 %736
      %738 = vrot.lane.b32.xlu0 %v542, 8
      %v739 = vpop.permute.xlu0 %738
      %740 = vrot.lane.b32.xlu0 %v543, 8
      %v741 = vpop.permute.xlu0 %740
      %742 = vrot.lane.b32.xlu0 %v544, 8
      %v743 = vpop.permute.xlu0 %742
      %744 = vrot.lane.b32.xlu0 %v545, 8
      %v745 = vpop.permute.xlu0 %744
      %746 = vrot.lane.b32.xlu0 %v546, 8
      %v747 = vpop.permute.xlu0 %746
      %748 = vrot.lane.b32.xlu0 %v547, 8
      %v749 = vpop.permute.xlu0 %748
      %750 = vrot.lane.b32.xlu0 %v548, 8
      %v751 = vpop.permute.xlu0 %750
      %752 = vrot.lane.b32.xlu0 %v549, 8
      %v753 = vpop.permute.xlu0 %752
      %754 = vrot.lane.b32.xlu0 %v550, 8
      %v755 = vpop.permute.xlu0 %754
      %756 = vrot.lane.b32.xlu0 %v551, 8
      %v757 = vpop.permute.xlu0 %756
      %758 = vrot.lane.b32.xlu0 %v552, 8
      %v759 = vpop.permute.xlu0 %758
      %760 = vrot.lane.b32.xlu0 %v553, 8
      %v761 = vpop.permute.xlu0 %760
      %762 = vrot.lane.b32.xlu0 %v554, 8
      %v763 = vpop.permute.xlu0 %762
      %764 = vrot.lane.b32.xlu0 %v555, 8
      %v765 = vpop.permute.xlu0 %764
      %766 = vrot.lane.b32.xlu0 %v556, 8
      %v767 = vpop.permute.xlu0 %766
      %768 = vrot.lane.b32.xlu0 %v557, 8
      %v769 = vpop.permute.xlu0 %768
      %770 = vrot.lane.b32.xlu0 %v558, 8
      %v771 = vpop.permute.xlu0 %770
      %772 = vrot.lane.b32.xlu0 %v559, 8
      %v773 = vpop.permute.xlu0 %772
      %774 = vrot.lane.b32.xlu0 %v560, 8
      %v775 = vpop.permute.xlu0 %774
      %776 = vrot.lane.b32.xlu0 %v561, 8
      %v777 = vpop.permute.xlu0 %776
      %778 = vrot.lane.b32.xlu0 %v562, 8
      %v779 = vpop.permute.xlu0 %778
      %780 = vrot.lane.b32.xlu0 %v563, 8
      %v781 = vpop.permute.xlu0 %780
      %782 = vrot.lane.b32.xlu0 %v564, 8
      %v783 = vpop.permute.xlu0 %782
      %784 = vrot.lane.b32.xlu0 %v565, 8
      %v785 = vpop.permute.xlu0 %784
      %786 = vrot.lane.b32.xlu0 %v566, 8
      %v787 = vpop.permute.xlu0 %786
      %788 = vrot.lane.b32.xlu0 %v567, 8
      %v789 = vpop.permute.xlu0 %788
      %790 = vrot.lane.b32.xlu0 %v568, 8
      %v791 = vpop.permute.xlu0 %790
      %792 = vrot.lane.b32.xlu0 %v569, 8
      %v793 = vpop.permute.xlu0 %792
      %vm826 = vcmask 31744
      %v827 = vsel %vm826, %v474, %v603
      %v828 = vsel %vm826, %v475, %v605
      %v829 = vsel %vm826, %v476, %v607
      %v830 = vsel %vm826, %v477, %v609
      %v831 = vsel %vm826, %v478, %v611
      %v832 = vsel %vm826, %v479, %v613
      %v833 = vsel %vm826, %v480, %v615
      %v834 = vsel %vm826, %v481, %v617
      %v835 = vsel %vm826, %v482, %v619
      %v836 = vsel %vm826, %v483, %v621
      %v837 = vsel %vm826, %v484, %v623
      %v838 = vsel %vm826, %v485, %v625
      %v839 = vsel %vm826, %v486, %v627
      %v840 = vsel %vm826, %v487, %v629
      %v841 = vsel %vm826, %v488, %v631
      %v842 = vsel %vm826, %v489, %v633
      %v843 = vsel %vm826, %v490, %v635
      %v844 = vsel %vm826, %v491, %v637
      %v845 = vsel %vm826, %v492, %v639
      %v846 = vsel %vm826, %v493, %v641
      %v847 = vsel %vm826, %v494, %v643
      %v848 = vsel %vm826, %v495, %v645
      %v849 = vsel %vm826, %v496, %v647
      %v850 = vsel %vm826, %v497, %v649
      %v851 = vsel %vm826, %v498, %v651
      %v852 = vsel %vm826, %v499, %v653
      %v853 = vsel %vm826, %v500, %v655
      %v854 = vsel %vm826, %v501, %v657
      %v855 = vsel %vm826, %v502, %v659
      %v856 = vsel %vm826, %v503, %v661
      %v857 = vsel %vm826, %v504, %v663
      %v858 = vsel %vm826, %v505, %v665
      %vm859 = vcmask 64512
      %v860 = vsel %vm859, %v827, %v731
      %v861 = vsel %vm859, %v828, %v733
      %v862 = vsel %vm859, %v829, %v735
      %v863 = vsel %vm859, %v830, %v737
      %v864 = vsel %vm859, %v831, %v739
      %v865 = vsel %vm859, %v832, %v741
      %v866 = vsel %vm859, %v833, %v743
      %v867 = vsel %vm859, %v834, %v745
      %v868 = vsel %vm859, %v835, %v747
      %v869 = vsel %vm859, %v836, %v749
      %v870 = vsel %vm859, %v837, %v751
      %v871 = vsel %vm859, %v838, %v753
      %v872 = vsel %vm859, %v839, %v755
      %v873 = vsel %vm859, %v840, %v757
      %v874 = vsel %vm859, %v841, %v759
      %v875 = vsel %vm859, %v842, %v761
      %v876 = vsel %vm859, %v843, %v763
      %v877 = vsel %vm859, %v844, %v765
      %v878 = vsel %vm859, %v845, %v767
      %v879 = vsel %vm859, %v846, %v769
      %v880 = vsel %vm859, %v847, %v771
      %v881 = vsel %vm859, %v848, %v773
      %v882 = vsel %vm859, %v849, %v775
      %v883 = vsel %vm859, %v850, %v777
      %v884 = vsel %vm859, %v851, %v779
      %v885 = vsel %vm859, %v852, %v781
      %v886 = vsel %vm859, %v853, %v783
      %v887 = vsel %vm859, %v854, %v785
      %v888 = vsel %vm859, %v855, %v787
      %v889 = vsel %vm859, %v856, %v789
      %v890 = vsel %vm859, %v857, %v791
      %v891 = vsel %vm859, %v858, %v793
      %v892 = vld [vmem:[%s328] sm:$0xff]
      %v893 = vld [vmem:[%s328 + $0x8] sm:$0xf]
      %s894 = scalar_lea.vmem [#allocation2], 24
      %v895 = vld [vmem:[%s894] sm:$0xff]
      %v896 = vld [vmem:[%s894 + $0x8] sm:$0xff]
      %v897 = vld [vmem:[%s894 + $0x18] sm:$0xff]
      %v898 = vld [vmem:[%s894 + $0x20] sm:$0xff]
      %v899 = vld [vmem:[%s894 + $0x30] sm:$0xff]
      %v900 = vld [vmem:[%s894 + $0x38] sm:$0xff]
      %v901 = vld [vmem:[%s894 + $0x48] sm:$0xff]
      %v902 = vld [vmem:[%s894 + $0x50] sm:$0xff]
      %v903 = vld [vmem:[%s894 + $0x60] sm:$0xff]
      %v904 = vld [vmem:[%s894 + $0x68] sm:$0xff]
      %v905 = vld [vmem:[%s894 + $0x78] sm:$0xff]
      %v906 = vld [vmem:[%s894 + $0x80] sm:$0xff]
      %v907 = vld [vmem:[%s894 + $0x90] sm:$0xff]
      %v908 = vld [vmem:[%s894 + $0x98] sm:$0xff]
      %v909 = vld [vmem:[%s894 + $0xa8] sm:$0xff]
      %v910 = vld [vmem:[%s894 + $0xb0] sm:$0xff]
      %v911 = vld [vmem:[%s894 + $0xc0] sm:$0xff]
      %v912 = vld [vmem:[%s894 + $0xc8] sm:$0xff]
      %v913 = vld [vmem:[%s894 + $0xd8] sm:$0xff]
      %v914 = vld [vmem:[%s894 + $0xe0] sm:$0xff]
      %v915 = vld [vmem:[%s894 + $0xf0] sm:$0xff]
      %v916 = vld [vmem:[%s894 + $0xf8] sm:$0xff]
      %v917 = vld [vmem:[%s894 + $0x108] sm:$0xff]
      %v918 = vld [vmem:[%s894 + $0x110] sm:$0xff]
      %v919 = vld [vmem:[%s894 + $0x120] sm:$0xff]
      %v920 = vld [vmem:[%s894 + $0x128] sm:$0xff]
      %v921 = vld [vmem:[%s894 + $0x138] sm:$0xff]
      %v922 = vld [vmem:[%s894 + $0x140] sm:$0xff]
      %v923 = vld [vmem:[%s894 + $0x150] sm:$0xff]
      %v924 = vld [vmem:[%s894 + $0x158] sm:$0xff]
      %v925 = vld [vmem:[%s894 + $0x168] sm:$0xff]
      %v926 = vld [vmem:[%s894 + $0x170] sm:$0xff]
      %v927 = vld [vmem:[%s894 + $0x1] sm:$0xff]
      %v928 = vld [vmem:[%s894 + $0x9] sm:$0xff]
      %v929 = vld [vmem:[%s894 + $0x19] sm:$0xff]
      %v930 = vld [vmem:[%s894 + $0x21] sm:$0xff]
      %v931 = vld [vmem:[%s894 + $0x31] sm:$0xff]
      %v932 = vld [vmem:[%s894 + $0x39] sm:$0xff]
      %v933 = vld [vmem:[%s894 + $0x49] sm:$0xff]
      %v934 = vld [vmem:[%s894 + $0x51] sm:$0xff]
      %v935 = vld [vmem:[%s894 + $0x61] sm:$0xff]
      %v936 = vld [vmem:[%s894 + $0x69] sm:$0xff]
      %v937 = vld [vmem:[%s894 + $0x79] sm:$0xff]
      %v938 = vld [vmem:[%s894 + $0x81] sm:$0xff]
      %v939 = vld [vmem:[%s894 + $0x91] sm:$0xff]
      %v940 = vld [vmem:[%s894 + $0x99] sm:$0xff]
      %v941 = vld [vmem:[%s894 + $0xa9] sm:$0xff]
      %v942 = vld [vmem:[%s894 + $0xb1] sm:$0xff]
      %v943 = vld [vmem:[%s894 + $0xc1] sm:$0xff]
      %v944 = vld [vmem:[%s894 + $0xc9] sm:$0xff]
      %v945 = vld [vmem:[%s894 + $0xd9] sm:$0xff]
      %v946 = vld [vmem:[%s894 + $0xe1] sm:$0xff]
      %v947 = vld [vmem:[%s894 + $0xf1] sm:$0xff]
      %v948 = vld [vmem:[%s894 + $0xf9] sm:$0xff]
      %v949 = vld [vmem:[%s894 + $0x109] sm:$0xff]
      %v950 = vld [vmem:[%s894 + $0x111] sm:$0xff]
      %v951 = vld [vmem:[%s894 + $0x121] sm:$0xff]
      %v952 = vld [vmem:[%s894 + $0x129] sm:$0xff]
      %v953 = vld [vmem:[%s894 + $0x139] sm:$0xff]
      %v954 = vld [vmem:[%s894 + $0x141] sm:$0xff]
      %v955 = vld [vmem:[%s894 + $0x151] sm:$0xff]
      %v956 = vld [vmem:[%s894 + $0x159] sm:$0xff]
      %v957 = vld [vmem:[%s894 + $0x169] sm:$0xff]
      %v958 = vld [vmem:[%s894 + $0x171] sm:$0xff]
      %v959 = vld [vmem:[%s894 + $0x2] sm:$0xff]
      %v960 = vld [vmem:[%s894 + $0xa] sm:$0xff]
      %v961 = vld [vmem:[%s894 + $0x1a] sm:$0xff]
      %v962 = vld [vmem:[%s894 + $0x22] sm:$0xff]
      %v963 = vld [vmem:[%s894 + $0x32] sm:$0xff]
      %v964 = vld [vmem:[%s894 + $0x3a] sm:$0xff]
      %v965 = vld [vmem:[%s894 + $0x4a] sm:$0xff]
      %v966 = vld [vmem:[%s894 + $0x52] sm:$0xff]
      %v967 = vld [vmem:[%s894 + $0x62] sm:$0xff]
      %v968 = vld [vmem:[%s894 + $0x6a] sm:$0xff]
      %v969 = vld [vmem:[%s894 + $0x7a] sm:$0xff]
      %v970 = vld [vmem:[%s894 + $0x82] sm:$0xff]
      %v971 = vld [vmem:[%s894 + $0x92] sm:$0xff]
      %v972 = vld [vmem:[%s894 + $0x9a] sm:$0xff]
      %v973 = vld [vmem:[%s894 + $0xaa] sm:$0xff]
      %v974 = vld [vmem:[%s894 + $0xb2] sm:$0xff]
      %v975 = vld [vmem:[%s894 + $0xc2] sm:$0xff]
      %v976 = vld [vmem:[%s894 + $0xca] sm:$0xff]
      %v977 = vld [vmem:[%s894 + $0xda] sm:$0xff]
      %v978 = vld [vmem:[%s894 + $0xe2] sm:$0xff]
      %v979 = vld [vmem:[%s894 + $0xf2] sm:$0xff]
      %v980 = vld [vmem:[%s894 + $0xfa] sm:$0xff]
      %v981 = vld [vmem:[%s894 + $0x10a] sm:$0xff]
      %v982 = vld [vmem:[%s894 + $0x112] sm:$0xff]
      %v983 = vld [vmem:[%s894 + $0x122] sm:$0xff]
      %v984 = vld [vmem:[%s894 + $0x12a] sm:$0xff]
      %v985 = vld [vmem:[%s894 + $0x13a] sm:$0xff]
      %v986 = vld [vmem:[%s894 + $0x142] sm:$0xff]
      %v987 = vld [vmem:[%s894 + $0x152] sm:$0xff]
      %v988 = vld [vmem:[%s894 + $0x15a] sm:$0xff]
      %v989 = vld [vmem:[%s894 + $0x16a] sm:$0xff]
      %v990 = vld [vmem:[%s894 + $0x172] sm:$0xff]
      %1023 = vrot.lane.b32.xlu0 %v927, 4
      %v1024 = vpop.permute.xlu0 %1023
      %1025 = vrot.lane.b32.xlu0 %v928, 4
      %v1026 = vpop.permute.xlu0 %1025
      %1027 = vrot.lane.b32.xlu0 %v929, 4
      %v1028 = vpop.permute.xlu0 %1027
      %1029 = vrot.lane.b32.xlu0 %v930, 4
      %v1030 = vpop.permute.xlu0 %1029
      %1031 = vrot.lane.b32.xlu0 %v931, 4
      %v1032 = vpop.permute.xlu0 %1031
      %1033 = vrot.lane.b32.xlu0 %v932, 4
      %v1034 = vpop.permute.xlu0 %1033
      %1035 = vrot.lane.b32.xlu0 %v933, 4
      %v1036 = vpop.permute.xlu0 %1035
      %1037 = vrot.lane.b32.xlu0 %v934, 4
      %v1038 = vpop.permute.xlu0 %1037
      %1039 = vrot.lane.b32.xlu0 %v935, 4
      %v1040 = vpop.permute.xlu0 %1039
      %1041 = vrot.lane.b32.xlu0 %v936, 4
      %v1042 = vpop.permute.xlu0 %1041
      %1043 = vrot.lane.b32.xlu0 %v937, 4
      %v1044 = vpop.permute.xlu0 %1043
      %1045 = vrot.lane.b32.xlu0 %v938, 4
      %v1046 = vpop.permute.xlu0 %1045
      %1047 = vrot.lane.b32.xlu0 %v939, 4
      %v1048 = vpop.permute.xlu0 %1047
      %1049 = vrot.lane.b32.xlu0 %v940, 4
      %v1050 = vpop.permute.xlu0 %1049
      %1051 = vrot.lane.b32.xlu0 %v941, 4
      %v1052 = vpop.permute.xlu0 %1051
      %1053 = vrot.lane.b32.xlu0 %v942, 4
      %v1054 = vpop.permute.xlu0 %1053
      %1055 = vrot.lane.b32.xlu0 %v943, 4
      %v1056 = vpop.permute.xlu0 %1055
      %1057 = vrot.lane.b32.xlu0 %v944, 4
      %v1058 = vpop.permute.xlu0 %1057
      %1059 = vrot.lane.b32.xlu0 %v945, 4
      %v1060 = vpop.permute.xlu0 %1059
      %1061 = vrot.lane.b32.xlu0 %v946, 4
      %v1062 = vpop.permute.xlu0 %1061
      %1063 = vrot.lane.b32.xlu0 %v947, 4
      %v1064 = vpop.permute.xlu0 %1063
      %1065 = vrot.lane.b32.xlu0 %v948, 4
      %v1066 = vpop.permute.xlu0 %1065
      %1067 = vrot.lane.b32.xlu0 %v949, 4
      %v1068 = vpop.permute.xlu0 %1067
      %1069 = vrot.lane.b32.xlu0 %v950, 4
      %v1070 = vpop.permute.xlu0 %1069
      %1071 = vrot.lane.b32.xlu0 %v951, 4
      %v1072 = vpop.permute.xlu0 %1071
      %1073 = vrot.lane.b32.xlu0 %v952, 4
      %v1074 = vpop.permute.xlu0 %1073
      %1075 = vrot.lane.b32.xlu0 %v953, 4
      %v1076 = vpop.permute.xlu0 %1075
      %1077 = vrot.lane.b32.xlu0 %v954, 4
      %v1078 = vpop.permute.xlu0 %1077
      %1079 = vrot.lane.b32.xlu0 %v955, 4
      %v1080 = vpop.permute.xlu0 %1079
      %1081 = vrot.lane.b32.xlu0 %v956, 4
      %v1082 = vpop.permute.xlu0 %1081
      %1083 = vrot.lane.b32.xlu0 %v957, 4
      %v1084 = vpop.permute.xlu0 %1083
      %1085 = vrot.lane.b32.xlu0 %v958, 4
      %v1086 = vpop.permute.xlu0 %1085
      %1151 = vrot.lane.b32.xlu0 %v959, 8
      %v1152 = vpop.permute.xlu0 %1151
      %1153 = vrot.lane.b32.xlu0 %v960, 8
      %v1154 = vpop.permute.xlu0 %1153
      %1155 = vrot.lane.b32.xlu0 %v961, 8
      %v1156 = vpop.permute.xlu0 %1155
      %1157 = vrot.lane.b32.xlu0 %v962, 8
      %v1158 = vpop.permute.xlu0 %1157
      %1159 = vrot.lane.b32.xlu0 %v963, 8
      %v1160 = vpop.permute.xlu0 %1159
      %1161 = vrot.lane.b32.xlu0 %v964, 8
      %v1162 = vpop.permute.xlu0 %1161
      %1163 = vrot.lane.b32.xlu0 %v965, 8
      %v1164 = vpop.permute.xlu0 %1163
      %1165 = vrot.lane.b32.xlu0 %v966, 8
      %v1166 = vpop.permute.xlu0 %1165
      %1167 = vrot.lane.b32.xlu0 %v967, 8
      %v1168 = vpop.permute.xlu0 %1167
      %1169 = vrot.lane.b32.xlu0 %v968, 8
      %v1170 = vpop.permute.xlu0 %1169
      %1171 = vrot.lane.b32.xlu0 %v969, 8
      %v1172 = vpop.permute.xlu0 %1171
      %1173 = vrot.lane.b32.xlu0 %v970, 8
      %v1174 = vpop.permute.xlu0 %1173
      %1175 = vrot.lane.b32.xlu0 %v971, 8
      %v1176 = vpop.permute.xlu0 %1175
      %1177 = vrot.lane.b32.xlu0 %v972, 8
      %v1178 = vpop.permute.xlu0 %1177
      %1179 = vrot.lane.b32.xlu0 %v973, 8
      %v1180 = vpop.permute.xlu0 %1179
      %1181 = vrot.lane.b32.xlu0 %v974, 8
      %v1182 = vpop.permute.xlu0 %1181
      %1183 = vrot.lane.b32.xlu0 %v975, 8
      %v1184 = vpop.permute.xlu0 %1183
      %1185 = vrot.lane.b32.xlu0 %v976, 8
      %v1186 = vpop.permute.xlu0 %1185
      %1187 = vrot.lane.b32.xlu0 %v977, 8
      %v1188 = vpop.permute.xlu0 %1187
      %1189 = vrot.lane.b32.xlu0 %v978, 8
      %v1190 = vpop.permute.xlu0 %1189
      %1191 = vrot.lane.b32.xlu0 %v979, 8
      %v1192 = vpop.permute.xlu0 %1191
      %1193 = vrot.lane.b32.xlu0 %v980, 8
      %v1194 = vpop.permute.xlu0 %1193
      %1195 = vrot.lane.b32.xlu0 %v981, 8
      %v1196 = vpop.permute.xlu0 %1195
      %1197 = vrot.lane.b32.xlu0 %v982, 8
      %v1198 = vpop.permute.xlu0 %1197
      %1199 = vrot.lane.b32.xlu0 %v983, 8
      %v1200 = vpop.permute.xlu0 %1199
      %1201 = vrot.lane.b32.xlu0 %v984, 8
      %v1202 = vpop.permute.xlu0 %1201
      %1203 = vrot.lane.b32.xlu0 %v985, 8
      %v1204 = vpop.permute.xlu0 %1203
      %1205 = vrot.lane.b32.xlu0 %v986, 8
      %v1206 = vpop.permute.xlu0 %1205
      %1207 = vrot.lane.b32.xlu0 %v987, 8
      %v1208 = vpop.permute.xlu0 %1207
      %1209 = vrot.lane.b32.xlu0 %v988, 8
      %v1210 = vpop.permute.xlu0 %1209
      %1211 = vrot.lane.b32.xlu0 %v989, 8
      %v1212 = vpop.permute.xlu0 %1211
      %1213 = vrot.lane.b32.xlu0 %v990, 8
      %v1214 = vpop.permute.xlu0 %1213
      %v1247 = vsel %vm826, %v895, %v1024
      %v1248 = vsel %vm826, %v896, %v1026
      %v1249 = vsel %vm826, %v897, %v1028
      %v1250 = vsel %vm826, %v898, %v1030
      %v1251 = vsel %vm826, %v899, %v1032
      %v1252 = vsel %vm826, %v900, %v1034
      %v1253 = vsel %vm826, %v901, %v1036
      %v1254 = vsel %vm826, %v902, %v1038
      %v1255 = vsel %vm826, %v903, %v1040
      %v1256 = vsel %vm826, %v904, %v1042
      %v1257 = vsel %vm826, %v905, %v1044
      %v1258 = vsel %vm826, %v906, %v1046
      %v1259 = vsel %vm826, %v907, %v1048
      %v1260 = vsel %vm826, %v908, %v1050
      %v1261 = vsel %vm826, %v909, %v1052
      %v1262 = vsel %vm826, %v910, %v1054
      %v1263 = vsel %vm826, %v911, %v1056
      %v1264 = vsel %vm826, %v912, %v1058
      %v1265 = vsel %vm826, %v913, %v1060
      %v1266 = vsel %vm826, %v914, %v1062
      %v1267 = vsel %vm826, %v915, %v1064
      %v1268 = vsel %vm826, %v916, %v1066
      %v1269 = vsel %vm826, %v917, %v1068
      %v1270 = vsel %vm826, %v918, %v1070
      %v1271 = vsel %vm826, %v919, %v1072
      %v1272 = vsel %vm826, %v920, %v1074
      %v1273 = vsel %vm826, %v921, %v1076
      %v1274 = vsel %vm826, %v922, %v1078
      %v1275 = vsel %vm826, %v923, %v1080
      %v1276 = vsel %vm826, %v924, %v1082
      %v1277 = vsel %vm826, %v925, %v1084
      %v1278 = vsel %vm826, %v926, %v1086
      %v1279 = vsel %vm859, %v1247, %v1152
      %v1280 = vsel %vm859, %v1248, %v1154
      %v1281 = vsel %vm859, %v1249, %v1156
      %v1282 = vsel %vm859, %v1250, %v1158
      %v1283 = vsel %vm859, %v1251, %v1160
      %v1284 = vsel %vm859, %v1252, %v1162
      %v1285 = vsel %vm859, %v1253, %v1164
      %v1286 = vsel %vm859, %v1254, %v1166
      %v1287 = vsel %vm859, %v1255, %v1168
      %v1288 = vsel %vm859, %v1256, %v1170
      %v1289 = vsel %vm859, %v1257, %v1172
      %v1290 = vsel %vm859, %v1258, %v1174
      %v1291 = vsel %vm859, %v1259, %v1176
      %v1292 = vsel %vm859, %v1260, %v1178
      %v1293 = vsel %vm859, %v1261, %v1180
      %v1294 = vsel %vm859, %v1262, %v1182
      %v1295 = vsel %vm859, %v1263, %v1184
      %v1296 = vsel %vm859, %v1264, %v1186
      %v1297 = vsel %vm859, %v1265, %v1188
      %v1298 = vsel %vm859, %v1266, %v1190
      %v1299 = vsel %vm859, %v1267, %v1192
      %v1300 = vsel %vm859, %v1268, %v1194
      %v1301 = vsel %vm859, %v1269, %v1196
      %v1302 = vsel %vm859, %v1270, %v1198
      %v1303 = vsel %vm859, %v1271, %v1200
      %v1304 = vsel %vm859, %v1272, %v1202
      %v1305 = vsel %vm859, %v1273, %v1204
      %v1306 = vsel %vm859, %v1274, %v1206
      %v1307 = vsel %vm859, %v1275, %v1208
      %v1308 = vsel %vm859, %v1276, %v1210
      %v1309 = vsel %vm859, %v1277, %v1212
      %v1310 = vsel %vm859, %v1278, %v1214
      %s1311 = scalar_lea.vmem %s328, 16
      %v1312 = vld [vmem:[%s1311] sm:$0xff]
      %v1313 = vld [vmem:[%s1311 + $0x8] sm:$0xf]
      %v1314 = vld [vmem:[%s332] sm:$0xff]
      %v1315 = vld [vmem:[%s332 + $0x8] sm:$0xf]
      %1318 = vrot.lane.b32.xlu0 %v1314, 8
      %v1319 = vpop.permute.xlu0 %1318
      %1320 = vrot.lane.b32.xlu0 %v1315, 8
      %v1321 = vpop.permute.xlu0 %1320
      %v1324 = vsel %vm859, %v1312, %v1319
      %v1325 = vsel %vm859, %v1313, %v1321
      %vm1326 = vcmask 97280
      %v1328 = vsel %vm1326, %v1279, 0
      %v1331 = vsel %vm1326, %v1280, 0
      %v1334 = vsel %vm1326, %v1281, 0
      %v1337 = vsel %vm1326, %v1282, 0
      %v1340 = vsel %vm1326, %v1283, 0
      %v1343 = vsel %vm1326, %v1284, 0
      %v1346 = vsel %vm1326, %v1285, 0
      %v1349 = vsel %vm1326, %v1286, 0
      %v1352 = vsel %vm1326, %v1287, 0
      %v1355 = vsel %vm1326, %v1288, 0
      %v1358 = vsel %vm1326, %v1289, 0
      %v1361 = vsel %vm1326, %v1290, 0
      %v1364 = vsel %vm1326, %v1291, 0
      %v1367 = vsel %vm1326, %v1292, 0
      %v1370 = vsel %vm1326, %v1293, 0
      %v1373 = vsel %vm1326, %v1294, 0
      %v1376 = vsel %vm1326, %v1295, 0
      %v1379 = vsel %vm1326, %v1296, 0
      %v1382 = vsel %vm1326, %v1297, 0
      %v1385 = vsel %vm1326, %v1298, 0
      %v1388 = vsel %vm1326, %v1299, 0
      %v1391 = vsel %vm1326, %v1300, 0
      %v1394 = vsel %vm1326, %v1301, 0
      %v1397 = vsel %vm1326, %v1302, 0
      %v1400 = vsel %vm1326, %v1303, 0
      %v1403 = vsel %vm1326, %v1304, 0
      %v1406 = vsel %vm1326, %v1305, 0
      %v1409 = vsel %vm1326, %v1306, 0
      %v1412 = vsel %vm1326, %v1307, 0
      %v1415 = vsel %vm1326, %v1308, 0
      %v1418 = vsel %vm1326, %v1309, 0
      %v1421 = vsel %vm1326, %v1310, 0
      %vm1423 = vcmask 1043456
      %v1425 = vsel %vm1423, %v1325, 0
      %1427 = vmatprep.subr.mxu0 0.0
      %1428 = vmatpush1.msra.mxu0 %v1324
      %1429 = vmatprep.subr.mxu0 0.0
      %1430 = vmatpush1.msra.mxu0 %v1425
      %1431 = vmatprep.subr.mxu0 0.0
      %1432 = vmatpush1.msra.mxu0 0.0
      %1433 = vmatprep.subr.mxu0 0.0
      %1434 = vmatpush1.msra.mxu0 0.0
      %1435 = vmatprep.subr.mxu0 0.0
      %1436 = vmatpush1.msra.mxu0 0.0
      %1437 = vmatprep.subr.mxu0 0.0
      %1438 = vmatpush1.msra.mxu0 0.0
      %1439 = vmatprep.subr.mxu0 0.0
      %1440 = vmatpush1.msra.mxu0 0.0
      %1441 = vmatprep.subr.mxu0 0.0
      %1442 = vmatpush1.msra.mxu0 0.0
      %1443 = vmatprep.subr.mxu0 0.0
      %1444 = vmatpush1.msra.mxu0 0.0
      %1445 = vmatprep.subr.mxu0 0.0
      %1446 = vmatpush1.msra.mxu0 0.0
      %1447 = vmatprep.subr.mxu0 0.0
      %1448 = vmatpush1.msra.mxu0 0.0
      %1449 = vmatprep.subr.mxu0 0.0
      %1450 = vmatpush1.msra.mxu0 0.0
      %1451 = vmatprep.subr.mxu0 0.0
      %1452 = vmatpush1.msra.mxu0 0.0
      %1453 = vmatprep.subr.mxu0 0.0
      %1454 = vmatpush1.msra.mxu0 0.0
      %1455 = vmatprep.subr.mxu0 0.0
      %1456 = vmatpush1.msra.mxu0 0.0
      %1457 = vmatprep.subr.mxu0 0.0
      %1458 = vmatpush1.msra.mxu0 0.0
      %1459 = vmatprep.subr.mxu0 0.0
      %1460 = vmatpush1.msra.mxu0 0.0
      %1461 = vmatprep.subr.mxu0 0.0
      %1462 = vmatpush1.msra.mxu0 0.0
      %1463 = vmatprep.subr.mxu0 0.0
      %1464 = vmatpush1.msra.mxu0 0.0
      %1465 = vmatprep.subr.mxu0 0.0
      %1466 = vmatpush1.msra.mxu0 0.0
      %1467 = vmatprep.subr.mxu0 0.0
      %1468 = vmatpush1.msra.mxu0 0.0
      %1469 = vmatprep.subr.mxu0 0.0
      %1470 = vmatpush1.msra.mxu0 0.0
      %1471 = vmatprep.subr.mxu0 0.0
      %1472 = vmatpush1.msra.mxu0 0.0
      %1473 = vmatprep.subr.mxu0 0.0
      %1474 = vmatpush1.msra.mxu0 0.0
      %1475 = vmatprep.subr.mxu0 0.0
      %1476 = vmatpush1.msra.mxu0 0.0
      %1477 = vmatprep.subr.mxu0 0.0
      %1478 = vmatpush1.msra.mxu0 0.0
      %1479 = vmatprep.subr.mxu0 0.0
      %1480 = vmatpush1.msra.mxu0 0.0
      %1481 = vmatprep.subr.mxu0 0.0
      %1482 = vmatpush1.msra.mxu0 0.0
      %1483 = vmatprep.subr.mxu0 0.0
      %1484 = vmatpush1.msra.mxu0 0.0
      %1485 = vmatprep.subr.mxu0 0.0
      %1486 = vmatpush1.msra.mxu0 0.0
      %1487 = vmatprep.subr.mxu0 0.0
      %1488 = vmatpush1.msra.mxu0 0.0
      %1489 = vmatprep.subr.mxu0 0.0
      %1490 = vmatpush1.msra.mxu0 0.0
      %1491 = vmatprep.mubr.f32.mxu0 0.0
      %1492 = vmatmul.mubr.f32.gmra.mrb[0].mxu0 %v1328
      %v1493 = vpop.f32.mrb[0].mxu0
      %v1494 = vadd.f32 0.0, %v1493
      %v1495 = vpop.f32.mrb[0].mxu0
      %1496 = vmatprep.mubr.f32.mxu0 0.0
      %1497 = vmatmul.mubr.f32.gmra.mrb[0].mxu0 %v1331
      %v1498 = vpop.f32.mrb[0].mxu0
      %v1499 = vadd.f32 0.0, %v1498
      %v1500 = vpop.f32.mrb[0].mxu0
      %1501 = vmatprep.mubr.f32.mxu0 0.0
      %1502 = vmatmul.mubr.f32.gmra.mrb[0].mxu0 %v1334
      %v1503 = vpop.f32.mrb[0].mxu0
      %v1504 = vadd.f32 0.0, %v1503
      %v1505 = vpop.f32.mrb[0].mxu0
      %1506 = vmatprep.mubr.f32.mxu0 0.0
      %1507 = vmatmul.mubr.f32.gmra.mrb[0].mxu0 %v1337
      %v1508 = vpop.f32.mrb[0].mxu0
      %v1509 = vadd.f32 0.0, %v1508
      %v1510 = vpop.f32.mrb[0].mxu0
      %1511 = vmatprep.mubr.f32.mxu0 0.0
      %1512 = vmatmul.mubr.f32.gmra.mrb[0].mxu0 %v1340
      %v1513 = vpop.f32.mrb[0].mxu0
      %v1514 = vadd.f32 0.0, %v1513
      %v1515 = vpop.f32.mrb[0].mxu0
      %1516 = vmatprep.mubr.f32.mxu0 0.0
      %1517 = vmatmul.mubr.f32.gmra.mrb[0].mxu0 %v1343
      %v1518 = vpop.f32.mrb[0].mxu0
      %v1519 = vadd.f32 0.0, %v1518
      %v1520 = vpop.f32.mrb[0].mxu0
      %1521 = vmatprep.mubr.f32.mxu0 0.0
      %1522 = vmatmul.mubr.f32.gmra.mrb[0].mxu0 %v1346
      %v1523 = vpop.f32.mrb[0].mxu0
      %v1524 = vadd.f32 0.0, %v1523
      %v1525 = vpop.f32.mrb[0].mxu0
      %1526 = vmatprep.mubr.f32.mxu0 0.0
      %1527 = vmatmul.mubr.f32.gmra.mrb[0].mxu0 %v1349
      %v1528 = vpop.f32.mrb[0].mxu0
      %v1529 = vadd.f32 0.0, %v1528
      %v1530 = vpop.f32.mrb[0].mxu0
      %1531 = vmatprep.mubr.f32.mxu0 0.0
      %1532 = vmatmul.mubr.f32.gmra.mrb[0].mxu0 %v1352
      %v1533 = vpop.f32.mrb[0].mxu0
      %v1534 = vadd.f32 0.0, %v1533
      %v1535 = vpop.f32.mrb[0].mxu0
      %1536 = vmatprep.mubr.f32.mxu0 0.0
      %1537 = vmatmul.mubr.f32.gmra.mrb[0].mxu0 %v1355
      %v1538 = vpop.f32.mrb[0].mxu0
      %v1539 = vadd.f32 0.0, %v1538
      %v1540 = vpop.f32.mrb[0].mxu0
      %1541 = vmatprep.mubr.f32.mxu0 0.0
      %1542 = vmatmul.mubr.f32.gmra.mrb[0].mxu0 %v1358
      %v1543 = vpop.f32.mrb[0].mxu0
      %v1544 = vadd.f32 0.0, %v1543
      %v1545 = vpop.f32.mrb[0].mxu0
      %1546 = vmatprep.mubr.f32.mxu0 0.0
      %1547 = vmatmul.mubr.f32.gmra.mrb[0].mxu0 %v1361
      %v1548 = vpop.f32.mrb[0].mxu0
      %v1549 = vadd.f32 0.0, %v1548
      %v1550 = vpop.f32.mrb[0].mxu0
      %1551 = vmatprep.mubr.f32.mxu0 0.0
      %1552 = vmatmul.mubr.f32.gmra.mrb[0].mxu0 %v1364
      %v1553 = vpop.f32.mrb[0].mxu0
      %v1554 = vadd.f32 0.0, %v1553
      %v1555 = vpop.f32.mrb[0].mxu0
      %1556 = vmatprep.mubr.f32.mxu0 0.0
      %1557 = vmatmul.mubr.f32.gmra.mrb[0].mxu0 %v1367
      %v1558 = vpop.f32.mrb[0].mxu0
      %v1559 = vadd.f32 0.0, %v1558
      %v1560 = vpop.f32.mrb[0].mxu0
      %1561 = vmatprep.mubr.f32.mxu0 0.0
      %1562 = vmatmul.mubr.f32.gmra.mrb[0].mxu0 %v1370
      %v1563 = vpop.f32.mrb[0].mxu0
      %v1564 = vadd.f32 0.0, %v1563
      %v1565 = vpop.f32.mrb[0].mxu0
      %1566 = vmatprep.mubr.f32.mxu0 0.0
      %1567 = vmatmul.mubr.f32.gmra.mrb[0].mxu0 %v1373
      %v1568 = vpop.f32.mrb[0].mxu0
      %v1569 = vadd.f32 0.0, %v1568
      %v1570 = vpop.f32.mrb[0].mxu0
      %1571 = vmatprep.mubr.f32.mxu0 0.0
      %1572 = vmatmul.mubr.f32.gmra.mrb[0].mxu0 %v1376
      %v1573 = vpop.f32.mrb[0].mxu0
      %v1574 = vadd.f32 0.0, %v1573
      %v1575 = vpop.f32.mrb[0].mxu0
      %1576 = vmatprep.mubr.f32.mxu0 0.0
      %1577 = vmatmul.mubr.f32.gmra.mrb[0].mxu0 %v1379
      %v1578 = vpop.f32.mrb[0].mxu0
      %v1579 = vadd.f32 0.0, %v1578
      %v1580 = vpop.f32.mrb[0].mxu0
      %1581 = vmatprep.mubr.f32.mxu0 0.0
      %1582 = vmatmul.mubr.f32.gmra.mrb[0].mxu0 %v1382
      %v1583 = vpop.f32.mrb[0].mxu0
      %v1584 = vadd.f32 0.0, %v1583
      %v1585 = vpop.f32.mrb[0].mxu0
      %1586 = vmatprep.mubr.f32.mxu0 0.0
      %1587 = vmatmul.mubr.f32.gmra.mrb[0].mxu0 %v1385
      %v1588 = vpop.f32.mrb[0].mxu0
      %v1589 = vadd.f32 0.0, %v1588
      %v1590 = vpop.f32.mrb[0].mxu0
      %1591 = vmatprep.mubr.f32.mxu0 0.0
      %1592 = vmatmul.mubr.f32.gmra.mrb[0].mxu0 %v1388
      %v1593 = vpop.f32.mrb[0].mxu0
      %v1594 = vadd.f32 0.0, %v1593
      %v1595 = vpop.f32.mrb[0].mxu0
      %1596 = vmatprep.mubr.f32.mxu0 0.0
      %1597 = vmatmul.mubr.f32.gmra.mrb[0].mxu0 %v1391
      %v1598 = vpop.f32.mrb[0].mxu0
      %v1599 = vadd.f32 0.0, %v1598
      %v1600 = vpop.f32.mrb[0].mxu0
      %1601 = vmatprep.mubr.f32.mxu0 0.0
      %1602 = vmatmul.mubr.f32.gmra.mrb[0].mxu0 %v1394
      %v1603 = vpop.f32.mrb[0].mxu0
      %v1604 = vadd.f32 0.0, %v1603
      %v1605 = vpop.f32.mrb[0].mxu0
      %1606 = vmatprep.mubr.f32.mxu0 0.0
      %1607 = vmatmul.mubr.f32.gmra.mrb[0].mxu0 %v1397
      %v1608 = vpop.f32.mrb[0].mxu0
      %v1609 = vadd.f32 0.0, %v1608
      %v1610 = vpop.f32.mrb[0].mxu0
      %1611 = vmatprep.mubr.f32.mxu0 0.0
      %1612 = vmatmul.mubr.f32.gmra.mrb[0].mxu0 %v1400
      %v1613 = vpop.f32.mrb[0].mxu0
      %v1614 = vadd.f32 0.0, %v1613
      %v1615 = vpop.f32.mrb[0].mxu0
      %1616 = vmatprep.mubr.f32.mxu0 0.0
      %1617 = vmatmul.mubr.f32.gmra.mrb[0].mxu0 %v1403
      %v1618 = vpop.f32.mrb[0].mxu0
      %v1619 = vadd.f32 0.0, %v1618
      %v1620 = vpop.f32.mrb[0].mxu0
      %1621 = vmatprep.mubr.f32.mxu0 0.0
      %1622 = vmatmul.mubr.f32.gmra.mrb[0].mxu0 %v1406
      %v1623 = vpop.f32.mrb[0].mxu0
      %v1624 = vadd.f32 0.0, %v1623
      %v1625 = vpop.f32.mrb[0].mxu0
      %1626 = vmatprep.mubr.f32.mxu0 0.0
      %1627 = vmatmul.mubr.f32.gmra.mrb[0].mxu0 %v1409
      %v1628 = vpop.f32.mrb[0].mxu0
      %v1629 = vadd.f32 0.0, %v1628
      %v1630 = vpop.f32.mrb[0].mxu0
      %1631 = vmatprep.mubr.f32.mxu0 0.0
      %1632 = vmatmul.mubr.f32.gmra.mrb[0].mxu0 %v1412
      %v1633 = vpop.f32.mrb[0].mxu0
      %v1634 = vadd.f32 0.0, %v1633
      %v1635 = vpop.f32.mrb[0].mxu0
      %1636 = vmatprep.mubr.f32.mxu0 0.0
      %1637 = vmatmul.mubr.f32.gmra.mrb[0].mxu0 %v1415
      %v1638 = vpop.f32.mrb[0].mxu0
      %v1639 = vadd.f32 0.0, %v1638
      %v1640 = vpop.f32.mrb[0].mxu0
      %1641 = vmatprep.mubr.f32.mxu0 0.0
      %1642 = vmatmul.mubr.f32.gmra.mrb[0].mxu0 %v1418
      %v1643 = vpop.f32.mrb[0].mxu0
      %v1644 = vadd.f32 0.0, %v1643
      %v1645 = vpop.f32.mrb[0].mxu0
      %1646 = vmatprep.mubr.f32.mxu0 0.0
      %1647 = vmatmul.mubr.f32.gmra.mrb[0].mxu0 %v1421
      %v1648 = vpop.f32.mrb[0].mxu0
      %v1649 = vadd.f32 0.0, %v1648
      %v1650 = vpop.f32.mrb[0].mxu0
      %1651 = vdwg.mxu0
      %v1653 = vsel %vm1326, %v860, 0
      %v1656 = vsel %vm1326, %v861, 0
      %v1659 = vsel %vm1326, %v862, 0
      %v1662 = vsel %vm1326, %v863, 0
      %v1665 = vsel %vm1326, %v864, 0
      %v1668 = vsel %vm1326, %v865, 0
      %v1671 = vsel %vm1326, %v866, 0
      %v1674 = vsel %vm1326, %v867, 0
      %v1677 = vsel %vm1326, %v868, 0
      %v1680 = vsel %vm1326, %v869, 0
      %v1683 = vsel %vm1326, %v870, 0
      %v1686 = vsel %vm1326, %v871, 0
      %v1689 = vsel %vm1326, %v872, 0
      %v1692 = vsel %vm1326, %v873, 0
      %v1695 = vsel %vm1326, %v874, 0
      %v1698 = vsel %vm1326, %v875, 0
      %v1701 = vsel %vm1326, %v876, 0
      %v1704 = vsel %vm1326, %v877, 0
      %v1707 = vsel %vm1326, %v878, 0
      %v1710 = vsel %vm1326, %v879, 0
      %v1713 = vsel %vm1326, %v880, 0
      %v1716 = vsel %vm1326, %v881, 0
      %v1719 = vsel %vm1326, %v882, 0
      %v1722 = vsel %vm1326, %v883, 0
      %v1725 = vsel %vm1326, %v884, 0
      %v1728 = vsel %vm1326, %v885, 0
      %v1731 = vsel %vm1326, %v886, 0
      %v1734 = vsel %vm1326, %v887, 0
      %v1737 = vsel %vm1326, %v888, 0
      %v1740 = vsel %vm1326, %v889, 0
      %v1743 = vsel %vm1326, %v890, 0
      %v1746 = vsel %vm1326, %v891, 0
      %v1749 = vsel %vm1423, %v893, 0
      %1751 = vmatprep.subr.mxu0 0.0
      %1752 = vmatpush1.msra.mxu0 %v892
      %1753 = vmatprep.subr.mxu0 0.0
      %1754 = vmatpush1.msra.mxu0 %v1749
      %1755 = vmatprep.subr.mxu0 0.0
      %1756 = vmatpush1.msra.mxu0 0.0
      %1757 = vmatprep.subr.mxu0 0.0
      %1758 = vmatpush1.msra.mxu0 0.0
      %1759 = vmatprep.subr.mxu0 0.0
      %1760 = vmatpush1.msra.mxu0 0.0
      %1761 = vmatprep.subr.mxu0 0.0
      %1762 = vmatpush1.msra.mxu0 0.0
      %1763 = vmatprep.subr.mxu0 0.0
      %1764 = vmatpush1.msra.mxu0 0.0
      %1765 = vmatprep.subr.mxu0 0.0
      %1766 = vmatpush1.msra.mxu0 0.0
      %1767 = vmatprep.subr.mxu0 0.0
      %1768 = vmatpush1.msra.mxu0 0.0
      %1769 = vmatprep.subr.mxu0 0.0
      %1770 = vmatpush1.msra.mxu0 0.0
      %1771 = vmatprep.subr.mxu0 0.0
      %1772 = vmatpush1.msra.mxu0 0.0
      %1773 = vmatprep.subr.mxu0 0.0
      %1774 = vmatpush1.msra.mxu0 0.0
      %1775 = vmatprep.subr.mxu0 0.0
      %1776 = vmatpush1.msra.mxu0 0.0
      %1777 = vmatprep.subr.mxu0 0.0
      %1778 = vmatpush1.msra.mxu0 0.0
      %1779 = vmatprep.subr.mxu0 0.0
      %1780 = vmatpush1.msra.mxu0 0.0
      %1781 = vmatprep.subr.mxu0 0.0
      %1782 = vmatpush1.msra.mxu0 0.0
      %1783 = vmatprep.subr.mxu0 0.0
      %1784 = vmatpush1.msra.mxu0 0.0
      %1785 = vmatprep.subr.mxu0 0.0
      %1786 = vmatpush1.msra.mxu0 0.0
      %1787 = vmatprep.subr.mxu0 0.0
      %1788 = vmatpush1.msra.mxu0 0.0
      %1789 = vmatprep.subr.mxu0 0.0
      %1790 = vmatpush1.msra.mxu0 0.0
      %1791 = vmatprep.subr.mxu0 0.0
      %1792 = vmatpush1.msra.mxu0 0.0
      %1793 = vmatprep.subr.mxu0 0.0
      %1794 = vmatpush1.msra.mxu0 0.0
      %1795 = vmatprep.subr.mxu0 0.0
      %1796 = vmatpush1.msra.mxu0 0.0
      %1797 = vmatprep.subr.mxu0 0.0
      %1798 = vmatpush1.msra.mxu0 0.0
      %1799 = vmatprep.subr.mxu0 0.0
      %1800 = vmatpush1.msra.mxu0 0.0
      %1801 = vmatprep.subr.mxu0 0.0
      %1802 = vmatpush1.msra.mxu0 0.0
      %1803 = vmatprep.subr.mxu0 0.0
      %1804 = vmatpush1.msra.mxu0 0.0
      %1805 = vmatprep.subr.mxu0 0.0
      %1806 = vmatpush1.msra.mxu0 0.0
      %1807 = vmatprep.subr.mxu0 0.0
      %1808 = vmatpush1.msra.mxu0 0.0
      %1809 = vmatprep.subr.mxu0 0.0
      %1810 = vmatpush1.msra.mxu0 0.0
      %1811 = vmatprep.subr.mxu0 0.0
      %1812 = vmatpush1.msra.mxu0 0.0
      %1813 = vmatprep.subr.mxu0 0.0
      %1814 = vmatpush1.msra.mxu0 0.0
      %1815 = vmatprep.mubr.f32.mxu0 0.0
      %1816 = vmatmul.mubr.f32.gmra.mrb[0].mxu0 %v1653
      %v1817 = vpop.f32.mrb[0].mxu0
      %v1818 = vadd.f32 %v1494, %v1817
      %v1819 = vpop.f32.mrb[0].mxu0
      %1820 = vmatprep.mubr.f32.mxu0 0.0
      %1821 = vmatmul.mubr.f32.gmra.mrb[0].mxu0 %v1656
      %v1822 = vpop.f32.mrb[0].mxu0
      %v1823 = vadd.f32 %v1499, %v1822
      %v1824 = vpop.f32.mrb[0].mxu0
      %1825 = vmatprep.mubr.f32.mxu0 0.0
      %1826 = vmatmul.mubr.f32.gmra.mrb[0].mxu0 %v1659
      %v1827 = vpop.f32.mrb[0].mxu0
      %v1828 = vadd.f32 %v1504, %v1827
      %v1829 = vpop.f32.mrb[0].mxu0
      %1830 = vmatprep.mubr.f32.mxu0 0.0
      %1831 = vmatmul.mubr.f32.gmra.mrb[0].mxu0 %v1662
      %v1832 = vpop.f32.mrb[0].mxu0
      %v1833 = vadd.f32 %v1509, %v1832
      %v1834 = vpop.f32.mrb[0].mxu0
      %1835 = vmatprep.mubr.f32.mxu0 0.0
      %1836 = vmatmul.mubr.f32.gmra.mrb[0].mxu0 %v1665
      %v1837 = vpop.f32.mrb[0].mxu0
      %v1838 = vadd.f32 %v1514, %v1837
      %v1839 = vpop.f32.mrb[0].mxu0
      %1840 = vmatprep.mubr.f32.mxu0 0.0
      %1841 = vmatmul.mubr.f32.gmra.mrb[0].mxu0 %v1668
      %v1842 = vpop.f32.mrb[0].mxu0
      %v1843 = vadd.f32 %v1519, %v1842
      %v1844 = vpop.f32.mrb[0].mxu0
      %1845 = vmatprep.mubr.f32.mxu0 0.0
      %1846 = vmatmul.mubr.f32.gmra.mrb[0].mxu0 %v1671
      %v1847 = vpop.f32.mrb[0].mxu0
      %v1848 = vadd.f32 %v1524, %v1847
      %v1849 = vpop.f32.mrb[0].mxu0
      %1850 = vmatprep.mubr.f32.mxu0 0.0
      %1851 = vmatmul.mubr.f32.gmra.mrb[0].mxu0 %v1674
      %v1852 = vpop.f32.mrb[0].mxu0
      %v1853 = vadd.f32 %v1529, %v1852
      %v1854 = vpop.f32.mrb[0].mxu0
      %1855 = vmatprep.mubr.f32.mxu0 0.0
      %1856 = vmatmul.mubr.f32.gmra.mrb[0].mxu0 %v1677
      %v1857 = vpop.f32.mrb[0].mxu0
      %v1858 = vadd.f32 %v1534, %v1857
      %v1859 = vpop.f32.mrb[0].mxu0
      %1860 = vmatprep.mubr.f32.mxu0 0.0
      %1861 = vmatmul.mubr.f32.gmra.mrb[0].mxu0 %v1680
      %v1862 = vpop.f32.mrb[0].mxu0
      %v1863 = vadd.f32 %v1539, %v1862
      %v1864 = vpop.f32.mrb[0].mxu0
      %1865 = vmatprep.mubr.f32.mxu0 0.0
      %1866 = vmatmul.mubr.f32.gmra.mrb[0].mxu0 %v1683
      %v1867 = vpop.f32.mrb[0].mxu0
      %v1868 = vadd.f32 %v1544, %v1867
      %v1869 = vpop.f32.mrb[0].mxu0
      %1870 = vmatprep.mubr.f32.mxu0 0.0
      %1871 = vmatmul.mubr.f32.gmra.mrb[0].mxu0 %v1686
      %v1872 = vpop.f32.mrb[0].mxu0
      %v1873 = vadd.f32 %v1549, %v1872
      %v1874 = vpop.f32.mrb[0].mxu0
      %1875 = vmatprep.mubr.f32.mxu0 0.0
      %1876 = vmatmul.mubr.f32.gmra.mrb[0].mxu0 %v1689
      %v1877 = vpop.f32.mrb[0].mxu0
      %v1878 = vadd.f32 %v1554, %v1877
      %v1879 = vpop.f32.mrb[0].mxu0
      %1880 = vmatprep.mubr.f32.mxu0 0.0
      %1881 = vmatmul.mubr.f32.gmra.mrb[0].mxu0 %v1692
      %v1882 = vpop.f32.mrb[0].mxu0
      %v1883 = vadd.f32 %v1559, %v1882
      %v1884 = vpop.f32.mrb[0].mxu0
      %1885 = vmatprep.mubr.f32.mxu0 0.0
      %1886 = vmatmul.mubr.f32.gmra.mrb[0].mxu0 %v1695
      %v1887 = vpop.f32.mrb[0].mxu0
      %v1888 = vadd.f32 %v1564, %v1887
      %v1889 = vpop.f32.mrb[0].mxu0
      %1890 = vmatprep.mubr.f32.mxu0 0.0
      %1891 = vmatmul.mubr.f32.gmra.mrb[0].mxu0 %v1698
      %v1892 = vpop.f32.mrb[0].mxu0
      %v1893 = vadd.f32 %v1569, %v1892
      %v1894 = vpop.f32.mrb[0].mxu0
      %1895 = vmatprep.mubr.f32.mxu0 0.0
      %1896 = vmatmul.mubr.f32.gmra.mrb[0].mxu0 %v1701
      %v1897 = vpop.f32.mrb[0].mxu0
      %v1898 = vadd.f32 %v1574, %v1897
      %v1899 = vpop.f32.mrb[0].mxu0
      %1900 = vmatprep.mubr.f32.mxu0 0.0
      %1901 = vmatmul.mubr.f32.gmra.mrb[0].mxu0 %v1704
      %v1902 = vpop.f32.mrb[0].mxu0
      %v1903 = vadd.f32 %v1579, %v1902
      %v1904 = vpop.f32.mrb[0].mxu0
      %1905 = vmatprep.mubr.f32.mxu0 0.0
      %1906 = vmatmul.mubr.f32.gmra.mrb[0].mxu0 %v1707
      %v1907 = vpop.f32.mrb[0].mxu0
      %v1908 = vadd.f32 %v1584, %v1907
      %v1909 = vpop.f32.mrb[0].mxu0
      %1910 = vmatprep.mubr.f32.mxu0 0.0
      %1911 = vmatmul.mubr.f32.gmra.mrb[0].mxu0 %v1710
      %v1912 = vpop.f32.mrb[0].mxu0
      %v1913 = vadd.f32 %v1589, %v1912
      %v1914 = vpop.f32.mrb[0].mxu0
      %1915 = vmatprep.mubr.f32.mxu0 0.0
      %1916 = vmatmul.mubr.f32.gmra.mrb[0].mxu0 %v1713
      %v1917 = vpop.f32.mrb[0].mxu0
      %v1918 = vadd.f32 %v1594, %v1917
      %v1919 = vpop.f32.mrb[0].mxu0
      %1920 = vmatprep.mubr.f32.mxu0 0.0
      %1921 = vmatmul.mubr.f32.gmra.mrb[0].mxu0 %v1716
      %v1922 = vpop.f32.mrb[0].mxu0
      %v1923 = vadd.f32 %v1599, %v1922
      %v1924 = vpop.f32.mrb[0].mxu0
      %1925 = vmatprep.mubr.f32.mxu0 0.0
      %1926 = vmatmul.mubr.f32.gmra.mrb[0].mxu0 %v1719
      %v1927 = vpop.f32.mrb[0].mxu0
      %v1928 = vadd.f32 %v1604, %v1927
      %v1929 = vpop.f32.mrb[0].mxu0
      %1930 = vmatprep.mubr.f32.mxu0 0.0
      %1931 = vmatmul.mubr.f32.gmra.mrb[0].mxu0 %v1722
      %v1932 = vpop.f32.mrb[0].mxu0
      %v1933 = vadd.f32 %v1609, %v1932
      %v1934 = vpop.f32.mrb[0].mxu0
      %1935 = vmatprep.mubr.f32.mxu0 0.0
      %1936 = vmatmul.mubr.f32.gmra.mrb[0].mxu0 %v1725
      %v1937 = vpop.f32.mrb[0].mxu0
      %v1938 = vadd.f32 %v1614, %v1937
      %v1939 = vpop.f32.mrb[0].mxu0
      %1940 = vmatprep.mubr.f32.mxu0 0.0
      %1941 = vmatmul.mubr.f32.gmra.mrb[0].mxu0 %v1728
      %v1942 = vpop.f32.mrb[0].mxu0
      %v1943 = vadd.f32 %v1619, %v1942
      %v1944 = vpop.f32.mrb[0].mxu0
      %1945 = vmatprep.mubr.f32.mxu0 0.0
      %1946 = vmatmul.mubr.f32.gmra.mrb[0].mxu0 %v1731
      %v1947 = vpop.f32.mrb[0].mxu0
      %v1948 = vadd.f32 %v1624, %v1947
      %v1949 = vpop.f32.mrb[0].mxu0
      %1950 = vmatprep.mubr.f32.mxu0 0.0
      %1951 = vmatmul.mubr.f32.gmra.mrb[0].mxu0 %v1734
      %v1952 = vpop.f32.mrb[0].mxu0
      %v1953 = vadd.f32 %v1629, %v1952
      %v1954 = vpop.f32.mrb[0].mxu0
      %1955 = vmatprep.mubr.f32.mxu0 0.0
      %1956 = vmatmul.mubr.f32.gmra.mrb[0].mxu0 %v1737
      %v1957 = vpop.f32.mrb[0].mxu0
      %v1958 = vadd.f32 %v1634, %v1957
      %v1959 = vpop.f32.mrb[0].mxu0
      %1960 = vmatprep.mubr.f32.mxu0 0.0
      %1961 = vmatmul.mubr.f32.gmra.mrb[0].mxu0 %v1740
      %v1962 = vpop.f32.mrb[0].mxu0
      %v1963 = vadd.f32 %v1639, %v1962
      %v1964 = vpop.f32.mrb[0].mxu0
      %1965 = vmatprep.mubr.f32.mxu0 0.0
      %1966 = vmatmul.mubr.f32.gmra.mrb[0].mxu0 %v1743
      %v1967 = vpop.f32.mrb[0].mxu0
      %v1968 = vadd.f32 %v1644, %v1967
      %v1969 = vpop.f32.mrb[0].mxu0
      %1970 = vmatprep.mubr.f32.mxu0 0.0
      %1971 = vmatmul.mubr.f32.gmra.mrb[0].mxu0 %v1746
      %v1972 = vpop.f32.mrb[0].mxu0
      %v1973 = vadd.f32 %v1649, %v1972
      %v1974 = vpop.f32.mrb[0].mxu0
      %1975 = vdwg.mxu0
      %s1976 = scalar_lea.vmem [#allocation2], 48
      %v1977 = vld [vmem:[%s1976] sm:$0xff]
      %v1978 = vld [vmem:[%s1976 + $0x8] sm:$0xff]
      %v1979 = vld [vmem:[%s1976 + $0x18] sm:$0xff]
      %v1980 = vld [vmem:[%s1976 + $0x20] sm:$0xff]
      %v1981 = vld [vmem:[%s1976 + $0x30] sm:$0xff]
      %v1982 = vld [vmem:[%s1976 + $0x38] sm:$0xff]
      %v1983 = vld [vmem:[%s1976 + $0x48] sm:$0xff]
      %v1984 = vld [vmem:[%s1976 + $0x50] sm:$0xff]
      %v1985 = vld [vmem:[%s1976 + $0x60] sm:$0xff]
      %v1986 = vld [vmem:[%s1976 + $0x68] sm:$0xff]
      %v1987 = vld [vmem:[%s1976 + $0x78] sm:$0xff]
      %v1988 = vld [vmem:[%s1976 + $0x80] sm:$0xff]
      %v1989 = vld [vmem:[%s1976 + $0x90] sm:$0xff]
      %v1990 = vld [vmem:[%s1976 + $0x98] sm:$0xff]
      %v1991 = vld [vmem:[%s1976 + $0xa8] sm:$0xff]
      %v1992 = vld [vmem:[%s1976 + $0xb0] sm:$0xff]
      %v1993 = vld [vmem:[%s1976 + $0xc0] sm:$0xff]
      %v1994 = vld [vmem:[%s1976 + $0xc8] sm:$0xff]
      %v1995 = vld [vmem:[%s1976 + $0xd8] sm:$0xff]
      %v1996 = vld [vmem:[%s1976 + $0xe0] sm:$0xff]
      %v1997 = vld [vmem:[%s1976 + $0xf0] sm:$0xff]
      %v1998 = vld [vmem:[%s1976 + $0xf8] sm:$0xff]
      %v1999 = vld [vmem:[%s1976 + $0x108] sm:$0xff]
      %v2000 = vld [vmem:[%s1976 + $0x110] sm:$0xff]
      %v2001 = vld [vmem:[%s1976 + $0x120] sm:$0xff]
      %v2002 = vld [vmem:[%s1976 + $0x128] sm:$0xff]
      %v2003 = vld [vmem:[%s1976 + $0x138] sm:$0xff]
      %v2004 = vld [vmem:[%s1976 + $0x140] sm:$0xff]
      %v2005 = vld [vmem:[%s1976 + $0x150] sm:$0xff]
      %v2006 = vld [vmem:[%s1976 + $0x158] sm:$0xff]
      %v2007 = vld [vmem:[%s1976 + $0x168] sm:$0xff]
      %v2008 = vld [vmem:[%s1976 + $0x170] sm:$0xff]
      %v2009 = vld [vmem:[%s1976 + $0x1] sm:$0xff]
      %v2010 = vld [vmem:[%s1976 + $0x9] sm:$0xff]
      %v2011 = vld [vmem:[%s1976 + $0x19] sm:$0xff]
      %v2012 = vld [vmem:[%s1976 + $0x21] sm:$0xff]
      %v2013 = vld [vmem:[%s1976 + $0x31] sm:$0xff]
      %v2014 = vld [vmem:[%s1976 + $0x39] sm:$0xff]
      %v2015 = vld [vmem:[%s1976 + $0x49] sm:$0xff]
      %v2016 = vld [vmem:[%s1976 + $0x51] sm:$0xff]
      %v2017 = vld [vmem:[%s1976 + $0x61] sm:$0xff]
      %v2018 = vld [vmem:[%s1976 + $0x69] sm:$0xff]
      %v2019 = vld [vmem:[%s1976 + $0x79] sm:$0xff]
      %v2020 = vld [vmem:[%s1976 + $0x81] sm:$0xff]
      %v2021 = vld [vmem:[%s1976 + $0x91] sm:$0xff]
      %v2022 = vld [vmem:[%s1976 + $0x99] sm:$0xff]
      %v2023 = vld [vmem:[%s1976 + $0xa9] sm:$0xff]
      %v2024 = vld [vmem:[%s1976 + $0xb1] sm:$0xff]
      %v2025 = vld [vmem:[%s1976 + $0xc1] sm:$0xff]
      %v2026 = vld [vmem:[%s1976 + $0xc9] sm:$0xff]
      %v2027 = vld [vmem:[%s1976 + $0xd9] sm:$0xff]
      %v2028 = vld [vmem:[%s1976 + $0xe1] sm:$0xff]
      %v2029 = vld [vmem:[%s1976 + $0xf1] sm:$0xff]
      %v2030 = vld [vmem:[%s1976 + $0xf9] sm:$0xff]
      %v2031 = vld [vmem:[%s1976 + $0x109] sm:$0xff]
      %v2032 = vld [vmem:[%s1976 + $0x111] sm:$0xff]
      %v2033 = vld [vmem:[%s1976 + $0x121] sm:$0xff]
      %v2034 = vld [vmem:[%s1976 + $0x129] sm:$0xff]
      %v2035 = vld [vmem:[%s1976 + $0x139] sm:$0xff]
      %v2036 = vld [vmem:[%s1976 + $0x141] sm:$0xff]
      %v2037 = vld [vmem:[%s1976 + $0x151] sm:$0xff]
      %v2038 = vld [vmem:[%s1976 + $0x159] sm:$0xff]
      %v2039 = vld [vmem:[%s1976 + $0x169] sm:$0xff]
      %v2040 = vld [vmem:[%s1976 + $0x171] sm:$0xff]
      %v2041 = vld [vmem:[%s1976 + $0x2] sm:$0xff]
      %v2042 = vld [vmem:[%s1976 + $0xa] sm:$0xff]
      %v2043 = vld [vmem:[%s1976 + $0x1a] sm:$0xff]
      %v2044 = vld [vmem:[%s1976 + $0x22] sm:$0xff]
      %v2045 = vld [vmem:[%s1976 + $0x32] sm:$0xff]
      %v2046 = vld [vmem:[%s1976 + $0x3a] sm:$0xff]
      %v2047 = vld [vmem:[%s1976 + $0x4a] sm:$0xff]
      %v2048 = vld [vmem:[%s1976 + $0x52] sm:$0xff]
      %v2049 = vld [vmem:[%s1976 + $0x62] sm:$0xff]
      %v2050 = vld [vmem:[%s1976 + $0x6a] sm:$0xff]
      %v2051 = vld [vmem:[%s1976 + $0x7a] sm:$0xff]
      %v2052 = vld [vmem:[%s1976 + $0x82] sm:$0xff]
      %v2053 = vld [vmem:[%s1976 + $0x92] sm:$0xff]
      %v2054 = vld [vmem:[%s1976 + $0x9a] sm:$0xff]
      %v2055 = vld [vmem:[%s1976 + $0xaa] sm:$0xff]
      %v2056 = vld [vmem:[%s1976 + $0xb2] sm:$0xff]
      %v2057 = vld [vmem:[%s1976 + $0xc2] sm:$0xff]
      %v2058 = vld [vmem:[%s1976 + $0xca] sm:$0xff]
      %v2059 = vld [vmem:[%s1976 + $0xda] sm:$0xff]
      %v2060 = vld [vmem:[%s1976 + $0xe2] sm:$0xff]
      %v2061 = vld [vmem:[%s1976 + $0xf2] sm:$0xff]
      %v2062 = vld [vmem:[%s1976 + $0xfa] sm:$0xff]
      %v2063 = vld [vmem:[%s1976 + $0x10a] sm:$0xff]
      %v2064 = vld [vmem:[%s1976 + $0x112] sm:$0xff]
      %v2065 = vld [vmem:[%s1976 + $0x122] sm:$0xff]
      %v2066 = vld [vmem:[%s1976 + $0x12a] sm:$0xff]
      %v2067 = vld [vmem:[%s1976 + $0x13a] sm:$0xff]
      %v2068 = vld [vmem:[%s1976 + $0x142] sm:$0xff]
      %v2069 = vld [vmem:[%s1976 + $0x152] sm:$0xff]
      %v2070 = vld [vmem:[%s1976 + $0x15a] sm:$0xff]
      %v2071 = vld [vmem:[%s1976 + $0x16a] sm:$0xff]
      %v2072 = vld [vmem:[%s1976 + $0x172] sm:$0xff]
      %2105 = vrot.lane.b32.xlu0 %v2009, 4
      %v2106 = vpop.permute.xlu0 %2105
      %2107 = vrot.lane.b32.xlu0 %v2010, 4
      %v2108 = vpop.permute.xlu0 %2107
      %2109 = vrot.lane.b32.xlu0 %v2011, 4
      %v2110 = vpop.permute.xlu0 %2109
      %2111 = vrot.lane.b32.xlu0 %v2012, 4
      %v2112 = vpop.permute.xlu0 %2111
      %2113 = vrot.lane.b32.xlu0 %v2013, 4
      %v2114 = vpop.permute.xlu0 %2113
      %2115 = vrot.lane.b32.xlu0 %v2014, 4
      %v2116 = vpop.permute.xlu0 %2115
      %2117 = vrot.lane.b32.xlu0 %v2015, 4
      %v2118 = vpop.permute.xlu0 %2117
      %2119 = vrot.lane.b32.xlu0 %v2016, 4
      %v2120 = vpop.permute.xlu0 %2119
      %2121 = vrot.lane.b32.xlu0 %v2017, 4
      %v2122 = vpop.permute.xlu0 %2121
      %2123 = vrot.lane.b32.xlu0 %v2018, 4
      %v2124 = vpop.permute.xlu0 %2123
      %2125 = vrot.lane.b32.xlu0 %v2019, 4
      %v2126 = vpop.permute.xlu0 %2125
      %2127 = vrot.lane.b32.xlu0 %v2020, 4
      %v2128 = vpop.permute.xlu0 %2127
      %2129 = vrot.lane.b32.xlu0 %v2021, 4
      %v2130 = vpop.permute.xlu0 %2129
      %2131 = vrot.lane.b32.xlu0 %v2022, 4
      %v2132 = vpop.permute.xlu0 %2131
      %2133 = vrot.lane.b32.xlu0 %v2023, 4
      %v2134 = vpop.permute.xlu0 %2133
      %2135 = vrot.lane.b32.xlu0 %v2024, 4
      %v2136 = vpop.permute.xlu0 %2135
      %2137 = vrot.lane.b32.xlu0 %v2025, 4
      %v2138 = vpop.permute.xlu0 %2137
      %2139 = vrot.lane.b32.xlu0 %v2026, 4
      %v2140 = vpop.permute.xlu0 %2139
      %2141 = vrot.lane.b32.xlu0 %v2027, 4
      %v2142 = vpop.permute.xlu0 %2141
      %2143 = vrot.lane.b32.xlu0 %v2028, 4
      %v2144 = vpop.permute.xlu0 %2143
      %2145 = vrot.lane.b32.xlu0 %v2029, 4
      %v2146 = vpop.permute.xlu0 %2145
      %2147 = vrot.lane.b32.xlu0 %v2030, 4
      %v2148 = vpop.permute.xlu0 %2147
      %2149 = vrot.lane.b32.xlu0 %v2031, 4
      %v2150 = vpop.permute.xlu0 %2149
      %2151 = vrot.lane.b32.xlu0 %v2032, 4
      %v2152 = vpop.permute.xlu0 %2151
      %2153 = vrot.lane.b32.xlu0 %v2033, 4
      %v2154 = vpop.permute.xlu0 %2153
      %2155 = vrot.lane.b32.xlu0 %v2034, 4
      %v2156 = vpop.permute.xlu0 %2155
      %2157 = vrot.lane.b32.xlu0 %v2035, 4
      %v2158 = vpop.permute.xlu0 %2157
      %2159 = vrot.lane.b32.xlu0 %v2036, 4
      %v2160 = vpop.permute.xlu0 %2159
      %2161 = vrot.lane.b32.xlu0 %v2037, 4
      %v2162 = vpop.permute.xlu0 %2161
      %2163 = vrot.lane.b32.xlu0 %v2038, 4
      %v2164 = vpop.permute.xlu0 %2163
      %2165 = vrot.lane.b32.xlu0 %v2039, 4
      %v2166 = vpop.permute.xlu0 %2165
      %2167 = vrot.lane.b32.xlu0 %v2040, 4
      %v2168 = vpop.permute.xlu0 %2167
      %2233 = vrot.lane.b32.xlu0 %v2041, 8
      %v2234 = vpop.permute.xlu0 %2233
      %2235 = vrot.lane.b32.xlu0 %v2042, 8
      %v2236 = vpop.permute.xlu0 %2235
      %2237 = vrot.lane.b32.xlu0 %v2043, 8
      %v2238 = vpop.permute.xlu0 %2237
      %2239 = vrot.lane.b32.xlu0 %v2044, 8
      %v2240 = vpop.permute.xlu0 %2239
      %2241 = vrot.lane.b32.xlu0 %v2045, 8
      %v2242 = vpop.permute.xlu0 %2241
      %2243 = vrot.lane.b32.xlu0 %v2046, 8
      %v2244 = vpop.permute.xlu0 %2243
      %2245 = vrot.lane.b32.xlu0 %v2047, 8
      %v2246 = vpop.permute.xlu0 %2245
      %2247 = vrot.lane.b32.xlu0 %v2048, 8
      %v2248 = vpop.permute.xlu0 %2247
      %2249 = vrot.lane.b32.xlu0 %v2049, 8
      %v2250 = vpop.permute.xlu0 %2249
      %2251 = vrot.lane.b32.xlu0 %v2050, 8
      %v2252 = vpop.permute.xlu0 %2251
      %2253 = vrot.lane.b32.xlu0 %v2051, 8
      %v2254 = vpop.permute.xlu0 %2253
      %2255 = vrot.lane.b32.xlu0 %v2052, 8
      %v2256 = vpop.permute.xlu0 %2255
      %2257 = vrot.lane.b32.xlu0 %v2053, 8
      %v2258 = vpop.permute.xlu0 %2257
      %2259 = vrot.lane.b32.xlu0 %v2054, 8
      %v2260 = vpop.permute.xlu0 %2259
      %2261 = vrot.lane.b32.xlu0 %v2055, 8
      %v2262 = vpop.permute.xlu0 %2261
      %2263 = vrot.lane.b32.xlu0 %v2056, 8
      %v2264 = vpop.permute.xlu0 %2263
      %2265 = vrot.lane.b32.xlu0 %v2057, 8
      %v2266 = vpop.permute.xlu0 %2265
      %2267 = vrot.lane.b32.xlu0 %v2058, 8
      %v2268 = vpop.permute.xlu0 %2267
      %2269 = vrot.lane.b32.xlu0 %v2059, 8
      %v2270 = vpop.permute.xlu0 %2269
      %2271 = vrot.lane.b32.xlu0 %v2060, 8
      %v2272 = vpop.permute.xlu0 %2271
      %2273 = vrot.lane.b32.xlu0 %v2061, 8
      %v2274 = vpop.permute.xlu0 %2273
      %2275 = vrot.lane.b32.xlu0 %v2062, 8
      %v2276 = vpop.permute.xlu0 %2275
      %2277 = vrot.lane.b32.xlu0 %v2063, 8
      %v2278 = vpop.permute.xlu0 %2277
      %2279 = vrot.lane.b32.xlu0 %v2064, 8
      %v2280 = vpop.permute.xlu0 %2279
      %2281 = vrot.lane.b32.xlu0 %v2065, 8
      %v2282 = vpop.permute.xlu0 %2281
      %2283 = vrot.lane.b32.xlu0 %v2066, 8
      %v2284 = vpop.permute.xlu0 %2283
      %2285 = vrot.lane.b32.xlu0 %v2067, 8
      %v2286 = vpop.permute.xlu0 %2285
      %2287 = vrot.lane.b32.xlu0 %v2068, 8
      %v2288 = vpop.permute.xlu0 %2287
      %2289 = vrot.lane.b32.xlu0 %v2069, 8
      %v2290 = vpop.permute.xlu0 %2289
      %2291 = vrot.lane.b32.xlu0 %v2070, 8
      %v2292 = vpop.permute.xlu0 %2291
      %2293 = vrot.lane.b32.xlu0 %v2071, 8
      %v2294 = vpop.permute.xlu0 %2293
      %2295 = vrot.lane.b32.xlu0 %v2072, 8
      %v2296 = vpop.permute.xlu0 %2295
      %v2329 = vsel %vm826, %v1977, %v2106
      %v2330 = vsel %vm826, %v1978, %v2108
      %v2331 = vsel %vm826, %v1979, %v2110
      %v2332 = vsel %vm826, %v1980, %v2112
      %v2333 = vsel %vm826, %v1981, %v2114
      %v2334 = vsel %vm826, %v1982, %v2116
      %v2335 = vsel %vm826, %v1983, %v2118
      %v2336 = vsel %vm826, %v1984, %v2120
      %v2337 = vsel %vm826, %v1985, %v2122
      %v2338 = vsel %vm826, %v1986, %v2124
      %v2339 = vsel %vm826, %v1987, %v2126
      %v2340 = vsel %vm826, %v1988, %v2128
      %v2341 = vsel %vm826, %v1989, %v2130
      %v2342 = vsel %vm826, %v1990, %v2132
      %v2343 = vsel %vm826, %v1991, %v2134
      %v2344 = vsel %vm826, %v1992, %v2136
      %v2345 = vsel %vm826, %v1993, %v2138
      %v2346 = vsel %vm826, %v1994, %v2140
      %v2347 = vsel %vm826, %v1995, %v2142
      %v2348 = vsel %vm826, %v1996, %v2144
      %v2349 = vsel %vm826, %v1997, %v2146
      %v2350 = vsel %vm826, %v1998, %v2148
      %v2351 = vsel %vm826, %v1999, %v2150
      %v2352 = vsel %vm826, %v2000, %v2152
      %v2353 = vsel %vm826, %v2001, %v2154
      %v2354 = vsel %vm826, %v2002, %v2156
      %v2355 = vsel %vm826, %v2003, %v2158
      %v2356 = vsel %vm826, %v2004, %v2160
      %v2357 = vsel %vm826, %v2005, %v2162
      %v2358 = vsel %vm826, %v2006, %v2164
      %v2359 = vsel %vm826, %v2007, %v2166
      %v2360 = vsel %vm826, %v2008, %v2168
      %v2361 = vsel %vm859, %v2329, %v2234
      %v2362 = vsel %vm859, %v2330, %v2236
      %v2363 = vsel %vm859, %v2331, %v2238
      %v2364 = vsel %vm859, %v2332, %v2240
      %v2365 = vsel %vm859, %v2333, %v2242
      %v2366 = vsel %vm859, %v2334, %v2244
      %v2367 = vsel %vm859, %v2335, %v2246
      %v2368 = vsel %vm859, %v2336, %v2248
      %v2369 = vsel %vm859, %v2337, %v2250
      %v2370 = vsel %vm859, %v2338, %v2252
      %v2371 = vsel %vm859, %v2339, %v2254
      %v2372 = vsel %vm859, %v2340, %v2256
      %v2373 = vsel %vm859, %v2341, %v2258
      %v2374 = vsel %vm859, %v2342, %v2260
      %v2375 = vsel %vm859, %v2343, %v2262
      %v2376 = vsel %vm859, %v2344, %v2264
      %v2377 = vsel %vm859, %v2345, %v2266
      %v2378 = vsel %vm859, %v2346, %v2268
      %v2379 = vsel %vm859, %v2347, %v2270
      %v2380 = vsel %vm859, %v2348, %v2272
      %v2381 = vsel %vm859, %v2349, %v2274
      %v2382 = vsel %vm859, %v2350, %v2276
      %v2383 = vsel %vm859, %v2351, %v2278
      %v2384 = vsel %vm859, %v2352, %v2280
      %v2385 = vsel %vm859, %v2353, %v2282
      %v2386 = vsel %vm859, %v2354, %v2284
      %v2387 = vsel %vm859, %v2355, %v2286
      %v2388 = vsel %vm859, %v2356, %v2288
      %v2389 = vsel %vm859, %v2357, %v2290
      %v2390 = vsel %vm859, %v2358, %v2292
      %v2391 = vsel %vm859, %v2359, %v2294
      %v2392 = vsel %vm859, %v2360, %v2296
      %s2393 = scalar_lea.vmem %s328, 32
      %v2394 = vld [vmem:[%s2393] sm:$0xff]
      %v2395 = vld [vmem:[%s2393 + $0x8] sm:$0xf]
      %v2397 = vsel %vm1326, %v2361, 0
      %v2400 = vsel %vm1326, %v2362, 0
      %v2403 = vsel %vm1326, %v2363, 0
      %v2406 = vsel %vm1326, %v2364, 0
      %v2409 = vsel %vm1326, %v2365, 0
      %v2412 = vsel %vm1326, %v2366, 0
      %v2415 = vsel %vm1326, %v2367, 0
      %v2418 = vsel %vm1326, %v2368, 0
      %v2421 = vsel %vm1326, %v2369, 0
      %v2424 = vsel %vm1326, %v2370, 0
      %v2427 = vsel %vm1326, %v2371, 0
      %v2430 = vsel %vm1326, %v2372, 0
      %v2433 = vsel %vm1326, %v2373, 0
      %v2436 = vsel %vm1326, %v2374, 0
      %v2439 = vsel %vm1326, %v2375, 0
      %v2442 = vsel %vm1326, %v2376, 0
      %v2445 = vsel %vm1326, %v2377, 0
      %v2448 = vsel %vm1326, %v2378, 0
      %v2451 = vsel %vm1326, %v2379, 0
      %v2454 = vsel %vm1326, %v2380, 0
      %v2457 = vsel %vm1326, %v2381, 0
      %v2460 = vsel %vm1326, %v2382, 0
      %v2463 = vsel %vm1326, %v2383, 0
      %v2466 = vsel %vm1326, %v2384, 0
      %v2469 = vsel %vm1326, %v2385, 0
      %v2472 = vsel %vm1326, %v2386, 0
      %v2475 = vsel %vm1326, %v2387, 0
      %v2478 = vsel %vm1326, %v2388, 0
      %v2481 = vsel %vm1326, %v2389, 0
      %v2484 = vsel %vm1326, %v2390, 0
      %v2487 = vsel %vm1326, %v2391, 0
      %v2490 = vsel %vm1326, %v2392, 0
      %v2493 = vsel %vm1423, %v2395, 0
      %2495 = vmatprep.subr.mxu0 0.0
      %2496 = vmatpush1.msra.mxu0 %v2394
      %2497 = vmatprep.subr.mxu0 0.0
      %2498 = vmatpush1.msra.mxu0 %v2493
      %2499 = vmatprep.subr.mxu0 0.0
      %2500 = vmatpush1.msra.mxu0 0.0
      %2501 = vmatprep.subr.mxu0 0.0
      %2502 = vmatpush1.msra.mxu0 0.0
      %2503 = vmatprep.subr.mxu0 0.0
      %2504 = vmatpush1.msra.mxu0 0.0
      %2505 = vmatprep.subr.mxu0 0.0
      %2506 = vmatpush1.msra.mxu0 0.0
      %2507 = vmatprep.subr.mxu0 0.0
      %2508 = vmatpush1.msra.mxu0 0.0
      %2509 = vmatprep.subr.mxu0 0.0
      %2510 = vmatpush1.msra.mxu0 0.0
      %2511 = vmatprep.subr.mxu0 0.0
      %2512 = vmatpush1.msra.mxu0 0.0
      %2513 = vmatprep.subr.mxu0 0.0
      %2514 = vmatpush1.msra.mxu0 0.0
      %2515 = vmatprep.subr.mxu0 0.0
      %2516 = vmatpush1.msra.mxu0 0.0
      %2517 = vmatprep.subr.mxu0 0.0
      %2518 = vmatpush1.msra.mxu0 0.0
      %2519 = vmatprep.subr.mxu0 0.0
      %2520 = vmatpush1.msra.mxu0 0.0
      %2521 = vmatprep.subr.mxu0 0.0
      %2522 = vmatpush1.msra.mxu0 0.0
      %2523 = vmatprep.subr.mxu0 0.0
      %2524 = vmatpush1.msra.mxu0 0.0
      %2525 = vmatprep.subr.mxu0 0.0
      %2526 = vmatpush1.msra.mxu0 0.0
      %2527 = vmatprep.subr.mxu0 0.0
      %2528 = vmatpush1.msra.mxu0 0.0
      %2529 = vmatprep.subr.mxu0 0.0
      %2530 = vmatpush1.msra.mxu0 0.0
      %2531 = vmatprep.subr.mxu0 0.0
      %2532 = vmatpush1.msra.mxu0 0.0
      %2533 = vmatprep.subr.mxu0 0.0
      %2534 = vmatpush1.msra.mxu0 0.0
      %2535 = vmatprep.subr.mxu0 0.0
      %2536 = vmatpush1.msra.mxu0 0.0
      %2537 = vmatprep.subr.mxu0 0.0
      %2538 = vmatpush1.msra.mxu0 0.0
      %2539 = vmatprep.subr.mxu0 0.0
      %2540 = vmatpush1.msra.mxu0 0.0
      %2541 = vmatprep.subr.mxu0 0.0
      %2542 = vmatpush1.msra.mxu0 0.0
      %2543 = vmatprep.subr.mxu0 0.0
      %2544 = vmatpush1.msra.mxu0 0.0
      %2545 = vmatprep.subr.mxu0 0.0
      %2546 = vmatpush1.msra.mxu0 0.0
      %2547 = vmatprep.subr.mxu0 0.0
      %2548 = vmatpush1.msra.mxu0 0.0
      %2549 = vmatprep.subr.mxu0 0.0
      %2550 = vmatpush1.msra.mxu0 0.0
      %2551 = vmatprep.subr.mxu0 0.0
      %2552 = vmatpush1.msra.mxu0 0.0
      %2553 = vmatprep.subr.mxu0 0.0
      %2554 = vmatpush1.msra.mxu0 0.0
      %2555 = vmatprep.subr.mxu0 0.0
      %2556 = vmatpush1.msra.mxu0 0.0
      %2557 = vmatprep.subr.mxu0 0.0
      %2558 = vmatpush1.msra.mxu0 0.0
      %2559 = vmatprep.mubr.f32.mxu0 0.0
      %2560 = vmatmul.mubr.f32.gmra.mrb[0].mxu0 %v2397
      %v2561 = vpop.f32.mrb[0].mxu0
      %v2562 = vadd.f32 0.0, %v2561
      %v2563 = vpop.f32.mrb[0].mxu0
      %2564 = vmatprep.mubr.f32.mxu0 0.0
      %2565 = vmatmul.mubr.f32.gmra.mrb[0].mxu0 %v2400
      %v2566 = vpop.f32.mrb[0].mxu0
      %v2567 = vadd.f32 0.0, %v2566
      %v2568 = vpop.f32.mrb[0].mxu0
      %2569 = vmatprep.mubr.f32.mxu0 0.0
      %2570 = vmatmul.mubr.f32.gmra.mrb[0].mxu0 %v2403
      %v2571 = vpop.f32.mrb[0].mxu0
      %v2572 = vadd.f32 0.0, %v2571
      %v2573 = vpop.f32.mrb[0].mxu0
      %2574 = vmatprep.mubr.f32.mxu0 0.0
      %2575 = vmatmul.mubr.f32.gmra.mrb[0].mxu0 %v2406
      %v2576 = vpop.f32.mrb[0].mxu0
      %v2577 = vadd.f32 0.0, %v2576
      %v2578 = vpop.f32.mrb[0].mxu0
      %2579 = vmatprep.mubr.f32.mxu0 0.0
      %2580 = vmatmul.mubr.f32.gmra.mrb[0].mxu0 %v2409
      %v2581 = vpop.f32.mrb[0].mxu0
      %v2582 = vadd.f32 0.0, %v2581
      %v2583 = vpop.f32.mrb[0].mxu0
      %2584 = vmatprep.mubr.f32.mxu0 0.0
      %2585 = vmatmul.mubr.f32.gmra.mrb[0].mxu0 %v2412
      %v2586 = vpop.f32.mrb[0].mxu0
      %v2587 = vadd.f32 0.0, %v2586
      %v2588 = vpop.f32.mrb[0].mxu0
      %2589 = vmatprep.mubr.f32.mxu0 0.0
      %2590 = vmatmul.mubr.f32.gmra.mrb[0].mxu0 %v2415
      %v2591 = vpop.f32.mrb[0].mxu0
      %v2592 = vadd.f32 0.0, %v2591
      %v2593 = vpop.f32.mrb[0].mxu0
      %2594 = vmatprep.mubr.f32.mxu0 0.0
      %2595 = vmatmul.mubr.f32.gmra.mrb[0].mxu0 %v2418
      %v2596 = vpop.f32.mrb[0].mxu0
      %v2597 = vadd.f32 0.0, %v2596
      %v2598 = vpop.f32.mrb[0].mxu0
      %2599 = vmatprep.mubr.f32.mxu0 0.0
      %2600 = vmatmul.mubr.f32.gmra.mrb[0].mxu0 %v2421
      %v2601 = vpop.f32.mrb[0].mxu0
      %v2602 = vadd.f32 0.0, %v2601
      %v2603 = vpop.f32.mrb[0].mxu0
      %2604 = vmatprep.mubr.f32.mxu0 0.0
      %2605 = vmatmul.mubr.f32.gmra.mrb[0].mxu0 %v2424
      %v2606 = vpop.f32.mrb[0].mxu0
      %v2607 = vadd.f32 0.0, %v2606
      %v2608 = vpop.f32.mrb[0].mxu0
      %2609 = vmatprep.mubr.f32.mxu0 0.0
      %2610 = vmatmul.mubr.f32.gmra.mrb[0].mxu0 %v2427
      %v2611 = vpop.f32.mrb[0].mxu0
      %v2612 = vadd.f32 0.0, %v2611
      %v2613 = vpop.f32.mrb[0].mxu0
      %2614 = vmatprep.mubr.f32.mxu0 0.0
      %2615 = vmatmul.mubr.f32.gmra.mrb[0].mxu0 %v2430
      %v2616 = vpop.f32.mrb[0].mxu0
      %v2617 = vadd.f32 0.0, %v2616
      %v2618 = vpop.f32.mrb[0].mxu0
      %2619 = vmatprep.mubr.f32.mxu0 0.0
      %2620 = vmatmul.mubr.f32.gmra.mrb[0].mxu0 %v2433
      %v2621 = vpop.f32.mrb[0].mxu0
      %v2622 = vadd.f32 0.0, %v2621
      %v2623 = vpop.f32.mrb[0].mxu0
      %2624 = vmatprep.mubr.f32.mxu0 0.0
      %2625 = vmatmul.mubr.f32.gmra.mrb[0].mxu0 %v2436
      %v2626 = vpop.f32.mrb[0].mxu0
      %v2627 = vadd.f32 0.0, %v2626
      %v2628 = vpop.f32.mrb[0].mxu0
      %2629 = vmatprep.mubr.f32.mxu0 0.0
      %2630 = vmatmul.mubr.f32.gmra.mrb[0].mxu0 %v2439
      %v2631 = vpop.f32.mrb[0].mxu0
      %v2632 = vadd.f32 0.0, %v2631
      %v2633 = vpop.f32.mrb[0].mxu0
      %2634 = vmatprep.mubr.f32.mxu0 0.0
      %2635 = vmatmul.mubr.f32.gmra.mrb[0].mxu0 %v2442
      %v2636 = vpop.f32.mrb[0].mxu0
      %v2637 = vadd.f32 0.0, %v2636
      %v2638 = vpop.f32.mrb[0].mxu0
      %2639 = vmatprep.mubr.f32.mxu0 0.0
      %2640 = vmatmul.mubr.f32.gmra.mrb[0].mxu0 %v2445
      %v2641 = vpop.f32.mrb[0].mxu0
      %v2642 = vadd.f32 0.0, %v2641
      %v2643 = vpop.f32.mrb[0].mxu0
      %2644 = vmatprep.mubr.f32.mxu0 0.0
      %2645 = vmatmul.mubr.f32.gmra.mrb[0].mxu0 %v2448
      %v2646 = vpop.f32.mrb[0].mxu0
      %v2647 = vadd.f32 0.0, %v2646
      %v2648 = vpop.f32.mrb[0].mxu0
      %2649 = vmatprep.mubr.f32.mxu0 0.0
      %2650 = vmatmul.mubr.f32.gmra.mrb[0].mxu0 %v2451
      %v2651 = vpop.f32.mrb[0].mxu0
      %v2652 = vadd.f32 0.0, %v2651
      %v2653 = vpop.f32.mrb[0].mxu0
      %2654 = vmatprep.mubr.f32.mxu0 0.0
      %2655 = vmatmul.mubr.f32.gmra.mrb[0].mxu0 %v2454
      %v2656 = vpop.f32.mrb[0].mxu0
      %v2657 = vadd.f32 0.0, %v2656
      %v2658 = vpop.f32.mrb[0].mxu0
      %2659 = vmatprep.mubr.f32.mxu0 0.0
      %2660 = vmatmul.mubr.f32.gmra.mrb[0].mxu0 %v2457
      %v2661 = vpop.f32.mrb[0].mxu0
      %v2662 = vadd.f32 0.0, %v2661
      %v2663 = vpop.f32.mrb[0].mxu0
      %2664 = vmatprep.mubr.f32.mxu0 0.0
      %2665 = vmatmul.mubr.f32.gmra.mrb[0].mxu0 %v2460
      %v2666 = vpop.f32.mrb[0].mxu0
      %v2667 = vadd.f32 0.0, %v2666
      %v2668 = vpop.f32.mrb[0].mxu0
      %2669 = vmatprep.mubr.f32.mxu0 0.0
      %2670 = vmatmul.mubr.f32.gmra.mrb[0].mxu0 %v2463
      %v2671 = vpop.f32.mrb[0].mxu0
      %v2672 = vadd.f32 0.0, %v2671
      %v2673 = vpop.f32.mrb[0].mxu0
      %2674 = vmatprep.mubr.f32.mxu0 0.0
      %2675 = vmatmul.mubr.f32.gmra.mrb[0].mxu0 %v2466
      %v2676 = vpop.f32.mrb[0].mxu0
      %v2677 = vadd.f32 0.0, %v2676
      %v2678 = vpop.f32.mrb[0].mxu0
      %2679 = vmatprep.mubr.f32.mxu0 0.0
      %2680 = vmatmul.mubr.f32.gmra.mrb[0].mxu0 %v2469
      %v2681 = vpop.f32.mrb[0].mxu0
      %v2682 = vadd.f32 0.0, %v2681
      %v2683 = vpop.f32.mrb[0].mxu0
      %2684 = vmatprep.mubr.f32.mxu0 0.0
      %2685 = vmatmul.mubr.f32.gmra.mrb[0].mxu0 %v2472
      %v2686 = vpop.f32.mrb[0].mxu0
      %v2687 = vadd.f32 0.0, %v2686
      %v2688 = vpop.f32.mrb[0].mxu0
      %2689 = vmatprep.mubr.f32.mxu0 0.0
      %2690 = vmatmul.mubr.f32.gmra.mrb[0].mxu0 %v2475
      %v2691 = vpop.f32.mrb[0].mxu0
      %v2692 = vadd.f32 0.0, %v2691
      %v2693 = vpop.f32.mrb[0].mxu0
      %2694 = vmatprep.mubr.f32.mxu0 0.0
      %2695 = vmatmul.mubr.f32.gmra.mrb[0].mxu0 %v2478
      %v2696 = vpop.f32.mrb[0].mxu0
      %v2697 = vadd.f32 0.0, %v2696
      %v2698 = vpop.f32.mrb[0].mxu0
      %2699 = vmatprep.mubr.f32.mxu0 0.0
      %2700 = vmatmul.mubr.f32.gmra.mrb[0].mxu0 %v2481
      %v2701 = vpop.f32.mrb[0].mxu0
      %v2702 = vadd.f32 0.0, %v2701
      %v2703 = vpop.f32.mrb[0].mxu0
      %2704 = vmatprep.mubr.f32.mxu0 0.0
      %2705 = vmatmul.mubr.f32.gmra.mrb[0].mxu0 %v2484
      %v2706 = vpop.f32.mrb[0].mxu0
      %v2707 = vadd.f32 0.0, %v2706
      %v2708 = vpop.f32.mrb[0].mxu0
      %2709 = vmatprep.mubr.f32.mxu0 0.0
      %2710 = vmatmul.mubr.f32.gmra.mrb[0].mxu0 %v2487
      %v2711 = vpop.f32.mrb[0].mxu0
      %v2712 = vadd.f32 0.0, %v2711
      %v2713 = vpop.f32.mrb[0].mxu0
      %2714 = vmatprep.mubr.f32.mxu0 0.0
      %2715 = vmatmul.mubr.f32.gmra.mrb[0].mxu0 %v2490
      %v2716 = vpop.f32.mrb[0].mxu0
      %v2717 = vadd.f32 0.0, %v2716
      %v2718 = vpop.f32.mrb[0].mxu0
      %2719 = vdwg.mxu0
      %v2720 = vadd.f32 %v1818, %v2562
      %v2721 = vadd.f32 %v1823, %v2567
      %v2722 = vadd.f32 %v1828, %v2572
      %v2723 = vadd.f32 %v1833, %v2577
      %v2724 = vadd.f32 %v1838, %v2582
      %v2725 = vadd.f32 %v1843, %v2587
      %v2726 = vadd.f32 %v1848, %v2592
      %v2727 = vadd.f32 %v1853, %v2597
      %v2728 = vadd.f32 %v1858, %v2602
      %v2729 = vadd.f32 %v1863, %v2607
      %v2730 = vadd.f32 %v1868, %v2612
      %v2731 = vadd.f32 %v1873, %v2617
      %v2732 = vadd.f32 %v1878, %v2622
      %v2733 = vadd.f32 %v1883, %v2627
      %v2734 = vadd.f32 %v1888, %v2632
      %v2735 = vadd.f32 %v1893, %v2637
      %v2736 = vadd.f32 %v1898, %v2642
      %v2737 = vadd.f32 %v1903, %v2647
      %v2738 = vadd.f32 %v1908, %v2652
      %v2739 = vadd.f32 %v1913, %v2657
      %v2740 = vadd.f32 %v1918, %v2662
      %v2741 = vadd.f32 %v1923, %v2667
      %v2742 = vadd.f32 %v1928, %v2672
      %v2743 = vadd.f32 %v1933, %v2677
      %v2744 = vadd.f32 %v1938, %v2682
      %v2745 = vadd.f32 %v1943, %v2687
      %v2746 = vadd.f32 %v1948, %v2692
      %v2747 = vadd.f32 %v1953, %v2697
      %v2748 = vadd.f32 %v1958, %v2702
      %v2749 = vadd.f32 %v1963, %v2707
      %v2750 = vadd.f32 %v1968, %v2712
      %v2751 = vadd.f32 %v1973, %v2717
      %2752 = vst.msk [vmem:[%s340] sm:$0xff] %vm859, %v2720
      %2753 = vst.msk [vmem:[%s340 + $0x8] sm:$0xff] %vm859, %v2721
      %2754 = vst.msk [vmem:[%s340 + $0x10] sm:$0xff] %vm859, %v2722
      %2755 = vst.msk [vmem:[%s340 + $0x18] sm:$0xff] %vm859, %v2723
      %2756 = vst.msk [vmem:[%s340 + $0x20] sm:$0xff] %vm859, %v2724
      %2757 = vst.msk [vmem:[%s340 + $0x28] sm:$0xff] %vm859, %v2725
      %2758 = vst.msk [vmem:[%s340 + $0x30] sm:$0xff] %vm859, %v2726
      %2759 = vst.msk [vmem:[%s340 + $0x38] sm:$0xff] %vm859, %v2727
      %2760 = vst.msk [vmem:[%s340 + $0x40] sm:$0xff] %vm859, %v2728
      %2761 = vst.msk [vmem:[%s340 + $0x48] sm:$0xff] %vm859, %v2729
      %2762 = vst.msk [vmem:[%s340 + $0x50] sm:$0xff] %vm859, %v2730
      %2763 = vst.msk [vmem:[%s340 + $0x58] sm:$0xff] %vm859, %v2731
      %2764 = vst.msk [vmem:[%s340 + $0x60] sm:$0xff] %vm859, %v2732
      %2765 = vst.msk [vmem:[%s340 + $0x68] sm:$0xff] %vm859, %v2733
      %2766 = vst.msk [vmem:[%s340 + $0x70] sm:$0xff] %vm859, %v2734
      %2767 = vst.msk [vmem:[%s340 + $0x78] sm:$0xff] %vm859, %v2735
      %2768 = vst.msk [vmem:[%s340 + $0x80] sm:$0xff] %vm859, %v2736
      %2769 = vst.msk [vmem:[%s340 + $0x88] sm:$0xff] %vm859, %v2737
      %2770 = vst.msk [vmem:[%s340 + $0x90] sm:$0xff] %vm859, %v2738
      %2771 = vst.msk [vmem:[%s340 + $0x98] sm:$0xff] %vm859, %v2739
      %2772 = vst.msk [vmem:[%s340 + $0xa0] sm:$0xff] %vm859, %v2740
      %2773 = vst.msk [vmem:[%s340 + $0xa8] sm:$0xff] %vm859, %v2741
      %2774 = vst.msk [vmem:[%s340 + $0xb0] sm:$0xff] %vm859, %v2742
      %2775 = vst.msk [vmem:[%s340 + $0xb8] sm:$0xff] %vm859, %v2743
      %2776 = vst.msk [vmem:[%s340 + $0xc0] sm:$0xff] %vm859, %v2744
      %2777 = vst.msk [vmem:[%s340 + $0xc8] sm:$0xff] %vm859, %v2745
      %2778 = vst.msk [vmem:[%s340 + $0xd0] sm:$0xff] %vm859, %v2746
      %2779 = vst.msk [vmem:[%s340 + $0xd8] sm:$0xff] %vm859, %v2747
      %2780 = vst.msk [vmem:[%s340 + $0xe0] sm:$0xff] %vm859, %v2748
      %2781 = vst.msk [vmem:[%s340 + $0xe8] sm:$0xff] %vm859, %v2749
      %2782 = vst.msk [vmem:[%s340 + $0xf0] sm:$0xff] %vm859, %v2750
      %2783 = vst.msk [vmem:[%s340 + $0xf8] sm:$0xff] %vm859, %v2751
      %v2784 = vsel %vm859, %v2720, 0.0
      %v2785 = vsel %vm859, %v2721, 0.0
      %v2786 = vadd.f32 %v2784, %v2785
      %v2787 = vsel %vm859, %v2722, 0.0
      %v2788 = vadd.f32 %v2786, %v2787
      %v2789 = vsel %vm859, %v2723, 0.0
      %v2790 = vadd.f32 %v2788, %v2789
      %v2791 = vsel %vm859, %v2724, 0.0
      %v2792 = vadd.f32 %v2790, %v2791
      %v2793 = vsel %vm859, %v2725, 0.0
      %v2794 = vadd.f32 %v2792, %v2793
      %v2795 = vsel %vm859, %v2726, 0.0
      %v2796 = vadd.f32 %v2794, %v2795
      %v2797 = vsel %vm859, %v2727, 0.0
      %v2798 = vadd.f32 %v2796, %v2797
      %v2799 = vsel %vm859, %v2728, 0.0
      %v2800 = vadd.f32 %v2798, %v2799
      %v2801 = vsel %vm859, %v2729, 0.0
      %v2802 = vadd.f32 %v2800, %v2801
      %v2803 = vsel %vm859, %v2730, 0.0
      %v2804 = vadd.f32 %v2802, %v2803
      %v2805 = vsel %vm859, %v2731, 0.0
      %v2806 = vadd.f32 %v2804, %v2805
      %v2807 = vsel %vm859, %v2732, 0.0
      %v2808 = vadd.f32 %v2806, %v2807
      %v2809 = vsel %vm859, %v2733, 0.0
      %v2810 = vadd.f32 %v2808, %v2809
      %v2811 = vsel %vm859, %v2734, 0.0
      %v2812 = vadd.f32 %v2810, %v2811
      %v2813 = vsel %vm859, %v2735, 0.0
      %v2814 = vadd.f32 %v2812, %v2813
      %v2815 = vsel %vm859, %v2736, 0.0
      %v2816 = vadd.f32 %v2814, %v2815
      %v2817 = vsel %vm859, %v2737, 0.0
      %v2818 = vadd.f32 %v2816, %v2817
      %v2819 = vsel %vm859, %v2738, 0.0
      %v2820 = vadd.f32 %v2818, %v2819
      %v2821 = vsel %vm859, %v2739, 0.0
      %v2822 = vadd.f32 %v2820, %v2821
      %v2823 = vsel %vm859, %v2740, 0.0
      %v2824 = vadd.f32 %v2822, %v2823
      %v2825 = vsel %vm859, %v2741, 0.0
      %v2826 = vadd.f32 %v2824, %v2825
      %v2827 = vsel %vm859, %v2742, 0.0
      %v2828 = vadd.f32 %v2826, %v2827
      %v2829 = vsel %vm859, %v2743, 0.0
      %v2830 = vadd.f32 %v2828, %v2829
      %v2831 = vsel %vm859, %v2744, 0.0
      %v2832 = vadd.f32 %v2830, %v2831
      %v2833 = vsel %vm859, %v2745, 0.0
      %v2834 = vadd.f32 %v2832, %v2833
      %v2835 = vsel %vm859, %v2746, 0.0
      %v2836 = vadd.f32 %v2834, %v2835
      %v2837 = vsel %vm859, %v2747, 0.0
      %v2838 = vadd.f32 %v2836, %v2837
      %v2839 = vsel %vm859, %v2748, 0.0
      %v2840 = vadd.f32 %v2838, %v2839
      %v2841 = vsel %vm859, %v2749, 0.0
      %v2842 = vadd.f32 %v2840, %v2841
      %v2843 = vsel %vm859, %v2750, 0.0
      %v2844 = vadd.f32 %v2842, %v2843
      %v2845 = vsel %vm859, %v2751, 0.0
      %v2846 = vadd.f32 %v2844, %v2845
      %v2847 = vrot.slane %v2846, 4
      %v2848 = vadd.f32 %v2846, %v2847
      %v2849 = vrot.slane %v2848, 2
      %v2850 = vadd.f32 %v2848, %v2849
      %v2851 = vrot.slane %v2850, 1
      %v2852 = vadd.f32 %v2850, %v2851
      %vm2853 = vcmask 57344
      %2854 = vst.msk [vmem:[%s347] sm:$0x1] %vm2853, %v2852
      %v2855 = vmul.f32 %v2720, %v2720
      %v2856 = vmul.f32 %v2721, %v2721
      %v2857 = vmul.f32 %v2722, %v2722
      %v2858 = vmul.f32 %v2723, %v2723
      %v2859 = vmul.f32 %v2724, %v2724
      %v2860 = vmul.f32 %v2725, %v2725
      %v2861 = vmul.f32 %v2726, %v2726
      %v2862 = vmul.f32 %v2727, %v2727
      %v2863 = vmul.f32 %v2728, %v2728
      %v2864 = vmul.f32 %v2729, %v2729
      %v2865 = vmul.f32 %v2730, %v2730
      %v2866 = vmul.f32 %v2731, %v2731
      %v2867 = vmul.f32 %v2732, %v2732
      %v2868 = vmul.f32 %v2733, %v2733
      %v2869 = vmul.f32 %v2734, %v2734
      %v2870 = vmul.f32 %v2735, %v2735
      %v2871 = vmul.f32 %v2736, %v2736
      %v2872 = vmul.f32 %v2737, %v2737
      %v2873 = vmul.f32 %v2738, %v2738
      %v2874 = vmul.f32 %v2739, %v2739
      %v2875 = vmul.f32 %v2740, %v2740
      %v2876 = vmul.f32 %v2741, %v2741
      %v2877 = vmul.f32 %v2742, %v2742
      %v2878 = vmul.f32 %v2743, %v2743
      %v2879 = vmul.f32 %v2744, %v2744
      %v2880 = vmul.f32 %v2745, %v2745
      %v2881 = vmul.f32 %v2746, %v2746
      %v2882 = vmul.f32 %v2747, %v2747
      %v2883 = vmul.f32 %v2748, %v2748
      %v2884 = vmul.f32 %v2749, %v2749
      %v2885 = vmul.f32 %v2750, %v2750
      %v2886 = vmul.f32 %v2751, %v2751
      %v2887 = vsel %vm859, %v2855, 0.0
      %v2888 = vsel %vm859, %v2856, 0.0
      %v2889 = vadd.f32 %v2887, %v2888
      %v2890 = vsel %vm859, %v2857, 0.0
      %v2891 = vadd.f32 %v2889, %v2890
      %v2892 = vsel %vm859, %v2858, 0.0
      %v2893 = vadd.f32 %v2891, %v2892
      %v2894 = vsel %vm859, %v2859, 0.0
      %v2895 = vadd.f32 %v2893, %v2894
      %v2896 = vsel %vm859, %v2860, 0.0
      %v2897 = vadd.f32 %v2895, %v2896
      %v2898 = vsel %vm859, %v2861, 0.0
      %v2899 = vadd.f32 %v2897, %v2898
      %v2900 = vsel %vm859, %v2862, 0.0
      %v2901 = vadd.f32 %v2899, %v2900
      %v2902 = vsel %vm859, %v2863, 0.0
      %v2903 = vadd.f32 %v2901, %v2902
      %v2904 = vsel %vm859, %v2864, 0.0
      %v2905 = vadd.f32 %v2903, %v2904
      %v2906 = vsel %vm859, %v2865, 0.0
      %v2907 = vadd.f32 %v2905, %v2906
      %v2908 = vsel %vm859, %v2866, 0.0
      %v2909 = vadd.f32 %v2907, %v2908
      %v2910 = vsel %vm859, %v2867, 0.0
      %v2911 = vadd.f32 %v2909, %v2910
      %v2912 = vsel %vm859, %v2868, 0.0
      %v2913 = vadd.f32 %v2911, %v2912
      %v2914 = vsel %vm859, %v2869, 0.0
      %v2915 = vadd.f32 %v2913, %v2914
      %v2916 = vsel %vm859, %v2870, 0.0
      %v2917 = vadd.f32 %v2915, %v2916
      %v2918 = vsel %vm859, %v2871, 0.0
      %v2919 = vadd.f32 %v2917, %v2918
      %v2920 = vsel %vm859, %v2872, 0.0
      %v2921 = vadd.f32 %v2919, %v2920
      %v2922 = vsel %vm859, %v2873, 0.0
      %v2923 = vadd.f32 %v2921, %v2922
      %v2924 = vsel %vm859, %v2874, 0.0
      %v2925 = vadd.f32 %v2923, %v2924
      %v2926 = vsel %vm859, %v2875, 0.0
      %v2927 = vadd.f32 %v2925, %v2926
      %v2928 = vsel %vm859, %v2876, 0.0
      %v2929 = vadd.f32 %v2927, %v2928
      %v2930 = vsel %vm859, %v2877, 0.0
      %v2931 = vadd.f32 %v2929, %v2930
      %v2932 = vsel %vm859, %v2878, 0.0
      %v2933 = vadd.f32 %v2931, %v2932
      %v2934 = vsel %vm859, %v2879, 0.0
      %v2935 = vadd.f32 %v2933, %v2934
      %v2936 = vsel %vm859, %v2880, 0.0
      %v2937 = vadd.f32 %v2935, %v2936
      %v2938 = vsel %vm859, %v2881, 0.0
      %v2939 = vadd.f32 %v2937, %v2938
      %v2940 = vsel %vm859, %v2882, 0.0
      %v2941 = vadd.f32 %v2939, %v2940
      %v2942 = vsel %vm859, %v2883, 0.0
      %v2943 = vadd.f32 %v2941, %v2942
      %v2944 = vsel %vm859, %v2884, 0.0
      %v2945 = vadd.f32 %v2943, %v2944
      %v2946 = vsel %vm859, %v2885, 0.0
      %v2947 = vadd.f32 %v2945, %v2946
      %v2948 = vsel %vm859, %v2886, 0.0
      %v2949 = vadd.f32 %v2947, %v2948
      %v2950 = vrot.slane %v2949, 4
      %v2951 = vadd.f32 %v2949, %v2950
      %v2952 = vrot.slane %v2951, 2
      %v2953 = vadd.f32 %v2951, %v2952
      %v2954 = vrot.slane %v2953, 1
      %v2955 = vadd.f32 %v2953, %v2954
      %2956 = vst.msk [vmem:[%s347 + $0x1] sm:$0x1] %vm2853, %v2955
      %2989 = vrot.lane.b32.xlu0 %v1494, 120
      %v2990 = vpop.permute.xlu0 %2989
      %2991 = vrot.lane.b32.xlu0 %v1499, 120
      %v2992 = vpop.permute.xlu0 %2991
      %2993 = vrot.lane.b32.xlu0 %v1504, 120
      %v2994 = vpop.permute.xlu0 %2993
      %2995 = vrot.lane.b32.xlu0 %v1509, 120
      %v2996 = vpop.permute.xlu0 %2995
      %2997 = vrot.lane.b32.xlu0 %v1514, 120
      %v2998 = vpop.permute.xlu0 %2997
      %2999 = vrot.lane.b32.xlu0 %v1519, 120
      %v3000 = vpop.permute.xlu0 %2999
      %3001 = vrot.lane.b32.xlu0 %v1524, 120
      %v3002 = vpop.permute.xlu0 %3001
      %3003 = vrot.lane.b32.xlu0 %v1529, 120
      %v3004 = vpop.permute.xlu0 %3003
      %3005 = vrot.lane.b32.xlu0 %v1534, 120
      %v3006 = vpop.permute.xlu0 %3005
      %3007 = vrot.lane.b32.xlu0 %v1539, 120
      %v3008 = vpop.permute.xlu0 %3007
      %3009 = vrot.lane.b32.xlu0 %v1544, 120
      %v3010 = vpop.permute.xlu0 %3009
      %3011 = vrot.lane.b32.xlu0 %v1549, 120
      %v3012 = vpop.permute.xlu0 %3011
      %3013 = vrot.lane.b32.xlu0 %v1554, 120
      %v3014 = vpop.permute.xlu0 %3013
      %3015 = vrot.lane.b32.xlu0 %v1559, 120
      %v3016 = vpop.permute.xlu0 %3015
      %3017 = vrot.lane.b32.xlu0 %v1564, 120
      %v3018 = vpop.permute.xlu0 %3017
      %3019 = vrot.lane.b32.xlu0 %v1569, 120
      %v3020 = vpop.permute.xlu0 %3019
      %3021 = vrot.lane.b32.xlu0 %v1574, 120
      %v3022 = vpop.permute.xlu0 %3021
      %3023 = vrot.lane.b32.xlu0 %v1579, 120
      %v3024 = vpop.permute.xlu0 %3023
      %3025 = vrot.lane.b32.xlu0 %v1584, 120
      %v3026 = vpop.permute.xlu0 %3025
      %3027 = vrot.lane.b32.xlu0 %v1589, 120
      %v3028 = vpop.permute.xlu0 %3027
      %3029 = vrot.lane.b32.xlu0 %v1594, 120
      %v3030 = vpop.permute.xlu0 %3029
      %3031 = vrot.lane.b32.xlu0 %v1599, 120
      %v3032 = vpop.permute.xlu0 %3031
      %3033 = vrot.lane.b32.xlu0 %v1604, 120
      %v3034 = vpop.permute.xlu0 %3033
      %3035 = vrot.lane.b32.xlu0 %v1609, 120
      %v3036 = vpop.permute.xlu0 %3035
      %3037 = vrot.lane.b32.xlu0 %v1614, 120
      %v3038 = vpop.permute.xlu0 %3037
      %3039 = vrot.lane.b32.xlu0 %v1619, 120
      %v3040 = vpop.permute.xlu0 %3039
      %3041 = vrot.lane.b32.xlu0 %v1624, 120
      %v3042 = vpop.permute.xlu0 %3041
      %3043 = vrot.lane.b32.xlu0 %v1629, 120
      %v3044 = vpop.permute.xlu0 %3043
      %3045 = vrot.lane.b32.xlu0 %v1634, 120
      %v3046 = vpop.permute.xlu0 %3045
      %3047 = vrot.lane.b32.xlu0 %v1639, 120
      %v3048 = vpop.permute.xlu0 %3047
      %3049 = vrot.lane.b32.xlu0 %v1644, 120
      %v3050 = vpop.permute.xlu0 %3049
      %3051 = vrot.lane.b32.xlu0 %v1649, 120
      %v3052 = vpop.permute.xlu0 %3051
      %3085 = vst.msk [vmem:[%s355] sm:$0xff] %vm859, %v2990
      %3086 = vst.msk [vmem:[%s355 + $0x8] sm:$0xff] %vm859, %v2992
      %3087 = vst.msk [vmem:[%s355 + $0x10] sm:$0xff] %vm859, %v2994
      %3088 = vst.msk [vmem:[%s355 + $0x18] sm:$0xff] %vm859, %v2996
      %3089 = vst.msk [vmem:[%s355 + $0x20] sm:$0xff] %vm859, %v2998
      %3090 = vst.msk [vmem:[%s355 + $0x28] sm:$0xff] %vm859, %v3000
      %3091 = vst.msk [vmem:[%s355 + $0x30] sm:$0xff] %vm859, %v3002
      %3092 = vst.msk [vmem:[%s355 + $0x38] sm:$0xff] %vm859, %v3004
      %3093 = vst.msk [vmem:[%s355 + $0x40] sm:$0xff] %vm859, %v3006
      %3094 = vst.msk [vmem:[%s355 + $0x48] sm:$0xff] %vm859, %v3008
      %3095 = vst.msk [vmem:[%s355 + $0x50] sm:$0xff] %vm859, %v3010
      %3096 = vst.msk [vmem:[%s355 + $0x58] sm:$0xff] %vm859, %v3012
      %3097 = vst.msk [vmem:[%s355 + $0x60] sm:$0xff] %vm859, %v3014
      %3098 = vst.msk [vmem:[%s355 + $0x68] sm:$0xff] %vm859, %v3016
      %3099 = vst.msk [vmem:[%s355 + $0x70] sm:$0xff] %vm859, %v3018
      %3100 = vst.msk [vmem:[%s355 + $0x78] sm:$0xff] %vm859, %v3020
      %3101 = vst.msk [vmem:[%s355 + $0x80] sm:$0xff] %vm859, %v3022
      %3102 = vst.msk [vmem:[%s355 + $0x88] sm:$0xff] %vm859, %v3024
      %3103 = vst.msk [vmem:[%s355 + $0x90] sm:$0xff] %vm859, %v3026
      %3104 = vst.msk [vmem:[%s355 + $0x98] sm:$0xff] %vm859, %v3028
      %3105 = vst.msk [vmem:[%s355 + $0xa0] sm:$0xff] %vm859, %v3030
      %3106 = vst.msk [vmem:[%s355 + $0xa8] sm:$0xff] %vm859, %v3032
      %3107 = vst.msk [vmem:[%s355 + $0xb0] sm:$0xff] %vm859, %v3034
      %3108 = vst.msk [vmem:[%s355 + $0xb8] sm:$0xff] %vm859, %v3036
      %3109 = vst.msk [vmem:[%s355 + $0xc0] sm:$0xff] %vm859, %v3038
      %3110 = vst.msk [vmem:[%s355 + $0xc8] sm:$0xff] %vm859, %v3040
      %3111 = vst.msk [vmem:[%s355 + $0xd0] sm:$0xff] %vm859, %v3042
      %3112 = vst.msk [vmem:[%s355 + $0xd8] sm:$0xff] %vm859, %v3044
      %3113 = vst.msk [vmem:[%s355 + $0xe0] sm:$0xff] %vm859, %v3046
      %3114 = vst.msk [vmem:[%s355 + $0xe8] sm:$0xff] %vm859, %v3048
      %3115 = vst.msk [vmem:[%s355 + $0xf0] sm:$0xff] %vm859, %v3050
      %3116 = vst.msk [vmem:[%s355 + $0xf8] sm:$0xff] %vm859, %v3052
      %vm3117 = vcmask 130112
      %v3118 = vsel %vm3117, %v1494, 0.0
      %v3119 = vsel %vm3117, %v1499, 0.0
      %v3120 = vadd.f32 %v3118, %v3119
      %v3121 = vsel %vm3117, %v1504, 0.0
      %v3122 = vadd.f32 %v3120, %v3121
      %v3123 = vsel %vm3117, %v1509, 0.0
      %v3124 = vadd.f32 %v3122, %v3123
      %v3125 = vsel %vm3117, %v1514, 0.0
      %v3126 = vadd.f32 %v3124, %v3125
      %v3127 = vsel %vm3117, %v1519, 0.0
      %v3128 = vadd.f32 %v3126, %v3127
      %v3129 = vsel %vm3117, %v1524, 0.0
      %v3130 = vadd.f32 %v3128, %v3129
      %v3131 = vsel %vm3117, %v1529, 0.0
      %v3132 = vadd.f32 %v3130, %v3131
      %v3133 = vsel %vm3117, %v1534, 0.0
      %v3134 = vadd.f32 %v3132, %v3133
      %v3135 = vsel %vm3117, %v1539, 0.0
      %v3136 = vadd.f32 %v3134, %v3135
      %v3137 = vsel %vm3117, %v1544, 0.0
      %v3138 = vadd.f32 %v3136, %v3137
      %v3139 = vsel %vm3117, %v1549, 0.0
      %v3140 = vadd.f32 %v3138, %v3139
      %v3141 = vsel %vm3117, %v1554, 0.0
      %v3142 = vadd.f32 %v3140, %v3141
      %v3143 = vsel %vm3117, %v1559, 0.0
      %v3144 = vadd.f32 %v3142, %v3143
      %v3145 = vsel %vm3117, %v1564, 0.0
      %v3146 = vadd.f32 %v3144, %v3145
      %v3147 = vsel %vm3117, %v1569, 0.0
      %v3148 = vadd.f32 %v3146, %v3147
      %v3149 = vsel %vm3117, %v1574, 0.0
      %v3150 = vadd.f32 %v3148, %v3149
      %v3151 = vsel %vm3117, %v1579, 0.0
      %v3152 = vadd.f32 %v3150, %v3151
      %v3153 = vsel %vm3117, %v1584, 0.0
      %v3154 = vadd.f32 %v3152, %v3153
      %v3155 = vsel %vm3117, %v1589, 0.0
      %v3156 = vadd.f32 %v3154, %v3155
      %v3157 = vsel %vm3117, %v1594, 0.0
      %v3158 = vadd.f32 %v3156, %v3157
      %v3159 = vsel %vm3117, %v1599, 0.0
      %v3160 = vadd.f32 %v3158, %v3159
      %v3161 = vsel %vm3117, %v1604, 0.0
      %v3162 = vadd.f32 %v3160, %v3161
      %v3163 = vsel %vm3117, %v1609, 0.0
      %v3164 = vadd.f32 %v3162, %v3163
      %v3165 = vsel %vm3117, %v1614, 0.0
      %v3166 = vadd.f32 %v3164, %v3165
      %v3167 = vsel %vm3117, %v1619, 0.0
      %v3168 = vadd.f32 %v3166, %v3167
      %v3169 = vsel %vm3117, %v1624, 0.0
      %v3170 = vadd.f32 %v3168, %v3169
      %v3171 = vsel %vm3117, %v1629, 0.0
      %v3172 = vadd.f32 %v3170, %v3171
      %v3173 = vsel %vm3117, %v1634, 0.0
      %v3174 = vadd.f32 %v3172, %v3173
      %v3175 = vsel %vm3117, %v1639, 0.0
      %v3176 = vadd.f32 %v3174, %v3175
      %v3177 = vsel %vm3117, %v1644, 0.0
      %v3178 = vadd.f32 %v3176, %v3177
      %v3179 = vsel %vm3117, %v1649, 0.0
      %v3180 = vadd.f32 %v3178, %v3179
      %v3181 = vrot.slane %v3180, 4
      %v3182 = vadd.f32 %v3180, %v3181
      %v3183 = vrot.slane %v3182, 2
      %v3184 = vadd.f32 %v3182, %v3183
      %v3185 = vrot.slane %v3184, 1
      %v3186 = vadd.f32 %v3184, %v3185
      %3188 = vrot.lane.b32.xlu0 %v3186, 120
      %v3189 = vpop.permute.xlu0 %3188
      %3191 = vst.msk [vmem:[%s362] sm:$0x1] %vm2853, %v3189
      %v3192 = vmul.f32 %v1494, %v1494
      %v3193 = vmul.f32 %v1499, %v1499
      %v3194 = vmul.f32 %v1504, %v1504
      %v3195 = vmul.f32 %v1509, %v1509
      %v3196 = vmul.f32 %v1514, %v1514
      %v3197 = vmul.f32 %v1519, %v1519
      %v3198 = vmul.f32 %v1524, %v1524
      %v3199 = vmul.f32 %v1529, %v1529
      %v3200 = vmul.f32 %v1534, %v1534
      %v3201 = vmul.f32 %v1539, %v1539
      %v3202 = vmul.f32 %v1544, %v1544
      %v3203 = vmul.f32 %v1549, %v1549
      %v3204 = vmul.f32 %v1554, %v1554
      %v3205 = vmul.f32 %v1559, %v1559
      %v3206 = vmul.f32 %v1564, %v1564
      %v3207 = vmul.f32 %v1569, %v1569
      %v3208 = vmul.f32 %v1574, %v1574
      %v3209 = vmul.f32 %v1579, %v1579
      %v3210 = vmul.f32 %v1584, %v1584
      %v3211 = vmul.f32 %v1589, %v1589
      %v3212 = vmul.f32 %v1594, %v1594
      %v3213 = vmul.f32 %v1599, %v1599
      %v3214 = vmul.f32 %v1604, %v1604
      %v3215 = vmul.f32 %v1609, %v1609
      %v3216 = vmul.f32 %v1614, %v1614
      %v3217 = vmul.f32 %v1619, %v1619
      %v3218 = vmul.f32 %v1624, %v1624
      %v3219 = vmul.f32 %v1629, %v1629
      %v3220 = vmul.f32 %v1634, %v1634
      %v3221 = vmul.f32 %v1639, %v1639
      %v3222 = vmul.f32 %v1644, %v1644
      %v3223 = vmul.f32 %v1649, %v1649
      %v3224 = vsel %vm3117, %v3192, 0.0
      %v3225 = vsel %vm3117, %v3193, 0.0
      %v3226 = vadd.f32 %v3224, %v3225
      %v3227 = vsel %vm3117, %v3194, 0.0
      %v3228 = vadd.f32 %v3226, %v3227
      %v3229 = vsel %vm3117, %v3195, 0.0
      %v3230 = vadd.f32 %v3228, %v3229
      %v3231 = vsel %vm3117, %v3196, 0.0
      %v3232 = vadd.f32 %v3230, %v3231
      %v3233 = vsel %vm3117, %v3197, 0.0
      %v3234 = vadd.f32 %v3232, %v3233
      %v3235 = vsel %vm3117, %v3198, 0.0
      %v3236 = vadd.f32 %v3234, %v3235
      %v3237 = vsel %vm3117, %v3199, 0.0
      %v3238 = vadd.f32 %v3236, %v3237
      %v3239 = vsel %vm3117, %v3200, 0.0
      %v3240 = vadd.f32 %v3238, %v3239
      %v3241 = vsel %vm3117, %v3201, 0.0
      %v3242 = vadd.f32 %v3240, %v3241
      %v3243 = vsel %vm3117, %v3202, 0.0
      %v3244 = vadd.f32 %v3242, %v3243
      %v3245 = vsel %vm3117, %v3203, 0.0
      %v3246 = vadd.f32 %v3244, %v3245
      %v3247 = vsel %vm3117, %v3204, 0.0
      %v3248 = vadd.f32 %v3246, %v3247
      %v3249 = vsel %vm3117, %v3205, 0.0
      %v3250 = vadd.f32 %v3248, %v3249
      %v3251 = vsel %vm3117, %v3206, 0.0
      %v3252 = vadd.f32 %v3250, %v3251
      %v3253 = vsel %vm3117, %v3207, 0.0
      %v3254 = vadd.f32 %v3252, %v3253
      %v3255 = vsel %vm3117, %v3208, 0.0
      %v3256 = vadd.f32 %v3254, %v3255
      %v3257 = vsel %vm3117, %v3209, 0.0
      %v3258 = vadd.f32 %v3256, %v3257
      %v3259 = vsel %vm3117, %v3210, 0.0
      %v3260 = vadd.f32 %v3258, %v3259
      %v3261 = vsel %vm3117, %v3211, 0.0
      %v3262 = vadd.f32 %v3260, %v3261
      %v3263 = vsel %vm3117, %v3212, 0.0
      %v3264 = vadd.f32 %v3262, %v3263
      %v3265 = vsel %vm3117, %v3213, 0.0
      %v3266 = vadd.f32 %v3264, %v3265
      %v3267 = vsel %vm3117, %v3214, 0.0
      %v3268 = vadd.f32 %v3266, %v3267
      %v3269 = vsel %vm3117, %v3215, 0.0
      %v3270 = vadd.f32 %v3268, %v3269
      %v3271 = vsel %vm3117, %v3216, 0.0
      %v3272 = vadd.f32 %v3270, %v3271
      %v3273 = vsel %vm3117, %v3217, 0.0
      %v3274 = vadd.f32 %v3272, %v3273
      %v3275 = vsel %vm3117, %v3218, 0.0
      %v3276 = vadd.f32 %v3274, %v3275
      %v3277 = vsel %vm3117, %v3219, 0.0
      %v3278 = vadd.f32 %v3276, %v3277
      %v3279 = vsel %vm3117, %v3220, 0.0
      %v3280 = vadd.f32 %v3278, %v3279
      %v3281 = vsel %vm3117, %v3221, 0.0
      %v3282 = vadd.f32 %v3280, %v3281
      %v3283 = vsel %vm3117, %v3222, 0.0
      %v3284 = vadd.f32 %v3282, %v3283
      %v3285 = vsel %vm3117, %v3223, 0.0
      %v3286 = vadd.f32 %v3284, %v3285
      %v3287 = vrot.slane %v3286, 4
      %v3288 = vadd.f32 %v3286, %v3287
      %v3289 = vrot.slane %v3288, 2
      %v3290 = vadd.f32 %v3288, %v3289
      %v3291 = vrot.slane %v3290, 1
      %v3292 = vadd.f32 %v3290, %v3291
      %3294 = vrot.lane.b32.xlu0 %v3292, 120
      %v3295 = vpop.permute.xlu0 %3294
      %3297 = vst.msk [vmem:[%s362 + $0x1] sm:$0x1] %vm2853, %v3295
      %p3298 = scmp.lt.s32.totalorder %s22, 1
      %s3299 = scalar_select %p3298, %s22, 1
      %p3300 = scmp.lt.s32.totalorder %s23, 0
      %s3301 = scalar_select %p3300, %s23, 0
      %s3302 = smul.addr %s3299, 32
      %s3303 = sadd.s32 %s3301, %s3302
      %s3304 = smul.addr %s3303, 8
      %s3305 = scalar_lea.vmem %s3, %s3304
      %p3306 = scmp.lt.s32.totalorder %s22, 1
      %s3307 = scalar_select %p3306, %s22, 1
      %p3308 = scmp.lt.s32.totalorder %s23, 0
      %s3309 = scalar_select %p3308, %s23, 0
      %s3310 = sadd.s32 %s3309, %s3307
      %s3311 = smul.addr %s3310, 2
      %s3312 = scalar_lea.vmem %s4, %s3311
      %p3313 = scmp.lt.s32.totalorder %s22, 1
      %s3314 = scalar_select %p3313, %s22, 1
      %p3315 = scmp.lt.s32.totalorder %s23, 0
      %s3316 = scalar_select %p3315, %s23, 0
      %s3317 = smul.addr %s3314, 32
      %s3318 = sadd.s32 %s3316, %s3317
      %s3319 = smul.addr %s3318, 8
      %s3320 = scalar_lea.vmem %s5, %s3319
      %p3321 = scmp.lt.s32.totalorder %s22, 1
      %s3322 = scalar_select %p3321, %s22, 1
      %p3323 = scmp.lt.s32.totalorder %s23, 0
      %s3324 = scalar_select %p3323, %s23, 0
      %s3325 = sadd.s32 %s3324, %s3322
      %s3326 = smul.addr %s3325, 2
      %s3327 = scalar_lea.vmem %s6, %s3326
      // Predicated region
      $region37: #{block_forward.4} parent=31 // pred_check
        %p3328 = pneg %p128
      $region38: #{block_forward.4} parent=31 // pred_check_branch
        %3330 = sbr.rel (%p3328) target = $region40
      $region39: #{block_forward.4} parent=31 // pred_region
        _
      $region40: #{block_forward.4} parent=31 // pred_fallthru
        _
      // Predicated region
      $region41: #{block_forward.4} parent=31 // pred_check
        %p3331 = pneg %p156
      $region42: #{block_forward.4} parent=31 // pred_check_branch
        %3333 = sbr.rel (%p3331) target = $region44
      $region43: #{block_forward.4} parent=31 // pred_region
        _
      $region44: #{block_forward.4} parent=31 // pred_fallthru
        _
      // Predicated region
      $region45: #{block_forward.4} parent=31 // pred_check
        %p3334 = pneg %p184
      $region46: #{block_forward.4} parent=31 // pred_check_branch
        %3336 = sbr.rel (%p3334) target = $region48
      $region47: #{block_forward.4} parent=31 // pred_region
        _
      $region48: #{block_forward.4} parent=31 // pred_fallthru
        _
      // Predicated region
      $region49: #{block_forward.4} parent=31 // pred_check
        %p3337 = pneg %p212
      $region50: #{block_forward.4} parent=31 // pred_check_branch
        %3339 = sbr.rel (%p3337) target = $region52
      $region51: #{block_forward.4} parent=31 // pred_region
        _
      $region52: #{block_forward.4} parent=31 // pred_fallthru
        _
    $region32: #{block_forward.4} parent=5 // pred_fallthru
      _
    %p3340 = scmp.le.s32.totalorder 2, %s13
    // Predicated region
    $region53: #{block_forward.4} parent=5 // pred_check
      %p3341 = pneg %p3340
    $region54: #{block_forward.4} parent=5 // pred_check_branch
      %3343 = sbr.rel (%p3341) target = $region56
    $region55: #{block_forward.4} parent=5 // pred_region
      %s3344 = ssub.s32 %s13, 2
      // Predicated region
      $region57: #{block_forward.4} parent=55 // pred_check
        %p3345 = pneg %p134
      $region58: #{block_forward.4} parent=55 // pred_check_branch
        %3347 = sbr.rel (%p3345) target = $region60
      $region59: #{block_forward.4} parent=55 // pred_region
        %p3348 = scmp.lt.s32.totalorder %s24, 1
        %s3349 = scalar_select %p3348, %s24, 1
        %p3350 = scmp.lt.s32.totalorder %s25, 0
        %s3351 = scalar_select %p3350, %s25, 0
        %s3352 = smul.addr %s3349, 32
        %s3353 = sadd.s32 %s3351, %s3352
        %s3354 = smul.addr %s3353, 8
        %s3355 = scalar_lea.vmem %s3, %s3354
      $region60: #{block_forward.4} parent=55 // pred_fallthru
        _
      // Predicated region
      $region61: #{block_forward.4} parent=55 // pred_check
        %p3356 = pneg %p162
      $region62: #{block_forward.4} parent=55 // pred_check_branch
        %3358 = sbr.rel (%p3356) target = $region64
      $region63: #{block_forward.4} parent=55 // pred_region
        %p3359 = scmp.lt.s32.totalorder %s24, 1
        %s3360 = scalar_select %p3359, %s24, 1
        %p3361 = scmp.lt.s32.totalorder %s25, 0
        %s3362 = scalar_select %p3361, %s25, 0
        %s3363 = sadd.s32 %s3362, %s3360
        %s3364 = smul.addr %s3363, 2
        %s3365 = scalar_lea.vmem %s4, %s3364
      $region64: #{block_forward.4} parent=55 // pred_fallthru
        _
      // Predicated region
      $region65: #{block_forward.4} parent=55 // pred_check
        %p3366 = pneg %p190
      $region66: #{block_forward.4} parent=55 // pred_check_branch
        %3368 = sbr.rel (%p3366) target = $region68
      $region67: #{block_forward.4} parent=55 // pred_region
        %p3369 = scmp.lt.s32.totalorder %s24, 1
        %s3370 = scalar_select %p3369, %s24, 1
        %p3371 = scmp.lt.s32.totalorder %s25, 0
        %s3372 = scalar_select %p3371, %s25, 0
        %s3373 = smul.addr %s3370, 32
        %s3374 = sadd.s32 %s3372, %s3373
        %s3375 = smul.addr %s3374, 8
        %s3376 = scalar_lea.vmem %s5, %s3375
      $region68: #{block_forward.4} parent=55 // pred_fallthru
        _
      // Predicated region
      $region69: #{block_forward.4} parent=55 // pred_check
        %p3377 = pneg %p218
      $region70: #{block_forward.4} parent=55 // pred_check_branch
        %3379 = sbr.rel (%p3377) target = $region72
      $region71: #{block_forward.4} parent=55 // pred_region
        %p3380 = scmp.lt.s32.totalorder %s24, 1
        %s3381 = scalar_select %p3380, %s24, 1
        %p3382 = scmp.lt.s32.totalorder %s25, 0
        %s3383 = scalar_select %p3382, %s25, 0
        %s3384 = sadd.s32 %s3383, %s3381
        %s3385 = smul.addr %s3384, 2
        %s3386 = scalar_lea.vmem %s6, %s3385
      $region72: #{block_forward.4} parent=55 // pred_fallthru
        _
    $region56: #{block_forward.4} parent=5 // pred_fallthru
      _
  $region6: #{block_forward.4} parent=0 // loop_footer
    %s17 = sadd.s32 1, %s13
  $region7: #{block_forward.4} parent=0 // loop_footer_branch
    %12 = sbr.rel target = $region3
  $region8: #{block_forward.4} parent=0 // loop_exit
    _

// kernel: block_forward.5
$region0: #{block_forward.5}
  #allocation0 [shape = 'u32[]', space=smem, size = 0x4, offset = 0x4, fixed_abs, tag = 'smem constant byte address 0x4 - core index']
  #allocation1 [shape = 'u32[144,128]{1,0:T(1,128)}', space=vmem, size = 0x12000, scoped, tag = 'internal scratch']
  #allocation2 [shape = 'f32[18,18,8]{2,1,0:T(8,128)}', space=vmem, size = 0x36000, scoped, tag = 'scratch operand']
  %s0 = inlined_call_operand.vmem [shape: f32[2,16,16,8], index: 0, kind: input, shape index: {}]
  %s1 = inlined_call_operand.vmem [shape: f32[1,8], index: 1, kind: input, shape index: {}]
  %s2 = inlined_call_operand.vmem [shape: f32[1,8], index: 2, kind: input, shape index: {}]
  %s3 = inlined_call_operand.vmem [shape: f32[3,24,8], index: 3, kind: input, shape index: {}]
  %s4 = inlined_call_operand.vmem [shape: f32[2,16,16,8], index: 4, kind: output, shape index: {0}]
  %s5 = inlined_call_operand.vmem [shape: f32[2,2,8], index: 5, kind: output, shape index: {1}]
  %6 = xla_tuple %s4, %s5
  %s7 = sld [smem:[#allocation0]]
  $region61: #{block_forward.5} parent=0
    _
  %s9 = ssub.s32 1, %s7
  %s10 = scalar_select 0, %s9, %s7
  loop: start=0, step=1, limit=4
  $region2: #{block_forward.5} parent=0 // loop_pre_header
    _
  $region3: #{block_forward.5} parent=0 // loop_header
    %s12 = sphi 0, %s16
    %p13 = scmp.ge.s32.totalorder %s12, 4
    %s19 = sphi 0, %s31
    %s20 = sphi 0, %s27
    %s21 = sphi 0, %s19
    %s22 = sphi 0, %s20
    %s23 = sphi 0, %s21
    %s24 = sphi 0, %s22
    %s34 = sphi 0, %s36
    %s37 = sphi 0, %s34
    %s38 = sphi 0, %s37
    %s54 = sphi 0, %s38
    %s58 = sphi 0, %s58
    %s60 = sphi 0, %s58
    %s61 = sphi 0, %s60
    %s75 = sphi 0, %s61
    %s79 = sphi 0, %s79
    %s81 = sphi 0, %s79
    %s82 = sphi 0, %s81
    %s96 = sphi 0, %s82
    %s102 = sphi 0, %s104
    %s105 = sphi 0, %s102
    %s106 = sphi 0, %s105
    %s122 = sphi 0, %s106
    %s130 = sphi 0, %s132
    %s133 = sphi 0, %s130
    %s134 = sphi 0, %s133
    %s150 = sphi 0, %s134
    %s158 = sphi 0, %s160
    %s161 = sphi 0, %s158
    %s162 = sphi 0, %s161
    %s178 = sphi 0, %s162
  $region4: #{block_forward.5} parent=0 // loop_header_branch
    %15 = sbr.rel (%p13) target = $region8
  $region5: #{block_forward.5} parent=0 // loop_body
    %s17 = ssub.s32 %s12, 1
    %s18 = ssub.s32 %s12, 2
    %s25 = sadd.s32 1, %s20
    %p26 = scmp.ge.s32.totalorder %s25, 1
    %s27 = scalar_select %p26, 0, %s25
    %s28 = sadd.s32 1, %s19
    %s29 = scalar_select %p26, %s28, %s19
    %p30 = scmp.ge.s32.totalorder %s29, 2
    %s31 = scalar_select %p30, 0, %s29
    %s32 = ssub.s32 %s19, %s31
    %p33 = scmp.eq.s32.totalorder %s32, 0
    %s35 = sadd.s32 %s34, 1
    %s36 = scalar_select %p33, %s34, %s35
    %p39 = pneg %p33
    %p40 = scmp.eq.s32.totalorder %s12, 1
    %p41 = por %p39, %p40
    %p42 = scmp.ne.s32.totalorder %s34, %s37
    %p43 = scmp.eq.s32.totalorder %s12, 0
    %p44 = por %p42, %p43
    %p45 = scmp.ne.s32.totalorder %s34, %s37
    %p46 = scmp.eq.s32.totalorder %s17, 1
    %p47 = por %p45, %p46
    %p48 = scmp.ne.s32.totalorder %s37, %s38
    %p49 = scmp.eq.s32.totalorder %s17, 0
    %p50 = por %p48, %p49
    %p51 = scmp.ne.s32.totalorder %s37, %s38
    %p52 = scmp.eq.s32.totalorder %s18, 1
    %p53 = por %p51, %p52
    %p55 = scmp.ne.s32.totalorder %s38, %s54
    %p56 = scmp.eq.s32.totalorder %s18, 0
    %p57 = por %p55, %p56
    %s59 = sadd.s32 %s58, 1
    %p62 = scmp.eq.s32.totalorder %s12, 1
    %p63 = scmp.ne.s32.totalorder %s58, %s60
    %p64 = scmp.eq.s32.totalorder %s12, 0
    %p65 = por %p63, %p64
    %p66 = scmp.ne.s32.totalorder %s58, %s60
    %p67 = scmp.eq.s32.totalorder %s17, 1
    %p68 = por %p66, %p67
    %p69 = scmp.ne.s32.totalorder %s60, %s61
    %p70 = scmp.eq.s32.totalorder %s17, 0
    %p71 = por %p69, %p70
    %p72 = scmp.ne.s32.totalorder %s60, %s61
    %p73 = scmp.eq.s32.totalorder %s18, 1
    %p74 = por %p72, %p73
    %p76 = scmp.ne.s32.totalorder %s61, %s75
    %p77 = scmp.eq.s32.totalorder %s18, 0
    %p78 = por %p76, %p77
    %s80 = sadd.s32 %s79, 1
    %p83 = scmp.eq.s32.totalorder %s12, 1
    %p84 = scmp.ne.s32.totalorder %s79, %s81
    %p85 = scmp.eq.s32.totalorder %s12, 0
    %p86 = por %p84, %p85
    %p87 = scmp.ne.s32.totalorder %s79, %s81
    %p88 = scmp.eq.s32.totalorder %s17, 1
    %p89 = por %p87, %p88
    %p90 = scmp.ne.s32.totalorder %s81, %s82
    %p91 = scmp.eq.s32.totalorder %s17, 0
    %p92 = por %p90, %p91
    %p93 = scmp.ne.s32.totalorder %s81, %s82
    %p94 = scmp.eq.s32.totalorder %s18, 1
    %p95 = por %p93, %p94
    %p97 = scmp.ne.s32.totalorder %s82, %s96
    %p98 = scmp.eq.s32.totalorder %s18, 0
    %p99 = por %p97, %p98
    %s100 = ssub.s32 %s20, %s27
    %p101 = scmp.eq.s32.totalorder %s100, 0
    %s103 = sadd.s32 %s102, 1
    %s104 = scalar_select %p101, %s102, %s103
    %p107 = pneg %p101
    %p108 = scmp.eq.s32.totalorder %s12, 1
    %p109 = por %p107, %p108
    %p110 = scmp.ne.s32.totalorder %s102, %s105
    %p111 = scmp.eq.s32.totalorder %s12, 0
    %p112 = por %p110, %p111
    %p113 = scmp.ne.s32.totalorder %s102, %s105
    %p114 = scmp.eq.s32.totalorder %s17, 1
    %p115 = por %p113, %p114
    %p116 = scmp.ne.s32.totalorder %s105, %s106
    %p117 = scmp.eq.s32.totalorder %s17, 0
    %p118 = por %p116, %p117
    %p119 = scmp.ne.s32.totalorder %s105, %s106
    %p120 = scmp.eq.s32.totalorder %s18, 1
    %p121 = por %p119, %p120
    %p123 = scmp.ne.s32.totalorder %s106, %s122
    %p124 = scmp.eq.s32.totalorder %s18, 0
    %p125 = por %p123, %p124
    %s126 = ssub.s32 %s19, %s31
    %s127 = ssub.s32 %s20, %s27
    %s128 = sor.u32 %s126, %s127
    %p129 = scmp.eq.s32.totalorder %s128, 0
    %s131 = sadd.s32 %s130, 1
    %s132 = scalar_select %p129, %s130, %s131
    %p135 = pneg %p129
    %p136 = scmp.eq.s32.totalorder %s12, 1
    %p137 = por %p135, %p136
    %p138 = scmp.ne.s32.totalorder %s130, %s133
    %p139 = scmp.eq.s32.totalorder %s12, 0
    %p140 = por %p138, %p139
    %p141 = scmp.ne.s32.totalorder %s130, %s133
    %p142 = scmp.eq.s32.totalorder %s17, 1
    %p143 = por %p141, %p142
    %p144 = scmp.ne.s32.totalorder %s133, %s134
    %p145 = scmp.eq.s32.totalorder %s17, 0
    %p146 = por %p144, %p145
    %p147 = scmp.ne.s32.totalorder %s133, %s134
    %p148 = scmp.eq.s32.totalorder %s18, 1
    %p149 = por %p147, %p148
    %p151 = scmp.ne.s32.totalorder %s134, %s150
    %p152 = scmp.eq.s32.totalorder %s18, 0
    %p153 = por %p151, %p152
    %s154 = ssub.s32 %s19, %s31
    %s155 = ssub.s32 %s20, %s27
    %s156 = sor.u32 %s154, %s155
    %p157 = scmp.eq.s32.totalorder %s156, 0
    %s159 = sadd.s32 %s158, 1
    %s160 = scalar_select %p157, %s158, %s159
    %p163 = pneg %p157
    %p164 = scmp.eq.s32.totalorder %s12, 1
    %p165 = por %p163, %p164
    %p166 = scmp.ne.s32.totalorder %s158, %s161
    %p167 = scmp.eq.s32.totalorder %s12, 0
    %p168 = por %p166, %p167
    %p169 = scmp.ne.s32.totalorder %s158, %s161
    %p170 = scmp.eq.s32.totalorder %s17, 1
    %p171 = por %p169, %p170
    %p172 = scmp.ne.s32.totalorder %s161, %s162
    %p173 = scmp.eq.s32.totalorder %s17, 0
    %p174 = por %p172, %p173
    %p175 = scmp.ne.s32.totalorder %s161, %s162
    %p176 = scmp.eq.s32.totalorder %s18, 1
    %p177 = por %p175, %p176
    %p179 = scmp.ne.s32.totalorder %s162, %s178
    %p180 = scmp.eq.s32.totalorder %s18, 0
    %p181 = por %p179, %p180
    %p182 = scmp.le.s32.totalorder 1, %s12
    %p183 = scmp.lt.s32.totalorder %s12, 3
    %p184 = pnand %p182, %p183
    %p185 = pneg %p184
    // Predicated region
    $region9: #{block_forward.5} parent=5 // pred_check
      _
    $region10: #{block_forward.5} parent=5 // pred_check_branch
      %187 = sbr.rel (%p184) target = $region12
    $region11: #{block_forward.5} parent=5 // pred_region
      %s188 = ssub.s32 %s12, 1
      // Predicated region
      $region13: #{block_forward.5} parent=11 // pred_check
        %p189 = pneg %p71
      $region14: #{block_forward.5} parent=11 // pred_check_branch
        %191 = sbr.rel (%p189) target = $region16
      $region15: #{block_forward.5} parent=11 // pred_region
        _
      $region16: #{block_forward.5} parent=11 // pred_fallthru
        _
      // Predicated region
      $region17: #{block_forward.5} parent=11 // pred_check
        %p192 = pneg %p92
      $region18: #{block_forward.5} parent=11 // pred_check_branch
        %194 = sbr.rel (%p192) target = $region20
      $region19: #{block_forward.5} parent=11 // pred_region
        _
      $region20: #{block_forward.5} parent=11 // pred_fallthru
        _
      // Predicated region
      $region21: #{block_forward.5} parent=11 // pred_check
        %p195 = pneg %p118
      $region22: #{block_forward.5} parent=11 // pred_check_branch
        %197 = sbr.rel (%p195) target = $region24
      $region23: #{block_forward.5} parent=11 // pred_region
        %p198 = scmp.lt.s32.totalorder %s22, 0
        %s199 = scalar_select %p198, %s22, 0
        %s200 = smul.addr %s199, 8
        %s201 = scalar_lea.vmem %s3, %s200
      $region24: #{block_forward.5} parent=11 // pred_fallthru
        _
    $region12: #{block_forward.5} parent=5 // pred_fallthru
      _
    %p202 = scmp.lt.s32.totalorder %s12, 2
    // Predicated region
    $region25: #{block_forward.5} parent=5 // pred_check
      %p203 = pneg %p202
    $region26: #{block_forward.5} parent=5 // pred_check_branch
      %205 = sbr.rel (%p203) target = $region28
    $region27: #{block_forward.5} parent=5 // pred_region
      // Predicated region
      $region29: #{block_forward.5} parent=27 // pred_check
        %p206 = pneg %p44
      $region30: #{block_forward.5} parent=27 // pred_check_branch
        %208 = sbr.rel (%p206) target = $region32
      $region31: #{block_forward.5} parent=27 // pred_region
        %p209 = scmp.lt.s32.totalorder %s19, 1
        %s210 = scalar_select %p209, %s19, 1
        %s211 = smul.addr %s210, 32
        %s212 = smul.addr %s211, 8
        %s213 = scalar_lea.vmem %s0, %s212
      $region32: #{block_forward.5} parent=27 // pred_fallthru
        _
    $region28: #{block_forward.5} parent=5 // pred_fallthru
      _
    %p214 = scmp.le.s32.totalorder 1, %s12
    %p215 = scmp.lt.s32.totalorder %s12, 3
    %p216 = pnand %p214, %p215
    %p217 = pneg %p216
    // Predicated region
    $region33: #{block_forward.5} parent=5 // pred_check
      _
    $region34: #{block_forward.5} parent=5 // pred_check_branch
      %219 = sbr.rel (%p216) target = $region36
    $region35: #{block_forward.5} parent=5 // pred_region
      %s220 = ssub.s32 %s12, 1
      %p221 = scmp.lt.s32.totalorder %s21, 1
      %s222 = scalar_select %p221, %s21, 1
      %s223 = smul.addr %s222, 32
      %s224 = smul.addr %s223, 8
      %s225 = scalar_lea.vmem %s0, %s224
      %p226 = pneg %p50
      %p227 = pneg %p47
      %p228 = pneg %p71
      %p229 = pneg %p68
      %p230 = pneg %p92
      %p231 = pneg %p89
      %p232 = scmp.lt.s32.totalorder %s22, 0
      %s233 = scalar_select %p232, %s22, 0
      %s234 = smul.addr %s233, 8
      %s235 = scalar_lea.vmem %s3, %s234
      %p236 = pneg %p118
      %p237 = pneg %p115
      %p238 = pneg %p146
      %p239 = pneg %p143
      %p240 = scmp.lt.s32.totalorder %s21, 1
      %s241 = scalar_select %p240, %s21, 1
      %p242 = scmp.lt.s32.totalorder %s22, 0
      %s243 = scalar_select %p242, %s22, 0
      %s244 = smul.addr %s241, 32
      %s245 = sadd.s32 %s243, %s244
      %s246 = smul.addr %s245, 8
      %s247 = scalar_lea.vmem %s4, %s246
      %p248 = pneg %p174
      %p249 = pneg %p171
      %p250 = scmp.lt.s32.totalorder %s21, 1
      %s251 = scalar_select %p250, %s21, 1
      %p252 = scmp.lt.s32.totalorder %s22, 0
      %s253 = scalar_select %p252, %s22, 0
      %s254 = sadd.s32 %s253, %s251
      %s255 = smul.addr %s254, 2
      %s256 = scalar_lea.vmem %s5, %s255
      %p257 = scmp.lt.s32.totalorder %s21, 1
      %s258 = scalar_select %p257, %s21, 1
      %s259 = smul.addr %s258, 32
      %s260 = smul.addr %s259, 8
      %s261 = scalar_lea.vmem %s0, %s260
      %p262 = scmp.lt.s32.totalorder %s22, 0
      %s263 = scalar_select %p262, %s22, 0
      %s264 = smul.addr %s263, 8
      %s265 = scalar_lea.vmem %s3, %s264
      %p266 = scmp.lt.s32.totalorder %s21, 1
      %s267 = scalar_select %p266, %s21, 1
      %p268 = scmp.lt.s32.totalorder %s22, 0
      %s269 = scalar_select %p268, %s22, 0
      %s270 = smul.addr %s267, 32
      %s271 = sadd.s32 %s269, %s270
      %s272 = smul.addr %s271, 8
      %s273 = scalar_lea.vmem %s4, %s272
      %p274 = scmp.lt.s32.totalorder %s21, 1
      %s275 = scalar_select %p274, %s21, 1
      %p276 = scmp.lt.s32.totalorder %s22, 0
      %s277 = scalar_select %p276, %s22, 0
      %s278 = sadd.s32 %s277, %s275
      %s279 = smul.addr %s278, 2
      %s280 = scalar_lea.vmem %s5, %s279
      %p281 = scmp.eq.s32.totalorder %s22, 0
      // Predicated region
      $region37: #{block_forward.5} parent=35 // pred_check
        %p282 = pneg %p281
      $region38: #{block_forward.5} parent=35 // pred_check_branch
        %284 = sbr.rel (%p282) target = $region40
      $region39: #{block_forward.5} parent=35 // pred_region
        %vm285 = vcmask 64512
        %286 = vst.msk [vmem:[#allocation2] sm:$0xff] %vm285, 0.0
        %287 = vst.msk [vmem:[#allocation2 + $0x8] sm:$0xff] %vm285, 0.0
        %vm288 = vcmask 58368
        %289 = vst.msk [vmem:[#allocation2 + $0x10] sm:$0x3] %vm288, 0.0
        %s290 = scalar_lea.vmem [#allocation2], 408
        %291 = vst.msk [vmem:[%s290] sm:$0xff] %vm285, 0.0
        %292 = vst.msk [vmem:[%s290 + $0x8] sm:$0xff] %vm285, 0.0
        %293 = vst.msk [vmem:[%s290 + $0x10] sm:$0x3] %vm288, 0.0
        %s294 = scalar_lea.vmem [#allocation2], 24
        %vm295 = vcmask 57344
        %296 = vst.msk [vmem:[%s294] sm:$0x1] %vm295, 0.0
        %297 = vst.msk [vmem:[%s294 + $0x18] sm:$0x1] %vm295, 0.0
        %298 = vst.msk [vmem:[%s294 + $0x30] sm:$0x1] %vm295, 0.0
        %299 = vst.msk [vmem:[%s294 + $0x48] sm:$0x1] %vm295, 0.0
        %300 = vst.msk [vmem:[%s294 + $0x60] sm:$0x1] %vm295, 0.0
        %301 = vst.msk [vmem:[%s294 + $0x78] sm:$0x1] %vm295, 0.0
        %302 = vst.msk [vmem:[%s294 + $0x90] sm:$0x1] %vm295, 0.0
        %303 = vst.msk [vmem:[%s294 + $0xa8] sm:$0x1] %vm295, 0.0
        %304 = vst.msk [vmem:[%s294 + $0xc0] sm:$0x1] %vm295, 0.0
        %305 = vst.msk [vmem:[%s294 + $0xd8] sm:$0x1] %vm295, 0.0
        %306 = vst.msk [vmem:[%s294 + $0xf0] sm:$0x1] %vm295, 0.0
        %307 = vst.msk [vmem:[%s294 + $0x108] sm:$0x1] %vm295, 0.0
        %308 = vst.msk [vmem:[%s294 + $0x120] sm:$0x1] %vm295, 0.0
        %309 = vst.msk [vmem:[%s294 + $0x138] sm:$0x1] %vm295, 0.0
        %310 = vst.msk [vmem:[%s294 + $0x150] sm:$0x1] %vm295, 0.0
        %311 = vst.msk [vmem:[%s294 + $0x168] sm:$0x1] %vm295, 0.0
        %312 = vst.msk [vmem:[%s294 + $0x11] sm:$0x1] %vm295, 0.0
        %313 = vst.msk [vmem:[%s294 + $0x29] sm:$0x1] %vm295, 0.0
        %314 = vst.msk [vmem:[%s294 + $0x41] sm:$0x1] %vm295, 0.0
        %315 = vst.msk [vmem:[%s294 + $0x59] sm:$0x1] %vm295, 0.0
        %316 = vst.msk [vmem:[%s294 + $0x71] sm:$0x1] %vm295, 0.0
        %317 = vst.msk [vmem:[%s294 + $0x89] sm:$0x1] %vm295, 0.0
        %318 = vst.msk [vmem:[%s294 + $0xa1] sm:$0x1] %vm295, 0.0
        %319 = vst.msk [vmem:[%s294 + $0xb9] sm:$0x1] %vm295, 0.0
        %320 = vst.msk [vmem:[%s294 + $0xd1] sm:$0x1] %vm295, 0.0
        %321 = vst.msk [vmem:[%s294 + $0xe9] sm:$0x1] %vm295, 0.0
        %322 = vst.msk [vmem:[%s294 + $0x101] sm:$0x1] %vm295, 0.0
        %323 = vst.msk [vmem:[%s294 + $0x119] sm:$0x1] %vm295, 0.0
        %324 = vst.msk [vmem:[%s294 + $0x131] sm:$0x1] %vm295, 0.0
        %325 = vst.msk [vmem:[%s294 + $0x149] sm:$0x1] %vm295, 0.0
        %326 = vst.msk [vmem:[%s294 + $0x161] sm:$0x1] %vm295, 0.0
        %327 = vst.msk [vmem:[%s294 + $0x179] sm:$0x1] %vm295, 0.0
        %v328 = vld [vmem:[%s1] sm:$0x1]
        %v329 = vld [vmem:[%s2] sm:$0x1]
        %s330 = smul.u32 0, 16
        %s331 = scalar_lea.vmem %s261, %s330
        %v332 = vld [vmem:[%s331] sm:$0xff]
        %v333 = vld [vmem:[%s331 + $0x8] sm:$0xff]
        %v334 = vld [vmem:[%s331 + $0x10] sm:$0xff]
        %v335 = vld [vmem:[%s331 + $0x18] sm:$0xff]
        %v336 = vld [vmem:[%s331 + $0x20] sm:$0xff]
        %v337 = vld [vmem:[%s331 + $0x28] sm:$0xff]
        %v338 = vld [vmem:[%s331 + $0x30] sm:$0xff]
        %v339 = vld [vmem:[%s331 + $0x38] sm:$0xff]
        %v340 = vld [vmem:[%s331 + $0x40] sm:$0xff]
        %v341 = vld [vmem:[%s331 + $0x48] sm:$0xff]
        %v342 = vld [vmem:[%s331 + $0x50] sm:$0xff]
        %v343 = vld [vmem:[%s331 + $0x58] sm:$0xff]
        %v344 = vld [vmem:[%s331 + $0x60] sm:$0xff]
        %v345 = vld [vmem:[%s331 + $0x68] sm:$0xff]
        %v346 = vld [vmem:[%s331 + $0x70] sm:$0xff]
        %v347 = vld [vmem:[%s331 + $0x78] sm:$0xff]
        %v348 = vld [vmem:[%s331 + $0x80] sm:$0xff]
        %v349 = vld [vmem:[%s331 + $0x88] sm:$0xff]
        %v350 = vld [vmem:[%s331 + $0x90] sm:$0xff]
        %v351 = vld [vmem:[%s331 + $0x98] sm:$0xff]
        %v352 = vld [vmem:[%s331 + $0xa0] sm:$0xff]
        %v353 = vld [vmem:[%s331 + $0xa8] sm:$0xff]
        %v354 = vld [vmem:[%s331 + $0xb0] sm:$0xff]
        %v355 = vld [vmem:[%s331 + $0xb8] sm:$0xff]
        %v356 = vld [vmem:[%s331 + $0xc0] sm:$0xff]
        %v357 = vld [vmem:[%s331 + $0xc8] sm:$0xff]
        %v358 = vld [vmem:[%s331 + $0xd0] sm:$0xff]
        %v359 = vld [vmem:[%s331 + $0xd8] sm:$0xff]
        %v360 = vld [vmem:[%s331 + $0xe0] sm:$0xff]
        %v361 = vld [vmem:[%s331 + $0xe8] sm:$0xff]
        %v362 = vld [vmem:[%s331 + $0xf0] sm:$0xff]
        %v363 = vld [vmem:[%s331 + $0xf8] sm:$0xff]
        %v365 = vlaneseq
        %v366 = vshrl.u32 %v365, 7
        %v367 = vsub.s32 0, %v366
        %v368 = vrot.slane %v328, %v367
        %v370 = vmul.f32 %v332, %v368
        %v371 = vmul.f32 %v333, %v368
        %v372 = vmul.f32 %v334, %v368
        %v373 = vmul.f32 %v335, %v368
        %v374 = vmul.f32 %v336, %v368
        %v375 = vmul.f32 %v337, %v368
        %v376 = vmul.f32 %v338, %v368
        %v377 = vmul.f32 %v339, %v368
        %v378 = vmul.f32 %v340, %v368
        %v379 = vmul.f32 %v341, %v368
        %v380 = vmul.f32 %v342, %v368
        %v381 = vmul.f32 %v343, %v368
        %v382 = vmul.f32 %v344, %v368
        %v383 = vmul.f32 %v345, %v368
        %v384 = vmul.f32 %v346, %v368
        %v385 = vmul.f32 %v347, %v368
        %v386 = vmul.f32 %v348, %v368
        %v387 = vmul.f32 %v349, %v368
        %v388 = vmul.f32 %v350, %v368
        %v389 = vmul.f32 %v351, %v368
        %v390 = vmul.f32 %v352, %v368
        %v391 = vmul.f32 %v353, %v368
        %v392 = vmul.f32 %v354, %v368
        %v393 = vmul.f32 %v355, %v368
        %v394 = vmul.f32 %v356, %v368
        %v395 = vmul.f32 %v357, %v368
        %v396 = vmul.f32 %v358, %v368
        %v397 = vmul.f32 %v359, %v368
        %v398 = vmul.f32 %v360, %v368
        %v399 = vmul.f32 %v361, %v368
        %v400 = vmul.f32 %v362, %v368
        %v401 = vmul.f32 %v363, %v368
        %v403 = vlaneseq
        %v404 = vshrl.u32 %v403, 7
        %v405 = vsub.s32 0, %v404
        %v406 = vrot.slane %v329, %v405
        %v408 = vadd.f32 %v370, %v406
        %v409 = vadd.f32 %v371, %v406
        %v410 = vadd.f32 %v372, %v406
        %v411 = vadd.f32 %v373, %v406
        %v412 = vadd.f32 %v374, %v406
        %v413 = vadd.f32 %v375, %v406
        %v414 = vadd.f32 %v376, %v406
        %v415 = vadd.f32 %v377, %v406
        %v416 = vadd.f32 %v378, %v406
        %v417 = vadd.f32 %v379, %v406
        %v418 = vadd.f32 %v380, %v406
        %v419 = vadd.f32 %v381, %v406
        %v420 = vadd.f32 %v382, %v406
        %v421 = vadd.f32 %v383, %v406
        %v422 = vadd.f32 %v384, %v406
        %v423 = vadd.f32 %v385, %v406
        %v424 = vadd.f32 %v386, %v406
        %v425 = vadd.f32 %v387, %v406
        %v426 = vadd.f32 %v388, %v406
        %v427 = vadd.f32 %v389, %v406
        %v428 = vadd.f32 %v390, %v406
        %v429 = vadd.f32 %v391, %v406
        %v430 = vadd.f32 %v392, %v406
        %v431 = vadd.f32 %v393, %v406
        %v432 = vadd.f32 %v394, %v406
        %v433 = vadd.f32 %v395, %v406
        %v434 = vadd.f32 %v396, %v406
        %v435 = vadd.f32 %v397, %v406
        %v436 = vadd.f32 %v398, %v406
        %v437 = vadd.f32 %v399, %v406
        %v438 = vadd.f32 %v400, %v406
        %v439 = vadd.f32 %v401, %v406
        %v440 = vmax.f32 %v408, 0.0
        %v441 = vmax.f32 %v409, 0.0
        %v442 = vmax.f32 %v410, 0.0
        %v443 = vmax.f32 %v411, 0.0
        %v444 = vmax.f32 %v412, 0.0
        %v445 = vmax.f32 %v413, 0.0
        %v446 = vmax.f32 %v414, 0.0
        %v447 = vmax.f32 %v415, 0.0
        %v448 = vmax.f32 %v416, 0.0
        %v449 = vmax.f32 %v417, 0.0
        %v450 = vmax.f32 %v418, 0.0
        %v451 = vmax.f32 %v419, 0.0
        %v452 = vmax.f32 %v420, 0.0
        %v453 = vmax.f32 %v421, 0.0
        %v454 = vmax.f32 %v422, 0.0
        %v455 = vmax.f32 %v423, 0.0
        %v456 = vmax.f32 %v424, 0.0
        %v457 = vmax.f32 %v425, 0.0
        %v458 = vmax.f32 %v426, 0.0
        %v459 = vmax.f32 %v427, 0.0
        %v460 = vmax.f32 %v428, 0.0
        %v461 = vmax.f32 %v429, 0.0
        %v462 = vmax.f32 %v430, 0.0
        %v463 = vmax.f32 %v431, 0.0
        %v464 = vmax.f32 %v432, 0.0
        %v465 = vmax.f32 %v433, 0.0
        %v466 = vmax.f32 %v434, 0.0
        %v467 = vmax.f32 %v435, 0.0
        %v468 = vmax.f32 %v436, 0.0
        %v469 = vmax.f32 %v437, 0.0
        %v470 = vmax.f32 %v438, 0.0
        %v471 = vmax.f32 %v439, 0.0
        %s472 = sadd.s32 0, 1
        %s473 = smul.u32 %s472, 24
        %s474 = scalar_lea.vmem [#allocation2], %s473
        %475 = vst.msk [vmem:[%s474 + $0x1] sm:$0xff] %vm285, %v440
        %476 = vst.msk [vmem:[%s474 + $0x9] sm:$0xff] %vm285, %v441
        %477 = vst.msk [vmem:[%s474 + $0x19] sm:$0xff] %vm285, %v442
        %478 = vst.msk [vmem:[%s474 + $0x21] sm:$0xff] %vm285, %v443
        %479 = vst.msk [vmem:[%s474 + $0x31] sm:$0xff] %vm285, %v444
        %480 = vst.msk [vmem:[%s474 + $0x39] sm:$0xff] %vm285, %v445
        %481 = vst.msk [vmem:[%s474 + $0x49] sm:$0xff] %vm285, %v446
        %482 = vst.msk [vmem:[%s474 + $0x51] sm:$0xff] %vm285, %v447
        %483 = vst.msk [vmem:[%s474 + $0x61] sm:$0xff] %vm285, %v448
        %484 = vst.msk [vmem:[%s474 + $0x69] sm:$0xff] %vm285, %v449
        %485 = vst.msk [vmem:[%s474 + $0x79] sm:$0xff] %vm285, %v450
        %486 = vst.msk [vmem:[%s474 + $0x81] sm:$0xff] %vm285, %v451
        %487 = vst.msk [vmem:[%s474 + $0x91] sm:$0xff] %vm285, %v452
        %488 = vst.msk [vmem:[%s474 + $0x99] sm:$0xff] %vm285, %v453
        %489 = vst.msk [vmem:[%s474 + $0xa9] sm:$0xff] %vm285, %v454
        %490 = vst.msk [vmem:[%s474 + $0xb1] sm:$0xff] %vm285, %v455
        %491 = vst.msk [vmem:[%s474 + $0xc1] sm:$0xff] %vm285, %v456
        %492 = vst.msk [vmem:[%s474 + $0xc9] sm:$0xff] %vm285, %v457
        %493 = vst.msk [vmem:[%s474 + $0xd9] sm:$0xff] %vm285, %v458
        %494 = vst.msk [vmem:[%s474 + $0xe1] sm:$0xff] %vm285, %v459
        %495 = vst.msk [vmem:[%s474 + $0xf1] sm:$0xff] %vm285, %v460
        %496 = vst.msk [vmem:[%s474 + $0xf9] sm:$0xff] %vm285, %v461
        %497 = vst.msk [vmem:[%s474 + $0x109] sm:$0xff] %vm285, %v462
        %498 = vst.msk [vmem:[%s474 + $0x111] sm:$0xff] %vm285, %v463
        %499 = vst.msk [vmem:[%s474 + $0x121] sm:$0xff] %vm285, %v464
        %500 = vst.msk [vmem:[%s474 + $0x129] sm:$0xff] %vm285, %v465
        %501 = vst.msk [vmem:[%s474 + $0x139] sm:$0xff] %vm285, %v466
        %502 = vst.msk [vmem:[%s474 + $0x141] sm:$0xff] %vm285, %v467
        %503 = vst.msk [vmem:[%s474 + $0x151] sm:$0xff] %vm285, %v468
        %504 = vst.msk [vmem:[%s474 + $0x159] sm:$0xff] %vm285, %v469
        %505 = vst.msk [vmem:[%s474 + $0x169] sm:$0xff] %vm285, %v470
        %506 = vst.msk [vmem:[%s474 + $0x171] sm:$0xff] %vm285, %v471
      $region40: #{block_forward.5} parent=35 // pred_fallthru
        _
      %v507 = vld [vmem:[#allocation2] sm:$0xff]
      %v508 = vld [vmem:[#allocation2 + $0x8] sm:$0xff]
      %v509 = vld [vmem:[#allocation2 + $0x18] sm:$0xff]
      %v510 = vld [vmem:[#allocation2 + $0x20] sm:$0xff]
      %v511 = vld [vmem:[#allocation2 + $0x30] sm:$0xff]
      %v512 = vld [vmem:[#allocation2 + $0x38] sm:$0xff]
      %v513 = vld [vmem:[#allocation2 + $0x48] sm:$0xff]
      %v514 = vld [vmem:[#allocation2 + $0x50] sm:$0xff]
      %v515 = vld [vmem:[#allocation2 + $0x60] sm:$0xff]
      %v516 = vld [vmem:[#allocation2 + $0x68] sm:$0xff]
      %v517 = vld [vmem:[#allocation2 + $0x78] sm:$0xff]
      %v518 = vld [vmem:[#allocation2 + $0x80] sm:$0xff]
      %v519 = vld [vmem:[#allocation2 + $0x90] sm:$0xff]
      %v520 = vld [vmem:[#allocation2 + $0x98] sm:$0xff]
      %v521 = vld [vmem:[#allocation2 + $0xa8] sm:$0xff]
      %v522 = vld [vmem:[#allocation2 + $0xb0] sm:$0xff]
      %v523 = vld [vmem:[#allocation2 + $0xc0] sm:$0xff]
      %v524 = vld [vmem:[#allocation2 + $0xc8] sm:$0xff]
      %v525 = vld [vmem:[#allocation2 + $0xd8] sm:$0xff]
      %v526 = vld [vmem:[#allocation2 + $0xe0] sm:$0xff]
      %v527 = vld [vmem:[#allocation2 + $0xf0] sm:$0xff]
      %v528 = vld [vmem:[#allocation2 + $0xf8] sm:$0xff]
      %v529 = vld [vmem:[#allocation2 + $0x108] sm:$0xff]
      %v530 = vld [vmem:[#allocation2 + $0x110] sm:$0xff]
      %v531 = vld [vmem:[#allocation2 + $0x120] sm:$0xff]
      %v532 = vld [vmem:[#allocation2 + $0x128] sm:$0xff]
      %v533 = vld [vmem:[#allocation2 + $0x138] sm:$0xff]
      %v534 = vld [vmem:[#allocation2 + $0x140] sm:$0xff]
      %v535 = vld [vmem:[#allocation2 + $0x150] sm:$0xff]
      %v536 = vld [vmem:[#allocation2 + $0x158] sm:$0xff]
      %v537 = vld [vmem:[#allocation2 + $0x168] sm:$0xff]
      %v538 = vld [vmem:[#allocation2 + $0x170] sm:$0xff]
      %v539 = vld [vmem:[#allocation2 + $0x1] sm:$0xff]
      %v540 = vld [vmem:[#allocation2 + $0x9] sm:$0xff]
      %v541 = vld [vmem:[#allocation2 + $0x19] sm:$0xff]
      %v542 = vld [vmem:[#allocation2 + $0x21] sm:$0xff]
      %v543 = vld [vmem:[#allocation2 + $0x31] sm:$0xff]
      %v544 = vld [vmem:[#allocation2 + $0x39] sm:$0xff]
      %v545 = vld [vmem:[#allocation2 + $0x49] sm:$0xff]
      %v546 = vld [vmem:[#allocation2 + $0x51] sm:$0xff]
      %v547 = vld [vmem:[#allocation2 + $0x61] sm:$0xff]
      %v548 = vld [vmem:[#allocation2 + $0x69] sm:$0xff]
      %v549 = vld [vmem:[#allocation2 + $0x79] sm:$0xff]
      %v550 = vld [vmem:[#allocation2 + $0x81] sm:$0xff]
      %v551 = vld [vmem:[#allocation2 + $0x91] sm:$0xff]
      %v552 = vld [vmem:[#allocation2 + $0x99] sm:$0xff]
      %v553 = vld [vmem:[#allocation2 + $0xa9] sm:$0xff]
      %v554 = vld [vmem:[#allocation2 + $0xb1] sm:$0xff]
      %v555 = vld [vmem:[#allocation2 + $0xc1] sm:$0xff]
      %v556 = vld [vmem:[#allocation2 + $0xc9] sm:$0xff]
      %v557 = vld [vmem:[#allocation2 + $0xd9] sm:$0xff]
      %v558 = vld [vmem:[#allocation2 + $0xe1] sm:$0xff]
      %v559 = vld [vmem:[#allocation2 + $0xf1] sm:$0xff]
      %v560 = vld [vmem:[#allocation2 + $0xf9] sm:$0xff]
      %v561 = vld [vmem:[#allocation2 + $0x109] sm:$0xff]
      %v562 = vld [vmem:[#allocation2 + $0x111] sm:$0xff]
      %v563 = vld [vmem:[#allocation2 + $0x121] sm:$0xff]
      %v564 = vld [vmem:[#allocation2 + $0x129] sm:$0xff]
      %v565 = vld [vmem:[#allocation2 + $0x139] sm:$0xff]
      %v566 = vld [vmem:[#allocation2 + $0x141] sm:$0xff]
      %v567 = vld [vmem:[#allocation2 + $0x151] sm:$0xff]
      %v568 = vld [vmem:[#allocation2 + $0x159] sm:$0xff]
      %v569 = vld [vmem:[#allocation2 + $0x169] sm:$0xff]
      %v570 = vld [vmem:[#allocation2 + $0x171] sm:$0xff]
      %v571 = vld [vmem:[#allocation2 + $0x2] sm:$0xff]
      %v572 = vld [vmem:[#allocation2 + $0xa] sm:$0xff]
      %v573 = vld [vmem:[#allocation2 + $0x1a] sm:$0xff]
      %v574 = vld [vmem:[#allocation2 + $0x22] sm:$0xff]
      %v575 = vld [vmem:[#allocation2 + $0x32] sm:$0xff]
      %v576 = vld [vmem:[#allocation2 + $0x3a] sm:$0xff]
      %v577 = vld [vmem:[#allocation2 + $0x4a] sm:$0xff]
      %v578 = vld [vmem:[#allocation2 + $0x52] sm:$0xff]
      %v579 = vld [vmem:[#allocation2 + $0x62] sm:$0xff]
      %v580 = vld [vmem:[#allocation2 + $0x6a] sm:$0xff]
      %v581 = vld [vmem:[#allocation2 + $0x7a] sm:$0xff]
      %v582 = vld [vmem:[#allocation2 + $0x82] sm:$0xff]
      %v583 = vld [vmem:[#allocation2 + $0x92] sm:$0xff]
      %v584 = vld [vmem:[#allocation2 + $0x9a] sm:$0xff]
      %v585 = vld [vmem:[#allocation2 + $0xaa] sm:$0xff]
      %v586 = vld [vmem:[#allocation2 + $0xb2] sm:$0xff]
      %v587 = vld [vmem:[#allocation2 + $0xc2] sm:$0xff]
      %v588 = vld [vmem:[#allocation2 + $0xca] sm:$0xff]
      %v589 = vld [vmem:[#allocation2 + $0xda] sm:$0xff]
      %v590 = vld [vmem:[#allocation2 + $0xe2] sm:$0xff]
      %v591 = vld [vmem:[#allocation2 + $0xf2] sm:$0xff]
      %v592 = vld [vmem:[#allocation2 + $0xfa] sm:$0xff]
      %v593 = vld [vmem:[#allocation2 + $0x10a] sm:$0xff]
      %v594 = vld [vmem:[#allocation2 + $0x112] sm:$0xff]
      %v595 = vld [vmem:[#allocation2 + $0x122] sm:$0xff]
      %v596 = vld [vmem:[#allocation2 + $0x12a] sm:$0xff]
      %v597 = vld [vmem:[#allocation2 + $0x13a] sm:$0xff]
      %v598 = vld [vmem:[#allocation2 + $0x142] sm:$0xff]
      %v599 = vld [vmem:[#allocation2 + $0x152] sm:$0xff]
      %v600 = vld [vmem:[#allocation2 + $0x15a] sm:$0xff]
      %v601 = vld [vmem:[#allocation2 + $0x16a] sm:$0xff]
      %v602 = vld [vmem:[#allocation2 + $0x172] sm:$0xff]
      %635 = vrot.lane.b32.xlu0 %v539, 8
      %v636 = vpop.permute.xlu0 %635
      %637 = vrot.lane.b32.xlu0 %v540, 8
      %v638 = vpop.permute.xlu0 %637
      %639 = vrot.lane.b32.xlu0 %v541, 8
      %v640 = vpop.permute.xlu0 %639
      %641 = vrot.lane.b32.xlu0 %v542, 8
      %v642 = vpop.permute.xlu0 %641
      %643 = vrot.lane.b32.xlu0 %v543, 8
      %v644 = vpop.permute.xlu0 %643
      %645 = vrot.lane.b32.xlu0 %v544, 8
      %v646 = vpop.permute.xlu0 %645
      %647 = vrot.lane.b32.xlu0 %v545, 8
      %v648 = vpop.permute.xlu0 %647
      %649 = vrot.lane.b32.xlu0 %v546, 8
      %v650 = vpop.permute.xlu0 %649
      %651 = vrot.lane.b32.xlu0 %v547, 8
      %v652 = vpop.permute.xlu0 %651
      %653 = vrot.lane.b32.xlu0 %v548, 8
      %v654 = vpop.permute.xlu0 %653
      %655 = vrot.lane.b32.xlu0 %v549, 8
      %v656 = vpop.permute.xlu0 %655
      %657 = vrot.lane.b32.xlu0 %v550, 8
      %v658 = vpop.permute.xlu0 %657
      %659 = vrot.lane.b32.xlu0 %v551, 8
      %v660 = vpop.permute.xlu0 %659
      %661 = vrot.lane.b32.xlu0 %v552, 8
      %v662 = vpop.permute.xlu0 %661
      %663 = vrot.lane.b32.xlu0 %v553, 8
      %v664 = vpop.permute.xlu0 %663
      %665 = vrot.lane.b32.xlu0 %v554, 8
      %v666 = vpop.permute.xlu0 %665
      %667 = vrot.lane.b32.xlu0 %v555, 8
      %v668 = vpop.permute.xlu0 %667
      %669 = vrot.lane.b32.xlu0 %v556, 8
      %v670 = vpop.permute.xlu0 %669
      %671 = vrot.lane.b32.xlu0 %v557, 8
      %v672 = vpop.permute.xlu0 %671
      %673 = vrot.lane.b32.xlu0 %v558, 8
      %v674 = vpop.permute.xlu0 %673
      %675 = vrot.lane.b32.xlu0 %v559, 8
      %v676 = vpop.permute.xlu0 %675
      %677 = vrot.lane.b32.xlu0 %v560, 8
      %v678 = vpop.permute.xlu0 %677
      %679 = vrot.lane.b32.xlu0 %v561, 8
      %v680 = vpop.permute.xlu0 %679
      %681 = vrot.lane.b32.xlu0 %v562, 8
      %v682 = vpop.permute.xlu0 %681
      %683 = vrot.lane.b32.xlu0 %v563, 8
      %v684 = vpop.permute.xlu0 %683
      %685 = vrot.lane.b32.xlu0 %v564, 8
      %v686 = vpop.permute.xlu0 %685
      %687 = vrot.lane.b32.xlu0 %v565, 8
      %v688 = vpop.permute.xlu0 %687
      %689 = vrot.lane.b32.xlu0 %v566, 8
      %v690 = vpop.permute.xlu0 %689
      %691 = vrot.lane.b32.xlu0 %v567, 8
      %v692 = vpop.permute.xlu0 %691
      %693 = vrot.lane.b32.xlu0 %v568, 8
      %v694 = vpop.permute.xlu0 %693
      %695 = vrot.lane.b32.xlu0 %v569, 8
      %v696 = vpop.permute.xlu0 %695
      %697 = vrot.lane.b32.xlu0 %v570, 8
      %v698 = vpop.permute.xlu0 %697
      %763 = vrot.lane.b32.xlu0 %v571, 16
      %v764 = vpop.permute.xlu0 %763
      %765 = vrot.lane.b32.xlu0 %v572, 16
      %v766 = vpop.permute.xlu0 %765
      %767 = vrot.lane.b32.xlu0 %v573, 16
      %v768 = vpop.permute.xlu0 %767
      %769 = vrot.lane.b32.xlu0 %v574, 16
      %v770 = vpop.permute.xlu0 %769
      %771 = vrot.lane.b32.xlu0 %v575, 16
      %v772 = vpop.permute.xlu0 %771
      %773 = vrot.lane.b32.xlu0 %v576, 16
      %v774 = vpop.permute.xlu0 %773
      %775 = vrot.lane.b32.xlu0 %v577, 16
      %v776 = vpop.permute.xlu0 %775
      %777 = vrot.lane.b32.xlu0 %v578, 16
      %v778 = vpop.permute.xlu0 %777
      %779 = vrot.lane.b32.xlu0 %v579, 16
      %v780 = vpop.permute.xlu0 %779
      %781 = vrot.lane.b32.xlu0 %v580, 16
      %v782 = vpop.permute.xlu0 %781
      %783 = vrot.lane.b32.xlu0 %v581, 16
      %v784 = vpop.permute.xlu0 %783
      %785 = vrot.lane.b32.xlu0 %v582, 16
      %v786 = vpop.permute.xlu0 %785
      %787 = vrot.lane.b32.xlu0 %v583, 16
      %v788 = vpop.permute.xlu0 %787
      %789 = vrot.lane.b32.xlu0 %v584, 16
      %v790 = vpop.permute.xlu0 %789
      %791 = vrot.lane.b32.xlu0 %v585, 16
      %v792 = vpop.permute.xlu0 %791
      %793 = vrot.lane.b32.xlu0 %v586, 16
      %v794 = vpop.permute.xlu0 %793
      %795 = vrot.lane.b32.xlu0 %v587, 16
      %v796 = vpop.permute.xlu0 %795
      %797 = vrot.lane.b32.xlu0 %v588, 16
      %v798 = vpop.permute.xlu0 %797
      %799 = vrot.lane.b32.xlu0 %v589, 16
      %v800 = vpop.permute.xlu0 %799
      %801 = vrot.lane.b32.xlu0 %v590, 16
      %v802 = vpop.permute.xlu0 %801
      %803 = vrot.lane.b32.xlu0 %v591, 16
      %v804 = vpop.permute.xlu0 %803
      %805 = vrot.lane.b32.xlu0 %v592, 16
      %v806 = vpop.permute.xlu0 %805
      %807 = vrot.lane.b32.xlu0 %v593, 16
      %v808 = vpop.permute.xlu0 %807
      %809 = vrot.lane.b32.xlu0 %v594, 16
      %v810 = vpop.permute.xlu0 %809
      %811 = vrot.lane.b32.xlu0 %v595, 16
      %v812 = vpop.permute.xlu0 %811
      %813 = vrot.lane.b32.xlu0 %v596, 16
      %v814 = vpop.permute.xlu0 %813
      %815 = vrot.lane.b32.xlu0 %v597, 16
      %v816 = vpop.permute.xlu0 %815
      %817 = vrot.lane.b32.xlu0 %v598, 16
      %v818 = vpop.permute.xlu0 %817
      %819 = vrot.lane.b32.xlu0 %v599, 16
      %v820 = vpop.permute.xlu0 %819
      %821 = vrot.lane.b32.xlu0 %v600, 16
      %v822 = vpop.permute.xlu0 %821
      %823 = vrot.lane.b32.xlu0 %v601, 16
      %v824 = vpop.permute.xlu0 %823
      %825 = vrot.lane.b32.xlu0 %v602, 16
      %v826 = vpop.permute.xlu0 %825
      %vm859 = vcmask 64512
      %v860 = vsel %vm859, %v507, %v636
      %v861 = vsel %vm859, %v508, %v638
      %v862 = vsel %vm859, %v509, %v640
      %v863 = vsel %vm859, %v510, %v642
      %v864 = vsel %vm859, %v511, %v644
      %v865 = vsel %vm859, %v512, %v646
      %v866 = vsel %vm859, %v513, %v648
      %v867 = vsel %vm859, %v514, %v650
      %v868 = vsel %vm859, %v515, %v652
      %v869 = vsel %vm859, %v516, %v654
      %v870 = vsel %vm859, %v517, %v656
      %v871 = vsel %vm859, %v518, %v658
      %v872 = vsel %vm859, %v519, %v660
      %v873 = vsel %vm859, %v520, %v662
      %v874 = vsel %vm859, %v521, %v664
      %v875 = vsel %vm859, %v522, %v666
      %v876 = vsel %vm859, %v523, %v668
      %v877 = vsel %vm859, %v524, %v670
      %v878 = vsel %vm859, %v525, %v672
      %v879 = vsel %vm859, %v526, %v674
      %v880 = vsel %vm859, %v527, %v676
      %v881 = vsel %vm859, %v528, %v678
      %v882 = vsel %vm859, %v529, %v680
      %v883 = vsel %vm859, %v530, %v682
      %v884 = vsel %vm859, %v531, %v684
      %v885 = vsel %vm859, %v532, %v686
      %v886 = vsel %vm859, %v533, %v688
      %v887 = vsel %vm859, %v534, %v690
      %v888 = vsel %vm859, %v535, %v692
      %v889 = vsel %vm859, %v536, %v694
      %v890 = vsel %vm859, %v537, %v696
      %v891 = vsel %vm859, %v538, %v698
      %vm892 = vcmask 130048
      %v893 = vsel %vm892, %v860, %v764
      %v894 = vsel %vm892, %v861, %v766
      %v895 = vsel %vm892, %v862, %v768
      %v896 = vsel %vm892, %v863, %v770
      %v897 = vsel %vm892, %v864, %v772
      %v898 = vsel %vm892, %v865, %v774
      %v899 = vsel %vm892, %v866, %v776
      %v900 = vsel %vm892, %v867, %v778
      %v901 = vsel %vm892, %v868, %v780
      %v902 = vsel %vm892, %v869, %v782
      %v903 = vsel %vm892, %v870, %v784
      %v904 = vsel %vm892, %v871, %v786
      %v905 = vsel %vm892, %v872, %v788
      %v906 = vsel %vm892, %v873, %v790
      %v907 = vsel %vm892, %v874, %v792
      %v908 = vsel %vm892, %v875, %v794
      %v909 = vsel %vm892, %v876, %v796
      %v910 = vsel %vm892, %v877, %v798
      %v911 = vsel %vm892, %v878, %v800
      %v912 = vsel %vm892, %v879, %v802
      %v913 = vsel %vm892, %v880, %v804
      %v914 = vsel %vm892, %v881, %v806
      %v915 = vsel %vm892, %v882, %v808
      %v916 = vsel %vm892, %v883, %v810
      %v917 = vsel %vm892, %v884, %v812
      %v918 = vsel %vm892, %v885, %v814
      %v919 = vsel %vm892, %v886, %v816
      %v920 = vsel %vm892, %v887, %v818
      %v921 = vsel %vm892, %v888, %v820
      %v922 = vsel %vm892, %v889, %v822
      %v923 = vsel %vm892, %v890, %v824
      %v924 = vsel %vm892, %v891, %v826
      %v925 = vld [vmem:[%s265] sm:$0xff]
      %v926 = vld [vmem:[%s265 + $0x8] sm:$0xff]
      %v927 = vld [vmem:[%s265 + $0x10] sm:$0xff]
      %s928 = scalar_lea.vmem [#allocation2], 24
      %v929 = vld [vmem:[%s928] sm:$0xff]
      %v930 = vld [vmem:[%s928 + $0x8] sm:$0xff]
      %v931 = vld [vmem:[%s928 + $0x18] sm:$0xff]
      %v932 = vld [vmem:[%s928 + $0x20] sm:$0xff]
      %v933 = vld [vmem:[%s928 + $0x30] sm:$0xff]
      %v934 = vld [vmem:[%s928 + $0x38] sm:$0xff]
      %v935 = vld [vmem:[%s928 + $0x48] sm:$0xff]
      %v936 = vld [vmem:[%s928 + $0x50] sm:$0xff]
      %v937 = vld [vmem:[%s928 + $0x60] sm:$0xff]
      %v938 = vld [vmem:[%s928 + $0x68] sm:$0xff]
      %v939 = vld [vmem:[%s928 + $0x78] sm:$0xff]
      %v940 = vld [vmem:[%s928 + $0x80] sm:$0xff]
      %v941 = vld [vmem:[%s928 + $0x90] sm:$0xff]
      %v942 = vld [vmem:[%s928 + $0x98] sm:$0xff]
      %v943 = vld [vmem:[%s928 + $0xa8] sm:$0xff]
      %v944 = vld [vmem:[%s928 + $0xb0] sm:$0xff]
      %v945 = vld [vmem:[%s928 + $0xc0] sm:$0xff]
      %v946 = vld [vmem:[%s928 + $0xc8] sm:$0xff]
      %v947 = vld [vmem:[%s928 + $0xd8] sm:$0xff]
      %v948 = vld [vmem:[%s928 + $0xe0] sm:$0xff]
      %v949 = vld [vmem:[%s928 + $0xf0] sm:$0xff]
      %v950 = vld [vmem:[%s928 + $0xf8] sm:$0xff]
      %v951 = vld [vmem:[%s928 + $0x108] sm:$0xff]
      %v952 = vld [vmem:[%s928 + $0x110] sm:$0xff]
      %v953 = vld [vmem:[%s928 + $0x120] sm:$0xff]
      %v954 = vld [vmem:[%s928 + $0x128] sm:$0xff]
      %v955 = vld [vmem:[%s928 + $0x138] sm:$0xff]
      %v956 = vld [vmem:[%s928 + $0x140] sm:$0xff]
      %v957 = vld [vmem:[%s928 + $0x150] sm:$0xff]
      %v958 = vld [vmem:[%s928 + $0x158] sm:$0xff]
      %v959 = vld [vmem:[%s928 + $0x168] sm:$0xff]
      %v960 = vld [vmem:[%s928 + $0x170] sm:$0xff]
      %v961 = vld [vmem:[%s928 + $0x1] sm:$0xff]
      %v962 = vld [vmem:[%s928 + $0x9] sm:$0xff]
      %v963 = vld [vmem:[%s928 + $0x19] sm:$0xff]
      %v964 = vld [vmem:[%s928 + $0x21] sm:$0xff]
      %v965 = vld [vmem:[%s928 + $0x31] sm:$0xff]
      %v966 = vld [vmem:[%s928 + $0x39] sm:$0xff]
      %v967 = vld [vmem:[%s928 + $0x49] sm:$0xff]
      %v968 = vld [vmem:[%s928 + $0x51] sm:$0xff]
      %v969 = vld [vmem:[%s928 + $0x61] sm:$0xff]
      %v970 = vld [vmem:[%s928 + $0x69] sm:$0xff]
      %v971 = vld [vmem:[%s928 + $0x79] sm:$0xff]
      %v972 = vld [vmem:[%s928 + $0x81] sm:$0xff]
      %v973 = vld [vmem:[%s928 + $0x91] sm:$0xff]
      %v974 = vld [vmem:[%s928 + $0x99] sm:$0xff]
      %v975 = vld [vmem:[%s928 + $0xa9] sm:$0xff]
      %v976 = vld [vmem:[%s928 + $0xb1] sm:$0xff]
      %v977 = vld [vmem:[%s928 + $0xc1] sm:$0xff]
      %v978 = vld [vmem:[%s928 + $0xc9] sm:$0xff]
      %v979 = vld [vmem:[%s928 + $0xd9] sm:$0xff]
      %v980 = vld [vmem:[%s928 + $0xe1] sm:$0xff]
      %v981 = vld [vmem:[%s928 + $0xf1] sm:$0xff]
      %v982 = vld [vmem:[%s928 + $0xf9] sm:$0xff]
      %v983 = vld [vmem:[%s928 + $0x109] sm:$0xff]
      %v984 = vld [vmem:[%s928 + $0x111] sm:$0xff]
      %v985 = vld [vmem:[%s928 + $0x121] sm:$0xff]
      %v986 = vld [vmem:[%s928 + $0x129] sm:$0xff]
      %v987 = vld [vmem:[%s928 + $0x139] sm:$0xff]
      %v988 = vld [vmem:[%s928 + $0x141] sm:$0xff]
      %v989 = vld [vmem:[%s928 + $0x151] sm:$0xff]
      %v990 = vld [vmem:[%s928 + $0x159] sm:$0xff]
      %v991 = vld [vmem:[%s928 + $0x169] sm:$0xff]
      %v992 = vld [vmem:[%s928 + $0x171] sm:$0xff]
      %v993 = vld [vmem:[%s928 + $0x2] sm:$0xff]
      %v994 = vld [vmem:[%s928 + $0xa] sm:$0xff]
      %v995 = vld [vmem:[%s928 + $0x1a] sm:$0xff]
      %v996 = vld [vmem:[%s928 + $0x22] sm:$0xff]
      %v997 = vld [vmem:[%s928 + $0x32] sm:$0xff]
      %v998 = vld [vmem:[%s928 + $0x3a] sm:$0xff]
      %v999 = vld [vmem:[%s928 + $0x4a] sm:$0xff]
      %v1000 = vld [vmem:[%s928 + $0x52] sm:$0xff]
      %v1001 = vld [vmem:[%s928 + $0x62] sm:$0xff]
      %v1002 = vld [vmem:[%s928 + $0x6a] sm:$0xff]
      %v1003 = vld [vmem:[%s928 + $0x7a] sm:$0xff]
      %v1004 = vld [vmem:[%s928 + $0x82] sm:$0xff]
      %v1005 = vld [vmem:[%s928 + $0x92] sm:$0xff]
      %v1006 = vld [vmem:[%s928 + $0x9a] sm:$0xff]
      %v1007 = vld [vmem:[%s928 + $0xaa] sm:$0xff]
      %v1008 = vld [vmem:[%s928 + $0xb2] sm:$0xff]
      %v1009 = vld [vmem:[%s928 + $0xc2] sm:$0xff]
      %v1010 = vld [vmem:[%s928 + $0xca] sm:$0xff]
      %v1011 = vld [vmem:[%s928 + $0xda] sm:$0xff]
      %v1012 = vld [vmem:[%s928 + $0xe2] sm:$0xff]
      %v1013 = vld [vmem:[%s928 + $0xf2] sm:$0xff]
      %v1014 = vld [vmem:[%s928 + $0xfa] sm:$0xff]
      %v1015 = vld [vmem:[%s928 + $0x10a] sm:$0xff]
      %v1016 = vld [vmem:[%s928 + $0x112] sm:$0xff]
      %v1017 = vld [vmem:[%s928 + $0x122] sm:$0xff]
      %v1018 = vld [vmem:[%s928 + $0x12a] sm:$0xff]
      %v1019 = vld [vmem:[%s928 + $0x13a] sm:$0xff]
      %v1020 = vld [vmem:[%s928 + $0x142] sm:$0xff]
      %v1021 = vld [vmem:[%s928 + $0x152] sm:$0xff]
      %v1022 = vld [vmem:[%s928 + $0x15a] sm:$0xff]
      %v1023 = vld [vmem:[%s928 + $0x16a] sm:$0xff]
      %v1024 = vld [vmem:[%s928 + $0x172] sm:$0xff]
      %1057 = vrot.lane.b32.xlu0 %v961, 8
      %v1058 = vpop.permute.xlu0 %1057
      %1059 = vrot.lane.b32.xlu0 %v962, 8
      %v1060 = vpop.permute.xlu0 %1059
      %1061 = vrot.lane.b32.xlu0 %v963, 8
      %v1062 = vpop.permute.xlu0 %1061
      %1063 = vrot.lane.b32.xlu0 %v964, 8
      %v1064 = vpop.permute.xlu0 %1063
      %1065 = vrot.lane.b32.xlu0 %v965, 8
      %v1066 = vpop.permute.xlu0 %1065
      %1067 = vrot.lane.b32.xlu0 %v966, 8
      %v1068 = vpop.permute.xlu0 %1067
      %1069 = vrot.lane.b32.xlu0 %v967, 8
      %v1070 = vpop.permute.xlu0 %1069
      %1071 = vrot.lane.b32.xlu0 %v968, 8
      %v1072 = vpop.permute.xlu0 %1071
      %1073 = vrot.lane.b32.xlu0 %v969, 8
      %v1074 = vpop.permute.xlu0 %1073
      %1075 = vrot.lane.b32.xlu0 %v970, 8
      %v1076 = vpop.permute.xlu0 %1075
      %1077 = vrot.lane.b32.xlu0 %v971, 8
      %v1078 = vpop.permute.xlu0 %1077
      %1079 = vrot.lane.b32.xlu0 %v972, 8
      %v1080 = vpop.permute.xlu0 %1079
      %1081 = vrot.lane.b32.xlu0 %v973, 8
      %v1082 = vpop.permute.xlu0 %1081
      %1083 = vrot.lane.b32.xlu0 %v974, 8
      %v1084 = vpop.permute.xlu0 %1083
      %1085 = vrot.lane.b32.xlu0 %v975, 8
      %v1086 = vpop.permute.xlu0 %1085
      %1087 = vrot.lane.b32.xlu0 %v976, 8
      %v1088 = vpop.permute.xlu0 %1087
      %1089 = vrot.lane.b32.xlu0 %v977, 8
      %v1090 = vpop.permute.xlu0 %1089
      %1091 = vrot.lane.b32.xlu0 %v978, 8
      %v1092 = vpop.permute.xlu0 %1091
      %1093 = vrot.lane.b32.xlu0 %v979, 8
      %v1094 = vpop.permute.xlu0 %1093
      %1095 = vrot.lane.b32.xlu0 %v980, 8
      %v1096 = vpop.permute.xlu0 %1095
      %1097 = vrot.lane.b32.xlu0 %v981, 8
      %v1098 = vpop.permute.xlu0 %1097
      %1099 = vrot.lane.b32.xlu0 %v982, 8
      %v1100 = vpop.permute.xlu0 %1099
      %1101 = vrot.lane.b32.xlu0 %v983, 8
      %v1102 = vpop.permute.xlu0 %1101
      %1103 = vrot.lane.b32.xlu0 %v984, 8
      %v1104 = vpop.permute.xlu0 %1103
      %1105 = vrot.lane.b32.xlu0 %v985, 8
      %v1106 = vpop.permute.xlu0 %1105
      %1107 = vrot.lane.b32.xlu0 %v986, 8
      %v1108 = vpop.permute.xlu0 %1107
      %1109 = vrot.lane.b32.xlu0 %v987, 8
      %v1110 = vpop.permute.xlu0 %1109
      %1111 = vrot.lane.b32.xlu0 %v988, 8
      %v1112 = vpop.permute.xlu0 %1111
      %1113 = vrot.lane.b32.xlu0 %v989, 8
      %v1114 = vpop.permute.xlu0 %1113
      %1115 = vrot.lane.b32.xlu0 %v990, 8
      %v1116 = vpop.permute.xlu0 %1115
      %1117 = vrot.lane.b32.xlu0 %v991, 8
      %v1118 = vpop.permute.xlu0 %1117
      %1119 = vrot.lane.b32.xlu0 %v992, 8
      %v1120 = vpop.permute.xlu0 %1119
      %1185 = vrot.lane.b32.xlu0 %v993, 16
      %v1186 = vpop.permute.xlu0 %1185
      %1187 = vrot.lane.b32.xlu0 %v994, 16
      %v1188 = vpop.permute.xlu0 %1187
      %1189 = vrot.lane.b32.xlu0 %v995, 16
      %v1190 = vpop.permute.xlu0 %1189
      %1191 = vrot.lane.b32.xlu0 %v996, 16
      %v1192 = vpop.permute.xlu0 %1191
      %1193 = vrot.lane.b32.xlu0 %v997, 16
      %v1194 = vpop.permute.xlu0 %1193
      %1195 = vrot.lane.b32.xlu0 %v998, 16
      %v1196 = vpop.permute.xlu0 %1195
      %1197 = vrot.lane.b32.xlu0 %v999, 16
      %v1198 = vpop.permute.xlu0 %1197
      %1199 = vrot.lane.b32.xlu0 %v1000, 16
      %v1200 = vpop.permute.xlu0 %1199
      %1201 = vrot.lane.b32.xlu0 %v1001, 16
      %v1202 = vpop.permute.xlu0 %1201
      %1203 = vrot.lane.b32.xlu0 %v1002, 16
      %v1204 = vpop.permute.xlu0 %1203
      %1205 = vrot.lane.b32.xlu0 %v1003, 16
      %v1206 = vpop.permute.xlu0 %1205
      %1207 = vrot.lane.b32.xlu0 %v1004, 16
      %v1208 = vpop.permute.xlu0 %1207
      %1209 = vrot.lane.b32.xlu0 %v1005, 16
      %v1210 = vpop.permute.xlu0 %1209
      %1211 = vrot.lane.b32.xlu0 %v1006, 16
      %v1212 = vpop.permute.xlu0 %1211
      %1213 = vrot.lane.b32.xlu0 %v1007, 16
      %v1214 = vpop.permute.xlu0 %1213
      %1215 = vrot.lane.b32.xlu0 %v1008, 16
      %v1216 = vpop.permute.xlu0 %1215
      %1217 = vrot.lane.b32.xlu0 %v1009, 16
      %v1218 = vpop.permute.xlu0 %1217
      %1219 = vrot.lane.b32.xlu0 %v1010, 16
      %v1220 = vpop.permute.xlu0 %1219
      %1221 = vrot.lane.b32.xlu0 %v1011, 16
      %v1222 = vpop.permute.xlu0 %1221
      %1223 = vrot.lane.b32.xlu0 %v1012, 16
      %v1224 = vpop.permute.xlu0 %1223
      %1225 = vrot.lane.b32.xlu0 %v1013, 16
      %v1226 = vpop.permute.xlu0 %1225
      %1227 = vrot.lane.b32.xlu0 %v1014, 16
      %v1228 = vpop.permute.xlu0 %1227
      %1229 = vrot.lane.b32.xlu0 %v1015, 16
      %v1230 = vpop.permute.xlu0 %1229
      %1231 = vrot.lane.b32.xlu0 %v1016, 16
      %v1232 = vpop.permute.xlu0 %1231
      %1233 = vrot.lane.b32.xlu0 %v1017, 16
      %v1234 = vpop.permute.xlu0 %1233
      %1235 = vrot.lane.b32.xlu0 %v1018, 16
      %v1236 = vpop.permute.xlu0 %1235
      %1237 = vrot.lane.b32.xlu0 %v1019, 16
      %v1238 = vpop.permute.xlu0 %1237
      %1239 = vrot.lane.b32.xlu0 %v1020, 16
      %v1240 = vpop.permute.xlu0 %1239
      %1241 = vrot.lane.b32.xlu0 %v1021, 16
      %v1242 = vpop.permute.xlu0 %1241
      %1243 = vrot.lane.b32.xlu0 %v1022, 16
      %v1244 = vpop.permute.xlu0 %1243
      %1245 = vrot.lane.b32.xlu0 %v1023, 16
      %v1246 = vpop.permute.xlu0 %1245
      %1247 = vrot.lane.b32.xlu0 %v1024, 16
      %v1248 = vpop.permute.xlu0 %1247
      %v1281 = vsel %vm859, %v929, %v1058
      %v1282 = vsel %vm859, %v930, %v1060
      %v1283 = vsel %vm859, %v931, %v1062
      %v1284 = vsel %vm859, %v932, %v1064
      %v1285 = vsel %vm859, %v933, %v1066
      %v1286 = vsel %vm859, %v934, %v1068
      %v1287 = vsel %vm859, %v935, %v1070
      %v1288 = vsel %vm859, %v936, %v1072
      %v1289 = vsel %vm859, %v937, %v1074
      %v1290 = vsel %vm859, %v938, %v1076
      %v1291 = vsel %vm859, %v939, %v1078
      %v1292 = vsel %vm859, %v940, %v1080
      %v1293 = vsel %vm859, %v941, %v1082
      %v1294 = vsel %vm859, %v942, %v1084
      %v1295 = vsel %vm859, %v943, %v1086
      %v1296 = vsel %vm859, %v944, %v1088
      %v1297 = vsel %vm859, %v945, %v1090
      %v1298 = vsel %vm859, %v946, %v1092
      %v1299 = vsel %vm859, %v947, %v1094
      %v1300 = vsel %vm859, %v948, %v1096
      %v1301 = vsel %vm859, %v949, %v1098
      %v1302 = vsel %vm859, %v950, %v1100
      %v1303 = vsel %vm859, %v951, %v1102
      %v1304 = vsel %vm859, %v952, %v1104
      %v1305 = vsel %vm859, %v953, %v1106
      %v1306 = vsel %vm859, %v954, %v1108
      %v1307 = vsel %vm859, %v955, %v1110
      %v1308 = vsel %vm859, %v956, %v1112
      %v1309 = vsel %vm859, %v957, %v1114
      %v1310 = vsel %vm859, %v958, %v1116
      %v1311 = vsel %vm859, %v959, %v1118
      %v1312 = vsel %vm859, %v960, %v1120
      %v1313 = vsel %vm892, %v1281, %v1186
      %v1314 = vsel %vm892, %v1282, %v1188
      %v1315 = vsel %vm892, %v1283, %v1190
      %v1316 = vsel %vm892, %v1284, %v1192
      %v1317 = vsel %vm892, %v1285, %v1194
      %v1318 = vsel %vm892, %v1286, %v1196
      %v1319 = vsel %vm892, %v1287, %v1198
      %v1320 = vsel %vm892, %v1288, %v1200
      %v1321 = vsel %vm892, %v1289, %v1202
      %v1322 = vsel %vm892, %v1290, %v1204
      %v1323 = vsel %vm892, %v1291, %v1206
      %v1324 = vsel %vm892, %v1292, %v1208
      %v1325 = vsel %vm892, %v1293, %v1210
      %v1326 = vsel %vm892, %v1294, %v1212
      %v1327 = vsel %vm892, %v1295, %v1214
      %v1328 = vsel %vm892, %v1296, %v1216
      %v1329 = vsel %vm892, %v1297, %v1218
      %v1330 = vsel %vm892, %v1298, %v1220
      %v1331 = vsel %vm892, %v1299, %v1222
      %v1332 = vsel %vm892, %v1300, %v1224
      %v1333 = vsel %vm892, %v1301, %v1226
      %v1334 = vsel %vm892, %v1302, %v1228
      %v1335 = vsel %vm892, %v1303, %v1230
      %v1336 = vsel %vm892, %v1304, %v1232
      %v1337 = vsel %vm892, %v1305, %v1234
      %v1338 = vsel %vm892, %v1306, %v1236
      %v1339 = vsel %vm892, %v1307, %v1238
      %v1340 = vsel %vm892, %v1308, %v1240
      %v1341 = vsel %vm892, %v1309, %v1242
      %v1342 = vsel %vm892, %v1310, %v1244
      %v1343 = vsel %vm892, %v1311, %v1246
      %v1344 = vsel %vm892, %v1312, %v1248
      %s1345 = scalar_lea.vmem %s265, 24
      %v1346 = vld [vmem:[%s1345] sm:$0xff]
      %v1347 = vld [vmem:[%s1345 + $0x8] sm:$0xff]
      %v1348 = vld [vmem:[%s1345 + $0x10] sm:$0xff]
      %vm1349 = vcmask 195584
      %v1351 = vsel %vm1349, %v1313, 0
      %v1354 = vsel %vm1349, %v1314, 0
      %v1357 = vsel %vm1349, %v1315, 0
      %v1360 = vsel %vm1349, %v1316, 0
      %v1363 = vsel %vm1349, %v1317, 0
      %v1366 = vsel %vm1349, %v1318, 0
      %v1369 = vsel %vm1349, %v1319, 0
      %v1372 = vsel %vm1349, %v1320, 0
      %v1375 = vsel %vm1349, %v1321, 0
      %v1378 = vsel %vm1349, %v1322, 0
      %v1381 = vsel %vm1349, %v1323, 0
      %v1384 = vsel %vm1349, %v1324, 0
      %v1387 = vsel %vm1349, %v1325, 0
      %v1390 = vsel %vm1349, %v1326, 0
      %v1393 = vsel %vm1349, %v1327, 0
      %v1396 = vsel %vm1349, %v1328, 0
      %v1399 = vsel %vm1349, %v1329, 0
      %v1402 = vsel %vm1349, %v1330, 0
      %v1405 = vsel %vm1349, %v1331, 0
      %v1408 = vsel %vm1349, %v1332, 0
      %v1411 = vsel %vm1349, %v1333, 0
      %v1414 = vsel %vm1349, %v1334, 0
      %v1417 = vsel %vm1349, %v1335, 0
      %v1420 = vsel %vm1349, %v1336, 0
      %v1423 = vsel %vm1349, %v1337, 0
      %v1426 = vsel %vm1349, %v1338, 0
      %v1429 = vsel %vm1349, %v1339, 0
      %v1432 = vsel %vm1349, %v1340, 0
      %v1435 = vsel %vm1349, %v1341, 0
      %v1438 = vsel %vm1349, %v1342, 0
      %v1441 = vsel %vm1349, %v1343, 0
      %v1444 = vsel %vm1349, %v1344, 0
      %1446 = vmatprep.subr.mxu0 0.0
      %1447 = vmatpush1.msra.mxu0 %v1346
      %1448 = vmatprep.subr.mxu0 0.0
      %1449 = vmatpush1.msra.mxu0 %v1347
      %1450 = vmatprep.subr.mxu0 0.0
      %1451 = vmatpush1.msra.mxu0 %v1348
      %1452 = vmatprep.subr.mxu0 0.0
      %1453 = vmatpush1.msra.mxu0 0.0
      %1454 = vmatprep.subr.mxu0 0.0
      %1455 = vmatpush1.msra.mxu0 0.0
      %1456 = vmatprep.subr.mxu0 0.0
      %1457 = vmatpush1.msra.mxu0 0.0
      %1458 = vmatprep.subr.mxu0 0.0
      %1459 = vmatpush1.msra.mxu0 0.0
      %1460 = vmatprep.subr.mxu0 0.0
      %1461 = vmatpush1.msra.mxu0 0.0
      %1462 = vmatprep.subr.mxu0 0.0
      %1463 = vmatpush1.msra.mxu0 0.0
      %1464 = vmatprep.subr.mxu0 0.0
      %1465 = vmatpush1.msra.mxu0 0.0
      %1466 = vmatprep.subr.mxu0 0.0
      %1467 = vmatpush1.msra.mxu0 0.0
      %1468 = vmatprep.subr.mxu0 0.0
      %1469 = vmatpush1.msra.mxu0 0.0
      %1470 = vmatprep.subr.mxu0 0.0
      %1471 = vmatpush1.msra.mxu0 0.0
      %1472 = vmatprep.subr.mxu0 0.0
      %1473 = vmatpush1.msra.mxu0 0.0
      %1474 = vmatprep.subr.mxu0 0.0
      %1475 = vmatpush1.msra.mxu0 0.0
      %1476 = vmatprep.subr.mxu0 0.0
      %1477 = vmatpush1.msra.mxu0 0.0
      %1478 = vmatprep.subr.mxu0 0.0
      %1479 = vmatpush1.msra.mxu0 0.0
      %1480 = vmatprep.subr.mxu0 0.0
      %1481 = vmatpush1.msra.mxu0 0.0
      %1482 = vmatprep.subr.mxu0 0.0
      %1483 = vmatpush1.msra.mxu0 0.0
      %1484 = vmatprep.subr.mxu0 0.0
      %1485 = vmatpush1.msra.mxu0 0.0
      %1486 = vmatprep.subr.mxu0 0.0
      %1487 = vmatpush1.msra.mxu0 0.0
      %1488 = vmatprep.subr.mxu0 0.0
      %1489 = vmatpush1.msra.mxu0 0.0
      %1490 = vmatprep.subr.mxu0 0.0
      %1491 = vmatpush1.msra.mxu0 0.0
      %1492 = vmatprep.subr.mxu0 0.0
      %1493 = vmatpush1.msra.mxu0 0.0
      %1494 = vmatprep.subr.mxu0 0.0
      %1495 = vmatpush1.msra.mxu0 0.0
      %1496 = vmatprep.subr.mxu0 0.0
      %1497 = vmatpush1.msra.mxu0 0.0
      %1498 = vmatprep.subr.mxu0 0.0
      %1499 = vmatpush1.msra.mxu0 0.0
      %1500 = vmatprep.subr.mxu0 0.0
      %1501 = vmatpush1.msra.mxu0 0.0
      %1502 = vmatprep.subr.mxu0 0.0
      %1503 = vmatpush1.msra.mxu0 0.0
      %1504 = vmatprep.subr.mxu0 0.0
      %1505 = vmatpush1.msra.mxu0 0.0
      %1506 = vmatprep.subr.mxu0 0.0
      %1507 = vmatpush1.msra.mxu0 0.0
      %1508 = vmatprep.subr.mxu0 0.0
      %1509 = vmatpush1.msra.mxu0 0.0
      %1510 = vmatprep.mubr.f32.mxu0 0.0
      %1511 = vmatmul.mubr.f32.gmra.mrb[0].mxu0 %v1351
      %v1512 = vpop.f32.mrb[0].mxu0
      %v1513 = vadd.f32 0.0, %v1512
      %v1514 = vpop.f32.mrb[0].mxu0
      %1515 = vmatprep.mubr.f32.mxu0 0.0
      %1516 = vmatmul.mubr.f32.gmra.mrb[0].mxu0 %v1354
      %v1517 = vpop.f32.mrb[0].mxu0
      %v1518 = vadd.f32 0.0, %v1517
      %v1519 = vpop.f32.mrb[0].mxu0
      %1520 = vmatprep.mubr.f32.mxu0 0.0
      %1521 = vmatmul.mubr.f32.gmra.mrb[0].mxu0 %v1357
      %v1522 = vpop.f32.mrb[0].mxu0
      %v1523 = vadd.f32 0.0, %v1522
      %v1524 = vpop.f32.mrb[0].mxu0
      %1525 = vmatprep.mubr.f32.mxu0 0.0
      %1526 = vmatmul.mubr.f32.gmra.mrb[0].mxu0 %v1360
      %v1527 = vpop.f32.mrb[0].mxu0
      %v1528 = vadd.f32 0.0, %v1527
      %v1529 = vpop.f32.mrb[0].mxu0
      %1530 = vmatprep.mubr.f32.mxu0 0.0
      %1531 = vmatmul.mubr.f32.gmra.mrb[0].mxu0 %v1363
      %v1532 = vpop.f32.mrb[0].mxu0
      %v1533 = vadd.f32 0.0, %v1532
      %v1534 = vpop.f32.mrb[0].mxu0
      %1535 = vmatprep.mubr.f32.mxu0 0.0
      %1536 = vmatmul.mubr.f32.gmra.mrb[0].mxu0 %v1366
      %v1537 = vpop.f32.mrb[0].mxu0
      %v1538 = vadd.f32 0.0, %v1537
      %v1539 = vpop.f32.mrb[0].mxu0
      %1540 = vmatprep.mubr.f32.mxu0 0.0
      %1541 = vmatmul.mubr.f32.gmra.mrb[0].mxu0 %v1369
      %v1542 = vpop.f32.mrb[0].mxu0
      %v1543 = vadd.f32 0.0, %v1542
      %v1544 = vpop.f32.mrb[0].mxu0
      %1545 = vmatprep.mubr.f32.mxu0 0.0
      %1546 = vmatmul.mubr.f32.gmra.mrb[0].mxu0 %v1372
      %v1547 = vpop.f32.mrb[0].mxu0
      %v1548 = vadd.f32 0.0, %v1547
      %v1549 = vpop.f32.mrb[0].mxu0
      %1550 = vmatprep.mubr.f32.mxu0 0.0
      %1551 = vmatmul.mubr.f32.gmra.mrb[0].mxu0 %v1375
      %v1552 = vpop.f32.mrb[0].mxu0
      %v1553 = vadd.f32 0.0, %v1552
      %v1554 = vpop.f32.mrb[0].mxu0
      %1555 = vmatprep.mubr.f32.mxu0 0.0
      %1556 = vmatmul.mubr.f32.gmra.mrb[0].mxu0 %v1378
      %v1557 = vpop.f32.mrb[0].mxu0
      %v1558 = vadd.f32 0.0, %v1557
      %v1559 = vpop.f32.mrb[0].mxu0
      %1560 = vmatprep.mubr.f32.mxu0 0.0
      %1561 = vmatmul.mubr.f32.gmra.mrb[0].mxu0 %v1381
      %v1562 = vpop.f32.mrb[0].mxu0
      %v1563 = vadd.f32 0.0, %v1562
      %v1564 = vpop.f32.mrb[0].mxu0
      %1565 = vmatprep.mubr.f32.mxu0 0.0
      %1566 = vmatmul.mubr.f32.gmra.mrb[0].mxu0 %v1384
      %v1567 = vpop.f32.mrb[0].mxu0
      %v1568 = vadd.f32 0.0, %v1567
      %v1569 = vpop.f32.mrb[0].mxu0
      %1570 = vmatprep.mubr.f32.mxu0 0.0
      %1571 = vmatmul.mubr.f32.gmra.mrb[0].mxu0 %v1387
      %v1572 = vpop.f32.mrb[0].mxu0
      %v1573 = vadd.f32 0.0, %v1572
      %v1574 = vpop.f32.mrb[0].mxu0
      %1575 = vmatprep.mubr.f32.mxu0 0.0
      %1576 = vmatmul.mubr.f32.gmra.mrb[0].mxu0 %v1390
      %v1577 = vpop.f32.mrb[0].mxu0
      %v1578 = vadd.f32 0.0, %v1577
      %v1579 = vpop.f32.mrb[0].mxu0
      %1580 = vmatprep.mubr.f32.mxu0 0.0
      %1581 = vmatmul.mubr.f32.gmra.mrb[0].mxu0 %v1393
      %v1582 = vpop.f32.mrb[0].mxu0
      %v1583 = vadd.f32 0.0, %v1582
      %v1584 = vpop.f32.mrb[0].mxu0
      %1585 = vmatprep.mubr.f32.mxu0 0.0
      %1586 = vmatmul.mubr.f32.gmra.mrb[0].mxu0 %v1396
      %v1587 = vpop.f32.mrb[0].mxu0
      %v1588 = vadd.f32 0.0, %v1587
      %v1589 = vpop.f32.mrb[0].mxu0
      %1590 = vmatprep.mubr.f32.mxu0 0.0
      %1591 = vmatmul.mubr.f32.gmra.mrb[0].mxu0 %v1399
      %v1592 = vpop.f32.mrb[0].mxu0
      %v1593 = vadd.f32 0.0, %v1592
      %v1594 = vpop.f32.mrb[0].mxu0
      %1595 = vmatprep.mubr.f32.mxu0 0.0
      %1596 = vmatmul.mubr.f32.gmra.mrb[0].mxu0 %v1402
      %v1597 = vpop.f32.mrb[0].mxu0
      %v1598 = vadd.f32 0.0, %v1597
      %v1599 = vpop.f32.mrb[0].mxu0
      %1600 = vmatprep.mubr.f32.mxu0 0.0
      %1601 = vmatmul.mubr.f32.gmra.mrb[0].mxu0 %v1405
      %v1602 = vpop.f32.mrb[0].mxu0
      %v1603 = vadd.f32 0.0, %v1602
      %v1604 = vpop.f32.mrb[0].mxu0
      %1605 = vmatprep.mubr.f32.mxu0 0.0
      %1606 = vmatmul.mubr.f32.gmra.mrb[0].mxu0 %v1408
      %v1607 = vpop.f32.mrb[0].mxu0
      %v1608 = vadd.f32 0.0, %v1607
      %v1609 = vpop.f32.mrb[0].mxu0
      %1610 = vmatprep.mubr.f32.mxu0 0.0
      %1611 = vmatmul.mubr.f32.gmra.mrb[0].mxu0 %v1411
      %v1612 = vpop.f32.mrb[0].mxu0
      %v1613 = vadd.f32 0.0, %v1612
      %v1614 = vpop.f32.mrb[0].mxu0
      %1615 = vmatprep.mubr.f32.mxu0 0.0
      %1616 = vmatmul.mubr.f32.gmra.mrb[0].mxu0 %v1414
      %v1617 = vpop.f32.mrb[0].mxu0
      %v1618 = vadd.f32 0.0, %v1617
      %v1619 = vpop.f32.mrb[0].mxu0
      %1620 = vmatprep.mubr.f32.mxu0 0.0
      %1621 = vmatmul.mubr.f32.gmra.mrb[0].mxu0 %v1417
      %v1622 = vpop.f32.mrb[0].mxu0
      %v1623 = vadd.f32 0.0, %v1622
      %v1624 = vpop.f32.mrb[0].mxu0
      %1625 = vmatprep.mubr.f32.mxu0 0.0
      %1626 = vmatmul.mubr.f32.gmra.mrb[0].mxu0 %v1420
      %v1627 = vpop.f32.mrb[0].mxu0
      %v1628 = vadd.f32 0.0, %v1627
      %v1629 = vpop.f32.mrb[0].mxu0
      %1630 = vmatprep.mubr.f32.mxu0 0.0
      %1631 = vmatmul.mubr.f32.gmra.mrb[0].mxu0 %v1423
      %v1632 = vpop.f32.mrb[0].mxu0
      %v1633 = vadd.f32 0.0, %v1632
      %v1634 = vpop.f32.mrb[0].mxu0
      %1635 = vmatprep.mubr.f32.mxu0 0.0
      %1636 = vmatmul.mubr.f32.gmra.mrb[0].mxu0 %v1426
      %v1637 = vpop.f32.mrb[0].mxu0
      %v1638 = vadd.f32 0.0, %v1637
      %v1639 = vpop.f32.mrb[0].mxu0
      %1640 = vmatprep.mubr.f32.mxu0 0.0
      %1641 = vmatmul.mubr.f32.gmra.mrb[0].mxu0 %v1429
      %v1642 = vpop.f32.mrb[0].mxu0
      %v1643 = vadd.f32 0.0, %v1642
      %v1644 = vpop.f32.mrb[0].mxu0
      %1645 = vmatprep.mubr.f32.mxu0 0.0
      %1646 = vmatmul.mubr.f32.gmra.mrb[0].mxu0 %v1432
      %v1647 = vpop.f32.mrb[0].mxu0
      %v1648 = vadd.f32 0.0, %v1647
      %v1649 = vpop.f32.mrb[0].mxu0
      %1650 = vmatprep.mubr.f32.mxu0 0.0
      %1651 = vmatmul.mubr.f32.gmra.mrb[0].mxu0 %v1435
      %v1652 = vpop.f32.mrb[0].mxu0
      %v1653 = vadd.f32 0.0, %v1652
      %v1654 = vpop.f32.mrb[0].mxu0
      %1655 = vmatprep.mubr.f32.mxu0 0.0
      %1656 = vmatmul.mubr.f32.gmra.mrb[0].mxu0 %v1438
      %v1657 = vpop.f32.mrb[0].mxu0
      %v1658 = vadd.f32 0.0, %v1657
      %v1659 = vpop.f32.mrb[0].mxu0
      %1660 = vmatprep.mubr.f32.mxu0 0.0
      %1661 = vmatmul.mubr.f32.gmra.mrb[0].mxu0 %v1441
      %v1662 = vpop.f32.mrb[0].mxu0
      %v1663 = vadd.f32 0.0, %v1662
      %v1664 = vpop.f32.mrb[0].mxu0
      %1665 = vmatprep.mubr.f32.mxu0 0.0
      %1666 = vmatmul.mubr.f32.gmra.mrb[0].mxu0 %v1444
      %v1667 = vpop.f32.mrb[0].mxu0
      %v1668 = vadd.f32 0.0, %v1667
      %v1669 = vpop.f32.mrb[0].mxu0
      %1670 = vdwg.mxu0
      %v1672 = vsel %vm1349, %v893, 0
      %v1675 = vsel %vm1349, %v894, 0
      %v1678 = vsel %vm1349, %v895, 0
      %v1681 = vsel %vm1349, %v896, 0
      %v1684 = vsel %vm1349, %v897, 0
      %v1687 = vsel %vm1349, %v898, 0
      %v1690 = vsel %vm1349, %v899, 0
      %v1693 = vsel %vm1349, %v900, 0
      %v1696 = vsel %vm1349, %v901, 0
      %v1699 = vsel %vm1349, %v902, 0
      %v1702 = vsel %vm1349, %v903, 0
      %v1705 = vsel %vm1349, %v904, 0
      %v1708 = vsel %vm1349, %v905, 0
      %v1711 = vsel %vm1349, %v906, 0
      %v1714 = vsel %vm1349, %v907, 0
      %v1717 = vsel %vm1349, %v908, 0
      %v1720 = vsel %vm1349, %v909, 0
      %v1723 = vsel %vm1349, %v910, 0
      %v1726 = vsel %vm1349, %v911, 0
      %v1729 = vsel %vm1349, %v912, 0
      %v1732 = vsel %vm1349, %v913, 0
      %v1735 = vsel %vm1349, %v914, 0
      %v1738 = vsel %vm1349, %v915, 0
      %v1741 = vsel %vm1349, %v916, 0
      %v1744 = vsel %vm1349, %v917, 0
      %v1747 = vsel %vm1349, %v918, 0
      %v1750 = vsel %vm1349, %v919, 0
      %v1753 = vsel %vm1349, %v920, 0
      %v1756 = vsel %vm1349, %v921, 0
      %v1759 = vsel %vm1349, %v922, 0
      %v1762 = vsel %vm1349, %v923, 0
      %v1765 = vsel %vm1349, %v924, 0
      %1767 = vmatprep.subr.mxu0 0.0
      %1768 = vmatpush1.msra.mxu0 %v925
      %1769 = vmatprep.subr.mxu0 0.0
      %1770 = vmatpush1.msra.mxu0 %v926
      %1771 = vmatprep.subr.mxu0 0.0
      %1772 = vmatpush1.msra.mxu0 %v927
      %1773 = vmatprep.subr.mxu0 0.0
      %1774 = vmatpush1.msra.mxu0 0.0
      %1775 = vmatprep.subr.mxu0 0.0
      %1776 = vmatpush1.msra.mxu0 0.0
      %1777 = vmatprep.subr.mxu0 0.0
      %1778 = vmatpush1.msra.mxu0 0.0
      %1779 = vmatprep.subr.mxu0 0.0
      %1780 = vmatpush1.msra.mxu0 0.0
      %1781 = vmatprep.subr.mxu0 0.0
      %1782 = vmatpush1.msra.mxu0 0.0
      %1783 = vmatprep.subr.mxu0 0.0
      %1784 = vmatpush1.msra.mxu0 0.0
      %1785 = vmatprep.subr.mxu0 0.0
      %1786 = vmatpush1.msra.mxu0 0.0
      %1787 = vmatprep.subr.mxu0 0.0
      %1788 = vmatpush1.msra.mxu0 0.0
      %1789 = vmatprep.subr.mxu0 0.0
      %1790 = vmatpush1.msra.mxu0 0.0
      %1791 = vmatprep.subr.mxu0 0.0
      %1792 = vmatpush1.msra.mxu0 0.0
      %1793 = vmatprep.subr.mxu0 0.0
      %1794 = vmatpush1.msra.mxu0 0.0
      %1795 = vmatprep.subr.mxu0 0.0
      %1796 = vmatpush1.msra.mxu0 0.0
      %1797 = vmatprep.subr.mxu0 0.0
      %1798 = vmatpush1.msra.mxu0 0.0
      %1799 = vmatprep.subr.mxu0 0.0
      %1800 = vmatpush1.msra.mxu0 0.0
      %1801 = vmatprep.subr.mxu0 0.0
      %1802 = vmatpush1.msra.mxu0 0.0
      %1803 = vmatprep.subr.mxu0 0.0
      %1804 = vmatpush1.msra.mxu0 0.0
      %1805 = vmatprep.subr.mxu0 0.0
      %1806 = vmatpush1.msra.mxu0 0.0
      %1807 = vmatprep.subr.mxu0 0.0
      %1808 = vmatpush1.msra.mxu0 0.0
      %1809 = vmatprep.subr.mxu0 0.0
      %1810 = vmatpush1.msra.mxu0 0.0
      %1811 = vmatprep.subr.mxu0 0.0
      %1812 = vmatpush1.msra.mxu0 0.0
      %1813 = vmatprep.subr.mxu0 0.0
      %1814 = vmatpush1.msra.mxu0 0.0
      %1815 = vmatprep.subr.mxu0 0.0
      %1816 = vmatpush1.msra.mxu0 0.0
      %1817 = vmatprep.subr.mxu0 0.0
      %1818 = vmatpush1.msra.mxu0 0.0
      %1819 = vmatprep.subr.mxu0 0.0
      %1820 = vmatpush1.msra.mxu0 0.0
      %1821 = vmatprep.subr.mxu0 0.0
      %1822 = vmatpush1.msra.mxu0 0.0
      %1823 = vmatprep.subr.mxu0 0.0
      %1824 = vmatpush1.msra.mxu0 0.0
      %1825 = vmatprep.subr.mxu0 0.0
      %1826 = vmatpush1.msra.mxu0 0.0
      %1827 = vmatprep.subr.mxu0 0.0
      %1828 = vmatpush1.msra.mxu0 0.0
      %1829 = vmatprep.subr.mxu0 0.0
      %1830 = vmatpush1.msra.mxu0 0.0
      %1831 = vmatprep.mubr.f32.mxu0 0.0
      %1832 = vmatmul.mubr.f32.gmra.mrb[0].mxu0 %v1672
      %v1833 = vpop.f32.mrb[0].mxu0
      %v1834 = vadd.f32 %v1513, %v1833
      %v1835 = vpop.f32.mrb[0].mxu0
      %1836 = vmatprep.mubr.f32.mxu0 0.0
      %1837 = vmatmul.mubr.f32.gmra.mrb[0].mxu0 %v1675
      %v1838 = vpop.f32.mrb[0].mxu0
      %v1839 = vadd.f32 %v1518, %v1838
      %v1840 = vpop.f32.mrb[0].mxu0
      %1841 = vmatprep.mubr.f32.mxu0 0.0
      %1842 = vmatmul.mubr.f32.gmra.mrb[0].mxu0 %v1678
      %v1843 = vpop.f32.mrb[0].mxu0
      %v1844 = vadd.f32 %v1523, %v1843
      %v1845 = vpop.f32.mrb[0].mxu0
      %1846 = vmatprep.mubr.f32.mxu0 0.0
      %1847 = vmatmul.mubr.f32.gmra.mrb[0].mxu0 %v1681
      %v1848 = vpop.f32.mrb[0].mxu0
      %v1849 = vadd.f32 %v1528, %v1848
      %v1850 = vpop.f32.mrb[0].mxu0
      %1851 = vmatprep.mubr.f32.mxu0 0.0
      %1852 = vmatmul.mubr.f32.gmra.mrb[0].mxu0 %v1684
      %v1853 = vpop.f32.mrb[0].mxu0
      %v1854 = vadd.f32 %v1533, %v1853
      %v1855 = vpop.f32.mrb[0].mxu0
      %1856 = vmatprep.mubr.f32.mxu0 0.0
      %1857 = vmatmul.mubr.f32.gmra.mrb[0].mxu0 %v1687
      %v1858 = vpop.f32.mrb[0].mxu0
      %v1859 = vadd.f32 %v1538, %v1858
      %v1860 = vpop.f32.mrb[0].mxu0
      %1861 = vmatprep.mubr.f32.mxu0 0.0
      %1862 = vmatmul.mubr.f32.gmra.mrb[0].mxu0 %v1690
      %v1863 = vpop.f32.mrb[0].mxu0
      %v1864 = vadd.f32 %v1543, %v1863
      %v1865 = vpop.f32.mrb[0].mxu0
      %1866 = vmatprep.mubr.f32.mxu0 0.0
      %1867 = vmatmul.mubr.f32.gmra.mrb[0].mxu0 %v1693
      %v1868 = vpop.f32.mrb[0].mxu0
      %v1869 = vadd.f32 %v1548, %v1868
      %v1870 = vpop.f32.mrb[0].mxu0
      %1871 = vmatprep.mubr.f32.mxu0 0.0
      %1872 = vmatmul.mubr.f32.gmra.mrb[0].mxu0 %v1696
      %v1873 = vpop.f32.mrb[0].mxu0
      %v1874 = vadd.f32 %v1553, %v1873
      %v1875 = vpop.f32.mrb[0].mxu0
      %1876 = vmatprep.mubr.f32.mxu0 0.0
      %1877 = vmatmul.mubr.f32.gmra.mrb[0].mxu0 %v1699
      %v1878 = vpop.f32.mrb[0].mxu0
      %v1879 = vadd.f32 %v1558, %v1878
      %v1880 = vpop.f32.mrb[0].mxu0
      %1881 = vmatprep.mubr.f32.mxu0 0.0
      %1882 = vmatmul.mubr.f32.gmra.mrb[0].mxu0 %v1702
      %v1883 = vpop.f32.mrb[0].mxu0
      %v1884 = vadd.f32 %v1563, %v1883
      %v1885 = vpop.f32.mrb[0].mxu0
      %1886 = vmatprep.mubr.f32.mxu0 0.0
      %1887 = vmatmul.mubr.f32.gmra.mrb[0].mxu0 %v1705
      %v1888 = vpop.f32.mrb[0].mxu0
      %v1889 = vadd.f32 %v1568, %v1888
      %v1890 = vpop.f32.mrb[0].mxu0
      %1891 = vmatprep.mubr.f32.mxu0 0.0
      %1892 = vmatmul.mubr.f32.gmra.mrb[0].mxu0 %v1708
      %v1893 = vpop.f32.mrb[0].mxu0
      %v1894 = vadd.f32 %v1573, %v1893
      %v1895 = vpop.f32.mrb[0].mxu0
      %1896 = vmatprep.mubr.f32.mxu0 0.0
      %1897 = vmatmul.mubr.f32.gmra.mrb[0].mxu0 %v1711
      %v1898 = vpop.f32.mrb[0].mxu0
      %v1899 = vadd.f32 %v1578, %v1898
      %v1900 = vpop.f32.mrb[0].mxu0
      %1901 = vmatprep.mubr.f32.mxu0 0.0
      %1902 = vmatmul.mubr.f32.gmra.mrb[0].mxu0 %v1714
      %v1903 = vpop.f32.mrb[0].mxu0
      %v1904 = vadd.f32 %v1583, %v1903
      %v1905 = vpop.f32.mrb[0].mxu0
      %1906 = vmatprep.mubr.f32.mxu0 0.0
      %1907 = vmatmul.mubr.f32.gmra.mrb[0].mxu0 %v1717
      %v1908 = vpop.f32.mrb[0].mxu0
      %v1909 = vadd.f32 %v1588, %v1908
      %v1910 = vpop.f32.mrb[0].mxu0
      %1911 = vmatprep.mubr.f32.mxu0 0.0
      %1912 = vmatmul.mubr.f32.gmra.mrb[0].mxu0 %v1720
      %v1913 = vpop.f32.mrb[0].mxu0
      %v1914 = vadd.f32 %v1593, %v1913
      %v1915 = vpop.f32.mrb[0].mxu0
      %1916 = vmatprep.mubr.f32.mxu0 0.0
      %1917 = vmatmul.mubr.f32.gmra.mrb[0].mxu0 %v1723
      %v1918 = vpop.f32.mrb[0].mxu0
      %v1919 = vadd.f32 %v1598, %v1918
      %v1920 = vpop.f32.mrb[0].mxu0
      %1921 = vmatprep.mubr.f32.mxu0 0.0
      %1922 = vmatmul.mubr.f32.gmra.mrb[0].mxu0 %v1726
      %v1923 = vpop.f32.mrb[0].mxu0
      %v1924 = vadd.f32 %v1603, %v1923
      %v1925 = vpop.f32.mrb[0].mxu0
      %1926 = vmatprep.mubr.f32.mxu0 0.0
      %1927 = vmatmul.mubr.f32.gmra.mrb[0].mxu0 %v1729
      %v1928 = vpop.f32.mrb[0].mxu0
      %v1929 = vadd.f32 %v1608, %v1928
      %v1930 = vpop.f32.mrb[0].mxu0
      %1931 = vmatprep.mubr.f32.mxu0 0.0
      %1932 = vmatmul.mubr.f32.gmra.mrb[0].mxu0 %v1732
      %v1933 = vpop.f32.mrb[0].mxu0
      %v1934 = vadd.f32 %v1613, %v1933
      %v1935 = vpop.f32.mrb[0].mxu0
      %1936 = vmatprep.mubr.f32.mxu0 0.0
      %1937 = vmatmul.mubr.f32.gmra.mrb[0].mxu0 %v1735
      %v1938 = vpop.f32.mrb[0].mxu0
      %v1939 = vadd.f32 %v1618, %v1938
      %v1940 = vpop.f32.mrb[0].mxu0
      %1941 = vmatprep.mubr.f32.mxu0 0.0
      %1942 = vmatmul.mubr.f32.gmra.mrb[0].mxu0 %v1738
      %v1943 = vpop.f32.mrb[0].mxu0
      %v1944 = vadd.f32 %v1623, %v1943
      %v1945 = vpop.f32.mrb[0].mxu0
      %1946 = vmatprep.mubr.f32.mxu0 0.0
      %1947 = vmatmul.mubr.f32.gmra.mrb[0].mxu0 %v1741
      %v1948 = vpop.f32.mrb[0].mxu0
      %v1949 = vadd.f32 %v1628, %v1948
      %v1950 = vpop.f32.mrb[0].mxu0
      %1951 = vmatprep.mubr.f32.mxu0 0.0
      %1952 = vmatmul.mubr.f32.gmra.mrb[0].mxu0 %v1744
      %v1953 = vpop.f32.mrb[0].mxu0
      %v1954 = vadd.f32 %v1633, %v1953
      %v1955 = vpop.f32.mrb[0].mxu0
      %1956 = vmatprep.mubr.f32.mxu0 0.0
      %1957 = vmatmul.mubr.f32.gmra.mrb[0].mxu0 %v1747
      %v1958 = vpop.f32.mrb[0].mxu0
      %v1959 = vadd.f32 %v1638, %v1958
      %v1960 = vpop.f32.mrb[0].mxu0
      %1961 = vmatprep.mubr.f32.mxu0 0.0
      %1962 = vmatmul.mubr.f32.gmra.mrb[0].mxu0 %v1750
      %v1963 = vpop.f32.mrb[0].mxu0
      %v1964 = vadd.f32 %v1643, %v1963
      %v1965 = vpop.f32.mrb[0].mxu0
      %1966 = vmatprep.mubr.f32.mxu0 0.0
      %1967 = vmatmul.mubr.f32.gmra.mrb[0].mxu0 %v1753
      %v1968 = vpop.f32.mrb[0].mxu0
      %v1969 = vadd.f32 %v1648, %v1968
      %v1970 = vpop.f32.mrb[0].mxu0
      %1971 = vmatprep.mubr.f32.mxu0 0.0
      %1972 = vmatmul.mubr.f32.gmra.mrb[0].mxu0 %v1756
      %v1973 = vpop.f32.mrb[0].mxu0
      %v1974 = vadd.f32 %v1653, %v1973
      %v1975 = vpop.f32.mrb[0].mxu0
      %1976 = vmatprep.mubr.f32.mxu0 0.0
      %1977 = vmatmul.mubr.f32.gmra.mrb[0].mxu0 %v1759
      %v1978 = vpop.f32.mrb[0].mxu0
      %v1979 = vadd.f32 %v1658, %v1978
      %v1980 = vpop.f32.mrb[0].mxu0
      %1981 = vmatprep.mubr.f32.mxu0 0.0
      %1982 = vmatmul.mubr.f32.gmra.mrb[0].mxu0 %v1762
      %v1983 = vpop.f32.mrb[0].mxu0
      %v1984 = vadd.f32 %v1663, %v1983
      %v1985 = vpop.f32.mrb[0].mxu0
      %1986 = vmatprep.mubr.f32.mxu0 0.0
      %1987 = vmatmul.mubr.f32.gmra.mrb[0].mxu0 %v1765
      %v1988 = vpop.f32.mrb[0].mxu0
      %v1989 = vadd.f32 %v1668, %v1988
      %v1990 = vpop.f32.mrb[0].mxu0
      %1991 = vdwg.mxu0
      %s1992 = scalar_lea.vmem [#allocation2], 48
      %v1993 = vld [vmem:[%s1992] sm:$0xff]
      %v1994 = vld [vmem:[%s1992 + $0x8] sm:$0xff]
      %v1995 = vld [vmem:[%s1992 + $0x18] sm:$0xff]
      %v1996 = vld [vmem:[%s1992 + $0x20] sm:$0xff]
      %v1997 = vld [vmem:[%s1992 + $0x30] sm:$0xff]
      %v1998 = vld [vmem:[%s1992 + $0x38] sm:$0xff]
      %v1999 = vld [vmem:[%s1992 + $0x48] sm:$0xff]
      %v2000 = vld [vmem:[%s1992 + $0x50] sm:$0xff]
      %v2001 = vld [vmem:[%s1992 + $0x60] sm:$0xff]
      %v2002 = vld [vmem:[%s1992 + $0x68] sm:$0xff]
      %v2003 = vld [vmem:[%s1992 + $0x78] sm:$0xff]
      %v2004 = vld [vmem:[%s1992 + $0x80] sm:$0xff]
      %v2005 = vld [vmem:[%s1992 + $0x90] sm:$0xff]
      %v2006 = vld [vmem:[%s1992 + $0x98] sm:$0xff]
      %v2007 = vld [vmem:[%s1992 + $0xa8] sm:$0xff]
      %v2008 = vld [vmem:[%s1992 + $0xb0] sm:$0xff]
      %v2009 = vld [vmem:[%s1992 + $0xc0] sm:$0xff]
      %v2010 = vld [vmem:[%s1992 + $0xc8] sm:$0xff]
      %v2011 = vld [vmem:[%s1992 + $0xd8] sm:$0xff]
      %v2012 = vld [vmem:[%s1992 + $0xe0] sm:$0xff]
      %v2013 = vld [vmem:[%s1992 + $0xf0] sm:$0xff]
      %v2014 = vld [vmem:[%s1992 + $0xf8] sm:$0xff]
      %v2015 = vld [vmem:[%s1992 + $0x108] sm:$0xff]
      %v2016 = vld [vmem:[%s1992 + $0x110] sm:$0xff]
      %v2017 = vld [vmem:[%s1992 + $0x120] sm:$0xff]
      %v2018 = vld [vmem:[%s1992 + $0x128] sm:$0xff]
      %v2019 = vld [vmem:[%s1992 + $0x138] sm:$0xff]
      %v2020 = vld [vmem:[%s1992 + $0x140] sm:$0xff]
      %v2021 = vld [vmem:[%s1992 + $0x150] sm:$0xff]
      %v2022 = vld [vmem:[%s1992 + $0x158] sm:$0xff]
      %v2023 = vld [vmem:[%s1992 + $0x168] sm:$0xff]
      %v2024 = vld [vmem:[%s1992 + $0x170] sm:$0xff]
      %v2025 = vld [vmem:[%s1992 + $0x1] sm:$0xff]
      %v2026 = vld [vmem:[%s1992 + $0x9] sm:$0xff]
      %v2027 = vld [vmem:[%s1992 + $0x19] sm:$0xff]
      %v2028 = vld [vmem:[%s1992 + $0x21] sm:$0xff]
      %v2029 = vld [vmem:[%s1992 + $0x31] sm:$0xff]
      %v2030 = vld [vmem:[%s1992 + $0x39] sm:$0xff]
      %v2031 = vld [vmem:[%s1992 + $0x49] sm:$0xff]
      %v2032 = vld [vmem:[%s1992 + $0x51] sm:$0xff]
      %v2033 = vld [vmem:[%s1992 + $0x61] sm:$0xff]
      %v2034 = vld [vmem:[%s1992 + $0x69] sm:$0xff]
      %v2035 = vld [vmem:[%s1992 + $0x79] sm:$0xff]
      %v2036 = vld [vmem:[%s1992 + $0x81] sm:$0xff]
      %v2037 = vld [vmem:[%s1992 + $0x91] sm:$0xff]
      %v2038 = vld [vmem:[%s1992 + $0x99] sm:$0xff]
      %v2039 = vld [vmem:[%s1992 + $0xa9] sm:$0xff]
      %v2040 = vld [vmem:[%s1992 + $0xb1] sm:$0xff]
      %v2041 = vld [vmem:[%s1992 + $0xc1] sm:$0xff]
      %v2042 = vld [vmem:[%s1992 + $0xc9] sm:$0xff]
      %v2043 = vld [vmem:[%s1992 + $0xd9] sm:$0xff]
      %v2044 = vld [vmem:[%s1992 + $0xe1] sm:$0xff]
      %v2045 = vld [vmem:[%s1992 + $0xf1] sm:$0xff]
      %v2046 = vld [vmem:[%s1992 + $0xf9] sm:$0xff]
      %v2047 = vld [vmem:[%s1992 + $0x109] sm:$0xff]
      %v2048 = vld [vmem:[%s1992 + $0x111] sm:$0xff]
      %v2049 = vld [vmem:[%s1992 + $0x121] sm:$0xff]
      %v2050 = vld [vmem:[%s1992 + $0x129] sm:$0xff]
      %v2051 = vld [vmem:[%s1992 + $0x139] sm:$0xff]
      %v2052 = vld [vmem:[%s1992 + $0x141] sm:$0xff]
      %v2053 = vld [vmem:[%s1992 + $0x151] sm:$0xff]
      %v2054 = vld [vmem:[%s1992 + $0x159] sm:$0xff]
      %v2055 = vld [vmem:[%s1992 + $0x169] sm:$0xff]
      %v2056 = vld [vmem:[%s1992 + $0x171] sm:$0xff]
      %v2057 = vld [vmem:[%s1992 + $0x2] sm:$0xff]
      %v2058 = vld [vmem:[%s1992 + $0xa] sm:$0xff]
      %v2059 = vld [vmem:[%s1992 + $0x1a] sm:$0xff]
      %v2060 = vld [vmem:[%s1992 + $0x22] sm:$0xff]
      %v2061 = vld [vmem:[%s1992 + $0x32] sm:$0xff]
      %v2062 = vld [vmem:[%s1992 + $0x3a] sm:$0xff]
      %v2063 = vld [vmem:[%s1992 + $0x4a] sm:$0xff]
      %v2064 = vld [vmem:[%s1992 + $0x52] sm:$0xff]
      %v2065 = vld [vmem:[%s1992 + $0x62] sm:$0xff]
      %v2066 = vld [vmem:[%s1992 + $0x6a] sm:$0xff]
      %v2067 = vld [vmem:[%s1992 + $0x7a] sm:$0xff]
      %v2068 = vld [vmem:[%s1992 + $0x82] sm:$0xff]
      %v2069 = vld [vmem:[%s1992 + $0x92] sm:$0xff]
      %v2070 = vld [vmem:[%s1992 + $0x9a] sm:$0xff]
      %v2071 = vld [vmem:[%s1992 + $0xaa] sm:$0xff]
      %v2072 = vld [vmem:[%s1992 + $0xb2] sm:$0xff]
      %v2073 = vld [vmem:[%s1992 + $0xc2] sm:$0xff]
      %v2074 = vld [vmem:[%s1992 + $0xca] sm:$0xff]
      %v2075 = vld [vmem:[%s1992 + $0xda] sm:$0xff]
      %v2076 = vld [vmem:[%s1992 + $0xe2] sm:$0xff]
      %v2077 = vld [vmem:[%s1992 + $0xf2] sm:$0xff]
      %v2078 = vld [vmem:[%s1992 + $0xfa] sm:$0xff]
      %v2079 = vld [vmem:[%s1992 + $0x10a] sm:$0xff]
      %v2080 = vld [vmem:[%s1992 + $0x112] sm:$0xff]
      %v2081 = vld [vmem:[%s1992 + $0x122] sm:$0xff]
      %v2082 = vld [vmem:[%s1992 + $0x12a] sm:$0xff]
      %v2083 = vld [vmem:[%s1992 + $0x13a] sm:$0xff]
      %v2084 = vld [vmem:[%s1992 + $0x142] sm:$0xff]
      %v2085 = vld [vmem:[%s1992 + $0x152] sm:$0xff]
      %v2086 = vld [vmem:[%s1992 + $0x15a] sm:$0xff]
      %v2087 = vld [vmem:[%s1992 + $0x16a] sm:$0xff]
      %v2088 = vld [vmem:[%s1992 + $0x172] sm:$0xff]
      %2121 = vrot.lane.b32.xlu0 %v2025, 8
      %v2122 = vpop.permute.xlu0 %2121
      %2123 = vrot.lane.b32.xlu0 %v2026, 8
      %v2124 = vpop.permute.xlu0 %2123
      %2125 = vrot.lane.b32.xlu0 %v2027, 8
      %v2126 = vpop.permute.xlu0 %2125
      %2127 = vrot.lane.b32.xlu0 %v2028, 8
      %v2128 = vpop.permute.xlu0 %2127
      %2129 = vrot.lane.b32.xlu0 %v2029, 8
      %v2130 = vpop.permute.xlu0 %2129
      %2131 = vrot.lane.b32.xlu0 %v2030, 8
      %v2132 = vpop.permute.xlu0 %2131
      %2133 = vrot.lane.b32.xlu0 %v2031, 8
      %v2134 = vpop.permute.xlu0 %2133
      %2135 = vrot.lane.b32.xlu0 %v2032, 8
      %v2136 = vpop.permute.xlu0 %2135
      %2137 = vrot.lane.b32.xlu0 %v2033, 8
      %v2138 = vpop.permute.xlu0 %2137
      %2139 = vrot.lane.b32.xlu0 %v2034, 8
      %v2140 = vpop.permute.xlu0 %2139
      %2141 = vrot.lane.b32.xlu0 %v2035, 8
      %v2142 = vpop.permute.xlu0 %2141
      %2143 = vrot.lane.b32.xlu0 %v2036, 8
      %v2144 = vpop.permute.xlu0 %2143
      %2145 = vrot.lane.b32.xlu0 %v2037, 8
      %v2146 = vpop.permute.xlu0 %2145
      %2147 = vrot.lane.b32.xlu0 %v2038, 8
      %v2148 = vpop.permute.xlu0 %2147
      %2149 = vrot.lane.b32.xlu0 %v2039, 8
      %v2150 = vpop.permute.xlu0 %2149
      %2151 = vrot.lane.b32.xlu0 %v2040, 8
      %v2152 = vpop.permute.xlu0 %2151
      %2153 = vrot.lane.b32.xlu0 %v2041, 8
      %v2154 = vpop.permute.xlu0 %2153
      %2155 = vrot.lane.b32.xlu0 %v2042, 8
      %v2156 = vpop.permute.xlu0 %2155
      %2157 = vrot.lane.b32.xlu0 %v2043, 8
      %v2158 = vpop.permute.xlu0 %2157
      %2159 = vrot.lane.b32.xlu0 %v2044, 8
      %v2160 = vpop.permute.xlu0 %2159
      %2161 = vrot.lane.b32.xlu0 %v2045, 8
      %v2162 = vpop.permute.xlu0 %2161
      %2163 = vrot.lane.b32.xlu0 %v2046, 8
      %v2164 = vpop.permute.xlu0 %2163
      %2165 = vrot.lane.b32.xlu0 %v2047, 8
      %v2166 = vpop.permute.xlu0 %2165
      %2167 = vrot.lane.b32.xlu0 %v2048, 8
      %v2168 = vpop.permute.xlu0 %2167
      %2169 = vrot.lane.b32.xlu0 %v2049, 8
      %v2170 = vpop.permute.xlu0 %2169
      %2171 = vrot.lane.b32.xlu0 %v2050, 8
      %v2172 = vpop.permute.xlu0 %2171
      %2173 = vrot.lane.b32.xlu0 %v2051, 8
      %v2174 = vpop.permute.xlu0 %2173
      %2175 = vrot.lane.b32.xlu0 %v2052, 8
      %v2176 = vpop.permute.xlu0 %2175
      %2177 = vrot.lane.b32.xlu0 %v2053, 8
      %v2178 = vpop.permute.xlu0 %2177
      %2179 = vrot.lane.b32.xlu0 %v2054, 8
      %v2180 = vpop.permute.xlu0 %2179
      %2181 = vrot.lane.b32.xlu0 %v2055, 8
      %v2182 = vpop.permute.xlu0 %2181
      %2183 = vrot.lane.b32.xlu0 %v2056, 8
      %v2184 = vpop.permute.xlu0 %2183
      %2249 = vrot.lane.b32.xlu0 %v2057, 16
      %v2250 = vpop.permute.xlu0 %2249
      %2251 = vrot.lane.b32.xlu0 %v2058, 16
      %v2252 = vpop.permute.xlu0 %2251
      %2253 = vrot.lane.b32.xlu0 %v2059, 16
      %v2254 = vpop.permute.xlu0 %2253
      %2255 = vrot.lane.b32.xlu0 %v2060, 16
      %v2256 = vpop.permute.xlu0 %2255
      %2257 = vrot.lane.b32.xlu0 %v2061, 16
      %v2258 = vpop.permute.xlu0 %2257
      %2259 = vrot.lane.b32.xlu0 %v2062, 16
      %v2260 = vpop.permute.xlu0 %2259
      %2261 = vrot.lane.b32.xlu0 %v2063, 16
      %v2262 = vpop.permute.xlu0 %2261
      %2263 = vrot.lane.b32.xlu0 %v2064, 16
      %v2264 = vpop.permute.xlu0 %2263
      %2265 = vrot.lane.b32.xlu0 %v2065, 16
      %v2266 = vpop.permute.xlu0 %2265
      %2267 = vrot.lane.b32.xlu0 %v2066, 16
      %v2268 = vpop.permute.xlu0 %2267
      %2269 = vrot.lane.b32.xlu0 %v2067, 16
      %v2270 = vpop.permute.xlu0 %2269
      %2271 = vrot.lane.b32.xlu0 %v2068, 16
      %v2272 = vpop.permute.xlu0 %2271
      %2273 = vrot.lane.b32.xlu0 %v2069, 16
      %v2274 = vpop.permute.xlu0 %2273
      %2275 = vrot.lane.b32.xlu0 %v2070, 16
      %v2276 = vpop.permute.xlu0 %2275
      %2277 = vrot.lane.b32.xlu0 %v2071, 16
      %v2278 = vpop.permute.xlu0 %2277
      %2279 = vrot.lane.b32.xlu0 %v2072, 16
      %v2280 = vpop.permute.xlu0 %2279
      %2281 = vrot.lane.b32.xlu0 %v2073, 16
      %v2282 = vpop.permute.xlu0 %2281
      %2283 = vrot.lane.b32.xlu0 %v2074, 16
      %v2284 = vpop.permute.xlu0 %2283
      %2285 = vrot.lane.b32.xlu0 %v2075, 16
      %v2286 = vpop.permute.xlu0 %2285
      %2287 = vrot.lane.b32.xlu0 %v2076, 16
      %v2288 = vpop.permute.xlu0 %2287
      %2289 = vrot.lane.b32.xlu0 %v2077, 16
      %v2290 = vpop.permute.xlu0 %2289
      %2291 = vrot.lane.b32.xlu0 %v2078, 16
      %v2292 = vpop.permute.xlu0 %2291
      %2293 = vrot.lane.b32.xlu0 %v2079, 16
      %v2294 = vpop.permute.xlu0 %2293
      %2295 = vrot.lane.b32.xlu0 %v2080, 16
      %v2296 = vpop.permute.xlu0 %2295
      %2297 = vrot.lane.b32.xlu0 %v2081, 16
      %v2298 = vpop.permute.xlu0 %2297
      %2299 = vrot.lane.b32.xlu0 %v2082, 16
      %v2300 = vpop.permute.xlu0 %2299
      %2301 = vrot.lane.b32.xlu0 %v2083, 16
      %v2302 = vpop.permute.xlu0 %2301
      %2303 = vrot.lane.b32.xlu0 %v2084, 16
      %v2304 = vpop.permute.xlu0 %2303
      %2305 = vrot.lane.b32.xlu0 %v2085, 16
      %v2306 = vpop.permute.xlu0 %2305
      %2307 = vrot.lane.b32.xlu0 %v2086, 16
      %v2308 = vpop.permute.xlu0 %2307
      %2309 = vrot.lane.b32.xlu0 %v2087, 16
      %v2310 = vpop.permute.xlu0 %2309
      %2311 = vrot.lane.b32.xlu0 %v2088, 16
      %v2312 = vpop.permute.xlu0 %2311
      %v2345 = vsel %vm859, %v1993, %v2122
      %v2346 = vsel %vm859, %v1994, %v2124
      %v2347 = vsel %vm859, %v1995, %v2126
      %v2348 = vsel %vm859, %v1996, %v2128
      %v2349 = vsel %vm859, %v1997, %v2130
      %v2350 = vsel %vm859, %v1998, %v2132
      %v2351 = vsel %vm859, %v1999, %v2134
      %v2352 = vsel %vm859, %v2000, %v2136
      %v2353 = vsel %vm859, %v2001, %v2138
      %v2354 = vsel %vm859, %v2002, %v2140
      %v2355 = vsel %vm859, %v2003, %v2142
      %v2356 = vsel %vm859, %v2004, %v2144
      %v2357 = vsel %vm859, %v2005, %v2146
      %v2358 = vsel %vm859, %v2006, %v2148
      %v2359 = vsel %vm859, %v2007, %v2150
      %v2360 = vsel %vm859, %v2008, %v2152
      %v2361 = vsel %vm859, %v2009, %v2154
      %v2362 = vsel %vm859, %v2010, %v2156
      %v2363 = vsel %vm859, %v2011, %v2158
      %v2364 = vsel %vm859, %v2012, %v2160
      %v2365 = vsel %vm859, %v2013, %v2162
      %v2366 = vsel %vm859, %v2014, %v2164
      %v2367 = vsel %vm859, %v2015, %v2166
      %v2368 = vsel %vm859, %v2016, %v2168
      %v2369 = vsel %vm859, %v2017, %v2170
      %v2370 = vsel %vm859, %v2018, %v2172
      %v2371 = vsel %vm859, %v2019, %v2174
      %v2372 = vsel %vm859, %v2020, %v2176
      %v2373 = vsel %vm859, %v2021, %v2178
      %v2374 = vsel %vm859, %v2022, %v2180
      %v2375 = vsel %vm859, %v2023, %v2182
      %v2376 = vsel %vm859, %v2024, %v2184
      %v2377 = vsel %vm892, %v2345, %v2250
      %v2378 = vsel %vm892, %v2346, %v2252
      %v2379 = vsel %vm892, %v2347, %v2254
      %v2380 = vsel %vm892, %v2348, %v2256
      %v2381 = vsel %vm892, %v2349, %v2258
      %v2382 = vsel %vm892, %v2350, %v2260
      %v2383 = vsel %vm892, %v2351, %v2262
      %v2384 = vsel %vm892, %v2352, %v2264
      %v2385 = vsel %vm892, %v2353, %v2266
      %v2386 = vsel %vm892, %v2354, %v2268
      %v2387 = vsel %vm892, %v2355, %v2270
      %v2388 = vsel %vm892, %v2356, %v2272
      %v2389 = vsel %vm892, %v2357, %v2274
      %v2390 = vsel %vm892, %v2358, %v2276
      %v2391 = vsel %vm892, %v2359, %v2278
      %v2392 = vsel %vm892, %v2360, %v2280
      %v2393 = vsel %vm892, %v2361, %v2282
      %v2394 = vsel %vm892, %v2362, %v2284
      %v2395 = vsel %vm892, %v2363, %v2286
      %v2396 = vsel %vm892, %v2364, %v2288
      %v2397 = vsel %vm892, %v2365, %v2290
      %v2398 = vsel %vm892, %v2366, %v2292
      %v2399 = vsel %vm892, %v2367, %v2294
      %v2400 = vsel %vm892, %v2368, %v2296
      %v2401 = vsel %vm892, %v2369, %v2298
      %v2402 = vsel %vm892, %v2370, %v2300
      %v2403 = vsel %vm892, %v2371, %v2302
      %v2404 = vsel %vm892, %v2372, %v2304
      %v2405 = vsel %vm892, %v2373, %v2306
      %v2406 = vsel %vm892, %v2374, %v2308
      %v2407 = vsel %vm892, %v2375, %v2310
      %v2408 = vsel %vm892, %v2376, %v2312
      %s2409 = scalar_lea.vmem %s265, 48
      %v2410 = vld [vmem:[%s2409] sm:$0xff]
      %v2411 = vld [vmem:[%s2409 + $0x8] sm:$0xff]
      %v2412 = vld [vmem:[%s2409 + $0x10] sm:$0xff]
      %v2414 = vsel %vm1349, %v2377, 0
      %v2417 = vsel %vm1349, %v2378, 0
      %v2420 = vsel %vm1349, %v2379, 0
      %v2423 = vsel %vm1349, %v2380, 0
      %v2426 = vsel %vm1349, %v2381, 0
      %v2429 = vsel %vm1349, %v2382, 0
      %v2432 = vsel %vm1349, %v2383, 0
      %v2435 = vsel %vm1349, %v2384, 0
      %v2438 = vsel %vm1349, %v2385, 0
      %v2441 = vsel %vm1349, %v2386, 0
      %v2444 = vsel %vm1349, %v2387, 0
      %v2447 = vsel %vm1349, %v2388, 0
      %v2450 = vsel %vm1349, %v2389, 0
      %v2453 = vsel %vm1349, %v2390, 0
      %v2456 = vsel %vm1349, %v2391, 0
      %v2459 = vsel %vm1349, %v2392, 0
      %v2462 = vsel %vm1349, %v2393, 0
      %v2465 = vsel %vm1349, %v2394, 0
      %v2468 = vsel %vm1349, %v2395, 0
      %v2471 = vsel %vm1349, %v2396, 0
      %v2474 = vsel %vm1349, %v2397, 0
      %v2477 = vsel %vm1349, %v2398, 0
      %v2480 = vsel %vm1349, %v2399, 0
      %v2483 = vsel %vm1349, %v2400, 0
      %v2486 = vsel %vm1349, %v2401, 0
      %v2489 = vsel %vm1349, %v2402, 0
      %v2492 = vsel %vm1349, %v2403, 0
      %v2495 = vsel %vm1349, %v2404, 0
      %v2498 = vsel %vm1349, %v2405, 0
      %v2501 = vsel %vm1349, %v2406, 0
      %v2504 = vsel %vm1349, %v2407, 0
      %v2507 = vsel %vm1349, %v2408, 0
      %2509 = vmatprep.subr.mxu0 0.0
      %2510 = vmatpush1.msra.mxu0 %v2410
      %2511 = vmatprep.subr.mxu0 0.0
      %2512 = vmatpush1.msra.mxu0 %v2411
      %2513 = vmatprep.subr.mxu0 0.0
      %2514 = vmatpush1.msra.mxu0 %v2412
      %2515 = vmatprep.subr.mxu0 0.0
      %2516 = vmatpush1.msra.mxu0 0.0
      %2517 = vmatprep.subr.mxu0 0.0
      %2518 = vmatpush1.msra.mxu0 0.0
      %2519 = vmatprep.subr.mxu0 0.0
      %2520 = vmatpush1.msra.mxu0 0.0
      %2521 = vmatprep.subr.mxu0 0.0
      %2522 = vmatpush1.msra.mxu0 0.0
      %2523 = vmatprep.subr.mxu0 0.0
      %2524 = vmatpush1.msra.mxu0 0.0
      %2525 = vmatprep.subr.mxu0 0.0
      %2526 = vmatpush1.msra.mxu0 0.0
      %2527 = vmatprep.subr.mxu0 0.0
      %2528 = vmatpush1.msra.mxu0 0.0
      %2529 = vmatprep.subr.mxu0 0.0
      %2530 = vmatpush1.msra.mxu0 0.0
      %2531 = vmatprep.subr.mxu0 0.0
      %2532 = vmatpush1.msra.mxu0 0.0
      %2533 = vmatprep.subr.mxu0 0.0
      %2534 = vmatpush1.msra.mxu0 0.0
      %2535 = vmatprep.subr.mxu0 0.0
      %2536 = vmatpush1.msra.mxu0 0.0
      %2537 = vmatprep.subr.mxu0 0.0
      %2538 = vmatpush1.msra.mxu0 0.0
      %2539 = vmatprep.subr.mxu0 0.0
      %2540 = vmatpush1.msra.mxu0 0.0
      %2541 = vmatprep.subr.mxu0 0.0
      %2542 = vmatpush1.msra.mxu0 0.0
      %2543 = vmatprep.subr.mxu0 0.0
      %2544 = vmatpush1.msra.mxu0 0.0
      %2545 = vmatprep.subr.mxu0 0.0
      %2546 = vmatpush1.msra.mxu0 0.0
      %2547 = vmatprep.subr.mxu0 0.0
      %2548 = vmatpush1.msra.mxu0 0.0
      %2549 = vmatprep.subr.mxu0 0.0
      %2550 = vmatpush1.msra.mxu0 0.0
      %2551 = vmatprep.subr.mxu0 0.0
      %2552 = vmatpush1.msra.mxu0 0.0
      %2553 = vmatprep.subr.mxu0 0.0
      %2554 = vmatpush1.msra.mxu0 0.0
      %2555 = vmatprep.subr.mxu0 0.0
      %2556 = vmatpush1.msra.mxu0 0.0
      %2557 = vmatprep.subr.mxu0 0.0
      %2558 = vmatpush1.msra.mxu0 0.0
      %2559 = vmatprep.subr.mxu0 0.0
      %2560 = vmatpush1.msra.mxu0 0.0
      %2561 = vmatprep.subr.mxu0 0.0
      %2562 = vmatpush1.msra.mxu0 0.0
      %2563 = vmatprep.subr.mxu0 0.0
      %2564 = vmatpush1.msra.mxu0 0.0
      %2565 = vmatprep.subr.mxu0 0.0
      %2566 = vmatpush1.msra.mxu0 0.0
      %2567 = vmatprep.subr.mxu0 0.0
      %2568 = vmatpush1.msra.mxu0 0.0
      %2569 = vmatprep.subr.mxu0 0.0
      %2570 = vmatpush1.msra.mxu0 0.0
      %2571 = vmatprep.subr.mxu0 0.0
      %2572 = vmatpush1.msra.mxu0 0.0
      %2573 = vmatprep.mubr.f32.mxu0 0.0
      %2574 = vmatmul.mubr.f32.gmra.mrb[0].mxu0 %v2414
      %v2575 = vpop.f32.mrb[0].mxu0
      %v2576 = vadd.f32 0.0, %v2575
      %v2577 = vpop.f32.mrb[0].mxu0
      %2578 = vmatprep.mubr.f32.mxu0 0.0
      %2579 = vmatmul.mubr.f32.gmra.mrb[0].mxu0 %v2417
      %v2580 = vpop.f32.mrb[0].mxu0
      %v2581 = vadd.f32 0.0, %v2580
      %v2582 = vpop.f32.mrb[0].mxu0
      %2583 = vmatprep.mubr.f32.mxu0 0.0
      %2584 = vmatmul.mubr.f32.gmra.mrb[0].mxu0 %v2420
      %v2585 = vpop.f32.mrb[0].mxu0
      %v2586 = vadd.f32 0.0, %v2585
      %v2587 = vpop.f32.mrb[0].mxu0
      %2588 = vmatprep.mubr.f32.mxu0 0.0
      %2589 = vmatmul.mubr.f32.gmra.mrb[0].mxu0 %v2423
      %v2590 = vpop.f32.mrb[0].mxu0
      %v2591 = vadd.f32 0.0, %v2590
      %v2592 = vpop.f32.mrb[0].mxu0
      %2593 = vmatprep.mubr.f32.mxu0 0.0
      %2594 = vmatmul.mubr.f32.gmra.mrb[0].mxu0 %v2426
      %v2595 = vpop.f32.mrb[0].mxu0
      %v2596 = vadd.f32 0.0, %v2595
      %v2597 = vpop.f32.mrb[0].mxu0
      %2598 = vmatprep.mubr.f32.mxu0 0.0
      %2599 = vmatmul.mubr.f32.gmra.mrb[0].mxu0 %v2429
      %v2600 = vpop.f32.mrb[0].mxu0
      %v2601 = vadd.f32 0.0, %v2600
      %v2602 = vpop.f32.mrb[0].mxu0
      %2603 = vmatprep.mubr.f32.mxu0 0.0
      %2604 = vmatmul.mubr.f32.gmra.mrb[0].mxu0 %v2432
      %v2605 = vpop.f32.mrb[0].mxu0
      %v2606 = vadd.f32 0.0, %v2605
      %v2607 = vpop.f32.mrb[0].mxu0
      %2608 = vmatprep.mubr.f32.mxu0 0.0
      %2609 = vmatmul.mubr.f32.gmra.mrb[0].mxu0 %v2435
      %v2610 = vpop.f32.mrb[0].mxu0
      %v2611 = vadd.f32 0.0, %v2610
      %v2612 = vpop.f32.mrb[0].mxu0
      %2613 = vmatprep.mubr.f32.mxu0 0.0
      %2614 = vmatmul.mubr.f32.gmra.mrb[0].mxu0 %v2438
      %v2615 = vpop.f32.mrb[0].mxu0
      %v2616 = vadd.f32 0.0, %v2615
      %v2617 = vpop.f32.mrb[0].mxu0
      %2618 = vmatprep.mubr.f32.mxu0 0.0
      %2619 = vmatmul.mubr.f32.gmra.mrb[0].mxu0 %v2441
      %v2620 = vpop.f32.mrb[0].mxu0
      %v2621 = vadd.f32 0.0, %v2620
      %v2622 = vpop.f32.mrb[0].mxu0
      %2623 = vmatprep.mubr.f32.mxu0 0.0
      %2624 = vmatmul.mubr.f32.gmra.mrb[0].mxu0 %v2444
      %v2625 = vpop.f32.mrb[0].mxu0
      %v2626 = vadd.f32 0.0, %v2625
      %v2627 = vpop.f32.mrb[0].mxu0
      %2628 = vmatprep.mubr.f32.mxu0 0.0
      %2629 = vmatmul.mubr.f32.gmra.mrb[0].mxu0 %v2447
      %v2630 = vpop.f32.mrb[0].mxu0
      %v2631 = vadd.f32 0.0, %v2630
      %v2632 = vpop.f32.mrb[0].mxu0
      %2633 = vmatprep.mubr.f32.mxu0 0.0
      %2634 = vmatmul.mubr.f32.gmra.mrb[0].mxu0 %v2450
      %v2635 = vpop.f32.mrb[0].mxu0
      %v2636 = vadd.f32 0.0, %v2635
      %v2637 = vpop.f32.mrb[0].mxu0
      %2638 = vmatprep.mubr.f32.mxu0 0.0
      %2639 = vmatmul.mubr.f32.gmra.mrb[0].mxu0 %v2453
      %v2640 = vpop.f32.mrb[0].mxu0
      %v2641 = vadd.f32 0.0, %v2640
      %v2642 = vpop.f32.mrb[0].mxu0
      %2643 = vmatprep.mubr.f32.mxu0 0.0
      %2644 = vmatmul.mubr.f32.gmra.mrb[0].mxu0 %v2456
      %v2645 = vpop.f32.mrb[0].mxu0
      %v2646 = vadd.f32 0.0, %v2645
      %v2647 = vpop.f32.mrb[0].mxu0
      %2648 = vmatprep.mubr.f32.mxu0 0.0
      %2649 = vmatmul.mubr.f32.gmra.mrb[0].mxu0 %v2459
      %v2650 = vpop.f32.mrb[0].mxu0
      %v2651 = vadd.f32 0.0, %v2650
      %v2652 = vpop.f32.mrb[0].mxu0
      %2653 = vmatprep.mubr.f32.mxu0 0.0
      %2654 = vmatmul.mubr.f32.gmra.mrb[0].mxu0 %v2462
      %v2655 = vpop.f32.mrb[0].mxu0
      %v2656 = vadd.f32 0.0, %v2655
      %v2657 = vpop.f32.mrb[0].mxu0
      %2658 = vmatprep.mubr.f32.mxu0 0.0
      %2659 = vmatmul.mubr.f32.gmra.mrb[0].mxu0 %v2465
      %v2660 = vpop.f32.mrb[0].mxu0
      %v2661 = vadd.f32 0.0, %v2660
      %v2662 = vpop.f32.mrb[0].mxu0
      %2663 = vmatprep.mubr.f32.mxu0 0.0
      %2664 = vmatmul.mubr.f32.gmra.mrb[0].mxu0 %v2468
      %v2665 = vpop.f32.mrb[0].mxu0
      %v2666 = vadd.f32 0.0, %v2665
      %v2667 = vpop.f32.mrb[0].mxu0
      %2668 = vmatprep.mubr.f32.mxu0 0.0
      %2669 = vmatmul.mubr.f32.gmra.mrb[0].mxu0 %v2471
      %v2670 = vpop.f32.mrb[0].mxu0
      %v2671 = vadd.f32 0.0, %v2670
      %v2672 = vpop.f32.mrb[0].mxu0
      %2673 = vmatprep.mubr.f32.mxu0 0.0
      %2674 = vmatmul.mubr.f32.gmra.mrb[0].mxu0 %v2474
      %v2675 = vpop.f32.mrb[0].mxu0
      %v2676 = vadd.f32 0.0, %v2675
      %v2677 = vpop.f32.mrb[0].mxu0
      %2678 = vmatprep.mubr.f32.mxu0 0.0
      %2679 = vmatmul.mubr.f32.gmra.mrb[0].mxu0 %v2477
      %v2680 = vpop.f32.mrb[0].mxu0
      %v2681 = vadd.f32 0.0, %v2680
      %v2682 = vpop.f32.mrb[0].mxu0
      %2683 = vmatprep.mubr.f32.mxu0 0.0
      %2684 = vmatmul.mubr.f32.gmra.mrb[0].mxu0 %v2480
      %v2685 = vpop.f32.mrb[0].mxu0
      %v2686 = vadd.f32 0.0, %v2685
      %v2687 = vpop.f32.mrb[0].mxu0
      %2688 = vmatprep.mubr.f32.mxu0 0.0
      %2689 = vmatmul.mubr.f32.gmra.mrb[0].mxu0 %v2483
      %v2690 = vpop.f32.mrb[0].mxu0
      %v2691 = vadd.f32 0.0, %v2690
      %v2692 = vpop.f32.mrb[0].mxu0
      %2693 = vmatprep.mubr.f32.mxu0 0.0
      %2694 = vmatmul.mubr.f32.gmra.mrb[0].mxu0 %v2486
      %v2695 = vpop.f32.mrb[0].mxu0
      %v2696 = vadd.f32 0.0, %v2695
      %v2697 = vpop.f32.mrb[0].mxu0
      %2698 = vmatprep.mubr.f32.mxu0 0.0
      %2699 = vmatmul.mubr.f32.gmra.mrb[0].mxu0 %v2489
      %v2700 = vpop.f32.mrb[0].mxu0
      %v2701 = vadd.f32 0.0, %v2700
      %v2702 = vpop.f32.mrb[0].mxu0
      %2703 = vmatprep.mubr.f32.mxu0 0.0
      %2704 = vmatmul.mubr.f32.gmra.mrb[0].mxu0 %v2492
      %v2705 = vpop.f32.mrb[0].mxu0
      %v2706 = vadd.f32 0.0, %v2705
      %v2707 = vpop.f32.mrb[0].mxu0
      %2708 = vmatprep.mubr.f32.mxu0 0.0
      %2709 = vmatmul.mubr.f32.gmra.mrb[0].mxu0 %v2495
      %v2710 = vpop.f32.mrb[0].mxu0
      %v2711 = vadd.f32 0.0, %v2710
      %v2712 = vpop.f32.mrb[0].mxu0
      %2713 = vmatprep.mubr.f32.mxu0 0.0
      %2714 = vmatmul.mubr.f32.gmra.mrb[0].mxu0 %v2498
      %v2715 = vpop.f32.mrb[0].mxu0
      %v2716 = vadd.f32 0.0, %v2715
      %v2717 = vpop.f32.mrb[0].mxu0
      %2718 = vmatprep.mubr.f32.mxu0 0.0
      %2719 = vmatmul.mubr.f32.gmra.mrb[0].mxu0 %v2501
      %v2720 = vpop.f32.mrb[0].mxu0
      %v2721 = vadd.f32 0.0, %v2720
      %v2722 = vpop.f32.mrb[0].mxu0
      %2723 = vmatprep.mubr.f32.mxu0 0.0
      %2724 = vmatmul.mubr.f32.gmra.mrb[0].mxu0 %v2504
      %v2725 = vpop.f32.mrb[0].mxu0
      %v2726 = vadd.f32 0.0, %v2725
      %v2727 = vpop.f32.mrb[0].mxu0
      %2728 = vmatprep.mubr.f32.mxu0 0.0
      %2729 = vmatmul.mubr.f32.gmra.mrb[0].mxu0 %v2507
      %v2730 = vpop.f32.mrb[0].mxu0
      %v2731 = vadd.f32 0.0, %v2730
      %v2732 = vpop.f32.mrb[0].mxu0
      %2733 = vdwg.mxu0
      %v2734 = vadd.f32 %v1834, %v2576
      %v2735 = vadd.f32 %v1839, %v2581
      %v2736 = vadd.f32 %v1844, %v2586
      %v2737 = vadd.f32 %v1849, %v2591
      %v2738 = vadd.f32 %v1854, %v2596
      %v2739 = vadd.f32 %v1859, %v2601
      %v2740 = vadd.f32 %v1864, %v2606
      %v2741 = vadd.f32 %v1869, %v2611
      %v2742 = vadd.f32 %v1874, %v2616
      %v2743 = vadd.f32 %v1879, %v2621
      %v2744 = vadd.f32 %v1884, %v2626
      %v2745 = vadd.f32 %v1889, %v2631
      %v2746 = vadd.f32 %v1894, %v2636
      %v2747 = vadd.f32 %v1899, %v2641
      %v2748 = vadd.f32 %v1904, %v2646
      %v2749 = vadd.f32 %v1909, %v2651
      %v2750 = vadd.f32 %v1914, %v2656
      %v2751 = vadd.f32 %v1919, %v2661
      %v2752 = vadd.f32 %v1924, %v2666
      %v2753 = vadd.f32 %v1929, %v2671
      %v2754 = vadd.f32 %v1934, %v2676
      %v2755 = vadd.f32 %v1939, %v2681
      %v2756 = vadd.f32 %v1944, %v2686
      %v2757 = vadd.f32 %v1949, %v2691
      %v2758 = vadd.f32 %v1954, %v2696
      %v2759 = vadd.f32 %v1959, %v2701
      %v2760 = vadd.f32 %v1964, %v2706
      %v2761 = vadd.f32 %v1969, %v2711
      %v2762 = vadd.f32 %v1974, %v2716
      %v2763 = vadd.f32 %v1979, %v2721
      %v2764 = vadd.f32 %v1984, %v2726
      %v2765 = vadd.f32 %v1989, %v2731
      %2766 = vst.msk [vmem:[%s273] sm:$0xff] %vm859, %v2734
      %2767 = vst.msk [vmem:[%s273 + $0x8] sm:$0xff] %vm859, %v2735
      %2768 = vst.msk [vmem:[%s273 + $0x10] sm:$0xff] %vm859, %v2736
      %2769 = vst.msk [vmem:[%s273 + $0x18] sm:$0xff] %vm859, %v2737
      %2770 = vst.msk [vmem:[%s273 + $0x20] sm:$0xff] %vm859, %v2738
      %2771 = vst.msk [vmem:[%s273 + $0x28] sm:$0xff] %vm859, %v2739
      %2772 = vst.msk [vmem:[%s273 + $0x30] sm:$0xff] %vm859, %v2740
      %2773 = vst.msk [vmem:[%s273 + $0x38] sm:$0xff] %vm859, %v2741
      %2774 = vst.msk [vmem:[%s273 + $0x40] sm:$0xff] %vm859, %v2742
      %2775 = vst.msk [vmem:[%s273 + $0x48] sm:$0xff] %vm859, %v2743
      %2776 = vst.msk [vmem:[%s273 + $0x50] sm:$0xff] %vm859, %v2744
      %2777 = vst.msk [vmem:[%s273 + $0x58] sm:$0xff] %vm859, %v2745
      %2778 = vst.msk [vmem:[%s273 + $0x60] sm:$0xff] %vm859, %v2746
      %2779 = vst.msk [vmem:[%s273 + $0x68] sm:$0xff] %vm859, %v2747
      %2780 = vst.msk [vmem:[%s273 + $0x70] sm:$0xff] %vm859, %v2748
      %2781 = vst.msk [vmem:[%s273 + $0x78] sm:$0xff] %vm859, %v2749
      %2782 = vst.msk [vmem:[%s273 + $0x80] sm:$0xff] %vm859, %v2750
      %2783 = vst.msk [vmem:[%s273 + $0x88] sm:$0xff] %vm859, %v2751
      %2784 = vst.msk [vmem:[%s273 + $0x90] sm:$0xff] %vm859, %v2752
      %2785 = vst.msk [vmem:[%s273 + $0x98] sm:$0xff] %vm859, %v2753
      %2786 = vst.msk [vmem:[%s273 + $0xa0] sm:$0xff] %vm859, %v2754
      %2787 = vst.msk [vmem:[%s273 + $0xa8] sm:$0xff] %vm859, %v2755
      %2788 = vst.msk [vmem:[%s273 + $0xb0] sm:$0xff] %vm859, %v2756
      %2789 = vst.msk [vmem:[%s273 + $0xb8] sm:$0xff] %vm859, %v2757
      %2790 = vst.msk [vmem:[%s273 + $0xc0] sm:$0xff] %vm859, %v2758
      %2791 = vst.msk [vmem:[%s273 + $0xc8] sm:$0xff] %vm859, %v2759
      %2792 = vst.msk [vmem:[%s273 + $0xd0] sm:$0xff] %vm859, %v2760
      %2793 = vst.msk [vmem:[%s273 + $0xd8] sm:$0xff] %vm859, %v2761
      %2794 = vst.msk [vmem:[%s273 + $0xe0] sm:$0xff] %vm859, %v2762
      %2795 = vst.msk [vmem:[%s273 + $0xe8] sm:$0xff] %vm859, %v2763
      %2796 = vst.msk [vmem:[%s273 + $0xf0] sm:$0xff] %vm859, %v2764
      %2797 = vst.msk [vmem:[%s273 + $0xf8] sm:$0xff] %vm859, %v2765
      %v2798 = vsel %vm859, %v2734, 0.0
      %v2799 = vsel %vm859, %v2735, 0.0
      %v2800 = vadd.f32 %v2798, %v2799
      %v2801 = vsel %vm859, %v2736, 0.0
      %v2802 = vadd.f32 %v2800, %v2801
      %v2803 = vsel %vm859, %v2737, 0.0
      %v2804 = vadd.f32 %v2802, %v2803
      %v2805 = vsel %vm859, %v2738, 0.0
      %v2806 = vadd.f32 %v2804, %v2805
      %v2807 = vsel %vm859, %v2739, 0.0
      %v2808 = vadd.f32 %v2806, %v2807
      %v2809 = vsel %vm859, %v2740, 0.0
      %v2810 = vadd.f32 %v2808, %v2809
      %v2811 = vsel %vm859, %v2741, 0.0
      %v2812 = vadd.f32 %v2810, %v2811
      %v2813 = vsel %vm859, %v2742, 0.0
      %v2814 = vadd.f32 %v2812, %v2813
      %v2815 = vsel %vm859, %v2743, 0.0
      %v2816 = vadd.f32 %v2814, %v2815
      %v2817 = vsel %vm859, %v2744, 0.0
      %v2818 = vadd.f32 %v2816, %v2817
      %v2819 = vsel %vm859, %v2745, 0.0
      %v2820 = vadd.f32 %v2818, %v2819
      %v2821 = vsel %vm859, %v2746, 0.0
      %v2822 = vadd.f32 %v2820, %v2821
      %v2823 = vsel %vm859, %v2747, 0.0
      %v2824 = vadd.f32 %v2822, %v2823
      %v2825 = vsel %vm859, %v2748, 0.0
      %v2826 = vadd.f32 %v2824, %v2825
      %v2827 = vsel %vm859, %v2749, 0.0
      %v2828 = vadd.f32 %v2826, %v2827
      %v2829 = vsel %vm859, %v2750, 0.0
      %v2830 = vadd.f32 %v2828, %v2829
      %v2831 = vsel %vm859, %v2751, 0.0
      %v2832 = vadd.f32 %v2830, %v2831
      %v2833 = vsel %vm859, %v2752, 0.0
      %v2834 = vadd.f32 %v2832, %v2833
      %v2835 = vsel %vm859, %v2753, 0.0
      %v2836 = vadd.f32 %v2834, %v2835
      %v2837 = vsel %vm859, %v2754, 0.0
      %v2838 = vadd.f32 %v2836, %v2837
      %v2839 = vsel %vm859, %v2755, 0.0
      %v2840 = vadd.f32 %v2838, %v2839
      %v2841 = vsel %vm859, %v2756, 0.0
      %v2842 = vadd.f32 %v2840, %v2841
      %v2843 = vsel %vm859, %v2757, 0.0
      %v2844 = vadd.f32 %v2842, %v2843
      %v2845 = vsel %vm859, %v2758, 0.0
      %v2846 = vadd.f32 %v2844, %v2845
      %v2847 = vsel %vm859, %v2759, 0.0
      %v2848 = vadd.f32 %v2846, %v2847
      %v2849 = vsel %vm859, %v2760, 0.0
      %v2850 = vadd.f32 %v2848, %v2849
      %v2851 = vsel %vm859, %v2761, 0.0
      %v2852 = vadd.f32 %v2850, %v2851
      %v2853 = vsel %vm859, %v2762, 0.0
      %v2854 = vadd.f32 %v2852, %v2853
      %v2855 = vsel %vm859, %v2763, 0.0
      %v2856 = vadd.f32 %v2854, %v2855
      %v2857 = vsel %vm859, %v2764, 0.0
      %v2858 = vadd.f32 %v2856, %v2857
      %v2859 = vsel %vm859, %v2765, 0.0
      %v2860 = vadd.f32 %v2858, %v2859
      %v2861 = vrot.slane %v2860, 4
      %v2862 = vadd.f32 %v2860, %v2861
      %v2863 = vrot.slane %v2862, 2
      %v2864 = vadd.f32 %v2862, %v2863
      %v2865 = vrot.slane %v2864, 1
      %v2866 = vadd.f32 %v2864, %v2865
      %vm2867 = vcmask 57344
      %2868 = vst.msk [vmem:[%s280] sm:$0x1] %vm2867, %v2866
      %v2869 = vmul.f32 %v2734, %v2734
      %v2870 = vmul.f32 %v2735, %v2735
      %v2871 = vmul.f32 %v2736, %v2736
      %v2872 = vmul.f32 %v2737, %v2737
      %v2873 = vmul.f32 %v2738, %v2738
      %v2874 = vmul.f32 %v2739, %v2739
      %v2875 = vmul.f32 %v2740, %v2740
      %v2876 = vmul.f32 %v2741, %v2741
      %v2877 = vmul.f32 %v2742, %v2742
      %v2878 = vmul.f32 %v2743, %v2743
      %v2879 = vmul.f32 %v2744, %v2744
      %v2880 = vmul.f32 %v2745, %v2745
      %v2881 = vmul.f32 %v2746, %v2746
      %v2882 = vmul.f32 %v2747, %v2747
      %v2883 = vmul.f32 %v2748, %v2748
      %v2884 = vmul.f32 %v2749, %v2749
      %v2885 = vmul.f32 %v2750, %v2750
      %v2886 = vmul.f32 %v2751, %v2751
      %v2887 = vmul.f32 %v2752, %v2752
      %v2888 = vmul.f32 %v2753, %v2753
      %v2889 = vmul.f32 %v2754, %v2754
      %v2890 = vmul.f32 %v2755, %v2755
      %v2891 = vmul.f32 %v2756, %v2756
      %v2892 = vmul.f32 %v2757, %v2757
      %v2893 = vmul.f32 %v2758, %v2758
      %v2894 = vmul.f32 %v2759, %v2759
      %v2895 = vmul.f32 %v2760, %v2760
      %v2896 = vmul.f32 %v2761, %v2761
      %v2897 = vmul.f32 %v2762, %v2762
      %v2898 = vmul.f32 %v2763, %v2763
      %v2899 = vmul.f32 %v2764, %v2764
      %v2900 = vmul.f32 %v2765, %v2765
      %v2901 = vsel %vm859, %v2869, 0.0
      %v2902 = vsel %vm859, %v2870, 0.0
      %v2903 = vadd.f32 %v2901, %v2902
      %v2904 = vsel %vm859, %v2871, 0.0
      %v2905 = vadd.f32 %v2903, %v2904
      %v2906 = vsel %vm859, %v2872, 0.0
      %v2907 = vadd.f32 %v2905, %v2906
      %v2908 = vsel %vm859, %v2873, 0.0
      %v2909 = vadd.f32 %v2907, %v2908
      %v2910 = vsel %vm859, %v2874, 0.0
      %v2911 = vadd.f32 %v2909, %v2910
      %v2912 = vsel %vm859, %v2875, 0.0
      %v2913 = vadd.f32 %v2911, %v2912
      %v2914 = vsel %vm859, %v2876, 0.0
      %v2915 = vadd.f32 %v2913, %v2914
      %v2916 = vsel %vm859, %v2877, 0.0
      %v2917 = vadd.f32 %v2915, %v2916
      %v2918 = vsel %vm859, %v2878, 0.0
      %v2919 = vadd.f32 %v2917, %v2918
      %v2920 = vsel %vm859, %v2879, 0.0
      %v2921 = vadd.f32 %v2919, %v2920
      %v2922 = vsel %vm859, %v2880, 0.0
      %v2923 = vadd.f32 %v2921, %v2922
      %v2924 = vsel %vm859, %v2881, 0.0
      %v2925 = vadd.f32 %v2923, %v2924
      %v2926 = vsel %vm859, %v2882, 0.0
      %v2927 = vadd.f32 %v2925, %v2926
      %v2928 = vsel %vm859, %v2883, 0.0
      %v2929 = vadd.f32 %v2927, %v2928
      %v2930 = vsel %vm859, %v2884, 0.0
      %v2931 = vadd.f32 %v2929, %v2930
      %v2932 = vsel %vm859, %v2885, 0.0
      %v2933 = vadd.f32 %v2931, %v2932
      %v2934 = vsel %vm859, %v2886, 0.0
      %v2935 = vadd.f32 %v2933, %v2934
      %v2936 = vsel %vm859, %v2887, 0.0
      %v2937 = vadd.f32 %v2935, %v2936
      %v2938 = vsel %vm859, %v2888, 0.0
      %v2939 = vadd.f32 %v2937, %v2938
      %v2940 = vsel %vm859, %v2889, 0.0
      %v2941 = vadd.f32 %v2939, %v2940
      %v2942 = vsel %vm859, %v2890, 0.0
      %v2943 = vadd.f32 %v2941, %v2942
      %v2944 = vsel %vm859, %v2891, 0.0
      %v2945 = vadd.f32 %v2943, %v2944
      %v2946 = vsel %vm859, %v2892, 0.0
      %v2947 = vadd.f32 %v2945, %v2946
      %v2948 = vsel %vm859, %v2893, 0.0
      %v2949 = vadd.f32 %v2947, %v2948
      %v2950 = vsel %vm859, %v2894, 0.0
      %v2951 = vadd.f32 %v2949, %v2950
      %v2952 = vsel %vm859, %v2895, 0.0
      %v2953 = vadd.f32 %v2951, %v2952
      %v2954 = vsel %vm859, %v2896, 0.0
      %v2955 = vadd.f32 %v2953, %v2954
      %v2956 = vsel %vm859, %v2897, 0.0
      %v2957 = vadd.f32 %v2955, %v2956
      %v2958 = vsel %vm859, %v2898, 0.0
      %v2959 = vadd.f32 %v2957, %v2958
      %v2960 = vsel %vm859, %v2899, 0.0
      %v2961 = vadd.f32 %v2959, %v2960
      %v2962 = vsel %vm859, %v2900, 0.0
      %v2963 = vadd.f32 %v2961, %v2962
      %v2964 = vrot.slane %v2963, 4
      %v2965 = vadd.f32 %v2963, %v2964
      %v2966 = vrot.slane %v2965, 2
      %v2967 = vadd.f32 %v2965, %v2966
      %v2968 = vrot.slane %v2967, 1
      %v2969 = vadd.f32 %v2967, %v2968
      %2970 = vst.msk [vmem:[%s280 + $0x1] sm:$0x1] %vm2867, %v2969
      %p2971 = scmp.lt.s32.totalorder %s21, 1
      %s2972 = scalar_select %p2971, %s21, 1
      %p2973 = scmp.lt.s32.totalorder %s22, 0
      %s2974 = scalar_select %p2973, %s22, 0
      %s2975 = smul.addr %s2972, 32
      %s2976 = sadd.s32 %s2974, %s2975
      %s2977 = smul.addr %s2976, 8
      %s2978 = scalar_lea.vmem %s4, %s2977
      %p2979 = scmp.lt.s32.totalorder %s21, 1
      %s2980 = scalar_select %p2979, %s21, 1
      %p2981 = scmp.lt.s32.totalorder %s22, 0
      %s2982 = scalar_select %p2981, %s22, 0
      %s2983 = sadd.s32 %s2982, %s2980
      %s2984 = smul.addr %s2983, 2
      %s2985 = scalar_lea.vmem %s5, %s2984
      // Predicated region
      $region41: #{block_forward.5} parent=35 // pred_check
        %p2986 = pneg %p143
      $region42: #{block_forward.5} parent=35 // pred_check_branch
        %2988 = sbr.rel (%p2986) target = $region44
      $region43: #{block_forward.5} parent=35 // pred_region
        _
      $region44: #{block_forward.5} parent=35 // pred_fallthru
        _
      // Predicated region
      $region45: #{block_forward.5} parent=35 // pred_check
        %p2989 = pneg %p171
      $region46: #{block_forward.5} parent=35 // pred_check_branch
        %2991 = sbr.rel (%p2989) target = $region48
      $region47: #{block_forward.5} parent=35 // pred_region
        _
      $region48: #{block_forward.5} parent=35 // pred_fallthru
        _
    $region36: #{block_forward.5} parent=5 // pred_fallthru
      _
    %p2992 = scmp.le.s32.totalorder 2, %s12
    // Predicated region
    $region49: #{block_forward.5} parent=5 // pred_check
      %p2993 = pneg %p2992
    $region50: #{block_forward.5} parent=5 // pred_check_branch
      %2995 = sbr.rel (%p2993) target = $region52
    $region51: #{block_forward.5} parent=5 // pred_region
      %s2996 = ssub.s32 %s12, 2
      // Predicated region
      $region53: #{block_forward.5} parent=51 // pred_check
        %p2997 = pneg %p149
      $region54: #{block_forward.5} parent=51 // pred_check_branch
        %2999 = sbr.rel (%p2997) target = $region56
      $region55: #{block_forward.5} parent=51 // pred_region
        %p3000 = scmp.lt.s32.totalorder %s23, 1
        %s3001 = scalar_select %p3000, %s23, 1
        %p3002 = scmp.lt.s32.totalorder %s24, 0
        %s3003 = scalar_select %p3002, %s24, 0
        %s3004 = smul.addr %s3001, 32
        %s3005 = sadd.s32 %s3003, %s3004
        %s3006 = smul.addr %s3005, 8
        %s3007 = scalar_lea.vmem %s4, %s3006
      $region56: #{block_forward.5} parent=51 // pred_fallthru
        _
      // Predicated region
      $region57: #{block_forward.5} parent=51 // pred_check
        %p3008 = pneg %p177
      $region58: #{block_forward.5} parent=51 // pred_check_branch
        %3010 = sbr.rel (%p3008) target = $region60
      $region59: #{block_forward.5} parent=51 // pred_region
        %p3011 = scmp.lt.s32.totalorder %s23, 1
        %s3012 = scalar_select %p3011, %s23, 1
        %p3013 = scmp.lt.s32.totalorder %s24, 0
        %s3014 = scalar_select %p3013, %s24, 0
        %s3015 = sadd.s32 %s3014, %s3012
        %s3016 = smul.addr %s3015, 2
        %s3017 = scalar_lea.vmem %s5, %s3016
      $region60: #{block_forward.5} parent=51 // pred_fallthru
        _
    $region52: #{block_forward.5} parent=5 // pred_fallthru
      _
  $region6: #{block_forward.5} parent=0 // loop_footer
    %s16 = sadd.s32 1, %s12
  $region7: #{block_forward.5} parent=0 // loop_footer_branch
    %11 = sbr.rel target = $region3
  $region8: #{block_forward.5} parent=0 // loop_exit
    _

</llo_original>
